<compile_context>
chip_gen: v7x
topology: tpu7x:2x2x1
jax: 0.10.0
libtpu: 0.0.40
codegen_flags: <defaults>
</compile_context>

<pallas_src>
import functools

import jax
import jax.numpy as jnp
from jax.experimental import pallas as pl
from jax.experimental.pallas import tpu as pltpu

EPS = 1e-5  # PyTorch BatchNorm2d default


# --------------------------------------------------------------------------
# small helpers
# --------------------------------------------------------------------------
def _round_up(x, m):
    return ((x + m - 1) // m) * m


def _matmul_tile_m(M):
    for t in (512, 256, 128):
        if M >= t:
            return t
    return _round_up(max(M, 8), 8)


def _elem_tile_m(M):
    for t in (2048, 1024, 512, 256, 128, 64, 32, 16, 8):
        if M >= t and M % t == 0:
            return t
    return M


def _fold_factor(M, C):
    """Fold spatial positions into lanes when C < 128 (lane-dense stores)."""
    if C < 128 and 128 % C == 0:
        f = 128 // C
        if M % f == 0:
            return f
    return 1


# --------------------------------------------------------------------------
# Pallas kernels
# --------------------------------------------------------------------------
def _matmul_stats_kernel(a_ref, w_ref, o_ref, s_ref):
    """bf16 x bf16 -> f32 MXU matmul; epilogue emits per-tile BN sum / sumsq."""
    acc = jnp.dot(a_ref[...], w_ref[...], preferred_element_type=jnp.float32)
    o_ref[...] = acc.astype(o_ref.dtype)
    ssum = jnp.sum(acc, axis=0, keepdims=True)
    ssq = jnp.sum(acc * acc, axis=0, keepdims=True)
    s_ref[...] = jnp.concatenate([ssum, ssq], axis=0)[None]


def _bn_apply_kernel(x_ref, scale_ref, shift_ref, o_ref, *, relu):
    y = x_ref[...].astype(jnp.float32) * scale_ref[...] + shift_ref[...]
    if relu:
        y = jnp.maximum(y, 0.0)
    o_ref[...] = y.astype(o_ref.dtype)


def _bn_apply_add_relu_kernel(x_ref, r_ref, scale_ref, shift_ref, o_ref):
    y = x_ref[...].astype(jnp.float32) * scale_ref[...] + shift_ref[...]
    y = y + r_ref[...].astype(jnp.float32)
    o_ref[...] = jnp.maximum(y, 0.0).astype(o_ref.dtype)


def _max9_kernel(*refs):
    o_ref = refs[-1]
    m = refs[0][...].astype(jnp.float32)
    for r in refs[1:-1]:
        m = jnp.maximum(m, r[...].astype(jnp.float32))
    o_ref[...] = m.astype(o_ref.dtype)


def _head_kernel(x_ref, w_ref, b_ref, o_ref):
    """Adaptive avg pool to (1,1) + fused fc_mu/fc_logvar for one batch element."""
    x = x_ref[0].astype(jnp.float32)                       # (HW, C)
    pooled = jnp.mean(x, axis=0, keepdims=True)            # (1, C)
    out = jnp.dot(pooled, w_ref[...], preferred_element_type=jnp.float32) + b_ref[...]
    o_ref[...] = out[None]                                 # (1, 1, 2L)


# --------------------------------------------------------------------------
# Pallas wrappers
# --------------------------------------------------------------------------
def _conv_matmul_stats(a, w, tm):
    """a: (Mp, K) bf16, w: (K, Cout) bf16. -> (bf16 (Mp,Cout), f32 (gm,2,Cout))."""
    Mp, K = a.shape
    Cout = w.shape[1]
    gm = Mp // tm
    return pl.pallas_call(
        _matmul_stats_kernel,
        out_shape=(
            jax.ShapeDtypeStruct((Mp, Cout), jnp.bfloat16),
            jax.ShapeDtypeStruct((gm, 2, Cout), jnp.float32),
        ),
        grid=(gm,),
        in_specs=[
            pl.BlockSpec((tm, K), lambda i: (i, 0)),
            pl.BlockSpec((K, Cout), lambda i: (0, 0)),
        ],
        out_specs=(
            pl.BlockSpec((tm, Cout), lambda i: (i, 0)),
            pl.BlockSpec((1, 2, Cout), lambda i: (i, 0, 0)),
        ),
        compiler_params=pltpu.CompilerParams(dimension_semantics=("parallel",)),
    )(a, w)


def _bn_apply(x2d, scale, shift, *, relu, residual=None):
    """Tiled normalize (+ReLU / +residual-add-ReLU). x2d: (Mp, C) bf16 -> bf16."""
    Mp, C = x2d.shape
    f = _fold_factor(Mp, C)
    if f > 1:  # lane-fold narrow-channel activations: (Mp, C) -> (Mp/f, C*f)
        x2d = x2d.reshape(Mp // f, C * f)
        scale = jnp.tile(scale, f)
        shift = jnp.tile(shift, f)
        if residual is not None:
            residual = residual.reshape(Mp // f, C * f)
    Mf, Cf = x2d.shape
    tm = _elem_tile_m(Mf)
    gm = Mf // tm
    scale2 = scale.reshape(1, Cf).astype(jnp.float32)
    shift2 = shift.reshape(1, Cf).astype(jnp.float32)
    mat_spec = pl.BlockSpec((tm, Cf), lambda i: (i, 0))
    vec_spec = pl.BlockSpec((1, Cf), lambda i: (0, 0))
    if residual is None:
        kernel = functools.partial(_bn_apply_kernel, relu=relu)
        args = (x2d, scale2, shift2)
        in_specs = [mat_spec, vec_spec, vec_spec]
    else:
        kernel = _bn_apply_add_relu_kernel
        args = (x2d, residual, scale2, shift2)
        in_specs = [mat_spec, mat_spec, vec_spec, vec_spec]
    y = pl.pallas_call(
        kernel,
        out_shape=jax.ShapeDtypeStruct((Mf, Cf), jnp.bfloat16),
        grid=(gm,),
        in_specs=in_specs,
        out_specs=mat_spec,
        compiler_params=pltpu.CompilerParams(dimension_semantics=("parallel",)),
    )(*args)
    if f > 1:
        y = y.reshape(Mp, C)
    return y


# --------------------------------------------------------------------------
# JAX glue: window-major im2col, conv+BN, maxpool, head
# --------------------------------------------------------------------------
def _im2col(x, kh, kw, stride, pad):
    """x: (N,H,W,C) -> (N*Ho*Wo, kh*kw*C) window-major (no big transpose)."""
    N, H, W, C = x.shape
    Ho = (H + 2 * pad - kh) // stride + 1
    Wo = (W + 2 * pad - kw) // stride + 1
    if kh == 1 and kw == 1 and pad == 0:
        win = x[:, ::stride, ::stride, :]
        return win.reshape(N * Ho * Wo, C), Ho, Wo
    xp = jnp.pad(x, ((0, 0), (pad, pad), (pad, pad), (0, 0)))
    wins = []
    for dy in range(kh):
        for dx in range(kw):
            win = jax.lax.slice(
                xp,
                (0, dy, dx, 0),
                (N, dy + (Ho - 1) * stride + 1, dx + (Wo - 1) * stride + 1, C),
                (1, stride, stride, 1),
            )
            wins.append(win)
    patches = jnp.concatenate(wins, axis=-1)  # (N, Ho, Wo, kh*kw*C)
    return patches.reshape(N * Ho * Wo, kh * kw * C), Ho, Wo


def conv_bn(x, w_mat, kh, kw, stride, pad, gamma, beta, *, relu, residual=None):
    """Conv (no bias) + train-mode BatchNorm (+ReLU / +residual-add-ReLU), NHWC bf16."""
    N, H, W, Cin = x.shape
    Cout = w_mat.shape[1]
    patches, Ho, Wo = _im2col(x.astype(jnp.bfloat16), kh, kw, stride, pad)
    M = N * Ho * Wo
    K = patches.shape[1]
    Kw = w_mat.shape[0]
    if Kw > K:  # weight was zero-padded along K at prep time (stem: 147 -> 256)
        patches = jnp.pad(patches, ((0, 0), (0, Kw - K)))
    tm = _matmul_tile_m(M)
    Mp = _round_up(M, tm)
    if Mp > M:
        patches = jnp.pad(patches, ((0, Mp - M), (0, 0)))

    conv_out, stats = _conv_matmul_stats(patches, w_mat, tm)

    # train-mode BN batch statistics (biased variance) from the fused epilogue
    tot = jnp.sum(stats, axis=0)                    # (2, Cout) f32
    mean = tot[0] / M
    var = jnp.maximum(tot[1] / M - mean * mean, 0.0)
    scale = gamma * jax.lax.rsqrt(var + EPS)
    shift = beta - mean * scale

    res2d = None
    if residual is not None:
        res2d = residual.reshape(M, Cout)
        if Mp > M:
            res2d = jnp.pad(res2d, ((0, Mp - M), (0, 0)))

    y = _bn_apply(conv_out, scale, shift, relu=relu, residual=res2d)
    return y[:M].reshape(N, Ho, Wo, Cout)


def maxpool3x3s2(x):
    """3x3 stride-2 maxpool, pad 1; tiled Pallas max over the 9 shifted windows."""
    N, H, W, C = x.shape
    Ho = (H + 2 - 3) // 2 + 1
    Wo = (W + 2 - 3) // 2 + 1
    M = N * Ho * Wo
    xp = jnp.pad(x, ((0, 0), (1, 1), (1, 1), (0, 0)), constant_values=-jnp.inf)
    wins = []
    for dy in range(3):
        for dx in range(3):
            win = jax.lax.slice(
                xp,
                (0, dy, dx, 0),
                (N, dy + (Ho - 1) * 2 + 1, dx + (Wo - 1) * 2 + 1, C),
                (1, 2, 2, 1),
            ).reshape(M, C)
            wins.append(win)
    Mp = _round_up(M, 8)
    if Mp > M:
        wins = [jnp.pad(w, ((0, Mp - M), (0, 0))) for w in wins]
    f = _fold_factor(Mp, C)
    if f > 1:
        wins = [w.reshape(Mp // f, C * f) for w in wins]
    Mf, Cf = wins[0].shape
    tm = _elem_tile_m(Mf)
    gm = Mf // tm
    mat_spec = pl.BlockSpec((tm, Cf), lambda i: (i, 0))
    out = pl.pallas_call(
        _max9_kernel,
        out_shape=jax.ShapeDtypeStruct((Mf, Cf), jnp.bfloat16),
        grid=(gm,),
        in_specs=[mat_spec] * 9,
        out_specs=mat_spec,
        compiler_params=pltpu.CompilerParams(dimension_semantics=("parallel",)),
    )(*wins)
    if f > 1:
        out = out.reshape(Mp, C)
    return out[:M].reshape(N, Ho, Wo, C)


def head(feat, w_cat, b_cat):
    """Adaptive avg pool (1,1) + fused fc_mu/fc_logvar, gridded over batch."""
    N, H, W, C = feat.shape
    L2 = w_cat.shape[1]
    x = feat.reshape(N, H * W, C)
    out = pl.pallas_call(
        _head_kernel,
        out_shape=jax.ShapeDtypeStruct((N, 1, L2), jnp.float32),
        grid=(N,),
        in_specs=[
            pl.BlockSpec((1, H * W, C), lambda i: (i, 0, 0)),
            pl.BlockSpec((C, L2), lambda i: (0, 0)),
            pl.BlockSpec((1, L2), lambda i: (0, 0)),
        ],
        out_specs=pl.BlockSpec((1, 1, L2), lambda i: (i, 0, 0)),
        compiler_params=pltpu.CompilerParams(dimension_semantics=("parallel",)),
    )(x, w_cat, b_cat)
    return out.reshape(N, L2)


# --------------------------------------------------------------------------
# Network
# --------------------------------------------------------------------------
def basic_block(x, p, stride):
    g1, b1 = p["bn1"]
    g2, b2 = p["bn2"]
    out = conv_bn(x, p["conv1"], 3, 3, stride, 1, g1, b1, relu=True)
    if "ds_conv" in p:
        gd, bd = p["ds_bn"]
        res = conv_bn(x, p["ds_conv"], 1, 1, stride, 0, gd, bd, relu=False)
    else:
        res = x
    return conv_bn(out, p["conv2"], 3, 3, 1, 1, g2, b2, relu=True, residual=res)


def encoder_forward(img_nchw, prep, latent_dim):
    x = jnp.transpose(img_nchw, (0, 2, 3, 1)).astype(jnp.bfloat16)  # NCHW -> NHWC bf16
    g, b = prep["bn1"]
    x = conv_bn(x, prep["conv1"], 7, 7, 2, 3, g, b, relu=True)       # stem
    x = maxpool3x3s2(x)
    for li, layer in enumerate(["layer1", "layer2", "layer3"]):
        for bi, bp in enumerate(prep[layer]):
            stride = 2 if (li > 0 and bi == 0) else 1
            x = basic_block(x, bp, stride)
    out = head(x, prep["w_cat"], prep["b_cat"])                      # (N, 2*latent)
    mu = out[:, :latent_dim]
    logvar = out[:, latent_dim:]
    return mu, logvar


# --------------------------------------------------------------------------
# Parameter preparation (done once, outside the jitted forward)
# --------------------------------------------------------------------------
def prepare_params(params):
    def conv_mat(w):
        # (Cout, Cin, kh, kw) -> window-major (kh*kw*Cin, Cout) bf16, K padded to
        # a 128 multiple when badly aligned (stem: 147 -> 256).
        Cout, Cin, kh, kw = w.shape
        K = kh * kw * Cin
        wm = jnp.transpose(w, (2, 3, 1, 0)).reshape(K, Cout)
        if K % 64 != 0:
            wm = jnp.pad(wm, ((0, _round_up(K, 128) - K), (0, 0)))
        return wm.astype(jnp.bfloat16)

    def block(p):
        q = {
            "conv1": conv_mat(p["conv1"]),
            "bn1": p["bn1"],
            "conv2": conv_mat(p["conv2"]),
            "bn2": p["bn2"],
        }
        if "ds_conv" in p:
            q["ds_conv"] = conv_mat(p["ds_conv"])
            q["ds_bn"] = p["ds_bn"]
        return q

    w_cat = jnp.concatenate(
        [params["fc_mu_w"].T, params["fc_logvar_w"].T], axis=1
    ).astype(jnp.float32)
    b_cat = jnp.concatenate(
        [params["fc_mu_b"], params["fc_logvar_b"]]
    ).reshape(1, -1).astype(jnp.float32)

    return {
        "conv1": conv_mat(params["conv1"]),
        "bn1": params["bn1"],
        "layer1": [block(p) for p in params["layer1"]],
        "layer2": [block(p) for p in params["layer2"]],
        "layer3": [block(p) for p in params["layer3"]],
        "w_cat": w_cat,
        "b_cat": b_cat,
    }


# --------------------------------------------------------------------------
# Deterministic parameter initialization (pretrained=False -> random weights)
# --------------------------------------------------------------------------
def init_params(key, latent_dim):
    keys = iter(jax.random.split(key, 128))

    def conv_w(cout, cin, k):
        return 0.05 * jax.random.normal(next(keys), (cout, cin, k, k), jnp.float32)

    def bn(c):
        g = 1.0 + 0.1 * jax.random.normal(next(keys), (c,), jnp.float32)
        b = 0.1 * jax.random.normal(next(keys), (c,), jnp.float32)
        return (g, b)

    def block_params(cout, cin, downsample):
        p = {
            "conv1": conv_w(cout, cin, 3),
            "bn1": bn(cout),
            "conv2": conv_w(cout, cout, 3),
            "bn2": bn(cout),
        }
        if downsample:
            p["ds_conv"] = conv_w(cout, cin, 1)
            p["ds_bn"] = bn(cout)
        return p

    return {
        "conv1": conv_w(64, 3, 7),
        "bn1": bn(64),
        "layer1": [block_params(64, 64, False), block_params(64, 64, False)],
        "layer2": [block_params(128, 64, True), block_params(128, 128, False)],
        "layer3": [block_params(256, 128, True), block_params(256, 256, False)],
        "fc_mu_w": 0.05 * jax.random.normal(next(keys), (latent_dim, 256), jnp.float32),
        "fc_mu_b": 0.05 * jax.random.normal(next(keys), (latent_dim,), jnp.float32),
        "fc_logvar_w": 0.05 * jax.random.normal(next(keys), (latent_dim, 256), jnp.float32),
        "fc_logvar_b": 0.05 * jax.random.normal(next(keys), (latent_dim,), jnp.float32),
    }


if __name__ == "__main__":
    latent_dim = 8
    key = jax.random.PRNGKey(0)
    pkey, xkey = jax.random.split(key)
    params = init_params(pkey, latent_dim)
    prep = prepare_params(params)
    img = jax.random.normal(xkey, (2, 3, 32, 32), jnp.float32)  # NCHW, like PyTorch

    fwd = jax.jit(functools.partial(encoder_forward, latent_dim=latent_dim))
    mu, logvar = fwd(img, prep)
    jax.block_until_ready((mu, logvar))

    assert mu.shape == (2, latent_dim) and logvar.shape == (2, latent_dim)
    assert bool(jnp.all(jnp.isfinite(mu))) and bool(jnp.all(jnp.isfinite(logvar)))
    print("KERNEL_OK")
</pallas_src>

<mosaic_0001>
module attributes {stable_mosaic.version = 11 : i64} {
  func.func @_bn_apply_kernel(%arg0: i32, %arg1: memref<256x128xbf16, #tpu.memory_space<vmem>>, %arg2: memref<1x128xf32, #tpu.memory_space<vmem>>, %arg3: memref<1x128xf32, #tpu.memory_space<vmem>>, %arg4: memref<256x128xbf16, #tpu.memory_space<vmem>>) attributes {dimension_semantics = [#tpu.dimension_semantics<parallel>], iteration_bounds = array<i64: 1>, scalar_prefetch = 0 : i64, scratch_operands = 0 : i64, tpu.core_type = #tpu.core_type<tc>, window_params = [{transform_indices = @transform_0, window_bounds = array<i64: 256, 128>}, {pipeline_mode = #tpu.pipeline_mode<synchronous>, transform_indices = @transform_1, window_bounds = array<i64: 1, 128>}, {pipeline_mode = #tpu.pipeline_mode<synchronous>, transform_indices = @transform_2, window_bounds = array<i64: 1, 128>}, {transform_indices = @transform_3, window_bounds = array<i64: 256, 128>}]} {
    %c0 = arith.constant 0 : index
    %c0_0 = arith.constant 0 : index
    %0 = vector.load %arg1[%c0, %c0_0] : memref<256x128xbf16, #tpu.memory_space<vmem>>, vector<256x128xbf16>
    %1 = arith.extf %0 : vector<256x128xbf16> to vector<256x128xf32>
    %c0_1 = arith.constant 0 : index
    %c0_2 = arith.constant 0 : index
    %2 = vector.load %arg2[%c0_1, %c0_2] : memref<1x128xf32, #tpu.memory_space<vmem>>, vector<1x128xf32>
    %3 = vector.broadcast %2 : vector<1x128xf32> to vector<256x128xf32>
    %4 = arith.mulf %1, %3 : vector<256x128xf32>
    %c0_3 = arith.constant 0 : index
    %c0_4 = arith.constant 0 : index
    %5 = vector.load %arg3[%c0_3, %c0_4] : memref<1x128xf32, #tpu.memory_space<vmem>>, vector<1x128xf32>
    %6 = vector.broadcast %5 : vector<1x128xf32> to vector<256x128xf32>
    %7 = arith.addf %4, %6 : vector<256x128xf32>
    %cst = arith.constant 0.000000e+00 : f32
    %8 = vector.broadcast %cst : f32 to vector<256x128xf32>
    %9 = arith.maximumf %7, %8 : vector<256x128xf32>
    %10 = arith.truncf %9 : vector<256x128xf32> to vector<256x128xbf16>
    %c0_5 = arith.constant 0 : index
    %c0_6 = arith.constant 0 : index
    %11 = vector.load %arg4[%c0_5, %c0_6] : memref<256x128xbf16, #tpu.memory_space<vmem>>, vector<256x128xbf16>
    tpu.vector_store %arg4[%c0_5, %c0_6], %10 {strides = array<i32>} : memref<256x128xbf16, #tpu.memory_space<vmem>>, vector<256x128xbf16>,
    return
  }
  func.func @transform_0(%arg0: i32) -> (i32, i32) {
    %c0_i32 = arith.constant 0 : i32
    %c0_i32_0 = arith.constant 0 : i32
    return %arg0, %c0_i32 : i32, i32
  }
  func.func @transform_1(%arg0: i32) -> (i32, i32) {
    %c0_i32 = arith.constant 0 : i32
    %c0_i32_0 = arith.constant 0 : i32
    %c0_i32_1 = arith.constant 0 : i32
    return %c0_i32, %c0_i32_0 : i32, i32
  }
  func.func @transform_2(%arg0: i32) -> (i32, i32) {
    %c0_i32 = arith.constant 0 : i32
    %c0_i32_0 = arith.constant 0 : i32
    %c0_i32_1 = arith.constant 0 : i32
    return %c0_i32, %c0_i32_0 : i32, i32
  }
  func.func @transform_3(%arg0: i32) -> (i32, i32) {
    %c0_i32 = arith.constant 0 : i32
    %c0_i32_0 = arith.constant 0 : i32
    return %arg0, %c0_i32 : i32, i32
  }
}

module attributes {stable_mosaic.version = 11 : i64} {
  func.func @_matmul_stats_kernel(%arg0: i32, %arg1: memref<512x256xbf16, #tpu.memory_space<vmem>>, %arg2: memref<256x64xbf16, #tpu.memory_space<vmem>>, %arg3: memref<512x64xbf16, #tpu.memory_space<vmem>>, %arg4: memref<1x2x64xf32, #tpu.memory_space<vmem>>) attributes {dimension_semantics = [#tpu.dimension_semantics<parallel>], iteration_bounds = array<i64: 1>, scalar_prefetch = 0 : i64, scratch_operands = 0 : i64, tpu.core_type = #tpu.core_type<tc>, window_params = [{transform_indices = @transform_0, window_bounds = array<i64: 512, 256>}, {pipeline_mode = #tpu.pipeline_mode<synchronous>, transform_indices = @transform_1, window_bounds = array<i64: 256, 64>}, {transform_indices = @transform_2, window_bounds = array<i64: 512, 64>}, {transform_indices = @transform_3, window_bounds = array<i64: 1, 2, 64>}]} {
    %c0 = arith.constant 0 : index
    %c0_0 = arith.constant 0 : index
    %0 = vector.load %arg1[%c0, %c0_0] : memref<512x256xbf16, #tpu.memory_space<vmem>>, vector<512x256xbf16>
    %c0_1 = arith.constant 0 : index
    %c0_2 = arith.constant 0 : index
    %1 = vector.load %arg2[%c0_1, %c0_2] : memref<256x64xbf16, #tpu.memory_space<vmem>>, vector<256x64xbf16>
    %cst = arith.constant dense<0.000000e+00> : vector<512x64xf32>
    %2 = tpu.matmul %0, %1, %cst {dimension_numbers = #tpu.dot_dimension_numbers<[1], [0], [0], [1], [0, 0, 1, 1], [], []>} : vector<512x256xbf16>, vector<256x64xbf16>, vector<512x64xf32> -> vector<512x64xf32>
    %3 = arith.truncf %2 : vector<512x64xf32> to vector<512x64xbf16>
    %c0_3 = arith.constant 0 : index
    %c0_4 = arith.constant 0 : index
    %4 = vector.load %arg3[%c0_3, %c0_4] : memref<512x64xbf16, #tpu.memory_space<vmem>>, vector<512x64xbf16>
    tpu.vector_store %arg3[%c0_3, %c0_4], %3 {strides = array<i32>} : memref<512x64xbf16, #tpu.memory_space<vmem>>, vector<512x64xbf16>,
    %cst_5 = arith.constant dense<0.000000e+00> : vector<64xf32>
    %5 = vector.multi_reduction <add>, %2, %cst_5 [0] : vector<512x64xf32> to vector<64xf32>
    %6 = vector.shape_cast %5 : vector<64xf32> to vector<1x64xf32>
    %7 = arith.mulf %2, %2 : vector<512x64xf32>
    %cst_6 = arith.constant dense<0.000000e+00> : vector<64xf32>
    %8 = vector.multi_reduction <add>, %7, %cst_6 [0] : vector<512x64xf32> to vector<64xf32>
    %9 = vector.shape_cast %8 : vector<64xf32> to vector<1x64xf32>
    %10 = tpu.concatenate %6, %9 in 0 : vector<1x64xf32>, vector<1x64xf32> -> vector<2x64xf32>
    %11 = vector.shape_cast %10 : vector<2x64xf32> to vector<1x2x64xf32>
    %c0_7 = arith.constant 0 : index
    %c0_8 = arith.constant 0 : index
    %c0_9 = arith.constant 0 : index
    %12 = vector.load %arg4[%c0_7, %c0_8, %c0_9] : memref<1x2x64xf32, #tpu.memory_space<vmem>>, vector<1x2x64xf32>
    tpu.vector_store %arg4[%c0_7, %c0_8, %c0_9], %11 {strides = array<i32>} : memref<1x2x64xf32, #tpu.memory_space<vmem>>, vector<1x2x64xf32>,
    return
  }
  func.func @transform_0(%arg0: i32) -> (i32, i32) {
    %c0_i32 = arith.constant 0 : i32
    %c0_i32_0 = arith.constant 0 : i32
    return %arg0, %c0_i32 : i32, i32
  }
  func.func @transform_1(%arg0: i32) -> (i32, i32) {
    %c0_i32 = arith.constant 0 : i32
    %c0_i32_0 = arith.constant 0 : i32
    %c0_i32_1 = arith.constant 0 : i32
    return %c0_i32, %c0_i32_0 : i32, i32
  }
  func.func @transform_2(%arg0: i32) -> (i32, i32) {
    %c0_i32 = arith.constant 0 : i32
    %c0_i32_0 = arith.constant 0 : i32
    return %arg0, %c0_i32 : i32, i32
  }
  func.func @transform_3(%arg0: i32) -> (i32, i32, i32) {
    %c0_i32 = arith.constant 0 : i32
    %c0_i32_0 = arith.constant 0 : i32
    %c0_i32_1 = arith.constant 0 : i32
    return %arg0, %c0_i32, %c0_i32_0 : i32, i32, i32
  }
}

module attributes {stable_mosaic.version = 11 : i64} {
  func.func @_max9_kernel(%arg0: i32, %arg1: memref<64x128xbf16, #tpu.memory_space<vmem>>, %arg2: memref<64x128xbf16, #tpu.memory_space<vmem>>, %arg3: memref<64x128xbf16, #tpu.memory_space<vmem>>, %arg4: memref<64x128xbf16, #tpu.memory_space<vmem>>, %arg5: memref<64x128xbf16, #tpu.memory_space<vmem>>, %arg6: memref<64x128xbf16, #tpu.memory_space<vmem>>, %arg7: memref<64x128xbf16, #tpu.memory_space<vmem>>, %arg8: memref<64x128xbf16, #tpu.memory_space<vmem>>, %arg9: memref<64x128xbf16, #tpu.memory_space<vmem>>, %arg10: memref<64x128xbf16, #tpu.memory_space<vmem>>) attributes {dimension_semantics = [#tpu.dimension_semantics<parallel>], iteration_bounds = array<i64: 1>, scalar_prefetch = 0 : i64, scratch_operands = 0 : i64, tpu.core_type = #tpu.core_type<tc>, window_params = [{transform_indices = @transform_0, window_bounds = array<i64: 64, 128>}, {transform_indices = @transform_1, window_bounds = array<i64: 64, 128>}, {transform_indices = @transform_2, window_bounds = array<i64: 64, 128>}, {transform_indices = @transform_3, window_bounds = array<i64: 64, 128>}, {transform_indices = @transform_4, window_bounds = array<i64: 64, 128>}, {transform_indices = @transform_5, window_bounds = array<i64: 64, 128>}, {transform_indices = @transform_6, window_bounds = array<i64: 64, 128>}, {transform_indices = @transform_7, window_bounds = array<i64: 64, 128>}, {transform_indices = @transform_8, window_bounds = array<i64: 64, 128>}, {transform_indices = @transform_9, window_bounds = array<i64: 64, 128>}]} {
    %c0 = arith.constant 0 : index
    %c0_0 = arith.constant 0 : index
    %0 = vector.load %arg1[%c0, %c0_0] : memref<64x128xbf16, #tpu.memory_space<vmem>>, vector<64x128xbf16>
    %1 = arith.extf %0 : vector<64x128xbf16> to vector<64x128xf32>
    %c0_1 = arith.constant 0 : index
    %c0_2 = arith.constant 0 : index
    %2 = vector.load %arg2[%c0_1, %c0_2] : memref<64x128xbf16, #tpu.memory_space<vmem>>, vector<64x128xbf16>
    %3 = arith.extf %2 : vector<64x128xbf16> to vector<64x128xf32>
    %4 = arith.maximumf %1, %3 : vector<64x128xf32>
    %c0_3 = arith.constant 0 : index
    %c0_4 = arith.constant 0 : index
    %5 = vector.load %arg3[%c0_3, %c0_4] : memref<64x128xbf16, #tpu.memory_space<vmem>>, vector<64x128xbf16>
    %6 = arith.extf %5 : vector<64x128xbf16> to vector<64x128xf32>
    %7 = arith.maximumf %4, %6 : vector<64x128xf32>
    %c0_5 = arith.constant 0 : index
    %c0_6 = arith.constant 0 : index
    %8 = vector.load %arg4[%c0_5, %c0_6] : memref<64x128xbf16, #tpu.memory_space<vmem>>, vector<64x128xbf16>
    %9 = arith.extf %8 : vector<64x128xbf16> to vector<64x128xf32>
    %10 = arith.maximumf %7, %9 : vector<64x128xf32>
    %c0_7 = arith.constant 0 : index
    %c0_8 = arith.constant 0 : index
    %11 = vector.load %arg5[%c0_7, %c0_8] : memref<64x128xbf16, #tpu.memory_space<vmem>>, vector<64x128xbf16>
    %12 = arith.extf %11 : vector<64x128xbf16> to vector<64x128xf32>
    %13 = arith.maximumf %10, %12 : vector<64x128xf32>
    %c0_9 = arith.constant 0 : index
    %c0_10 = arith.constant 0 : index
    %14 = vector.load %arg6[%c0_9, %c0_10] : memref<64x128xbf16, #tpu.memory_space<vmem>>, vector<64x128xbf16>
    %15 = arith.extf %14 : vector<64x128xbf16> to vector<64x128xf32>
    %16 = arith.maximumf %13, %15 : vector<64x128xf32>
    %c0_11 = arith.constant 0 : index
    %c0_12 = arith.constant 0 : index
    %17 = vector.load %arg7[%c0_11, %c0_12] : memref<64x128xbf16, #tpu.memory_space<vmem>>, vector<64x128xbf16>
    %18 = arith.extf %17 : vector<64x128xbf16> to vector<64x128xf32>
    %19 = arith.maximumf %16, %18 : vector<64x128xf32>
    %c0_13 = arith.constant 0 : index
    %c0_14 = arith.constant 0 : index
    %20 = vector.load %arg8[%c0_13, %c0_14] : memref<64x128xbf16, #tpu.memory_space<vmem>>, vector<64x128xbf16>
    %21 = arith.extf %20 : vector<64x128xbf16> to vector<64x128xf32>
    %22 = arith.maximumf %19, %21 : vector<64x128xf32>
    %c0_15 = arith.constant 0 : index
    %c0_16 = arith.constant 0 : index
    %23 = vector.load %arg9[%c0_15, %c0_16] : memref<64x128xbf16, #tpu.memory_space<vmem>>, vector<64x128xbf16>
    %24 = arith.extf %23 : vector<64x128xbf16> to vector<64x128xf32>
    %25 = arith.maximumf %22, %24 : vector<64x128xf32>
    %26 = arith.truncf %25 : vector<64x128xf32> to vector<64x128xbf16>
    %c0_17 = arith.constant 0 : index
    %c0_18 = arith.constant 0 : index
    %27 = vector.load %arg10[%c0_17, %c0_18] : memref<64x128xbf16, #tpu.memory_space<vmem>>, vector<64x128xbf16>
    tpu.vector_store %arg10[%c0_17, %c0_18], %26 {strides = array<i32>} : memref<64x128xbf16, #tpu.memory_space<vmem>>, vector<64x128xbf16>,
    return
  }
  func.func @transform_0(%arg0: i32) -> (i32, i32) {
    %c0_i32 = arith.constant 0 : i32
    %c0_i32_0 = arith.constant 0 : i32
    return %arg0, %c0_i32 : i32, i32
  }
  func.func @transform_1(%arg0: i32) -> (i32, i32) {
    %c0_i32 = arith.constant 0 : i32
    %c0_i32_0 = arith.constant 0 : i32
    return %arg0, %c0_i32 : i32, i32
  }
  func.func @transform_2(%arg0: i32) -> (i32, i32) {
    %c0_i32 = arith.constant 0 : i32
    %c0_i32_0 = arith.constant 0 : i32
    return %arg0, %c0_i32 : i32, i32
  }
  func.func @transform_3(%arg0: i32) -> (i32, i32) {
    %c0_i32 = arith.constant 0 : i32
    %c0_i32_0 = arith.constant 0 : i32
    return %arg0, %c0_i32 : i32, i32
  }
  func.func @transform_4(%arg0: i32) -> (i32, i32) {
    %c0_i32 = arith.constant 0 : i32
    %c0_i32_0 = arith.constant 0 : i32
    return %arg0, %c0_i32 : i32, i32
  }
  func.func @transform_5(%arg0: i32) -> (i32, i32) {
    %c0_i32 = arith.constant 0 : i32
    %c0_i32_0 = arith.constant 0 : i32
    return %arg0, %c0_i32 : i32, i32
  }
  func.func @transform_6(%arg0: i32) -> (i32, i32) {
    %c0_i32 = arith.constant 0 : i32
    %c0_i32_0 = arith.constant 0 : i32
    return %arg0, %c0_i32 : i32, i32
  }
  func.func @transform_7(%arg0: i32) -> (i32, i32) {
    %c0_i32 = arith.constant 0 : i32
    %c0_i32_0 = arith.constant 0 : i32
    return %arg0, %c0_i32 : i32, i32
  }
  func.func @transform_8(%arg0: i32) -> (i32, i32) {
    %c0_i32 = arith.constant 0 : i32
    %c0_i32_0 = arith.constant 0 : i32
    return %arg0, %c0_i32 : i32, i32
  }
  func.func @transform_9(%arg0: i32) -> (i32, i32) {
    %c0_i32 = arith.constant 0 : i32
    %c0_i32_0 = arith.constant 0 : i32
    return %arg0, %c0_i32 : i32, i32
  }
}

module attributes {stable_mosaic.version = 11 : i64} {
  func.func @_bn_apply_add_relu_kernel(%arg0: i32, %arg1: memref<64x128xbf16, #tpu.memory_space<vmem>>, %arg2: memref<64x128xbf16, #tpu.memory_space<vmem>>, %arg3: memref<1x128xf32, #tpu.memory_space<vmem>>, %arg4: memref<1x128xf32, #tpu.memory_space<vmem>>, %arg5: memref<64x128xbf16, #tpu.memory_space<vmem>>) attributes {dimension_semantics = [#tpu.dimension_semantics<parallel>], iteration_bounds = array<i64: 1>, scalar_prefetch = 0 : i64, scratch_operands = 0 : i64, tpu.core_type = #tpu.core_type<tc>, window_params = [{transform_indices = @transform_0, window_bounds = array<i64: 64, 128>}, {transform_indices = @transform_1, window_bounds = array<i64: 64, 128>}, {pipeline_mode = #tpu.pipeline_mode<synchronous>, transform_indices = @transform_2, window_bounds = array<i64: 1, 128>}, {pipeline_mode = #tpu.pipeline_mode<synchronous>, transform_indices = @transform_3, window_bounds = array<i64: 1, 128>}, {transform_indices = @transform_4, window_bounds = array<i64: 64, 128>}]} {
    %c0 = arith.constant 0 : index
    %c0_0 = arith.constant 0 : index
    %0 = vector.load %arg1[%c0, %c0_0] : memref<64x128xbf16, #tpu.memory_space<vmem>>, vector<64x128xbf16>
    %1 = arith.extf %0 : vector<64x128xbf16> to vector<64x128xf32>
    %c0_1 = arith.constant 0 : index
    %c0_2 = arith.constant 0 : index
    %2 = vector.load %arg3[%c0_1, %c0_2] : memref<1x128xf32, #tpu.memory_space<vmem>>, vector<1x128xf32>
    %3 = vector.broadcast %2 : vector<1x128xf32> to vector<64x128xf32>
    %4 = arith.mulf %1, %3 : vector<64x128xf32>
    %c0_3 = arith.constant 0 : index
    %c0_4 = arith.constant 0 : index
    %5 = vector.load %arg4[%c0_3, %c0_4] : memref<1x128xf32, #tpu.memory_space<vmem>>, vector<1x128xf32>
    %6 = vector.broadcast %5 : vector<1x128xf32> to vector<64x128xf32>
    %7 = arith.addf %4, %6 : vector<64x128xf32>
    %c0_5 = arith.constant 0 : index
    %c0_6 = arith.constant 0 : index
    %8 = vector.load %arg2[%c0_5, %c0_6] : memref<64x128xbf16, #tpu.memory_space<vmem>>, vector<64x128xbf16>
    %9 = arith.extf %8 : vector<64x128xbf16> to vector<64x128xf32>
    %10 = arith.addf %7, %9 : vector<64x128xf32>
    %cst = arith.constant 0.000000e+00 : f32
    %11 = vector.broadcast %cst : f32 to vector<64x128xf32>
    %12 = arith.maximumf %10, %11 : vector<64x128xf32>
    %13 = arith.truncf %12 : vector<64x128xf32> to vector<64x128xbf16>
    %c0_7 = arith.constant 0 : index
    %c0_8 = arith.constant 0 : index
    %14 = vector.load %arg5[%c0_7, %c0_8] : memref<64x128xbf16, #tpu.memory_space<vmem>>, vector<64x128xbf16>
    tpu.vector_store %arg5[%c0_7, %c0_8], %13 {strides = array<i32>} : memref<64x128xbf16, #tpu.memory_space<vmem>>, vector<64x128xbf16>,
    return
  }
  func.func @transform_0(%arg0: i32) -> (i32, i32) {
    %c0_i32 = arith.constant 0 : i32
    %c0_i32_0 = arith.constant 0 : i32
    return %arg0, %c0_i32 : i32, i32
  }
  func.func @transform_1(%arg0: i32) -> (i32, i32) {
    %c0_i32 = arith.constant 0 : i32
    %c0_i32_0 = arith.constant 0 : i32
    return %arg0, %c0_i32 : i32, i32
  }
  func.func @transform_2(%arg0: i32) -> (i32, i32) {
    %c0_i32 = arith.constant 0 : i32
    %c0_i32_0 = arith.constant 0 : i32
    %c0_i32_1 = arith.constant 0 : i32
    return %c0_i32, %c0_i32_0 : i32, i32
  }
  func.func @transform_3(%arg0: i32) -> (i32, i32) {
    %c0_i32 = arith.constant 0 : i32
    %c0_i32_0 = arith.constant 0 : i32
    %c0_i32_1 = arith.constant 0 : i32
    return %c0_i32, %c0_i32_0 : i32, i32
  }
  func.func @transform_4(%arg0: i32) -> (i32, i32) {
    %c0_i32 = arith.constant 0 : i32
    %c0_i32_0 = arith.constant 0 : i32
    return %arg0, %c0_i32 : i32, i32
  }
}

module attributes {stable_mosaic.version = 11 : i64} {
  func.func @_matmul_stats_kernel(%arg0: i32, %arg1: memref<128x576xbf16, #tpu.memory_space<vmem>>, %arg2: memref<576x64xbf16, #tpu.memory_space<vmem>>, %arg3: memref<128x64xbf16, #tpu.memory_space<vmem>>, %arg4: memref<1x2x64xf32, #tpu.memory_space<vmem>>) attributes {dimension_semantics = [#tpu.dimension_semantics<parallel>], iteration_bounds = array<i64: 1>, scalar_prefetch = 0 : i64, scratch_operands = 0 : i64, tpu.core_type = #tpu.core_type<tc>, window_params = [{transform_indices = @transform_0, window_bounds = array<i64: 128, 576>}, {pipeline_mode = #tpu.pipeline_mode<synchronous>, transform_indices = @transform_1, window_bounds = array<i64: 576, 64>}, {transform_indices = @transform_2, window_bounds = array<i64: 128, 64>}, {transform_indices = @transform_3, window_bounds = array<i64: 1, 2, 64>}]} {
    %c0 = arith.constant 0 : index
    %c0_0 = arith.constant 0 : index
    %0 = vector.load %arg1[%c0, %c0_0] : memref<128x576xbf16, #tpu.memory_space<vmem>>, vector<128x576xbf16>
    %c0_1 = arith.constant 0 : index
    %c0_2 = arith.constant 0 : index
    %1 = vector.load %arg2[%c0_1, %c0_2] : memref<576x64xbf16, #tpu.memory_space<vmem>>, vector<576x64xbf16>
    %cst = arith.constant dense<0.000000e+00> : vector<128x64xf32>
    %2 = tpu.matmul %0, %1, %cst {dimension_numbers = #tpu.dot_dimension_numbers<[1], [0], [0], [1], [0, 0, 1, 1], [], []>} : vector<128x576xbf16>, vector<576x64xbf16>, vector<128x64xf32> -> vector<128x64xf32>
    %3 = arith.truncf %2 : vector<128x64xf32> to vector<128x64xbf16>
    %c0_3 = arith.constant 0 : index
    %c0_4 = arith.constant 0 : index
    %4 = vector.load %arg3[%c0_3, %c0_4] : memref<128x64xbf16, #tpu.memory_space<vmem>>, vector<128x64xbf16>
    tpu.vector_store %arg3[%c0_3, %c0_4], %3 {strides = array<i32>} : memref<128x64xbf16, #tpu.memory_space<vmem>>, vector<128x64xbf16>,
    %cst_5 = arith.constant dense<0.000000e+00> : vector<64xf32>
    %5 = vector.multi_reduction <add>, %2, %cst_5 [0] : vector<128x64xf32> to vector<64xf32>
    %6 = vector.shape_cast %5 : vector<64xf32> to vector<1x64xf32>
    %7 = arith.mulf %2, %2 : vector<128x64xf32>
    %cst_6 = arith.constant dense<0.000000e+00> : vector<64xf32>
    %8 = vector.multi_reduction <add>, %7, %cst_6 [0] : vector<128x64xf32> to vector<64xf32>
    %9 = vector.shape_cast %8 : vector<64xf32> to vector<1x64xf32>
    %10 = tpu.concatenate %6, %9 in 0 : vector<1x64xf32>, vector<1x64xf32> -> vector<2x64xf32>
    %11 = vector.shape_cast %10 : vector<2x64xf32> to vector<1x2x64xf32>
    %c0_7 = arith.constant 0 : index
    %c0_8 = arith.constant 0 : index
    %c0_9 = arith.constant 0 : index
    %12 = vector.load %arg4[%c0_7, %c0_8, %c0_9] : memref<1x2x64xf32, #tpu.memory_space<vmem>>, vector<1x2x64xf32>
    tpu.vector_store %arg4[%c0_7, %c0_8, %c0_9], %11 {strides = array<i32>} : memref<1x2x64xf32, #tpu.memory_space<vmem>>, vector<1x2x64xf32>,
    return
  }
  func.func @transform_0(%arg0: i32) -> (i32, i32) {
    %c0_i32 = arith.constant 0 : i32
    %c0_i32_0 = arith.constant 0 : i32
    return %arg0, %c0_i32 : i32, i32
  }
  func.func @transform_1(%arg0: i32) -> (i32, i32) {
    %c0_i32 = arith.constant 0 : i32
    %c0_i32_0 = arith.constant 0 : i32
    %c0_i32_1 = arith.constant 0 : i32
    return %c0_i32, %c0_i32_0 : i32, i32
  }
  func.func @transform_2(%arg0: i32) -> (i32, i32) {
    %c0_i32 = arith.constant 0 : i32
    %c0_i32_0 = arith.constant 0 : i32
    return %arg0, %c0_i32 : i32, i32
  }
  func.func @transform_3(%arg0: i32) -> (i32, i32, i32) {
    %c0_i32 = arith.constant 0 : i32
    %c0_i32_0 = arith.constant 0 : i32
    %c0_i32_1 = arith.constant 0 : i32
    return %arg0, %c0_i32, %c0_i32_0 : i32, i32, i32
  }
}

module attributes {stable_mosaic.version = 11 : i64} {
  func.func @_bn_apply_kernel(%arg0: i32, %arg1: memref<64x128xbf16, #tpu.memory_space<vmem>>, %arg2: memref<1x128xf32, #tpu.memory_space<vmem>>, %arg3: memref<1x128xf32, #tpu.memory_space<vmem>>, %arg4: memref<64x128xbf16, #tpu.memory_space<vmem>>) attributes {dimension_semantics = [#tpu.dimension_semantics<parallel>], iteration_bounds = array<i64: 1>, scalar_prefetch = 0 : i64, scratch_operands = 0 : i64, tpu.core_type = #tpu.core_type<tc>, window_params = [{transform_indices = @transform_0, window_bounds = array<i64: 64, 128>}, {pipeline_mode = #tpu.pipeline_mode<synchronous>, transform_indices = @transform_1, window_bounds = array<i64: 1, 128>}, {pipeline_mode = #tpu.pipeline_mode<synchronous>, transform_indices = @transform_2, window_bounds = array<i64: 1, 128>}, {transform_indices = @transform_3, window_bounds = array<i64: 64, 128>}]} {
    %c0 = arith.constant 0 : index
    %c0_0 = arith.constant 0 : index
    %0 = vector.load %arg1[%c0, %c0_0] : memref<64x128xbf16, #tpu.memory_space<vmem>>, vector<64x128xbf16>
    %1 = arith.extf %0 : vector<64x128xbf16> to vector<64x128xf32>
    %c0_1 = arith.constant 0 : index
    %c0_2 = arith.constant 0 : index
    %2 = vector.load %arg2[%c0_1, %c0_2] : memref<1x128xf32, #tpu.memory_space<vmem>>, vector<1x128xf32>
    %3 = vector.broadcast %2 : vector<1x128xf32> to vector<64x128xf32>
    %4 = arith.mulf %1, %3 : vector<64x128xf32>
    %c0_3 = arith.constant 0 : index
    %c0_4 = arith.constant 0 : index
    %5 = vector.load %arg3[%c0_3, %c0_4] : memref<1x128xf32, #tpu.memory_space<vmem>>, vector<1x128xf32>
    %6 = vector.broadcast %5 : vector<1x128xf32> to vector<64x128xf32>
    %7 = arith.addf %4, %6 : vector<64x128xf32>
    %cst = arith.constant 0.000000e+00 : f32
    %8 = vector.broadcast %cst : f32 to vector<64x128xf32>
    %9 = arith.maximumf %7, %8 : vector<64x128xf32>
    %10 = arith.truncf %9 : vector<64x128xf32> to vector<64x128xbf16>
    %c0_5 = arith.constant 0 : index
    %c0_6 = arith.constant 0 : index
    %11 = vector.load %arg4[%c0_5, %c0_6] : memref<64x128xbf16, #tpu.memory_space<vmem>>, vector<64x128xbf16>
    tpu.vector_store %arg4[%c0_5, %c0_6], %10 {strides = array<i32>} : memref<64x128xbf16, #tpu.memory_space<vmem>>, vector<64x128xbf16>,
    return
  }
  func.func @transform_0(%arg0: i32) -> (i32, i32) {
    %c0_i32 = arith.constant 0 : i32
    %c0_i32_0 = arith.constant 0 : i32
    return %arg0, %c0_i32 : i32, i32
  }
  func.func @transform_1(%arg0: i32) -> (i32, i32) {
    %c0_i32 = arith.constant 0 : i32
    %c0_i32_0 = arith.constant 0 : i32
    %c0_i32_1 = arith.constant 0 : i32
    return %c0_i32, %c0_i32_0 : i32, i32
  }
  func.func @transform_2(%arg0: i32) -> (i32, i32) {
    %c0_i32 = arith.constant 0 : i32
    %c0_i32_0 = arith.constant 0 : i32
    %c0_i32_1 = arith.constant 0 : i32
    return %c0_i32, %c0_i32_0 : i32, i32
  }
  func.func @transform_3(%arg0: i32) -> (i32, i32) {
    %c0_i32 = arith.constant 0 : i32
    %c0_i32_0 = arith.constant 0 : i32
    return %arg0, %c0_i32 : i32, i32
  }
}

module attributes {stable_mosaic.version = 11 : i64} {
  func.func @_matmul_stats_kernel(%arg0: i32, %arg1: memref<32x576xbf16, #tpu.memory_space<vmem>>, %arg2: memref<576x128xbf16, #tpu.memory_space<vmem>>, %arg3: memref<32x128xbf16, #tpu.memory_space<vmem>>, %arg4: memref<1x2x128xf32, #tpu.memory_space<vmem>>) attributes {dimension_semantics = [#tpu.dimension_semantics<parallel>], iteration_bounds = array<i64: 1>, scalar_prefetch = 0 : i64, scratch_operands = 0 : i64, tpu.core_type = #tpu.core_type<tc>, window_params = [{transform_indices = @transform_0, window_bounds = array<i64: 32, 576>}, {pipeline_mode = #tpu.pipeline_mode<synchronous>, transform_indices = @transform_1, window_bounds = array<i64: 576, 128>}, {transform_indices = @transform_2, window_bounds = array<i64: 32, 128>}, {transform_indices = @transform_3, window_bounds = array<i64: 1, 2, 128>}]} {
    %c0 = arith.constant 0 : index
    %c0_0 = arith.constant 0 : index
    %0 = vector.load %arg1[%c0, %c0_0] : memref<32x576xbf16, #tpu.memory_space<vmem>>, vector<32x576xbf16>
    %c0_1 = arith.constant 0 : index
    %c0_2 = arith.constant 0 : index
    %1 = vector.load %arg2[%c0_1, %c0_2] : memref<576x128xbf16, #tpu.memory_space<vmem>>, vector<576x128xbf16>
    %cst = arith.constant dense<0.000000e+00> : vector<32x128xf32>
    %2 = tpu.matmul %0, %1, %cst {dimension_numbers = #tpu.dot_dimension_numbers<[1], [0], [0], [1], [0, 0, 1, 1], [], []>} : vector<32x576xbf16>, vector<576x128xbf16>, vector<32x128xf32> -> vector<32x128xf32>
    %3 = arith.truncf %2 : vector<32x128xf32> to vector<32x128xbf16>
    %c0_3 = arith.constant 0 : index
    %c0_4 = arith.constant 0 : index
    %4 = vector.load %arg3[%c0_3, %c0_4] : memref<32x128xbf16, #tpu.memory_space<vmem>>, vector<32x128xbf16>
    tpu.vector_store %arg3[%c0_3, %c0_4], %3 {strides = array<i32>} : memref<32x128xbf16, #tpu.memory_space<vmem>>, vector<32x128xbf16>,
    %cst_5 = arith.constant dense<0.000000e+00> : vector<128xf32>
    %5 = vector.multi_reduction <add>, %2, %cst_5 [0] : vector<32x128xf32> to vector<128xf32>
    %6 = vector.shape_cast %5 : vector<128xf32> to vector<1x128xf32>
    %7 = arith.mulf %2, %2 : vector<32x128xf32>
    %cst_6 = arith.constant dense<0.000000e+00> : vector<128xf32>
    %8 = vector.multi_reduction <add>, %7, %cst_6 [0] : vector<32x128xf32> to vector<128xf32>
    %9 = vector.shape_cast %8 : vector<128xf32> to vector<1x128xf32>
    %10 = tpu.concatenate %6, %9 in 0 : vector<1x128xf32>, vector<1x128xf32> -> vector<2x128xf32>
    %11 = vector.shape_cast %10 : vector<2x128xf32> to vector<1x2x128xf32>
    %c0_7 = arith.constant 0 : index
    %c0_8 = arith.constant 0 : index
    %c0_9 = arith.constant 0 : index
    %12 = vector.load %arg4[%c0_7, %c0_8, %c0_9] : memref<1x2x128xf32, #tpu.memory_space<vmem>>, vector<1x2x128xf32>
    tpu.vector_store %arg4[%c0_7, %c0_8, %c0_9], %11 {strides = array<i32>} : memref<1x2x128xf32, #tpu.memory_space<vmem>>, vector<1x2x128xf32>,
    return
  }
  func.func @transform_0(%arg0: i32) -> (i32, i32) {
    %c0_i32 = arith.constant 0 : i32
    %c0_i32_0 = arith.constant 0 : i32
    return %arg0, %c0_i32 : i32, i32
  }
  func.func @transform_1(%arg0: i32) -> (i32, i32) {
    %c0_i32 = arith.constant 0 : i32
    %c0_i32_0 = arith.constant 0 : i32
    %c0_i32_1 = arith.constant 0 : i32
    return %c0_i32, %c0_i32_0 : i32, i32
  }
  func.func @transform_2(%arg0: i32) -> (i32, i32) {
    %c0_i32 = arith.constant 0 : i32
    %c0_i32_0 = arith.constant 0 : i32
    return %arg0, %c0_i32 : i32, i32
  }
  func.func @transform_3(%arg0: i32) -> (i32, i32, i32) {
    %c0_i32 = arith.constant 0 : i32
    %c0_i32_0 = arith.constant 0 : i32
    %c0_i32_1 = arith.constant 0 : i32
    return %arg0, %c0_i32, %c0_i32_0 : i32, i32, i32
  }
}

module attributes {stable_mosaic.version = 11 : i64} {
  func.func @_matmul_stats_kernel(%arg0: i32, %arg1: memref<32x1152xbf16, #tpu.memory_space<vmem>>, %arg2: memref<1152x128xbf16, #tpu.memory_space<vmem>>, %arg3: memref<32x128xbf16, #tpu.memory_space<vmem>>, %arg4: memref<1x2x128xf32, #tpu.memory_space<vmem>>) attributes {dimension_semantics = [#tpu.dimension_semantics<parallel>], iteration_bounds = array<i64: 1>, scalar_prefetch = 0 : i64, scratch_operands = 0 : i64, tpu.core_type = #tpu.core_type<tc>, window_params = [{transform_indices = @transform_0, window_bounds = array<i64: 32, 1152>}, {pipeline_mode = #tpu.pipeline_mode<synchronous>, transform_indices = @transform_1, window_bounds = array<i64: 1152, 128>}, {transform_indices = @transform_2, window_bounds = array<i64: 32, 128>}, {transform_indices = @transform_3, window_bounds = array<i64: 1, 2, 128>}]} {
    %c0 = arith.constant 0 : index
    %c0_0 = arith.constant 0 : index
    %0 = vector.load %arg1[%c0, %c0_0] : memref<32x1152xbf16, #tpu.memory_space<vmem>>, vector<32x1152xbf16>
    %c0_1 = arith.constant 0 : index
    %c0_2 = arith.constant 0 : index
    %1 = vector.load %arg2[%c0_1, %c0_2] : memref<1152x128xbf16, #tpu.memory_space<vmem>>, vector<1152x128xbf16>
    %cst = arith.constant dense<0.000000e+00> : vector<32x128xf32>
    %2 = tpu.matmul %0, %1, %cst {dimension_numbers = #tpu.dot_dimension_numbers<[1], [0], [0], [1], [0, 0, 1, 1], [], []>} : vector<32x1152xbf16>, vector<1152x128xbf16>, vector<32x128xf32> -> vector<32x128xf32>
    %3 = arith.truncf %2 : vector<32x128xf32> to vector<32x128xbf16>
    %c0_3 = arith.constant 0 : index
    %c0_4 = arith.constant 0 : index
    %4 = vector.load %arg3[%c0_3, %c0_4] : memref<32x128xbf16, #tpu.memory_space<vmem>>, vector<32x128xbf16>
    tpu.vector_store %arg3[%c0_3, %c0_4], %3 {strides = array<i32>} : memref<32x128xbf16, #tpu.memory_space<vmem>>, vector<32x128xbf16>,
    %cst_5 = arith.constant dense<0.000000e+00> : vector<128xf32>
    %5 = vector.multi_reduction <add>, %2, %cst_5 [0] : vector<32x128xf32> to vector<128xf32>
    %6 = vector.shape_cast %5 : vector<128xf32> to vector<1x128xf32>
    %7 = arith.mulf %2, %2 : vector<32x128xf32>
    %cst_6 = arith.constant dense<0.000000e+00> : vector<128xf32>
    %8 = vector.multi_reduction <add>, %7, %cst_6 [0] : vector<32x128xf32> to vector<128xf32>
    %9 = vector.shape_cast %8 : vector<128xf32> to vector<1x128xf32>
    %10 = tpu.concatenate %6, %9 in 0 : vector<1x128xf32>, vector<1x128xf32> -> vector<2x128xf32>
    %11 = vector.shape_cast %10 : vector<2x128xf32> to vector<1x2x128xf32>
    %c0_7 = arith.constant 0 : index
    %c0_8 = arith.constant 0 : index
    %c0_9 = arith.constant 0 : index
    %12 = vector.load %arg4[%c0_7, %c0_8, %c0_9] : memref<1x2x128xf32, #tpu.memory_space<vmem>>, vector<1x2x128xf32>
    tpu.vector_store %arg4[%c0_7, %c0_8, %c0_9], %11 {strides = array<i32>} : memref<1x2x128xf32, #tpu.memory_space<vmem>>, vector<1x2x128xf32>,
    return
  }
  func.func @transform_0(%arg0: i32) -> (i32, i32) {
    %c0_i32 = arith.constant 0 : i32
    %c0_i32_0 = arith.constant 0 : i32
    return %arg0, %c0_i32 : i32, i32
  }
  func.func @transform_1(%arg0: i32) -> (i32, i32) {
    %c0_i32 = arith.constant 0 : i32
    %c0_i32_0 = arith.constant 0 : i32
    %c0_i32_1 = arith.constant 0 : i32
    return %c0_i32, %c0_i32_0 : i32, i32
  }
  func.func @transform_2(%arg0: i32) -> (i32, i32) {
    %c0_i32 = arith.constant 0 : i32
    %c0_i32_0 = arith.constant 0 : i32
    return %arg0, %c0_i32 : i32, i32
  }
  func.func @transform_3(%arg0: i32) -> (i32, i32, i32) {
    %c0_i32 = arith.constant 0 : i32
    %c0_i32_0 = arith.constant 0 : i32
    %c0_i32_1 = arith.constant 0 : i32
    return %arg0, %c0_i32, %c0_i32_0 : i32, i32, i32
  }
}

module attributes {stable_mosaic.version = 11 : i64} {
  func.func @_bn_apply_kernel(%arg0: i32, %arg1: memref<32x128xbf16, #tpu.memory_space<vmem>>, %arg2: memref<1x128xf32, #tpu.memory_space<vmem>>, %arg3: memref<1x128xf32, #tpu.memory_space<vmem>>, %arg4: memref<32x128xbf16, #tpu.memory_space<vmem>>) attributes {dimension_semantics = [#tpu.dimension_semantics<parallel>], iteration_bounds = array<i64: 1>, scalar_prefetch = 0 : i64, scratch_operands = 0 : i64, tpu.core_type = #tpu.core_type<tc>, window_params = [{transform_indices = @transform_0, window_bounds = array<i64: 32, 128>}, {pipeline_mode = #tpu.pipeline_mode<synchronous>, transform_indices = @transform_1, window_bounds = array<i64: 1, 128>}, {pipeline_mode = #tpu.pipeline_mode<synchronous>, transform_indices = @transform_2, window_bounds = array<i64: 1, 128>}, {transform_indices = @transform_3, window_bounds = array<i64: 32, 128>}]} {
    %c0 = arith.constant 0 : index
    %c0_0 = arith.constant 0 : index
    %0 = vector.load %arg1[%c0, %c0_0] : memref<32x128xbf16, #tpu.memory_space<vmem>>, vector<32x128xbf16>
    %1 = arith.extf %0 : vector<32x128xbf16> to vector<32x128xf32>
    %c0_1 = arith.constant 0 : index
    %c0_2 = arith.constant 0 : index
    %2 = vector.load %arg2[%c0_1, %c0_2] : memref<1x128xf32, #tpu.memory_space<vmem>>, vector<1x128xf32>
    %3 = vector.broadcast %2 : vector<1x128xf32> to vector<32x128xf32>
    %4 = arith.mulf %1, %3 : vector<32x128xf32>
    %c0_3 = arith.constant 0 : index
    %c0_4 = arith.constant 0 : index
    %5 = vector.load %arg3[%c0_3, %c0_4] : memref<1x128xf32, #tpu.memory_space<vmem>>, vector<1x128xf32>
    %6 = vector.broadcast %5 : vector<1x128xf32> to vector<32x128xf32>
    %7 = arith.addf %4, %6 : vector<32x128xf32>
    %cst = arith.constant 0.000000e+00 : f32
    %8 = vector.broadcast %cst : f32 to vector<32x128xf32>
    %9 = arith.maximumf %7, %8 : vector<32x128xf32>
    %10 = arith.truncf %9 : vector<32x128xf32> to vector<32x128xbf16>
    %c0_5 = arith.constant 0 : index
    %c0_6 = arith.constant 0 : index
    %11 = vector.load %arg4[%c0_5, %c0_6] : memref<32x128xbf16, #tpu.memory_space<vmem>>, vector<32x128xbf16>
    tpu.vector_store %arg4[%c0_5, %c0_6], %10 {strides = array<i32>} : memref<32x128xbf16, #tpu.memory_space<vmem>>, vector<32x128xbf16>,
    return
  }
  func.func @transform_0(%arg0: i32) -> (i32, i32) {
    %c0_i32 = arith.constant 0 : i32
    %c0_i32_0 = arith.constant 0 : i32
    return %arg0, %c0_i32 : i32, i32
  }
  func.func @transform_1(%arg0: i32) -> (i32, i32) {
    %c0_i32 = arith.constant 0 : i32
    %c0_i32_0 = arith.constant 0 : i32
    %c0_i32_1 = arith.constant 0 : i32
    return %c0_i32, %c0_i32_0 : i32, i32
  }
  func.func @transform_2(%arg0: i32) -> (i32, i32) {
    %c0_i32 = arith.constant 0 : i32
    %c0_i32_0 = arith.constant 0 : i32
    %c0_i32_1 = arith.constant 0 : i32
    return %c0_i32, %c0_i32_0 : i32, i32
  }
  func.func @transform_3(%arg0: i32) -> (i32, i32) {
    %c0_i32 = arith.constant 0 : i32
    %c0_i32_0 = arith.constant 0 : i32
    return %arg0, %c0_i32 : i32, i32
  }
}

module attributes {stable_mosaic.version = 11 : i64} {
  func.func @_matmul_stats_kernel(%arg0: i32, %arg1: memref<32x64xbf16, #tpu.memory_space<vmem>>, %arg2: memref<64x128xbf16, #tpu.memory_space<vmem>>, %arg3: memref<32x128xbf16, #tpu.memory_space<vmem>>, %arg4: memref<1x2x128xf32, #tpu.memory_space<vmem>>) attributes {dimension_semantics = [#tpu.dimension_semantics<parallel>], iteration_bounds = array<i64: 1>, scalar_prefetch = 0 : i64, scratch_operands = 0 : i64, tpu.core_type = #tpu.core_type<tc>, window_params = [{transform_indices = @transform_0, window_bounds = array<i64: 32, 64>}, {pipeline_mode = #tpu.pipeline_mode<synchronous>, transform_indices = @transform_1, window_bounds = array<i64: 64, 128>}, {transform_indices = @transform_2, window_bounds = array<i64: 32, 128>}, {transform_indices = @transform_3, window_bounds = array<i64: 1, 2, 128>}]} {
    %c0 = arith.constant 0 : index
    %c0_0 = arith.constant 0 : index
    %0 = vector.load %arg1[%c0, %c0_0] : memref<32x64xbf16, #tpu.memory_space<vmem>>, vector<32x64xbf16>
    %c0_1 = arith.constant 0 : index
    %c0_2 = arith.constant 0 : index
    %1 = vector.load %arg2[%c0_1, %c0_2] : memref<64x128xbf16, #tpu.memory_space<vmem>>, vector<64x128xbf16>
    %cst = arith.constant dense<0.000000e+00> : vector<32x128xf32>
    %2 = tpu.matmul %0, %1, %cst {dimension_numbers = #tpu.dot_dimension_numbers<[1], [0], [0], [1], [0, 0, 1, 1], [], []>} : vector<32x64xbf16>, vector<64x128xbf16>, vector<32x128xf32> -> vector<32x128xf32>
    %3 = arith.truncf %2 : vector<32x128xf32> to vector<32x128xbf16>
    %c0_3 = arith.constant 0 : index
    %c0_4 = arith.constant 0 : index
    %4 = vector.load %arg3[%c0_3, %c0_4] : memref<32x128xbf16, #tpu.memory_space<vmem>>, vector<32x128xbf16>
    tpu.vector_store %arg3[%c0_3, %c0_4], %3 {strides = array<i32>} : memref<32x128xbf16, #tpu.memory_space<vmem>>, vector<32x128xbf16>,
    %cst_5 = arith.constant dense<0.000000e+00> : vector<128xf32>
    %5 = vector.multi_reduction <add>, %2, %cst_5 [0] : vector<32x128xf32> to vector<128xf32>
    %6 = vector.shape_cast %5 : vector<128xf32> to vector<1x128xf32>
    %7 = arith.mulf %2, %2 : vector<32x128xf32>
    %cst_6 = arith.constant dense<0.000000e+00> : vector<128xf32>
    %8 = vector.multi_reduction <add>, %7, %cst_6 [0] : vector<32x128xf32> to vector<128xf32>
    %9 = vector.shape_cast %8 : vector<128xf32> to vector<1x128xf32>
    %10 = tpu.concatenate %6, %9 in 0 : vector<1x128xf32>, vector<1x128xf32> -> vector<2x128xf32>
    %11 = vector.shape_cast %10 : vector<2x128xf32> to vector<1x2x128xf32>
    %c0_7 = arith.constant 0 : index
    %c0_8 = arith.constant 0 : index
    %c0_9 = arith.constant 0 : index
    %12 = vector.load %arg4[%c0_7, %c0_8, %c0_9] : memref<1x2x128xf32, #tpu.memory_space<vmem>>, vector<1x2x128xf32>
    tpu.vector_store %arg4[%c0_7, %c0_8, %c0_9], %11 {strides = array<i32>} : memref<1x2x128xf32, #tpu.memory_space<vmem>>, vector<1x2x128xf32>,
    return
  }
  func.func @transform_0(%arg0: i32) -> (i32, i32) {
    %c0_i32 = arith.constant 0 : i32
    %c0_i32_0 = arith.constant 0 : i32
    return %arg0, %c0_i32 : i32, i32
  }
  func.func @transform_1(%arg0: i32) -> (i32, i32) {
    %c0_i32 = arith.constant 0 : i32
    %c0_i32_0 = arith.constant 0 : i32
    %c0_i32_1 = arith.constant 0 : i32
    return %c0_i32, %c0_i32_0 : i32, i32
  }
  func.func @transform_2(%arg0: i32) -> (i32, i32) {
    %c0_i32 = arith.constant 0 : i32
    %c0_i32_0 = arith.constant 0 : i32
    return %arg0, %c0_i32 : i32, i32
  }
  func.func @transform_3(%arg0: i32) -> (i32, i32, i32) {
    %c0_i32 = arith.constant 0 : i32
    %c0_i32_0 = arith.constant 0 : i32
    %c0_i32_1 = arith.constant 0 : i32
    return %arg0, %c0_i32, %c0_i32_0 : i32, i32, i32
  }
}

module attributes {stable_mosaic.version = 11 : i64} {
  func.func @_bn_apply_kernel(%arg0: i32, %arg1: memref<32x128xbf16, #tpu.memory_space<vmem>>, %arg2: memref<1x128xf32, #tpu.memory_space<vmem>>, %arg3: memref<1x128xf32, #tpu.memory_space<vmem>>, %arg4: memref<32x128xbf16, #tpu.memory_space<vmem>>) attributes {dimension_semantics = [#tpu.dimension_semantics<parallel>], iteration_bounds = array<i64: 1>, scalar_prefetch = 0 : i64, scratch_operands = 0 : i64, tpu.core_type = #tpu.core_type<tc>, window_params = [{transform_indices = @transform_0, window_bounds = array<i64: 32, 128>}, {pipeline_mode = #tpu.pipeline_mode<synchronous>, transform_indices = @transform_1, window_bounds = array<i64: 1, 128>}, {pipeline_mode = #tpu.pipeline_mode<synchronous>, transform_indices = @transform_2, window_bounds = array<i64: 1, 128>}, {transform_indices = @transform_3, window_bounds = array<i64: 32, 128>}]} {
    %c0 = arith.constant 0 : index
    %c0_0 = arith.constant 0 : index
    %0 = vector.load %arg1[%c0, %c0_0] : memref<32x128xbf16, #tpu.memory_space<vmem>>, vector<32x128xbf16>
    %1 = arith.extf %0 : vector<32x128xbf16> to vector<32x128xf32>
    %c0_1 = arith.constant 0 : index
    %c0_2 = arith.constant 0 : index
    %2 = vector.load %arg2[%c0_1, %c0_2] : memref<1x128xf32, #tpu.memory_space<vmem>>, vector<1x128xf32>
    %3 = vector.broadcast %2 : vector<1x128xf32> to vector<32x128xf32>
    %4 = arith.mulf %1, %3 : vector<32x128xf32>
    %c0_3 = arith.constant 0 : index
    %c0_4 = arith.constant 0 : index
    %5 = vector.load %arg3[%c0_3, %c0_4] : memref<1x128xf32, #tpu.memory_space<vmem>>, vector<1x128xf32>
    %6 = vector.broadcast %5 : vector<1x128xf32> to vector<32x128xf32>
    %7 = arith.addf %4, %6 : vector<32x128xf32>
    %8 = arith.truncf %7 : vector<32x128xf32> to vector<32x128xbf16>
    %c0_5 = arith.constant 0 : index
    %c0_6 = arith.constant 0 : index
    %9 = vector.load %arg4[%c0_5, %c0_6] : memref<32x128xbf16, #tpu.memory_space<vmem>>, vector<32x128xbf16>
    tpu.vector_store %arg4[%c0_5, %c0_6], %8 {strides = array<i32>} : memref<32x128xbf16, #tpu.memory_space<vmem>>, vector<32x128xbf16>,
    return
  }
  func.func @transform_0(%arg0: i32) -> (i32, i32) {
    %c0_i32 = arith.constant 0 : i32
    %c0_i32_0 = arith.constant 0 : i32
    return %arg0, %c0_i32 : i32, i32
  }
  func.func @transform_1(%arg0: i32) -> (i32, i32) {
    %c0_i32 = arith.constant 0 : i32
    %c0_i32_0 = arith.constant 0 : i32
    %c0_i32_1 = arith.constant 0 : i32
    return %c0_i32, %c0_i32_0 : i32, i32
  }
  func.func @transform_2(%arg0: i32) -> (i32, i32) {
    %c0_i32 = arith.constant 0 : i32
    %c0_i32_0 = arith.constant 0 : i32
    %c0_i32_1 = arith.constant 0 : i32
    return %c0_i32, %c0_i32_0 : i32, i32
  }
  func.func @transform_3(%arg0: i32) -> (i32, i32) {
    %c0_i32 = arith.constant 0 : i32
    %c0_i32_0 = arith.constant 0 : i32
    return %arg0, %c0_i32 : i32, i32
  }
}

module attributes {stable_mosaic.version = 11 : i64} {
  func.func @_bn_apply_add_relu_kernel(%arg0: i32, %arg1: memref<32x128xbf16, #tpu.memory_space<vmem>>, %arg2: memref<32x128xbf16, #tpu.memory_space<vmem>>, %arg3: memref<1x128xf32, #tpu.memory_space<vmem>>, %arg4: memref<1x128xf32, #tpu.memory_space<vmem>>, %arg5: memref<32x128xbf16, #tpu.memory_space<vmem>>) attributes {dimension_semantics = [#tpu.dimension_semantics<parallel>], iteration_bounds = array<i64: 1>, scalar_prefetch = 0 : i64, scratch_operands = 0 : i64, tpu.core_type = #tpu.core_type<tc>, window_params = [{transform_indices = @transform_0, window_bounds = array<i64: 32, 128>}, {transform_indices = @transform_1, window_bounds = array<i64: 32, 128>}, {pipeline_mode = #tpu.pipeline_mode<synchronous>, transform_indices = @transform_2, window_bounds = array<i64: 1, 128>}, {pipeline_mode = #tpu.pipeline_mode<synchronous>, transform_indices = @transform_3, window_bounds = array<i64: 1, 128>}, {transform_indices = @transform_4, window_bounds = array<i64: 32, 128>}]} {
    %c0 = arith.constant 0 : index
    %c0_0 = arith.constant 0 : index
    %0 = vector.load %arg1[%c0, %c0_0] : memref<32x128xbf16, #tpu.memory_space<vmem>>, vector<32x128xbf16>
    %1 = arith.extf %0 : vector<32x128xbf16> to vector<32x128xf32>
    %c0_1 = arith.constant 0 : index
    %c0_2 = arith.constant 0 : index
    %2 = vector.load %arg3[%c0_1, %c0_2] : memref<1x128xf32, #tpu.memory_space<vmem>>, vector<1x128xf32>
    %3 = vector.broadcast %2 : vector<1x128xf32> to vector<32x128xf32>
    %4 = arith.mulf %1, %3 : vector<32x128xf32>
    %c0_3 = arith.constant 0 : index
    %c0_4 = arith.constant 0 : index
    %5 = vector.load %arg4[%c0_3, %c0_4] : memref<1x128xf32, #tpu.memory_space<vmem>>, vector<1x128xf32>
    %6 = vector.broadcast %5 : vector<1x128xf32> to vector<32x128xf32>
    %7 = arith.addf %4, %6 : vector<32x128xf32>
    %c0_5 = arith.constant 0 : index
    %c0_6 = arith.constant 0 : index
    %8 = vector.load %arg2[%c0_5, %c0_6] : memref<32x128xbf16, #tpu.memory_space<vmem>>, vector<32x128xbf16>
    %9 = arith.extf %8 : vector<32x128xbf16> to vector<32x128xf32>
    %10 = arith.addf %7, %9 : vector<32x128xf32>
    %cst = arith.constant 0.000000e+00 : f32
    %11 = vector.broadcast %cst : f32 to vector<32x128xf32>
    %12 = arith.maximumf %10, %11 : vector<32x128xf32>
    %13 = arith.truncf %12 : vector<32x128xf32> to vector<32x128xbf16>
    %c0_7 = arith.constant 0 : index
    %c0_8 = arith.constant 0 : index
    %14 = vector.load %arg5[%c0_7, %c0_8] : memref<32x128xbf16, #tpu.memory_space<vmem>>, vector<32x128xbf16>
    tpu.vector_store %arg5[%c0_7, %c0_8], %13 {strides = array<i32>} : memref<32x128xbf16, #tpu.memory_space<vmem>>, vector<32x128xbf16>,
    return
  }
  func.func @transform_0(%arg0: i32) -> (i32, i32) {
    %c0_i32 = arith.constant 0 : i32
    %c0_i32_0 = arith.constant 0 : i32
    return %arg0, %c0_i32 : i32, i32
  }
  func.func @transform_1(%arg0: i32) -> (i32, i32) {
    %c0_i32 = arith.constant 0 : i32
    %c0_i32_0 = arith.constant 0 : i32
    return %arg0, %c0_i32 : i32, i32
  }
  func.func @transform_2(%arg0: i32) -> (i32, i32) {
    %c0_i32 = arith.constant 0 : i32
    %c0_i32_0 = arith.constant 0 : i32
    %c0_i32_1 = arith.constant 0 : i32
    return %c0_i32, %c0_i32_0 : i32, i32
  }
  func.func @transform_3(%arg0: i32) -> (i32, i32) {
    %c0_i32 = arith.constant 0 : i32
    %c0_i32_0 = arith.constant 0 : i32
    %c0_i32_1 = arith.constant 0 : i32
    return %c0_i32, %c0_i32_0 : i32, i32
  }
  func.func @transform_4(%arg0: i32) -> (i32, i32) {
    %c0_i32 = arith.constant 0 : i32
    %c0_i32_0 = arith.constant 0 : i32
    return %arg0, %c0_i32 : i32, i32
  }
}

module attributes {stable_mosaic.version = 11 : i64} {
  func.func @_matmul_stats_kernel(%arg0: i32, %arg1: memref<8x1152xbf16, #tpu.memory_space<vmem>>, %arg2: memref<1152x256xbf16, #tpu.memory_space<vmem>>, %arg3: memref<8x256xbf16, #tpu.memory_space<vmem>>, %arg4: memref<1x2x256xf32, #tpu.memory_space<vmem>>) attributes {dimension_semantics = [#tpu.dimension_semantics<parallel>], iteration_bounds = array<i64: 1>, scalar_prefetch = 0 : i64, scratch_operands = 0 : i64, tpu.core_type = #tpu.core_type<tc>, window_params = [{transform_indices = @transform_0, window_bounds = array<i64: 8, 1152>}, {pipeline_mode = #tpu.pipeline_mode<synchronous>, transform_indices = @transform_1, window_bounds = array<i64: 1152, 256>}, {transform_indices = @transform_2, window_bounds = array<i64: 8, 256>}, {transform_indices = @transform_3, window_bounds = array<i64: 1, 2, 256>}]} {
    %c0 = arith.constant 0 : index
    %c0_0 = arith.constant 0 : index
    %0 = vector.load %arg1[%c0, %c0_0] : memref<8x1152xbf16, #tpu.memory_space<vmem>>, vector<8x1152xbf16>
    %c0_1 = arith.constant 0 : index
    %c0_2 = arith.constant 0 : index
    %1 = vector.load %arg2[%c0_1, %c0_2] : memref<1152x256xbf16, #tpu.memory_space<vmem>>, vector<1152x256xbf16>
    %cst = arith.constant dense<0.000000e+00> : vector<8x256xf32>
    %2 = tpu.matmul %0, %1, %cst {dimension_numbers = #tpu.dot_dimension_numbers<[1], [0], [0], [1], [0, 0, 1, 1], [], []>} : vector<8x1152xbf16>, vector<1152x256xbf16>, vector<8x256xf32> -> vector<8x256xf32>
    %3 = arith.truncf %2 : vector<8x256xf32> to vector<8x256xbf16>
    %c0_3 = arith.constant 0 : index
    %c0_4 = arith.constant 0 : index
    %4 = vector.load %arg3[%c0_3, %c0_4] : memref<8x256xbf16, #tpu.memory_space<vmem>>, vector<8x256xbf16>
    tpu.vector_store %arg3[%c0_3, %c0_4], %3 {strides = array<i32>} : memref<8x256xbf16, #tpu.memory_space<vmem>>, vector<8x256xbf16>,
    %cst_5 = arith.constant dense<0.000000e+00> : vector<256xf32>
    %5 = vector.multi_reduction <add>, %2, %cst_5 [0] : vector<8x256xf32> to vector<256xf32>
    %6 = vector.shape_cast %5 : vector<256xf32> to vector<1x256xf32>
    %7 = arith.mulf %2, %2 : vector<8x256xf32>
    %cst_6 = arith.constant dense<0.000000e+00> : vector<256xf32>
    %8 = vector.multi_reduction <add>, %7, %cst_6 [0] : vector<8x256xf32> to vector<256xf32>
    %9 = vector.shape_cast %8 : vector<256xf32> to vector<1x256xf32>
    %10 = tpu.concatenate %6, %9 in 0 : vector<1x256xf32>, vector<1x256xf32> -> vector<2x256xf32>
    %11 = vector.shape_cast %10 : vector<2x256xf32> to vector<1x2x256xf32>
    %c0_7 = arith.constant 0 : index
    %c0_8 = arith.constant 0 : index
    %c0_9 = arith.constant 0 : index
    %12 = vector.load %arg4[%c0_7, %c0_8, %c0_9] : memref<1x2x256xf32, #tpu.memory_space<vmem>>, vector<1x2x256xf32>
    tpu.vector_store %arg4[%c0_7, %c0_8, %c0_9], %11 {strides = array<i32>} : memref<1x2x256xf32, #tpu.memory_space<vmem>>, vector<1x2x256xf32>,
    return
  }
  func.func @transform_0(%arg0: i32) -> (i32, i32) {
    %c0_i32 = arith.constant 0 : i32
    %c0_i32_0 = arith.constant 0 : i32
    return %arg0, %c0_i32 : i32, i32
  }
  func.func @transform_1(%arg0: i32) -> (i32, i32) {
    %c0_i32 = arith.constant 0 : i32
    %c0_i32_0 = arith.constant 0 : i32
    %c0_i32_1 = arith.constant 0 : i32
    return %c0_i32, %c0_i32_0 : i32, i32
  }
  func.func @transform_2(%arg0: i32) -> (i32, i32) {
    %c0_i32 = arith.constant 0 : i32
    %c0_i32_0 = arith.constant 0 : i32
    return %arg0, %c0_i32 : i32, i32
  }
  func.func @transform_3(%arg0: i32) -> (i32, i32, i32) {
    %c0_i32 = arith.constant 0 : i32
    %c0_i32_0 = arith.constant 0 : i32
    %c0_i32_1 = arith.constant 0 : i32
    return %arg0, %c0_i32, %c0_i32_0 : i32, i32, i32
  }
}

module attributes {stable_mosaic.version = 11 : i64} {
  func.func @_bn_apply_kernel(%arg0: i32, %arg1: memref<8x256xbf16, #tpu.memory_space<vmem>>, %arg2: memref<1x256xf32, #tpu.memory_space<vmem>>, %arg3: memref<1x256xf32, #tpu.memory_space<vmem>>, %arg4: memref<8x256xbf16, #tpu.memory_space<vmem>>) attributes {dimension_semantics = [#tpu.dimension_semantics<parallel>], iteration_bounds = array<i64: 1>, scalar_prefetch = 0 : i64, scratch_operands = 0 : i64, tpu.core_type = #tpu.core_type<tc>, window_params = [{transform_indices = @transform_0, window_bounds = array<i64: 8, 256>}, {pipeline_mode = #tpu.pipeline_mode<synchronous>, transform_indices = @transform_1, window_bounds = array<i64: 1, 256>}, {pipeline_mode = #tpu.pipeline_mode<synchronous>, transform_indices = @transform_2, window_bounds = array<i64: 1, 256>}, {transform_indices = @transform_3, window_bounds = array<i64: 8, 256>}]} {
    %c0 = arith.constant 0 : index
    %c0_0 = arith.constant 0 : index
    %0 = vector.load %arg1[%c0, %c0_0] : memref<8x256xbf16, #tpu.memory_space<vmem>>, vector<8x256xbf16>
    %1 = arith.extf %0 : vector<8x256xbf16> to vector<8x256xf32>
    %c0_1 = arith.constant 0 : index
    %c0_2 = arith.constant 0 : index
    %2 = vector.load %arg2[%c0_1, %c0_2] : memref<1x256xf32, #tpu.memory_space<vmem>>, vector<1x256xf32>
    %3 = vector.broadcast %2 : vector<1x256xf32> to vector<8x256xf32>
    %4 = arith.mulf %1, %3 : vector<8x256xf32>
    %c0_3 = arith.constant 0 : index
    %c0_4 = arith.constant 0 : index
    %5 = vector.load %arg3[%c0_3, %c0_4] : memref<1x256xf32, #tpu.memory_space<vmem>>, vector<1x256xf32>
    %6 = vector.broadcast %5 : vector<1x256xf32> to vector<8x256xf32>
    %7 = arith.addf %4, %6 : vector<8x256xf32>
    %cst = arith.constant 0.000000e+00 : f32
    %8 = vector.broadcast %cst : f32 to vector<8x256xf32>
    %9 = arith.maximumf %7, %8 : vector<8x256xf32>
    %10 = arith.truncf %9 : vector<8x256xf32> to vector<8x256xbf16>
    %c0_5 = arith.constant 0 : index
    %c0_6 = arith.constant 0 : index
    %11 = vector.load %arg4[%c0_5, %c0_6] : memref<8x256xbf16, #tpu.memory_space<vmem>>, vector<8x256xbf16>
    tpu.vector_store %arg4[%c0_5, %c0_6], %10 {strides = array<i32>} : memref<8x256xbf16, #tpu.memory_space<vmem>>, vector<8x256xbf16>,
    return
  }
  func.func @transform_0(%arg0: i32) -> (i32, i32) {
    %c0_i32 = arith.constant 0 : i32
    %c0_i32_0 = arith.constant 0 : i32
    return %arg0, %c0_i32 : i32, i32
  }
  func.func @transform_1(%arg0: i32) -> (i32, i32) {
    %c0_i32 = arith.constant 0 : i32
    %c0_i32_0 = arith.constant 0 : i32
    %c0_i32_1 = arith.constant 0 : i32
    return %c0_i32, %c0_i32_0 : i32, i32
  }
  func.func @transform_2(%arg0: i32) -> (i32, i32) {
    %c0_i32 = arith.constant 0 : i32
    %c0_i32_0 = arith.constant 0 : i32
    %c0_i32_1 = arith.constant 0 : i32
    return %c0_i32, %c0_i32_0 : i32, i32
  }
  func.func @transform_3(%arg0: i32) -> (i32, i32) {
    %c0_i32 = arith.constant 0 : i32
    %c0_i32_0 = arith.constant 0 : i32
    return %arg0, %c0_i32 : i32, i32
  }
}

module attributes {stable_mosaic.version = 11 : i64} {
  func.func @_matmul_stats_kernel(%arg0: i32, %arg1: memref<8x2304xbf16, #tpu.memory_space<vmem>>, %arg2: memref<2304x256xbf16, #tpu.memory_space<vmem>>, %arg3: memref<8x256xbf16, #tpu.memory_space<vmem>>, %arg4: memref<1x2x256xf32, #tpu.memory_space<vmem>>) attributes {dimension_semantics = [#tpu.dimension_semantics<parallel>], iteration_bounds = array<i64: 1>, scalar_prefetch = 0 : i64, scratch_operands = 0 : i64, tpu.core_type = #tpu.core_type<tc>, window_params = [{transform_indices = @transform_0, window_bounds = array<i64: 8, 2304>}, {pipeline_mode = #tpu.pipeline_mode<synchronous>, transform_indices = @transform_1, window_bounds = array<i64: 2304, 256>}, {transform_indices = @transform_2, window_bounds = array<i64: 8, 256>}, {transform_indices = @transform_3, window_bounds = array<i64: 1, 2, 256>}]} {
    %c0 = arith.constant 0 : index
    %c0_0 = arith.constant 0 : index
    %0 = vector.load %arg1[%c0, %c0_0] : memref<8x2304xbf16, #tpu.memory_space<vmem>>, vector<8x2304xbf16>
    %c0_1 = arith.constant 0 : index
    %c0_2 = arith.constant 0 : index
    %1 = vector.load %arg2[%c0_1, %c0_2] : memref<2304x256xbf16, #tpu.memory_space<vmem>>, vector<2304x256xbf16>
    %cst = arith.constant dense<0.000000e+00> : vector<8x256xf32>
    %2 = tpu.matmul %0, %1, %cst {dimension_numbers = #tpu.dot_dimension_numbers<[1], [0], [0], [1], [0, 0, 1, 1], [], []>} : vector<8x2304xbf16>, vector<2304x256xbf16>, vector<8x256xf32> -> vector<8x256xf32>
    %3 = arith.truncf %2 : vector<8x256xf32> to vector<8x256xbf16>
    %c0_3 = arith.constant 0 : index
    %c0_4 = arith.constant 0 : index
    %4 = vector.load %arg3[%c0_3, %c0_4] : memref<8x256xbf16, #tpu.memory_space<vmem>>, vector<8x256xbf16>
    tpu.vector_store %arg3[%c0_3, %c0_4], %3 {strides = array<i32>} : memref<8x256xbf16, #tpu.memory_space<vmem>>, vector<8x256xbf16>,
    %cst_5 = arith.constant dense<0.000000e+00> : vector<256xf32>
    %5 = vector.multi_reduction <add>, %2, %cst_5 [0] : vector<8x256xf32> to vector<256xf32>
    %6 = vector.shape_cast %5 : vector<256xf32> to vector<1x256xf32>
    %7 = arith.mulf %2, %2 : vector<8x256xf32>
    %cst_6 = arith.constant dense<0.000000e+00> : vector<256xf32>
    %8 = vector.multi_reduction <add>, %7, %cst_6 [0] : vector<8x256xf32> to vector<256xf32>
    %9 = vector.shape_cast %8 : vector<256xf32> to vector<1x256xf32>
    %10 = tpu.concatenate %6, %9 in 0 : vector<1x256xf32>, vector<1x256xf32> -> vector<2x256xf32>
    %11 = vector.shape_cast %10 : vector<2x256xf32> to vector<1x2x256xf32>
    %c0_7 = arith.constant 0 : index
    %c0_8 = arith.constant 0 : index
    %c0_9 = arith.constant 0 : index
    %12 = vector.load %arg4[%c0_7, %c0_8, %c0_9] : memref<1x2x256xf32, #tpu.memory_space<vmem>>, vector<1x2x256xf32>
    tpu.vector_store %arg4[%c0_7, %c0_8, %c0_9], %11 {strides = array<i32>} : memref<1x2x256xf32, #tpu.memory_space<vmem>>, vector<1x2x256xf32>,
    return
  }
  func.func @transform_0(%arg0: i32) -> (i32, i32) {
    %c0_i32 = arith.constant 0 : i32
    %c0_i32_0 = arith.constant 0 : i32
    return %arg0, %c0_i32 : i32, i32
  }
  func.func @transform_1(%arg0: i32) -> (i32, i32) {
    %c0_i32 = arith.constant 0 : i32
    %c0_i32_0 = arith.constant 0 : i32
    %c0_i32_1 = arith.constant 0 : i32
    return %c0_i32, %c0_i32_0 : i32, i32
  }
  func.func @transform_2(%arg0: i32) -> (i32, i32) {
    %c0_i32 = arith.constant 0 : i32
    %c0_i32_0 = arith.constant 0 : i32
    return %arg0, %c0_i32 : i32, i32
  }
  func.func @transform_3(%arg0: i32) -> (i32, i32, i32) {
    %c0_i32 = arith.constant 0 : i32
    %c0_i32_0 = arith.constant 0 : i32
    %c0_i32_1 = arith.constant 0 : i32
    return %arg0, %c0_i32, %c0_i32_0 : i32, i32, i32
  }
}

module attributes {stable_mosaic.version = 11 : i64} {
  func.func @_matmul_stats_kernel(%arg0: i32, %arg1: memref<8x128xbf16, #tpu.memory_space<vmem>>, %arg2: memref<128x256xbf16, #tpu.memory_space<vmem>>, %arg3: memref<8x256xbf16, #tpu.memory_space<vmem>>, %arg4: memref<1x2x256xf32, #tpu.memory_space<vmem>>) attributes {dimension_semantics = [#tpu.dimension_semantics<parallel>], iteration_bounds = array<i64: 1>, scalar_prefetch = 0 : i64, scratch_operands = 0 : i64, tpu.core_type = #tpu.core_type<tc>, window_params = [{transform_indices = @transform_0, window_bounds = array<i64: 8, 128>}, {pipeline_mode = #tpu.pipeline_mode<synchronous>, transform_indices = @transform_1, window_bounds = array<i64: 128, 256>}, {transform_indices = @transform_2, window_bounds = array<i64: 8, 256>}, {transform_indices = @transform_3, window_bounds = array<i64: 1, 2, 256>}]} {
    %c0 = arith.constant 0 : index
    %c0_0 = arith.constant 0 : index
    %0 = vector.load %arg1[%c0, %c0_0] : memref<8x128xbf16, #tpu.memory_space<vmem>>, vector<8x128xbf16>
    %c0_1 = arith.constant 0 : index
    %c0_2 = arith.constant 0 : index
    %1 = vector.load %arg2[%c0_1, %c0_2] : memref<128x256xbf16, #tpu.memory_space<vmem>>, vector<128x256xbf16>
    %cst = arith.constant dense<0.000000e+00> : vector<8x256xf32>
    %2 = tpu.matmul %0, %1, %cst {dimension_numbers = #tpu.dot_dimension_numbers<[1], [0], [0], [1], [0, 0, 1, 1], [], []>} : vector<8x128xbf16>, vector<128x256xbf16>, vector<8x256xf32> -> vector<8x256xf32>
    %3 = arith.truncf %2 : vector<8x256xf32> to vector<8x256xbf16>
    %c0_3 = arith.constant 0 : index
    %c0_4 = arith.constant 0 : index
    %4 = vector.load %arg3[%c0_3, %c0_4] : memref<8x256xbf16, #tpu.memory_space<vmem>>, vector<8x256xbf16>
    tpu.vector_store %arg3[%c0_3, %c0_4], %3 {strides = array<i32>} : memref<8x256xbf16, #tpu.memory_space<vmem>>, vector<8x256xbf16>,
    %cst_5 = arith.constant dense<0.000000e+00> : vector<256xf32>
    %5 = vector.multi_reduction <add>, %2, %cst_5 [0] : vector<8x256xf32> to vector<256xf32>
    %6 = vector.shape_cast %5 : vector<256xf32> to vector<1x256xf32>
    %7 = arith.mulf %2, %2 : vector<8x256xf32>
    %cst_6 = arith.constant dense<0.000000e+00> : vector<256xf32>
    %8 = vector.multi_reduction <add>, %7, %cst_6 [0] : vector<8x256xf32> to vector<256xf32>
    %9 = vector.shape_cast %8 : vector<256xf32> to vector<1x256xf32>
    %10 = tpu.concatenate %6, %9 in 0 : vector<1x256xf32>, vector<1x256xf32> -> vector<2x256xf32>
    %11 = vector.shape_cast %10 : vector<2x256xf32> to vector<1x2x256xf32>
    %c0_7 = arith.constant 0 : index
    %c0_8 = arith.constant 0 : index
    %c0_9 = arith.constant 0 : index
    %12 = vector.load %arg4[%c0_7, %c0_8, %c0_9] : memref<1x2x256xf32, #tpu.memory_space<vmem>>, vector<1x2x256xf32>
    tpu.vector_store %arg4[%c0_7, %c0_8, %c0_9], %11 {strides = array<i32>} : memref<1x2x256xf32, #tpu.memory_space<vmem>>, vector<1x2x256xf32>,
    return
  }
  func.func @transform_0(%arg0: i32) -> (i32, i32) {
    %c0_i32 = arith.constant 0 : i32
    %c0_i32_0 = arith.constant 0 : i32
    return %arg0, %c0_i32 : i32, i32
  }
  func.func @transform_1(%arg0: i32) -> (i32, i32) {
    %c0_i32 = arith.constant 0 : i32
    %c0_i32_0 = arith.constant 0 : i32
    %c0_i32_1 = arith.constant 0 : i32
    return %c0_i32, %c0_i32_0 : i32, i32
  }
  func.func @transform_2(%arg0: i32) -> (i32, i32) {
    %c0_i32 = arith.constant 0 : i32
    %c0_i32_0 = arith.constant 0 : i32
    return %arg0, %c0_i32 : i32, i32
  }
  func.func @transform_3(%arg0: i32) -> (i32, i32, i32) {
    %c0_i32 = arith.constant 0 : i32
    %c0_i32_0 = arith.constant 0 : i32
    %c0_i32_1 = arith.constant 0 : i32
    return %arg0, %c0_i32, %c0_i32_0 : i32, i32, i32
  }
}

module attributes {stable_mosaic.version = 11 : i64} {
  func.func @_bn_apply_kernel(%arg0: i32, %arg1: memref<8x256xbf16, #tpu.memory_space<vmem>>, %arg2: memref<1x256xf32, #tpu.memory_space<vmem>>, %arg3: memref<1x256xf32, #tpu.memory_space<vmem>>, %arg4: memref<8x256xbf16, #tpu.memory_space<vmem>>) attributes {dimension_semantics = [#tpu.dimension_semantics<parallel>], iteration_bounds = array<i64: 1>, scalar_prefetch = 0 : i64, scratch_operands = 0 : i64, tpu.core_type = #tpu.core_type<tc>, window_params = [{transform_indices = @transform_0, window_bounds = array<i64: 8, 256>}, {pipeline_mode = #tpu.pipeline_mode<synchronous>, transform_indices = @transform_1, window_bounds = array<i64: 1, 256>}, {pipeline_mode = #tpu.pipeline_mode<synchronous>, transform_indices = @transform_2, window_bounds = array<i64: 1, 256>}, {transform_indices = @transform_3, window_bounds = array<i64: 8, 256>}]} {
    %c0 = arith.constant 0 : index
    %c0_0 = arith.constant 0 : index
    %0 = vector.load %arg1[%c0, %c0_0] : memref<8x256xbf16, #tpu.memory_space<vmem>>, vector<8x256xbf16>
    %1 = arith.extf %0 : vector<8x256xbf16> to vector<8x256xf32>
    %c0_1 = arith.constant 0 : index
    %c0_2 = arith.constant 0 : index
    %2 = vector.load %arg2[%c0_1, %c0_2] : memref<1x256xf32, #tpu.memory_space<vmem>>, vector<1x256xf32>
    %3 = vector.broadcast %2 : vector<1x256xf32> to vector<8x256xf32>
    %4 = arith.mulf %1, %3 : vector<8x256xf32>
    %c0_3 = arith.constant 0 : index
    %c0_4 = arith.constant 0 : index
    %5 = vector.load %arg3[%c0_3, %c0_4] : memref<1x256xf32, #tpu.memory_space<vmem>>, vector<1x256xf32>
    %6 = vector.broadcast %5 : vector<1x256xf32> to vector<8x256xf32>
    %7 = arith.addf %4, %6 : vector<8x256xf32>
    %8 = arith.truncf %7 : vector<8x256xf32> to vector<8x256xbf16>
    %c0_5 = arith.constant 0 : index
    %c0_6 = arith.constant 0 : index
    %9 = vector.load %arg4[%c0_5, %c0_6] : memref<8x256xbf16, #tpu.memory_space<vmem>>, vector<8x256xbf16>
    tpu.vector_store %arg4[%c0_5, %c0_6], %8 {strides = array<i32>} : memref<8x256xbf16, #tpu.memory_space<vmem>>, vector<8x256xbf16>,
    return
  }
  func.func @transform_0(%arg0: i32) -> (i32, i32) {
    %c0_i32 = arith.constant 0 : i32
    %c0_i32_0 = arith.constant 0 : i32
    return %arg0, %c0_i32 : i32, i32
  }
  func.func @transform_1(%arg0: i32) -> (i32, i32) {
    %c0_i32 = arith.constant 0 : i32
    %c0_i32_0 = arith.constant 0 : i32
    %c0_i32_1 = arith.constant 0 : i32
    return %c0_i32, %c0_i32_0 : i32, i32
  }
  func.func @transform_2(%arg0: i32) -> (i32, i32) {
    %c0_i32 = arith.constant 0 : i32
    %c0_i32_0 = arith.constant 0 : i32
    %c0_i32_1 = arith.constant 0 : i32
    return %c0_i32, %c0_i32_0 : i32, i32
  }
  func.func @transform_3(%arg0: i32) -> (i32, i32) {
    %c0_i32 = arith.constant 0 : i32
    %c0_i32_0 = arith.constant 0 : i32
    return %arg0, %c0_i32 : i32, i32
  }
}

module attributes {stable_mosaic.version = 11 : i64} {
  func.func @_bn_apply_add_relu_kernel(%arg0: i32, %arg1: memref<8x256xbf16, #tpu.memory_space<vmem>>, %arg2: memref<8x256xbf16, #tpu.memory_space<vmem>>, %arg3: memref<1x256xf32, #tpu.memory_space<vmem>>, %arg4: memref<1x256xf32, #tpu.memory_space<vmem>>, %arg5: memref<8x256xbf16, #tpu.memory_space<vmem>>) attributes {dimension_semantics = [#tpu.dimension_semantics<parallel>], iteration_bounds = array<i64: 1>, scalar_prefetch = 0 : i64, scratch_operands = 0 : i64, tpu.core_type = #tpu.core_type<tc>, window_params = [{transform_indices = @transform_0, window_bounds = array<i64: 8, 256>}, {transform_indices = @transform_1, window_bounds = array<i64: 8, 256>}, {pipeline_mode = #tpu.pipeline_mode<synchronous>, transform_indices = @transform_2, window_bounds = array<i64: 1, 256>}, {pipeline_mode = #tpu.pipeline_mode<synchronous>, transform_indices = @transform_3, window_bounds = array<i64: 1, 256>}, {transform_indices = @transform_4, window_bounds = array<i64: 8, 256>}]} {
    %c0 = arith.constant 0 : index
    %c0_0 = arith.constant 0 : index
    %0 = vector.load %arg1[%c0, %c0_0] : memref<8x256xbf16, #tpu.memory_space<vmem>>, vector<8x256xbf16>
    %1 = arith.extf %0 : vector<8x256xbf16> to vector<8x256xf32>
    %c0_1 = arith.constant 0 : index
    %c0_2 = arith.constant 0 : index
    %2 = vector.load %arg3[%c0_1, %c0_2] : memref<1x256xf32, #tpu.memory_space<vmem>>, vector<1x256xf32>
    %3 = vector.broadcast %2 : vector<1x256xf32> to vector<8x256xf32>
    %4 = arith.mulf %1, %3 : vector<8x256xf32>
    %c0_3 = arith.constant 0 : index
    %c0_4 = arith.constant 0 : index
    %5 = vector.load %arg4[%c0_3, %c0_4] : memref<1x256xf32, #tpu.memory_space<vmem>>, vector<1x256xf32>
    %6 = vector.broadcast %5 : vector<1x256xf32> to vector<8x256xf32>
    %7 = arith.addf %4, %6 : vector<8x256xf32>
    %c0_5 = arith.constant 0 : index
    %c0_6 = arith.constant 0 : index
    %8 = vector.load %arg2[%c0_5, %c0_6] : memref<8x256xbf16, #tpu.memory_space<vmem>>, vector<8x256xbf16>
    %9 = arith.extf %8 : vector<8x256xbf16> to vector<8x256xf32>
    %10 = arith.addf %7, %9 : vector<8x256xf32>
    %cst = arith.constant 0.000000e+00 : f32
    %11 = vector.broadcast %cst : f32 to vector<8x256xf32>
    %12 = arith.maximumf %10, %11 : vector<8x256xf32>
    %13 = arith.truncf %12 : vector<8x256xf32> to vector<8x256xbf16>
    %c0_7 = arith.constant 0 : index
    %c0_8 = arith.constant 0 : index
    %14 = vector.load %arg5[%c0_7, %c0_8] : memref<8x256xbf16, #tpu.memory_space<vmem>>, vector<8x256xbf16>
    tpu.vector_store %arg5[%c0_7, %c0_8], %13 {strides = array<i32>} : memref<8x256xbf16, #tpu.memory_space<vmem>>, vector<8x256xbf16>,
    return
  }
  func.func @transform_0(%arg0: i32) -> (i32, i32) {
    %c0_i32 = arith.constant 0 : i32
    %c0_i32_0 = arith.constant 0 : i32
    return %arg0, %c0_i32 : i32, i32
  }
  func.func @transform_1(%arg0: i32) -> (i32, i32) {
    %c0_i32 = arith.constant 0 : i32
    %c0_i32_0 = arith.constant 0 : i32
    return %arg0, %c0_i32 : i32, i32
  }
  func.func @transform_2(%arg0: i32) -> (i32, i32) {
    %c0_i32 = arith.constant 0 : i32
    %c0_i32_0 = arith.constant 0 : i32
    %c0_i32_1 = arith.constant 0 : i32
    return %c0_i32, %c0_i32_0 : i32, i32
  }
  func.func @transform_3(%arg0: i32) -> (i32, i32) {
    %c0_i32 = arith.constant 0 : i32
    %c0_i32_0 = arith.constant 0 : i32
    %c0_i32_1 = arith.constant 0 : i32
    return %c0_i32, %c0_i32_0 : i32, i32
  }
  func.func @transform_4(%arg0: i32) -> (i32, i32) {
    %c0_i32 = arith.constant 0 : i32
    %c0_i32_0 = arith.constant 0 : i32
    return %arg0, %c0_i32 : i32, i32
  }
}

module attributes {stable_mosaic.version = 11 : i64} {
  func.func @_head_kernel(%arg0: i32, %arg1: memref<1x4x256xbf16, #tpu.memory_space<vmem>>, %arg2: memref<256x16xf32, #tpu.memory_space<vmem>>, %arg3: memref<1x16xf32, #tpu.memory_space<vmem>>, %arg4: memref<1x1x16xf32, #tpu.memory_space<vmem>>) attributes {dimension_semantics = [#tpu.dimension_semantics<parallel>], iteration_bounds = array<i64: 2>, scalar_prefetch = 0 : i64, scratch_operands = 0 : i64, tpu.core_type = #tpu.core_type<tc>, window_params = [{transform_indices = @transform_0, window_bounds = array<i64: 1, 4, 256>}, {pipeline_mode = #tpu.pipeline_mode<synchronous>, transform_indices = @transform_1, window_bounds = array<i64: 256, 16>}, {pipeline_mode = #tpu.pipeline_mode<synchronous>, transform_indices = @transform_2, window_bounds = array<i64: 1, 16>}, {transform_indices = @transform_3, window_bounds = array<i64: 1, 1, 16>}]} {
    %c0 = arith.constant 0 : index
    %c0_0 = arith.constant 0 : index
    %c0_1 = arith.constant 0 : index
    %0 = vector.load %arg1[%c0, %c0_0, %c0_1] : memref<1x4x256xbf16, #tpu.memory_space<vmem>>, vector<1x4x256xbf16>
    %1 = vector.shape_cast %0 : vector<1x4x256xbf16> to vector<4x256xbf16>
    %2 = arith.extf %1 : vector<4x256xbf16> to vector<4x256xf32>
    %cst = arith.constant dense<0.000000e+00> : vector<256xf32>
    %3 = vector.multi_reduction <add>, %2, %cst [0] : vector<4x256xf32> to vector<256xf32>
    %4 = vector.shape_cast %3 : vector<256xf32> to vector<1x256xf32>
    %cst_2 = arith.constant 4.000000e+00 : f32
    %5 = vector.broadcast %cst_2 : f32 to vector<1x256xf32>
    %6 = arith.divf %4, %5 : vector<1x256xf32>
    %c0_3 = arith.constant 0 : index
    %c0_4 = arith.constant 0 : index
    %7 = vector.load %arg2[%c0_3, %c0_4] : memref<256x16xf32, #tpu.memory_space<vmem>>, vector<256x16xf32>
    %cst_5 = arith.constant dense<0.000000e+00> : vector<1x16xf32>
    %8 = tpu.matmul %6, %7, %cst_5 {dimension_numbers = #tpu.dot_dimension_numbers<[1], [0], [0], [1], [0, 0, 1, 1], [], []>} : vector<1x256xf32>, vector<256x16xf32>, vector<1x16xf32> -> vector<1x16xf32>
    %c0_6 = arith.constant 0 : index
    %c0_7 = arith.constant 0 : index
    %9 = vector.load %arg3[%c0_6, %c0_7] : memref<1x16xf32, #tpu.memory_space<vmem>>, vector<1x16xf32>
    %10 = arith.addf %8, %9 : vector<1x16xf32>
    %11 = vector.shape_cast %10 : vector<1x16xf32> to vector<1x1x16xf32>
    %c0_8 = arith.constant 0 : index
    %c0_9 = arith.constant 0 : index
    %c0_10 = arith.constant 0 : index
    %12 = vector.load %arg4[%c0_8, %c0_9, %c0_10] : memref<1x1x16xf32, #tpu.memory_space<vmem>>, vector<1x1x16xf32>
    tpu.vector_store %arg4[%c0_8, %c0_9, %c0_10], %11 {strides = array<i32>} : memref<1x1x16xf32, #tpu.memory_space<vmem>>, vector<1x1x16xf32>,
    return
  }
  func.func @transform_0(%arg0: i32) -> (i32, i32, i32) {
    %c0_i32 = arith.constant 0 : i32
    %c0_i32_0 = arith.constant 0 : i32
    %c0_i32_1 = arith.constant 0 : i32
    return %arg0, %c0_i32, %c0_i32_0 : i32, i32, i32
  }
  func.func @transform_1(%arg0: i32) -> (i32, i32) {
    %c0_i32 = arith.constant 0 : i32
    %c0_i32_0 = arith.constant 0 : i32
    %c0_i32_1 = arith.constant 0 : i32
    return %c0_i32, %c0_i32_0 : i32, i32
  }
  func.func @transform_2(%arg0: i32) -> (i32, i32) {
    %c0_i32 = arith.constant 0 : i32
    %c0_i32_0 = arith.constant 0 : i32
    %c0_i32_1 = arith.constant 0 : i32
    return %c0_i32, %c0_i32_0 : i32, i32
  }
  func.func @transform_3(%arg0: i32) -> (i32, i32, i32) {
    %c0_i32 = arith.constant 0 : i32
    %c0_i32_0 = arith.constant 0 : i32
    %c0_i32_1 = arith.constant 0 : i32
    return %arg0, %c0_i32, %c0_i32_0 : i32, i32, i32
  }
}

</mosaic_0001>

<llo_original>
// kernel: tile.53
$region0: #{tile.53}
  #allocation0 [shape = 's32[1]{0}', space=sflag, size = 0x4, scoped, tag = 'scoped memory for tile.53']
  %s0 = inlined_call_operand.vmem [shape: f32[64], index: 0, kind: input, shape index: {}]
  %s1 = inlined_call_operand.vmem [shape: f32[2,64], index: 1, kind: output, shape index: {}]
  // Predicated region
  $region2: #{tile.53} parent=0 // pred_check
    _
  $region3: #{tile.53} parent=0 // pred_check_branch
    %3 = sbr.rel (0) target = $region5
  $region4: #{tile.53} parent=0 // pred_region
    _
  $region5: #{tile.53} parent=0 // pred_fallthru
    _
  %v4 = vld [vmem:[%s0] ss:$0 sm:$0xff]
  %5 = vst [vmem:[%s1] sm:$0x3] %v4

// kernel: tile.58
$region0: #{tile.58}
  %s0 = inlined_call_operand.vmem [shape: f32[2,64], index: 0, kind: input, shape index: {}]
  %s1 = inlined_call_operand.vmem [shape: f32[1,128], index: 1, kind: output, shape index: {}]
  $region1: #{tile.58} parent=0
    #allocation0 [shape = 'u8[4096]{0}', space=vmem, size = 0x1000, scoped, tag = 'scoped mem for output reshape']
    #allocation1 [shape = 'u8[4096]{0}', space=vmem, size = 0x1000, scoped, tag = 'scoped mem for input reshape']
    %s3 = sshllo.u32 0, 2
    %v4 = vld [vmem:[%s0] sm:%s3]
    %5 = vst [vmem:[#allocation1] sm:%s3] %v4
    %v6 = vld [vmem:[#allocation1] sm:$0x1]
    %vm7 = vcmask 523264
    %8 = vst.msk [vmem:[#allocation0] sm:$0x1] %vm7, %v6
    %s9 = scalar_lea.vmem [#allocation1], 1
    %v10 = vld [vmem:[%s9] sm:$0x1]
    %11 = vrot.lane.b32.xlu0 %v10, 64
    %v12 = vpop.permute.xlu0 %11
    %vm13 = vcmask 1048064
    %14 = vst.msk [vmem:[#allocation0] sm:$0x1] %vm13, %v12
    %s16 = sshllo.u32 0, 1
    %v18 = vld [vmem:[#allocation0] sm:%s16]
    %s19 = sshllo.u32 0, 1
    %20 = vst [vmem:[%s1] sm:%s19] %v18

// kernel: encoder_forward.33
$region0: #{encoder_forward.33}
  #allocation0 [shape = 'u32[]', space=smem, size = 0x4, offset = 0x4, fixed_abs, tag = 'smem constant byte address 0x4 - core index']
  #allocation1 [shape = 'u32[144,128]{1,0:T(1,128)}', space=vmem, size = 0x12000, scoped, tag = 'internal scratch']
  %s0 = inlined_call_operand.vmem [shape: bf16[256,128], index: 0, kind: input, shape index: {}]
  %s1 = inlined_call_operand.vmem [shape: f32[1,128], index: 1, kind: input, shape index: {}]
  %s2 = inlined_call_operand.vmem [shape: f32[1,128], index: 2, kind: input, shape index: {}]
  %s3 = inlined_call_operand.vmem [shape: bf16[256,128], index: 3, kind: output, shape index: {}]
  %s4 = sld [smem:[#allocation0]]
  $region22: #{encoder_forward.33} parent=0
    _
  %s6 = ssub.s32 1, %s4
  %s7 = scalar_select 0, %s6, %s4
  // Predicated region
  $region2: #{encoder_forward.33} parent=0 // pred_check
    _
  $region3: #{encoder_forward.33} parent=0 // pred_check_branch
    %9 = sbr.rel (0) target = $region5
  $region4: #{encoder_forward.33} parent=0 // pred_region
    _
  $region5: #{encoder_forward.33} parent=0 // pred_fallthru
    _
  // Predicated region
  $region6: #{encoder_forward.33} parent=0 // pred_check
    _
  $region7: #{encoder_forward.33} parent=0 // pred_check_branch
    %11 = sbr.rel (0) target = $region9
  $region8: #{encoder_forward.33} parent=0 // pred_region
    _
  $region9: #{encoder_forward.33} parent=0 // pred_fallthru
    _
  // Predicated region
  $region10: #{encoder_forward.33} parent=0 // pred_check
    _
  $region11: #{encoder_forward.33} parent=0 // pred_check_branch
    %13 = sbr.rel (0) target = $region13
  $region12: #{encoder_forward.33} parent=0 // pred_region
    _
  $region13: #{encoder_forward.33} parent=0 // pred_fallthru
    _
  %v14 = vld [vmem:[%s0] sm:$0xf]
  %v15 = vld [vmem:[%s0 + $0x4] sm:$0xf]
  %v16 = vld [vmem:[%s0 + $0x8] sm:$0xf]
  %v17 = vld [vmem:[%s0 + $0xc] sm:$0xf]
  %v18 = vld [vmem:[%s0 + $0x10] sm:$0xf]
  %v19 = vld [vmem:[%s0 + $0x14] sm:$0xf]
  %v20 = vld [vmem:[%s0 + $0x18] sm:$0xf]
  %v21 = vld [vmem:[%s0 + $0x1c] sm:$0xf]
  %v22 = vld [vmem:[%s0 + $0x20] sm:$0xf]
  %v23 = vld [vmem:[%s0 + $0x24] sm:$0xf]
  %v24 = vld [vmem:[%s0 + $0x28] sm:$0xf]
  %v25 = vld [vmem:[%s0 + $0x2c] sm:$0xf]
  %v26 = vld [vmem:[%s0 + $0x30] sm:$0xf]
  %v27 = vld [vmem:[%s0 + $0x34] sm:$0xf]
  %v28 = vld [vmem:[%s0 + $0x38] sm:$0xf]
  %v29 = vld [vmem:[%s0 + $0x3c] sm:$0xf]
  %v30 = vld [vmem:[%s0 + $0x40] sm:$0xf]
  %v31 = vld [vmem:[%s0 + $0x44] sm:$0xf]
  %v32 = vld [vmem:[%s0 + $0x48] sm:$0xf]
  %v33 = vld [vmem:[%s0 + $0x4c] sm:$0xf]
  %v34 = vld [vmem:[%s0 + $0x50] sm:$0xf]
  %v35 = vld [vmem:[%s0 + $0x54] sm:$0xf]
  %v36 = vld [vmem:[%s0 + $0x58] sm:$0xf]
  %v37 = vld [vmem:[%s0 + $0x5c] sm:$0xf]
  %v38 = vld [vmem:[%s0 + $0x60] sm:$0xf]
  %v39 = vld [vmem:[%s0 + $0x64] sm:$0xf]
  %v40 = vld [vmem:[%s0 + $0x68] sm:$0xf]
  %v41 = vld [vmem:[%s0 + $0x6c] sm:$0xf]
  %v42 = vld [vmem:[%s0 + $0x70] sm:$0xf]
  %v43 = vld [vmem:[%s0 + $0x74] sm:$0xf]
  %v44 = vld [vmem:[%s0 + $0x78] sm:$0xf]
  %v45 = vld [vmem:[%s0 + $0x7c] sm:$0xf]
  %v46 = vunpack.c.l.bf16 %v14
  %v47 = vunpack.c.l.bf16 %v15
  %v48 = vunpack.c.l.bf16 %v16
  %v49 = vunpack.c.l.bf16 %v17
  %v50 = vunpack.c.l.bf16 %v18
  %v51 = vunpack.c.l.bf16 %v19
  %v52 = vunpack.c.l.bf16 %v20
  %v53 = vunpack.c.l.bf16 %v21
  %v54 = vunpack.c.l.bf16 %v22
  %v55 = vunpack.c.l.bf16 %v23
  %v56 = vunpack.c.l.bf16 %v24
  %v57 = vunpack.c.l.bf16 %v25
  %v58 = vunpack.c.l.bf16 %v26
  %v59 = vunpack.c.l.bf16 %v27
  %v60 = vunpack.c.l.bf16 %v28
  %v61 = vunpack.c.l.bf16 %v29
  %v62 = vunpack.c.l.bf16 %v30
  %v63 = vunpack.c.l.bf16 %v31
  %v64 = vunpack.c.l.bf16 %v32
  %v65 = vunpack.c.l.bf16 %v33
  %v66 = vunpack.c.l.bf16 %v34
  %v67 = vunpack.c.l.bf16 %v35
  %v68 = vunpack.c.l.bf16 %v36
  %v69 = vunpack.c.l.bf16 %v37
  %v70 = vunpack.c.l.bf16 %v38
  %v71 = vunpack.c.l.bf16 %v39
  %v72 = vunpack.c.l.bf16 %v40
  %v73 = vunpack.c.l.bf16 %v41
  %v74 = vunpack.c.l.bf16 %v42
  %v75 = vunpack.c.l.bf16 %v43
  %v76 = vunpack.c.l.bf16 %v44
  %v77 = vunpack.c.l.bf16 %v45
  %v78 = vld [vmem:[%s1] sm:$0x1]
  %v80 = vlaneseq
  %v81 = vshrl.u32 %v80, 7
  %v82 = vsub.s32 0, %v81
  %v83 = vrot.slane %v78, %v82
  %v85 = vmul.f32 %v46, %v83
  %v86 = vmul.f32 %v47, %v83
  %v87 = vmul.f32 %v48, %v83
  %v88 = vmul.f32 %v49, %v83
  %v89 = vmul.f32 %v50, %v83
  %v90 = vmul.f32 %v51, %v83
  %v91 = vmul.f32 %v52, %v83
  %v92 = vmul.f32 %v53, %v83
  %v93 = vmul.f32 %v54, %v83
  %v94 = vmul.f32 %v55, %v83
  %v95 = vmul.f32 %v56, %v83
  %v96 = vmul.f32 %v57, %v83
  %v97 = vmul.f32 %v58, %v83
  %v98 = vmul.f32 %v59, %v83
  %v99 = vmul.f32 %v60, %v83
  %v100 = vmul.f32 %v61, %v83
  %v101 = vmul.f32 %v62, %v83
  %v102 = vmul.f32 %v63, %v83
  %v103 = vmul.f32 %v64, %v83
  %v104 = vmul.f32 %v65, %v83
  %v105 = vmul.f32 %v66, %v83
  %v106 = vmul.f32 %v67, %v83
  %v107 = vmul.f32 %v68, %v83
  %v108 = vmul.f32 %v69, %v83
  %v109 = vmul.f32 %v70, %v83
  %v110 = vmul.f32 %v71, %v83
  %v111 = vmul.f32 %v72, %v83
  %v112 = vmul.f32 %v73, %v83
  %v113 = vmul.f32 %v74, %v83
  %v114 = vmul.f32 %v75, %v83
  %v115 = vmul.f32 %v76, %v83
  %v116 = vmul.f32 %v77, %v83
  %v117 = vld [vmem:[%s2] sm:$0x1]
  %v119 = vlaneseq
  %v120 = vshrl.u32 %v119, 7
  %v121 = vsub.s32 0, %v120
  %v122 = vrot.slane %v117, %v121
  %v124 = vadd.f32 %v85, %v122
  %v125 = vadd.f32 %v86, %v122
  %v126 = vadd.f32 %v87, %v122
  %v127 = vadd.f32 %v88, %v122
  %v128 = vadd.f32 %v89, %v122
  %v129 = vadd.f32 %v90, %v122
  %v130 = vadd.f32 %v91, %v122
  %v131 = vadd.f32 %v92, %v122
  %v132 = vadd.f32 %v93, %v122
  %v133 = vadd.f32 %v94, %v122
  %v134 = vadd.f32 %v95, %v122
  %v135 = vadd.f32 %v96, %v122
  %v136 = vadd.f32 %v97, %v122
  %v137 = vadd.f32 %v98, %v122
  %v138 = vadd.f32 %v99, %v122
  %v139 = vadd.f32 %v100, %v122
  %v140 = vadd.f32 %v101, %v122
  %v141 = vadd.f32 %v102, %v122
  %v142 = vadd.f32 %v103, %v122
  %v143 = vadd.f32 %v104, %v122
  %v144 = vadd.f32 %v105, %v122
  %v145 = vadd.f32 %v106, %v122
  %v146 = vadd.f32 %v107, %v122
  %v147 = vadd.f32 %v108, %v122
  %v148 = vadd.f32 %v109, %v122
  %v149 = vadd.f32 %v110, %v122
  %v150 = vadd.f32 %v111, %v122
  %v151 = vadd.f32 %v112, %v122
  %v152 = vadd.f32 %v113, %v122
  %v153 = vadd.f32 %v114, %v122
  %v154 = vadd.f32 %v115, %v122
  %v155 = vadd.f32 %v116, %v122
  %v156 = vmax.f32 %v124, 0.0
  %v157 = vmax.f32 %v125, 0.0
  %v158 = vmax.f32 %v126, 0.0
  %v159 = vmax.f32 %v127, 0.0
  %v160 = vmax.f32 %v128, 0.0
  %v161 = vmax.f32 %v129, 0.0
  %v162 = vmax.f32 %v130, 0.0
  %v163 = vmax.f32 %v131, 0.0
  %v164 = vmax.f32 %v132, 0.0
  %v165 = vmax.f32 %v133, 0.0
  %v166 = vmax.f32 %v134, 0.0
  %v167 = vmax.f32 %v135, 0.0
  %v168 = vmax.f32 %v136, 0.0
  %v169 = vmax.f32 %v137, 0.0
  %v170 = vmax.f32 %v138, 0.0
  %v171 = vmax.f32 %v139, 0.0
  %v172 = vmax.f32 %v140, 0.0
  %v173 = vmax.f32 %v141, 0.0
  %v174 = vmax.f32 %v142, 0.0
  %v175 = vmax.f32 %v143, 0.0
  %v176 = vmax.f32 %v144, 0.0
  %v177 = vmax.f32 %v145, 0.0
  %v178 = vmax.f32 %v146, 0.0
  %v179 = vmax.f32 %v147, 0.0
  %v180 = vmax.f32 %v148, 0.0
  %v181 = vmax.f32 %v149, 0.0
  %v182 = vmax.f32 %v150, 0.0
  %v183 = vmax.f32 %v151, 0.0
  %v184 = vmax.f32 %v152, 0.0
  %v185 = vmax.f32 %v153, 0.0
  %v186 = vmax.f32 %v154, 0.0
  %v187 = vmax.f32 %v155, 0.0
  %v188 = vpack.c.bf16 %v157, %v156
  %v189 = vpack.c.bf16 %v159, %v158
  %v190 = vpack.c.bf16 %v161, %v160
  %v191 = vpack.c.bf16 %v163, %v162
  %v192 = vpack.c.bf16 %v165, %v164
  %v193 = vpack.c.bf16 %v167, %v166
  %v194 = vpack.c.bf16 %v169, %v168
  %v195 = vpack.c.bf16 %v171, %v170
  %v196 = vpack.c.bf16 %v173, %v172
  %v197 = vpack.c.bf16 %v175, %v174
  %v198 = vpack.c.bf16 %v177, %v176
  %v199 = vpack.c.bf16 %v179, %v178
  %v200 = vpack.c.bf16 %v181, %v180
  %v201 = vpack.c.bf16 %v183, %v182
  %v202 = vpack.c.bf16 %v185, %v184
  %v203 = vpack.c.bf16 %v187, %v186
  %v220 = vunpack.c.l.b16 %v188
  %v221 = vunpack.c.h.b16 %v188
  %v222 = vunpack.c.l.b16 %v189
  %v223 = vunpack.c.h.b16 %v189
  %v224 = vunpack.c.l.b16 %v190
  %v225 = vunpack.c.h.b16 %v190
  %v226 = vunpack.c.l.b16 %v191
  %v227 = vunpack.c.h.b16 %v191
  %v228 = vunpack.c.l.b16 %v192
  %v229 = vunpack.c.h.b16 %v192
  %v230 = vunpack.c.l.b16 %v193
  %v231 = vunpack.c.h.b16 %v193
  %v232 = vunpack.c.l.b16 %v194
  %v233 = vunpack.c.h.b16 %v194
  %v234 = vunpack.c.l.b16 %v195
  %v235 = vunpack.c.h.b16 %v195
  %v236 = vunpack.c.l.b16 %v196
  %v237 = vunpack.c.h.b16 %v196
  %v238 = vunpack.c.l.b16 %v197
  %v239 = vunpack.c.h.b16 %v197
  %v240 = vunpack.c.l.b16 %v198
  %v241 = vunpack.c.h.b16 %v198
  %v242 = vunpack.c.l.b16 %v199
  %v243 = vunpack.c.h.b16 %v199
  %v244 = vunpack.c.l.b16 %v200
  %v245 = vunpack.c.h.b16 %v200
  %v246 = vunpack.c.l.b16 %v201
  %v247 = vunpack.c.h.b16 %v201
  %v248 = vunpack.c.l.b16 %v202
  %v249 = vunpack.c.h.b16 %v202
  %v250 = vunpack.c.l.b16 %v203
  %v251 = vunpack.c.h.b16 %v203
  %v252 = vpack.c.b16 %v220, %v220
  %v253 = vpack.c.b16 %v221, %v221
  %v254 = vpack.c.b16 %v222, %v222
  %v255 = vpack.c.b16 %v223, %v223
  %v256 = vpack.c.b16 %v224, %v224
  %v257 = vpack.c.b16 %v225, %v225
  %v258 = vpack.c.b16 %v226, %v226
  %v259 = vpack.c.b16 %v227, %v227
  %v260 = vpack.c.b16 %v228, %v228
  %v261 = vpack.c.b16 %v229, %v229
  %v262 = vpack.c.b16 %v230, %v230
  %v263 = vpack.c.b16 %v231, %v231
  %v264 = vpack.c.b16 %v232, %v232
  %v265 = vpack.c.b16 %v233, %v233
  %v266 = vpack.c.b16 %v234, %v234
  %v267 = vpack.c.b16 %v235, %v235
  %v268 = vpack.c.b16 %v236, %v236
  %v269 = vpack.c.b16 %v237, %v237
  %v270 = vpack.c.b16 %v238, %v238
  %v271 = vpack.c.b16 %v239, %v239
  %v272 = vpack.c.b16 %v240, %v240
  %v273 = vpack.c.b16 %v241, %v241
  %v274 = vpack.c.b16 %v242, %v242
  %v275 = vpack.c.b16 %v243, %v243
  %v276 = vpack.c.b16 %v244, %v244
  %v277 = vpack.c.b16 %v245, %v245
  %v278 = vpack.c.b16 %v246, %v246
  %v279 = vpack.c.b16 %v247, %v247
  %v280 = vpack.c.b16 %v248, %v248
  %v281 = vpack.c.b16 %v249, %v249
  %v282 = vpack.c.b16 %v250, %v250
  %v283 = vpack.c.b16 %v251, %v251
  %316 = vst [vmem:[%s3] sm:$0xf] %v252
  %317 = vst [vmem:[%s3 + $0x4] sm:$0xf] %v253
  %318 = vst [vmem:[%s3 + $0x8] sm:$0xf] %v254
  %319 = vst [vmem:[%s3 + $0xc] sm:$0xf] %v255
  %320 = vst [vmem:[%s3 + $0x10] sm:$0xf] %v256
  %321 = vst [vmem:[%s3 + $0x14] sm:$0xf] %v257
  %322 = vst [vmem:[%s3 + $0x18] sm:$0xf] %v258
  %323 = vst [vmem:[%s3 + $0x1c] sm:$0xf] %v259
  %324 = vst [vmem:[%s3 + $0x20] sm:$0xf] %v260
  %325 = vst [vmem:[%s3 + $0x24] sm:$0xf] %v261
  %326 = vst [vmem:[%s3 + $0x28] sm:$0xf] %v262
  %327 = vst [vmem:[%s3 + $0x2c] sm:$0xf] %v263
  %328 = vst [vmem:[%s3 + $0x30] sm:$0xf] %v264
  %329 = vst [vmem:[%s3 + $0x34] sm:$0xf] %v265
  %330 = vst [vmem:[%s3 + $0x38] sm:$0xf] %v266
  %331 = vst [vmem:[%s3 + $0x3c] sm:$0xf] %v267
  %332 = vst [vmem:[%s3 + $0x40] sm:$0xf] %v268
  %333 = vst [vmem:[%s3 + $0x44] sm:$0xf] %v269
  %334 = vst [vmem:[%s3 + $0x48] sm:$0xf] %v270
  %335 = vst [vmem:[%s3 + $0x4c] sm:$0xf] %v271
  %336 = vst [vmem:[%s3 + $0x50] sm:$0xf] %v272
  %337 = vst [vmem:[%s3 + $0x54] sm:$0xf] %v273
  %338 = vst [vmem:[%s3 + $0x58] sm:$0xf] %v274
  %339 = vst [vmem:[%s3 + $0x5c] sm:$0xf] %v275
  %340 = vst [vmem:[%s3 + $0x60] sm:$0xf] %v276
  %341 = vst [vmem:[%s3 + $0x64] sm:$0xf] %v277
  %342 = vst [vmem:[%s3 + $0x68] sm:$0xf] %v278
  %343 = vst [vmem:[%s3 + $0x6c] sm:$0xf] %v279
  %344 = vst [vmem:[%s3 + $0x70] sm:$0xf] %v280
  %345 = vst [vmem:[%s3 + $0x74] sm:$0xf] %v281
  %346 = vst [vmem:[%s3 + $0x78] sm:$0xf] %v282
  %347 = vst [vmem:[%s3 + $0x7c] sm:$0xf] %v283
  // Predicated region
  $region14: #{encoder_forward.33} parent=0 // pred_check
    _
  $region15: #{encoder_forward.33} parent=0 // pred_check_branch
    %349 = sbr.rel (0) target = $region17
  $region16: #{encoder_forward.33} parent=0 // pred_region
    _
  $region17: #{encoder_forward.33} parent=0 // pred_fallthru
    _
  // Predicated region
  $region18: #{encoder_forward.33} parent=0 // pred_check
    _
  $region19: #{encoder_forward.33} parent=0 // pred_check_branch
    %351 = sbr.rel (0) target = $region21
  $region20: #{encoder_forward.33} parent=0 // pred_region
    _
  $region21: #{encoder_forward.33} parent=0 // pred_fallthru
    _

// kernel: encoder_forward.32
$region0: #{encoder_forward.32}
  #allocation0 [shape = 'u32[]', space=smem, size = 0x4, offset = 0x4, fixed_abs, tag = 'smem constant byte address 0x4 - core index']
  #allocation1 [shape = 'u32[144,128]{1,0:T(1,128)}', space=vmem, size = 0x12000, scoped, tag = 'internal scratch']
  %s0 = inlined_call_operand.vmem [shape: bf16[512,256], index: 0, kind: input, shape index: {}]
  %s1 = inlined_call_operand.vmem [shape: bf16[256,64], index: 1, kind: input, shape index: {}]
  %s2 = inlined_call_operand.vmem [shape: bf16[512,64], index: 2, kind: output, shape index: {0}]
  %s3 = inlined_call_operand.vmem [shape: f32[1,2,64], index: 3, kind: output, shape index: {1}]
  %4 = xla_tuple %s2, %s3
  %s5 = sld [smem:[#allocation0]]
  $region26: #{encoder_forward.32} parent=0
    _
  %s7 = ssub.s32 1, %s5
  %s8 = scalar_select 0, %s7, %s5
  // Predicated region
  $region2: #{encoder_forward.32} parent=0 // pred_check
    _
  $region3: #{encoder_forward.32} parent=0 // pred_check_branch
    %10 = sbr.rel (0) target = $region5
  $region4: #{encoder_forward.32} parent=0 // pred_region
    _
  $region5: #{encoder_forward.32} parent=0 // pred_fallthru
    _
  // Predicated region
  $region6: #{encoder_forward.32} parent=0 // pred_check
    _
  $region7: #{encoder_forward.32} parent=0 // pred_check_branch
    %12 = sbr.rel (0) target = $region9
  $region8: #{encoder_forward.32} parent=0 // pred_region
    _
  $region9: #{encoder_forward.32} parent=0 // pred_fallthru
    _
  %v14 = vld [vmem:[%s0] sm:$0xff]
  %v15 = vld [vmem:[%s0 + $0x8] sm:$0xff]
  %v16 = vld [vmem:[%s0 + $0x10] sm:$0xff]
  %v17 = vld [vmem:[%s0 + $0x18] sm:$0xff]
  %v18 = vld [vmem:[%s0 + $0x20] sm:$0xff]
  %v19 = vld [vmem:[%s0 + $0x28] sm:$0xff]
  %v20 = vld [vmem:[%s0 + $0x30] sm:$0xff]
  %v21 = vld [vmem:[%s0 + $0x38] sm:$0xff]
  %v22 = vld [vmem:[%s0 + $0x40] sm:$0xff]
  %v23 = vld [vmem:[%s0 + $0x48] sm:$0xff]
  %v24 = vld [vmem:[%s0 + $0x50] sm:$0xff]
  %v25 = vld [vmem:[%s0 + $0x58] sm:$0xff]
  %v26 = vld [vmem:[%s0 + $0x60] sm:$0xff]
  %v27 = vld [vmem:[%s0 + $0x68] sm:$0xff]
  %v28 = vld [vmem:[%s0 + $0x70] sm:$0xff]
  %v29 = vld [vmem:[%s0 + $0x78] sm:$0xff]
  %v30 = vld [vmem:[%s0 + $0x80] sm:$0xff]
  %v31 = vld [vmem:[%s0 + $0x88] sm:$0xff]
  %v32 = vld [vmem:[%s0 + $0x90] sm:$0xff]
  %v33 = vld [vmem:[%s0 + $0x98] sm:$0xff]
  %v34 = vld [vmem:[%s0 + $0xa0] sm:$0xff]
  %v35 = vld [vmem:[%s0 + $0xa8] sm:$0xff]
  %v36 = vld [vmem:[%s0 + $0xb0] sm:$0xff]
  %v37 = vld [vmem:[%s0 + $0xb8] sm:$0xff]
  %v38 = vld [vmem:[%s0 + $0xc0] sm:$0xff]
  %v39 = vld [vmem:[%s0 + $0xc8] sm:$0xff]
  %v40 = vld [vmem:[%s0 + $0xd0] sm:$0xff]
  %v41 = vld [vmem:[%s0 + $0xd8] sm:$0xff]
  %v42 = vld [vmem:[%s0 + $0xe0] sm:$0xff]
  %v43 = vld [vmem:[%s0 + $0xe8] sm:$0xff]
  %v44 = vld [vmem:[%s0 + $0xf0] sm:$0xff]
  %v45 = vld [vmem:[%s0 + $0xf8] sm:$0xff]
  %v46 = vld [vmem:[%s0 + $0x100] sm:$0xff]
  %v47 = vld [vmem:[%s0 + $0x108] sm:$0xff]
  %v48 = vld [vmem:[%s0 + $0x110] sm:$0xff]
  %v49 = vld [vmem:[%s0 + $0x118] sm:$0xff]
  %v50 = vld [vmem:[%s0 + $0x120] sm:$0xff]
  %v51 = vld [vmem:[%s0 + $0x128] sm:$0xff]
  %v52 = vld [vmem:[%s0 + $0x130] sm:$0xff]
  %v53 = vld [vmem:[%s0 + $0x138] sm:$0xff]
  %v54 = vld [vmem:[%s0 + $0x140] sm:$0xff]
  %v55 = vld [vmem:[%s0 + $0x148] sm:$0xff]
  %v56 = vld [vmem:[%s0 + $0x150] sm:$0xff]
  %v57 = vld [vmem:[%s0 + $0x158] sm:$0xff]
  %v58 = vld [vmem:[%s0 + $0x160] sm:$0xff]
  %v59 = vld [vmem:[%s0 + $0x168] sm:$0xff]
  %v60 = vld [vmem:[%s0 + $0x170] sm:$0xff]
  %v61 = vld [vmem:[%s0 + $0x178] sm:$0xff]
  %v62 = vld [vmem:[%s0 + $0x180] sm:$0xff]
  %v63 = vld [vmem:[%s0 + $0x188] sm:$0xff]
  %v64 = vld [vmem:[%s0 + $0x190] sm:$0xff]
  %v65 = vld [vmem:[%s0 + $0x198] sm:$0xff]
  %v66 = vld [vmem:[%s0 + $0x1a0] sm:$0xff]
  %v67 = vld [vmem:[%s0 + $0x1a8] sm:$0xff]
  %v68 = vld [vmem:[%s0 + $0x1b0] sm:$0xff]
  %v69 = vld [vmem:[%s0 + $0x1b8] sm:$0xff]
  %v70 = vld [vmem:[%s0 + $0x1c0] sm:$0xff]
  %v71 = vld [vmem:[%s0 + $0x1c8] sm:$0xff]
  %v72 = vld [vmem:[%s0 + $0x1d0] sm:$0xff]
  %v73 = vld [vmem:[%s0 + $0x1d8] sm:$0xff]
  %v74 = vld [vmem:[%s0 + $0x1e0] sm:$0xff]
  %v75 = vld [vmem:[%s0 + $0x1e8] sm:$0xff]
  %v76 = vld [vmem:[%s0 + $0x1f0] sm:$0xff]
  %v77 = vld [vmem:[%s0 + $0x1f8] sm:$0xff]
  %v78 = vld [vmem:[%s1] sm:$0xf]
  %v79 = vld [vmem:[%s1 + $0x4] sm:$0xf]
  %v80 = vld [vmem:[%s1 + $0x8] sm:$0xf]
  %v81 = vld [vmem:[%s1 + $0xc] sm:$0xf]
  %v82 = vld [vmem:[%s1 + $0x10] sm:$0xf]
  %v83 = vld [vmem:[%s1 + $0x14] sm:$0xf]
  %v84 = vld [vmem:[%s1 + $0x18] sm:$0xf]
  %v85 = vld [vmem:[%s1 + $0x1c] sm:$0xf]
  %v86 = vld [vmem:[%s1 + $0x20] sm:$0xf]
  %v87 = vld [vmem:[%s1 + $0x24] sm:$0xf]
  %v88 = vld [vmem:[%s1 + $0x28] sm:$0xf]
  %v89 = vld [vmem:[%s1 + $0x2c] sm:$0xf]
  %v90 = vld [vmem:[%s1 + $0x30] sm:$0xf]
  %v91 = vld [vmem:[%s1 + $0x34] sm:$0xf]
  %v92 = vld [vmem:[%s1 + $0x38] sm:$0xf]
  %v93 = vld [vmem:[%s1 + $0x3c] sm:$0xf]
  %v94 = vld [vmem:[%s1 + $0x40] sm:$0xf]
  %v95 = vld [vmem:[%s1 + $0x44] sm:$0xf]
  %v96 = vld [vmem:[%s1 + $0x48] sm:$0xf]
  %v97 = vld [vmem:[%s1 + $0x4c] sm:$0xf]
  %v98 = vld [vmem:[%s1 + $0x50] sm:$0xf]
  %v99 = vld [vmem:[%s1 + $0x54] sm:$0xf]
  %v100 = vld [vmem:[%s1 + $0x58] sm:$0xf]
  %v101 = vld [vmem:[%s1 + $0x5c] sm:$0xf]
  %v102 = vld [vmem:[%s1 + $0x60] sm:$0xf]
  %v103 = vld [vmem:[%s1 + $0x64] sm:$0xf]
  %v104 = vld [vmem:[%s1 + $0x68] sm:$0xf]
  %v105 = vld [vmem:[%s1 + $0x6c] sm:$0xf]
  %v106 = vld [vmem:[%s1 + $0x70] sm:$0xf]
  %v107 = vld [vmem:[%s1 + $0x74] sm:$0xf]
  %v108 = vld [vmem:[%s1 + $0x78] sm:$0xf]
  %v109 = vld [vmem:[%s1 + $0x7c] sm:$0xf]
  %v174 = vunpack.c.l.b16 %v14
  %v175 = vunpack.c.h.b16 %v14
  %v176 = vunpack.c.l.b16 %v15
  %v177 = vunpack.c.h.b16 %v15
  %v178 = vunpack.c.l.b16 %v16
  %v179 = vunpack.c.h.b16 %v16
  %v180 = vunpack.c.l.b16 %v17
  %v181 = vunpack.c.h.b16 %v17
  %v182 = vunpack.c.l.b16 %v18
  %v183 = vunpack.c.h.b16 %v18
  %v184 = vunpack.c.l.b16 %v19
  %v185 = vunpack.c.h.b16 %v19
  %v186 = vunpack.c.l.b16 %v20
  %v187 = vunpack.c.h.b16 %v20
  %v188 = vunpack.c.l.b16 %v21
  %v189 = vunpack.c.h.b16 %v21
  %v190 = vunpack.c.l.b16 %v22
  %v191 = vunpack.c.h.b16 %v22
  %v192 = vunpack.c.l.b16 %v23
  %v193 = vunpack.c.h.b16 %v23
  %v194 = vunpack.c.l.b16 %v24
  %v195 = vunpack.c.h.b16 %v24
  %v196 = vunpack.c.l.b16 %v25
  %v197 = vunpack.c.h.b16 %v25
  %v198 = vunpack.c.l.b16 %v26
  %v199 = vunpack.c.h.b16 %v26
  %v200 = vunpack.c.l.b16 %v27
  %v201 = vunpack.c.h.b16 %v27
  %v202 = vunpack.c.l.b16 %v28
  %v203 = vunpack.c.h.b16 %v28
  %v204 = vunpack.c.l.b16 %v29
  %v205 = vunpack.c.h.b16 %v29
  %v206 = vunpack.c.l.b16 %v30
  %v207 = vunpack.c.h.b16 %v30
  %v208 = vunpack.c.l.b16 %v31
  %v209 = vunpack.c.h.b16 %v31
  %v210 = vunpack.c.l.b16 %v32
  %v211 = vunpack.c.h.b16 %v32
  %v212 = vunpack.c.l.b16 %v33
  %v213 = vunpack.c.h.b16 %v33
  %v214 = vunpack.c.l.b16 %v34
  %v215 = vunpack.c.h.b16 %v34
  %v216 = vunpack.c.l.b16 %v35
  %v217 = vunpack.c.h.b16 %v35
  %v218 = vunpack.c.l.b16 %v36
  %v219 = vunpack.c.h.b16 %v36
  %v220 = vunpack.c.l.b16 %v37
  %v221 = vunpack.c.h.b16 %v37
  %v222 = vunpack.c.l.b16 %v38
  %v223 = vunpack.c.h.b16 %v38
  %v224 = vunpack.c.l.b16 %v39
  %v225 = vunpack.c.h.b16 %v39
  %v226 = vunpack.c.l.b16 %v40
  %v227 = vunpack.c.h.b16 %v40
  %v228 = vunpack.c.l.b16 %v41
  %v229 = vunpack.c.h.b16 %v41
  %v230 = vunpack.c.l.b16 %v42
  %v231 = vunpack.c.h.b16 %v42
  %v232 = vunpack.c.l.b16 %v43
  %v233 = vunpack.c.h.b16 %v43
  %v234 = vunpack.c.l.b16 %v44
  %v235 = vunpack.c.h.b16 %v44
  %v236 = vunpack.c.l.b16 %v45
  %v237 = vunpack.c.h.b16 %v45
  %v238 = vunpack.c.l.b16 %v46
  %v239 = vunpack.c.h.b16 %v46
  %v240 = vunpack.c.l.b16 %v47
  %v241 = vunpack.c.h.b16 %v47
  %v242 = vunpack.c.l.b16 %v48
  %v243 = vunpack.c.h.b16 %v48
  %v244 = vunpack.c.l.b16 %v49
  %v245 = vunpack.c.h.b16 %v49
  %v246 = vunpack.c.l.b16 %v50
  %v247 = vunpack.c.h.b16 %v50
  %v248 = vunpack.c.l.b16 %v51
  %v249 = vunpack.c.h.b16 %v51
  %v250 = vunpack.c.l.b16 %v52
  %v251 = vunpack.c.h.b16 %v52
  %v252 = vunpack.c.l.b16 %v53
  %v253 = vunpack.c.h.b16 %v53
  %v254 = vunpack.c.l.b16 %v54
  %v255 = vunpack.c.h.b16 %v54
  %v256 = vunpack.c.l.b16 %v55
  %v257 = vunpack.c.h.b16 %v55
  %v258 = vunpack.c.l.b16 %v56
  %v259 = vunpack.c.h.b16 %v56
  %v260 = vunpack.c.l.b16 %v57
  %v261 = vunpack.c.h.b16 %v57
  %v262 = vunpack.c.l.b16 %v58
  %v263 = vunpack.c.h.b16 %v58
  %v264 = vunpack.c.l.b16 %v59
  %v265 = vunpack.c.h.b16 %v59
  %v266 = vunpack.c.l.b16 %v60
  %v267 = vunpack.c.h.b16 %v60
  %v268 = vunpack.c.l.b16 %v61
  %v269 = vunpack.c.h.b16 %v61
  %v270 = vunpack.c.l.b16 %v62
  %v271 = vunpack.c.h.b16 %v62
  %v272 = vunpack.c.l.b16 %v63
  %v273 = vunpack.c.h.b16 %v63
  %v274 = vunpack.c.l.b16 %v64
  %v275 = vunpack.c.h.b16 %v64
  %v276 = vunpack.c.l.b16 %v65
  %v277 = vunpack.c.h.b16 %v65
  %v278 = vunpack.c.l.b16 %v66
  %v279 = vunpack.c.h.b16 %v66
  %v280 = vunpack.c.l.b16 %v67
  %v281 = vunpack.c.h.b16 %v67
  %v282 = vunpack.c.l.b16 %v68
  %v283 = vunpack.c.h.b16 %v68
  %v284 = vunpack.c.l.b16 %v69
  %v285 = vunpack.c.h.b16 %v69
  %v286 = vunpack.c.l.b16 %v70
  %v287 = vunpack.c.h.b16 %v70
  %v288 = vunpack.c.l.b16 %v71
  %v289 = vunpack.c.h.b16 %v71
  %v290 = vunpack.c.l.b16 %v72
  %v291 = vunpack.c.h.b16 %v72
  %v292 = vunpack.c.l.b16 %v73
  %v293 = vunpack.c.h.b16 %v73
  %v294 = vunpack.c.l.b16 %v74
  %v295 = vunpack.c.h.b16 %v74
  %v296 = vunpack.c.l.b16 %v75
  %v297 = vunpack.c.h.b16 %v75
  %v298 = vunpack.c.l.b16 %v76
  %v299 = vunpack.c.h.b16 %v76
  %v300 = vunpack.c.l.b16 %v77
  %v301 = vunpack.c.h.b16 %v77
  %v302 = vpack.c.b16 %v176, %v174
  %v303 = vpack.c.b16 %v177, %v175
  %v304 = vpack.c.b16 %v180, %v178
  %v305 = vpack.c.b16 %v181, %v179
  %v306 = vpack.c.b16 %v184, %v182
  %v307 = vpack.c.b16 %v185, %v183
  %v308 = vpack.c.b16 %v188, %v186
  %v309 = vpack.c.b16 %v189, %v187
  %v310 = vpack.c.b16 %v192, %v190
  %v311 = vpack.c.b16 %v193, %v191
  %v312 = vpack.c.b16 %v196, %v194
  %v313 = vpack.c.b16 %v197, %v195
  %v314 = vpack.c.b16 %v200, %v198
  %v315 = vpack.c.b16 %v201, %v199
  %v316 = vpack.c.b16 %v204, %v202
  %v317 = vpack.c.b16 %v205, %v203
  %v318 = vpack.c.b16 %v208, %v206
  %v319 = vpack.c.b16 %v209, %v207
  %v320 = vpack.c.b16 %v212, %v210
  %v321 = vpack.c.b16 %v213, %v211
  %v322 = vpack.c.b16 %v216, %v214
  %v323 = vpack.c.b16 %v217, %v215
  %v324 = vpack.c.b16 %v220, %v218
  %v325 = vpack.c.b16 %v221, %v219
  %v326 = vpack.c.b16 %v224, %v222
  %v327 = vpack.c.b16 %v225, %v223
  %v328 = vpack.c.b16 %v228, %v226
  %v329 = vpack.c.b16 %v229, %v227
  %v330 = vpack.c.b16 %v232, %v230
  %v331 = vpack.c.b16 %v233, %v231
  %v332 = vpack.c.b16 %v236, %v234
  %v333 = vpack.c.b16 %v237, %v235
  %v334 = vpack.c.b16 %v240, %v238
  %v335 = vpack.c.b16 %v241, %v239
  %v336 = vpack.c.b16 %v244, %v242
  %v337 = vpack.c.b16 %v245, %v243
  %v338 = vpack.c.b16 %v248, %v246
  %v339 = vpack.c.b16 %v249, %v247
  %v340 = vpack.c.b16 %v252, %v250
  %v341 = vpack.c.b16 %v253, %v251
  %v342 = vpack.c.b16 %v256, %v254
  %v343 = vpack.c.b16 %v257, %v255
  %v344 = vpack.c.b16 %v260, %v258
  %v345 = vpack.c.b16 %v261, %v259
  %v346 = vpack.c.b16 %v264, %v262
  %v347 = vpack.c.b16 %v265, %v263
  %v348 = vpack.c.b16 %v268, %v266
  %v349 = vpack.c.b16 %v269, %v267
  %v350 = vpack.c.b16 %v272, %v270
  %v351 = vpack.c.b16 %v273, %v271
  %v352 = vpack.c.b16 %v276, %v274
  %v353 = vpack.c.b16 %v277, %v275
  %v354 = vpack.c.b16 %v280, %v278
  %v355 = vpack.c.b16 %v281, %v279
  %v356 = vpack.c.b16 %v284, %v282
  %v357 = vpack.c.b16 %v285, %v283
  %v358 = vpack.c.b16 %v288, %v286
  %v359 = vpack.c.b16 %v289, %v287
  %v360 = vpack.c.b16 %v292, %v290
  %v361 = vpack.c.b16 %v293, %v291
  %v362 = vpack.c.b16 %v296, %v294
  %v363 = vpack.c.b16 %v297, %v295
  %v364 = vpack.c.b16 %v300, %v298
  %v365 = vpack.c.b16 %v301, %v299
  %v462 = vunpack.c.l.b16 %v78
  %v463 = vunpack.c.l.b16 %v79
  %v464 = vunpack.c.l.b16 %v80
  %v465 = vunpack.c.l.b16 %v81
  %v466 = vunpack.c.l.b16 %v82
  %v467 = vunpack.c.l.b16 %v83
  %v468 = vunpack.c.l.b16 %v84
  %v469 = vunpack.c.l.b16 %v85
  %v470 = vunpack.c.l.b16 %v86
  %v471 = vunpack.c.l.b16 %v87
  %v472 = vunpack.c.l.b16 %v88
  %v473 = vunpack.c.l.b16 %v89
  %v474 = vunpack.c.l.b16 %v90
  %v475 = vunpack.c.l.b16 %v91
  %v476 = vunpack.c.l.b16 %v92
  %v477 = vunpack.c.l.b16 %v93
  %v478 = vunpack.c.l.b16 %v94
  %v479 = vunpack.c.l.b16 %v95
  %v480 = vunpack.c.l.b16 %v96
  %v481 = vunpack.c.l.b16 %v97
  %v482 = vunpack.c.l.b16 %v98
  %v483 = vunpack.c.l.b16 %v99
  %v484 = vunpack.c.l.b16 %v100
  %v485 = vunpack.c.l.b16 %v101
  %v486 = vunpack.c.l.b16 %v102
  %v487 = vunpack.c.l.b16 %v103
  %v488 = vunpack.c.l.b16 %v104
  %v489 = vunpack.c.l.b16 %v105
  %v490 = vunpack.c.l.b16 %v106
  %v491 = vunpack.c.l.b16 %v107
  %v492 = vunpack.c.l.b16 %v108
  %v493 = vunpack.c.l.b16 %v109
  %v494 = vpack.c.b16 %v463, %v462
  %v495 = vpack.c.b16 %v465, %v464
  %v496 = vpack.c.b16 %v467, %v466
  %v497 = vpack.c.b16 %v469, %v468
  %v498 = vpack.c.b16 %v471, %v470
  %v499 = vpack.c.b16 %v473, %v472
  %v500 = vpack.c.b16 %v475, %v474
  %v501 = vpack.c.b16 %v477, %v476
  %v502 = vpack.c.b16 %v479, %v478
  %v503 = vpack.c.b16 %v481, %v480
  %v504 = vpack.c.b16 %v483, %v482
  %v505 = vpack.c.b16 %v485, %v484
  %v506 = vpack.c.b16 %v487, %v486
  %v507 = vpack.c.b16 %v489, %v488
  %v508 = vpack.c.b16 %v491, %v490
  %v509 = vpack.c.b16 %v493, %v492
  %526 = vmatprep.subr.bf16.mxu0 0
  %527 = vmatpush1.bf16.msra.mxu0 %v494
  %528 = vmatprep.subr.bf16.mxu0 0
  %529 = vmatpush1.bf16.msra.mxu0 %v495
  %530 = vmatprep.subr.bf16.mxu0 0
  %531 = vmatpush1.bf16.msra.mxu0 %v496
  %532 = vmatprep.subr.bf16.mxu0 0
  %533 = vmatpush1.bf16.msra.mxu0 %v497
  %534 = vmatprep.subr.bf16.mxu0 0
  %535 = vmatpush1.bf16.msra.mxu0 %v498
  %536 = vmatprep.subr.bf16.mxu0 0
  %537 = vmatpush1.bf16.msra.mxu0 %v499
  %538 = vmatprep.subr.bf16.mxu0 0
  %539 = vmatpush1.bf16.msra.mxu0 %v500
  %540 = vmatprep.subr.bf16.mxu0 0
  %541 = vmatpush1.bf16.msra.mxu0 %v501
  %542 = vmatprep.subr.bf16.mxu0 0
  %543 = vmatpush1.bf16.msra.mxu0 %v502
  %544 = vmatprep.subr.bf16.mxu0 0
  %545 = vmatpush1.bf16.msra.mxu0 %v503
  %546 = vmatprep.subr.bf16.mxu0 0
  %547 = vmatpush1.bf16.msra.mxu0 %v504
  %548 = vmatprep.subr.bf16.mxu0 0
  %549 = vmatpush1.bf16.msra.mxu0 %v505
  %550 = vmatprep.subr.bf16.mxu0 0
  %551 = vmatpush1.bf16.msra.mxu0 %v506
  %552 = vmatprep.subr.bf16.mxu0 0
  %553 = vmatpush1.bf16.msra.mxu0 %v507
  %554 = vmatprep.subr.bf16.mxu0 0
  %555 = vmatpush1.bf16.msra.mxu0 %v508
  %556 = vmatprep.subr.bf16.mxu0 0
  %557 = vmatpush1.bf16.msra.mxu0 %v509
  %558 = vmatprep.mubr.bf16.mxu0 %v303
  %559 = vmatmul.mubr.bf16.gmra.mrb[0].mxu0 %v302
  %v560 = vpop.f32.mrb[0].mxu0
  %v561 = vadd.f32 0.0, %v560
  %v562 = vpop.f32.mrb[0].mxu0
  %v563 = vpop.f32.mrb[0].mxu0
  %v564 = vadd.f32 0.0, %v563
  %v565 = vpop.f32.mrb[0].mxu0
  %566 = vmatprep.mubr.bf16.mxu0 %v305
  %567 = vmatmul.mubr.bf16.gmra.mrb[0].mxu0 %v304
  %v568 = vpop.f32.mrb[0].mxu0
  %v569 = vadd.f32 0.0, %v568
  %v570 = vpop.f32.mrb[0].mxu0
  %v571 = vpop.f32.mrb[0].mxu0
  %v572 = vadd.f32 0.0, %v571
  %v573 = vpop.f32.mrb[0].mxu0
  %574 = vmatprep.mubr.bf16.mxu0 %v307
  %575 = vmatmul.mubr.bf16.gmra.mrb[0].mxu0 %v306
  %v576 = vpop.f32.mrb[0].mxu0
  %v577 = vadd.f32 0.0, %v576
  %v578 = vpop.f32.mrb[0].mxu0
  %v579 = vpop.f32.mrb[0].mxu0
  %v580 = vadd.f32 0.0, %v579
  %v581 = vpop.f32.mrb[0].mxu0
  %582 = vmatprep.mubr.bf16.mxu0 %v309
  %583 = vmatmul.mubr.bf16.gmra.mrb[0].mxu0 %v308
  %v584 = vpop.f32.mrb[0].mxu0
  %v585 = vadd.f32 0.0, %v584
  %v586 = vpop.f32.mrb[0].mxu0
  %v587 = vpop.f32.mrb[0].mxu0
  %v588 = vadd.f32 0.0, %v587
  %v589 = vpop.f32.mrb[0].mxu0
  %590 = vmatprep.mubr.bf16.mxu0 %v311
  %591 = vmatmul.mubr.bf16.gmra.mrb[0].mxu0 %v310
  %v592 = vpop.f32.mrb[0].mxu0
  %v593 = vadd.f32 0.0, %v592
  %v594 = vpop.f32.mrb[0].mxu0
  %v595 = vpop.f32.mrb[0].mxu0
  %v596 = vadd.f32 0.0, %v595
  %v597 = vpop.f32.mrb[0].mxu0
  %598 = vmatprep.mubr.bf16.mxu0 %v313
  %599 = vmatmul.mubr.bf16.gmra.mrb[0].mxu0 %v312
  %v600 = vpop.f32.mrb[0].mxu0
  %v601 = vadd.f32 0.0, %v600
  %v602 = vpop.f32.mrb[0].mxu0
  %v603 = vpop.f32.mrb[0].mxu0
  %v604 = vadd.f32 0.0, %v603
  %v605 = vpop.f32.mrb[0].mxu0
  %606 = vmatprep.mubr.bf16.mxu0 %v315
  %607 = vmatmul.mubr.bf16.gmra.mrb[0].mxu0 %v314
  %v608 = vpop.f32.mrb[0].mxu0
  %v609 = vadd.f32 0.0, %v608
  %v610 = vpop.f32.mrb[0].mxu0
  %v611 = vpop.f32.mrb[0].mxu0
  %v612 = vadd.f32 0.0, %v611
  %v613 = vpop.f32.mrb[0].mxu0
  %614 = vmatprep.mubr.bf16.mxu0 %v317
  %615 = vmatmul.mubr.bf16.gmra.mrb[0].mxu0 %v316
  %v616 = vpop.f32.mrb[0].mxu0
  %v617 = vadd.f32 0.0, %v616
  %v618 = vpop.f32.mrb[0].mxu0
  %v619 = vpop.f32.mrb[0].mxu0
  %v620 = vadd.f32 0.0, %v619
  %v621 = vpop.f32.mrb[0].mxu0
  %622 = vmatprep.mubr.bf16.mxu0 %v319
  %623 = vmatmul.mubr.bf16.gmra.mrb[0].mxu0 %v318
  %v624 = vpop.f32.mrb[0].mxu0
  %v625 = vadd.f32 0.0, %v624
  %v626 = vpop.f32.mrb[0].mxu0
  %v627 = vpop.f32.mrb[0].mxu0
  %v628 = vadd.f32 0.0, %v627
  %v629 = vpop.f32.mrb[0].mxu0
  %630 = vmatprep.mubr.bf16.mxu0 %v321
  %631 = vmatmul.mubr.bf16.gmra.mrb[0].mxu0 %v320
  %v632 = vpop.f32.mrb[0].mxu0
  %v633 = vadd.f32 0.0, %v632
  %v634 = vpop.f32.mrb[0].mxu0
  %v635 = vpop.f32.mrb[0].mxu0
  %v636 = vadd.f32 0.0, %v635
  %v637 = vpop.f32.mrb[0].mxu0
  %638 = vmatprep.mubr.bf16.mxu0 %v323
  %639 = vmatmul.mubr.bf16.gmra.mrb[0].mxu0 %v322
  %v640 = vpop.f32.mrb[0].mxu0
  %v641 = vadd.f32 0.0, %v640
  %v642 = vpop.f32.mrb[0].mxu0
  %v643 = vpop.f32.mrb[0].mxu0
  %v644 = vadd.f32 0.0, %v643
  %v645 = vpop.f32.mrb[0].mxu0
  %646 = vmatprep.mubr.bf16.mxu0 %v325
  %647 = vmatmul.mubr.bf16.gmra.mrb[0].mxu0 %v324
  %v648 = vpop.f32.mrb[0].mxu0
  %v649 = vadd.f32 0.0, %v648
  %v650 = vpop.f32.mrb[0].mxu0
  %v651 = vpop.f32.mrb[0].mxu0
  %v652 = vadd.f32 0.0, %v651
  %v653 = vpop.f32.mrb[0].mxu0
  %654 = vmatprep.mubr.bf16.mxu0 %v327
  %655 = vmatmul.mubr.bf16.gmra.mrb[0].mxu0 %v326
  %v656 = vpop.f32.mrb[0].mxu0
  %v657 = vadd.f32 0.0, %v656
  %v658 = vpop.f32.mrb[0].mxu0
  %v659 = vpop.f32.mrb[0].mxu0
  %v660 = vadd.f32 0.0, %v659
  %v661 = vpop.f32.mrb[0].mxu0
  %662 = vmatprep.mubr.bf16.mxu0 %v329
  %663 = vmatmul.mubr.bf16.gmra.mrb[0].mxu0 %v328
  %v664 = vpop.f32.mrb[0].mxu0
  %v665 = vadd.f32 0.0, %v664
  %v666 = vpop.f32.mrb[0].mxu0
  %v667 = vpop.f32.mrb[0].mxu0
  %v668 = vadd.f32 0.0, %v667
  %v669 = vpop.f32.mrb[0].mxu0
  %670 = vmatprep.mubr.bf16.mxu0 %v331
  %671 = vmatmul.mubr.bf16.gmra.mrb[0].mxu0 %v330
  %v672 = vpop.f32.mrb[0].mxu0
  %v673 = vadd.f32 0.0, %v672
  %v674 = vpop.f32.mrb[0].mxu0
  %v675 = vpop.f32.mrb[0].mxu0
  %v676 = vadd.f32 0.0, %v675
  %v677 = vpop.f32.mrb[0].mxu0
  %678 = vmatprep.mubr.bf16.mxu0 %v333
  %679 = vmatmul.mubr.bf16.gmra.mrb[0].mxu0 %v332
  %v680 = vpop.f32.mrb[0].mxu0
  %v681 = vadd.f32 0.0, %v680
  %v682 = vpop.f32.mrb[0].mxu0
  %v683 = vpop.f32.mrb[0].mxu0
  %v684 = vadd.f32 0.0, %v683
  %v685 = vpop.f32.mrb[0].mxu0
  %686 = vmatprep.mubr.bf16.mxu0 %v335
  %687 = vmatmul.mubr.bf16.gmra.mrb[0].mxu0 %v334
  %v688 = vpop.f32.mrb[0].mxu0
  %v689 = vadd.f32 0.0, %v688
  %v690 = vpop.f32.mrb[0].mxu0
  %v691 = vpop.f32.mrb[0].mxu0
  %v692 = vadd.f32 0.0, %v691
  %v693 = vpop.f32.mrb[0].mxu0
  %694 = vmatprep.mubr.bf16.mxu0 %v337
  %695 = vmatmul.mubr.bf16.gmra.mrb[0].mxu0 %v336
  %v696 = vpop.f32.mrb[0].mxu0
  %v697 = vadd.f32 0.0, %v696
  %v698 = vpop.f32.mrb[0].mxu0
  %v699 = vpop.f32.mrb[0].mxu0
  %v700 = vadd.f32 0.0, %v699
  %v701 = vpop.f32.mrb[0].mxu0
  %702 = vmatprep.mubr.bf16.mxu0 %v339
  %703 = vmatmul.mubr.bf16.gmra.mrb[0].mxu0 %v338
  %v704 = vpop.f32.mrb[0].mxu0
  %v705 = vadd.f32 0.0, %v704
  %v706 = vpop.f32.mrb[0].mxu0
  %v707 = vpop.f32.mrb[0].mxu0
  %v708 = vadd.f32 0.0, %v707
  %v709 = vpop.f32.mrb[0].mxu0
  %710 = vmatprep.mubr.bf16.mxu0 %v341
  %711 = vmatmul.mubr.bf16.gmra.mrb[0].mxu0 %v340
  %v712 = vpop.f32.mrb[0].mxu0
  %v713 = vadd.f32 0.0, %v712
  %v714 = vpop.f32.mrb[0].mxu0
  %v715 = vpop.f32.mrb[0].mxu0
  %v716 = vadd.f32 0.0, %v715
  %v717 = vpop.f32.mrb[0].mxu0
  %718 = vmatprep.mubr.bf16.mxu0 %v343
  %719 = vmatmul.mubr.bf16.gmra.mrb[0].mxu0 %v342
  %v720 = vpop.f32.mrb[0].mxu0
  %v721 = vadd.f32 0.0, %v720
  %v722 = vpop.f32.mrb[0].mxu0
  %v723 = vpop.f32.mrb[0].mxu0
  %v724 = vadd.f32 0.0, %v723
  %v725 = vpop.f32.mrb[0].mxu0
  %726 = vmatprep.mubr.bf16.mxu0 %v345
  %727 = vmatmul.mubr.bf16.gmra.mrb[0].mxu0 %v344
  %v728 = vpop.f32.mrb[0].mxu0
  %v729 = vadd.f32 0.0, %v728
  %v730 = vpop.f32.mrb[0].mxu0
  %v731 = vpop.f32.mrb[0].mxu0
  %v732 = vadd.f32 0.0, %v731
  %v733 = vpop.f32.mrb[0].mxu0
  %734 = vmatprep.mubr.bf16.mxu0 %v347
  %735 = vmatmul.mubr.bf16.gmra.mrb[0].mxu0 %v346
  %v736 = vpop.f32.mrb[0].mxu0
  %v737 = vadd.f32 0.0, %v736
  %v738 = vpop.f32.mrb[0].mxu0
  %v739 = vpop.f32.mrb[0].mxu0
  %v740 = vadd.f32 0.0, %v739
  %v741 = vpop.f32.mrb[0].mxu0
  %742 = vmatprep.mubr.bf16.mxu0 %v349
  %743 = vmatmul.mubr.bf16.gmra.mrb[0].mxu0 %v348
  %v744 = vpop.f32.mrb[0].mxu0
  %v745 = vadd.f32 0.0, %v744
  %v746 = vpop.f32.mrb[0].mxu0
  %v747 = vpop.f32.mrb[0].mxu0
  %v748 = vadd.f32 0.0, %v747
  %v749 = vpop.f32.mrb[0].mxu0
  %750 = vmatprep.mubr.bf16.mxu0 %v351
  %751 = vmatmul.mubr.bf16.gmra.mrb[0].mxu0 %v350
  %v752 = vpop.f32.mrb[0].mxu0
  %v753 = vadd.f32 0.0, %v752
  %v754 = vpop.f32.mrb[0].mxu0
  %v755 = vpop.f32.mrb[0].mxu0
  %v756 = vadd.f32 0.0, %v755
  %v757 = vpop.f32.mrb[0].mxu0
  %758 = vmatprep.mubr.bf16.mxu0 %v353
  %759 = vmatmul.mubr.bf16.gmra.mrb[0].mxu0 %v352
  %v760 = vpop.f32.mrb[0].mxu0
  %v761 = vadd.f32 0.0, %v760
  %v762 = vpop.f32.mrb[0].mxu0
  %v763 = vpop.f32.mrb[0].mxu0
  %v764 = vadd.f32 0.0, %v763
  %v765 = vpop.f32.mrb[0].mxu0
  %766 = vmatprep.mubr.bf16.mxu0 %v355
  %767 = vmatmul.mubr.bf16.gmra.mrb[0].mxu0 %v354
  %v768 = vpop.f32.mrb[0].mxu0
  %v769 = vadd.f32 0.0, %v768
  %v770 = vpop.f32.mrb[0].mxu0
  %v771 = vpop.f32.mrb[0].mxu0
  %v772 = vadd.f32 0.0, %v771
  %v773 = vpop.f32.mrb[0].mxu0
  %774 = vmatprep.mubr.bf16.mxu0 %v357
  %775 = vmatmul.mubr.bf16.gmra.mrb[0].mxu0 %v356
  %v776 = vpop.f32.mrb[0].mxu0
  %v777 = vadd.f32 0.0, %v776
  %v778 = vpop.f32.mrb[0].mxu0
  %v779 = vpop.f32.mrb[0].mxu0
  %v780 = vadd.f32 0.0, %v779
  %v781 = vpop.f32.mrb[0].mxu0
  %782 = vmatprep.mubr.bf16.mxu0 %v359
  %783 = vmatmul.mubr.bf16.gmra.mrb[0].mxu0 %v358
  %v784 = vpop.f32.mrb[0].mxu0
  %v785 = vadd.f32 0.0, %v784
  %v786 = vpop.f32.mrb[0].mxu0
  %v787 = vpop.f32.mrb[0].mxu0
  %v788 = vadd.f32 0.0, %v787
  %v789 = vpop.f32.mrb[0].mxu0
  %790 = vmatprep.mubr.bf16.mxu0 %v361
  %791 = vmatmul.mubr.bf16.gmra.mrb[0].mxu0 %v360
  %v792 = vpop.f32.mrb[0].mxu0
  %v793 = vadd.f32 0.0, %v792
  %v794 = vpop.f32.mrb[0].mxu0
  %v795 = vpop.f32.mrb[0].mxu0
  %v796 = vadd.f32 0.0, %v795
  %v797 = vpop.f32.mrb[0].mxu0
  %798 = vmatprep.mubr.bf16.mxu0 %v363
  %799 = vmatmul.mubr.bf16.gmra.mrb[0].mxu0 %v362
  %v800 = vpop.f32.mrb[0].mxu0
  %v801 = vadd.f32 0.0, %v800
  %v802 = vpop.f32.mrb[0].mxu0
  %v803 = vpop.f32.mrb[0].mxu0
  %v804 = vadd.f32 0.0, %v803
  %v805 = vpop.f32.mrb[0].mxu0
  %806 = vmatprep.mubr.bf16.mxu0 %v365
  %807 = vmatmul.mubr.bf16.gmra.mrb[0].mxu0 %v364
  %v808 = vpop.f32.mrb[0].mxu0
  %v809 = vadd.f32 0.0, %v808
  %v810 = vpop.f32.mrb[0].mxu0
  %v811 = vpop.f32.mrb[0].mxu0
  %v812 = vadd.f32 0.0, %v811
  %v813 = vpop.f32.mrb[0].mxu0
  %814 = vdwg.mxu0
  %v815 = vpack.c.bf16 %v564, %v561
  %v816 = vpack.c.bf16 %v572, %v569
  %v817 = vpack.c.bf16 %v580, %v577
  %v818 = vpack.c.bf16 %v588, %v585
  %v819 = vpack.c.bf16 %v596, %v593
  %v820 = vpack.c.bf16 %v604, %v601
  %v821 = vpack.c.bf16 %v612, %v609
  %v822 = vpack.c.bf16 %v620, %v617
  %v823 = vpack.c.bf16 %v628, %v625
  %v824 = vpack.c.bf16 %v636, %v633
  %v825 = vpack.c.bf16 %v644, %v641
  %v826 = vpack.c.bf16 %v652, %v649
  %v827 = vpack.c.bf16 %v660, %v657
  %v828 = vpack.c.bf16 %v668, %v665
  %v829 = vpack.c.bf16 %v676, %v673
  %v830 = vpack.c.bf16 %v684, %v681
  %v831 = vpack.c.bf16 %v692, %v689
  %v832 = vpack.c.bf16 %v700, %v697
  %v833 = vpack.c.bf16 %v708, %v705
  %v834 = vpack.c.bf16 %v716, %v713
  %v835 = vpack.c.bf16 %v724, %v721
  %v836 = vpack.c.bf16 %v732, %v729
  %v837 = vpack.c.bf16 %v740, %v737
  %v838 = vpack.c.bf16 %v748, %v745
  %v839 = vpack.c.bf16 %v756, %v753
  %v840 = vpack.c.bf16 %v764, %v761
  %v841 = vpack.c.bf16 %v772, %v769
  %v842 = vpack.c.bf16 %v780, %v777
  %v843 = vpack.c.bf16 %v788, %v785
  %v844 = vpack.c.bf16 %v796, %v793
  %v845 = vpack.c.bf16 %v804, %v801
  %v846 = vpack.c.bf16 %v812, %v809
  %v879 = vunpack.c.l.b16 %v815
  %v880 = vunpack.c.h.b16 %v815
  %v881 = vunpack.c.l.b16 %v816
  %v882 = vunpack.c.h.b16 %v816
  %v883 = vunpack.c.l.b16 %v817
  %v884 = vunpack.c.h.b16 %v817
  %v885 = vunpack.c.l.b16 %v818
  %v886 = vunpack.c.h.b16 %v818
  %v887 = vunpack.c.l.b16 %v819
  %v888 = vunpack.c.h.b16 %v819
  %v889 = vunpack.c.l.b16 %v820
  %v890 = vunpack.c.h.b16 %v820
  %v891 = vunpack.c.l.b16 %v821
  %v892 = vunpack.c.h.b16 %v821
  %v893 = vunpack.c.l.b16 %v822
  %v894 = vunpack.c.h.b16 %v822
  %v895 = vunpack.c.l.b16 %v823
  %v896 = vunpack.c.h.b16 %v823
  %v897 = vunpack.c.l.b16 %v824
  %v898 = vunpack.c.h.b16 %v824
  %v899 = vunpack.c.l.b16 %v825
  %v900 = vunpack.c.h.b16 %v825
  %v901 = vunpack.c.l.b16 %v826
  %v902 = vunpack.c.h.b16 %v826
  %v903 = vunpack.c.l.b16 %v827
  %v904 = vunpack.c.h.b16 %v827
  %v905 = vunpack.c.l.b16 %v828
  %v906 = vunpack.c.h.b16 %v828
  %v907 = vunpack.c.l.b16 %v829
  %v908 = vunpack.c.h.b16 %v829
  %v909 = vunpack.c.l.b16 %v830
  %v910 = vunpack.c.h.b16 %v830
  %v911 = vunpack.c.l.b16 %v831
  %v912 = vunpack.c.h.b16 %v831
  %v913 = vunpack.c.l.b16 %v832
  %v914 = vunpack.c.h.b16 %v832
  %v915 = vunpack.c.l.b16 %v833
  %v916 = vunpack.c.h.b16 %v833
  %v917 = vunpack.c.l.b16 %v834
  %v918 = vunpack.c.h.b16 %v834
  %v919 = vunpack.c.l.b16 %v835
  %v920 = vunpack.c.h.b16 %v835
  %v921 = vunpack.c.l.b16 %v836
  %v922 = vunpack.c.h.b16 %v836
  %v923 = vunpack.c.l.b16 %v837
  %v924 = vunpack.c.h.b16 %v837
  %v925 = vunpack.c.l.b16 %v838
  %v926 = vunpack.c.h.b16 %v838
  %v927 = vunpack.c.l.b16 %v839
  %v928 = vunpack.c.h.b16 %v839
  %v929 = vunpack.c.l.b16 %v840
  %v930 = vunpack.c.h.b16 %v840
  %v931 = vunpack.c.l.b16 %v841
  %v932 = vunpack.c.h.b16 %v841
  %v933 = vunpack.c.l.b16 %v842
  %v934 = vunpack.c.h.b16 %v842
  %v935 = vunpack.c.l.b16 %v843
  %v936 = vunpack.c.h.b16 %v843
  %v937 = vunpack.c.l.b16 %v844
  %v938 = vunpack.c.h.b16 %v844
  %v939 = vunpack.c.l.b16 %v845
  %v940 = vunpack.c.h.b16 %v845
  %v941 = vunpack.c.l.b16 %v846
  %v942 = vunpack.c.h.b16 %v846
  %v943 = vpack.c.b16 %v879, %v879
  %v944 = vpack.c.b16 %v880, %v880
  %v945 = vpack.c.b16 %v881, %v881
  %v946 = vpack.c.b16 %v882, %v882
  %v947 = vpack.c.b16 %v883, %v883
  %v948 = vpack.c.b16 %v884, %v884
  %v949 = vpack.c.b16 %v885, %v885
  %v950 = vpack.c.b16 %v886, %v886
  %v951 = vpack.c.b16 %v887, %v887
  %v952 = vpack.c.b16 %v888, %v888
  %v953 = vpack.c.b16 %v889, %v889
  %v954 = vpack.c.b16 %v890, %v890
  %v955 = vpack.c.b16 %v891, %v891
  %v956 = vpack.c.b16 %v892, %v892
  %v957 = vpack.c.b16 %v893, %v893
  %v958 = vpack.c.b16 %v894, %v894
  %v959 = vpack.c.b16 %v895, %v895
  %v960 = vpack.c.b16 %v896, %v896
  %v961 = vpack.c.b16 %v897, %v897
  %v962 = vpack.c.b16 %v898, %v898
  %v963 = vpack.c.b16 %v899, %v899
  %v964 = vpack.c.b16 %v900, %v900
  %v965 = vpack.c.b16 %v901, %v901
  %v966 = vpack.c.b16 %v902, %v902
  %v967 = vpack.c.b16 %v903, %v903
  %v968 = vpack.c.b16 %v904, %v904
  %v969 = vpack.c.b16 %v905, %v905
  %v970 = vpack.c.b16 %v906, %v906
  %v971 = vpack.c.b16 %v907, %v907
  %v972 = vpack.c.b16 %v908, %v908
  %v973 = vpack.c.b16 %v909, %v909
  %v974 = vpack.c.b16 %v910, %v910
  %v975 = vpack.c.b16 %v911, %v911
  %v976 = vpack.c.b16 %v912, %v912
  %v977 = vpack.c.b16 %v913, %v913
  %v978 = vpack.c.b16 %v914, %v914
  %v979 = vpack.c.b16 %v915, %v915
  %v980 = vpack.c.b16 %v916, %v916
  %v981 = vpack.c.b16 %v917, %v917
  %v982 = vpack.c.b16 %v918, %v918
  %v983 = vpack.c.b16 %v919, %v919
  %v984 = vpack.c.b16 %v920, %v920
  %v985 = vpack.c.b16 %v921, %v921
  %v986 = vpack.c.b16 %v922, %v922
  %v987 = vpack.c.b16 %v923, %v923
  %v988 = vpack.c.b16 %v924, %v924
  %v989 = vpack.c.b16 %v925, %v925
  %v990 = vpack.c.b16 %v926, %v926
  %v991 = vpack.c.b16 %v927, %v927
  %v992 = vpack.c.b16 %v928, %v928
  %v993 = vpack.c.b16 %v929, %v929
  %v994 = vpack.c.b16 %v930, %v930
  %v995 = vpack.c.b16 %v931, %v931
  %v996 = vpack.c.b16 %v932, %v932
  %v997 = vpack.c.b16 %v933, %v933
  %v998 = vpack.c.b16 %v934, %v934
  %v999 = vpack.c.b16 %v935, %v935
  %v1000 = vpack.c.b16 %v936, %v936
  %v1001 = vpack.c.b16 %v937, %v937
  %v1002 = vpack.c.b16 %v938, %v938
  %v1003 = vpack.c.b16 %v939, %v939
  %v1004 = vpack.c.b16 %v940, %v940
  %v1005 = vpack.c.b16 %v941, %v941
  %v1006 = vpack.c.b16 %v942, %v942
  %vm1071 = vcmask 519168
  %1072 = vst.msk [vmem:[%s2] sm:$0xf] %vm1071, %v943
  %1073 = vst.msk [vmem:[%s2 + $0x4] sm:$0xf] %vm1071, %v944
  %1074 = vst.msk [vmem:[%s2 + $0x8] sm:$0xf] %vm1071, %v945
  %1075 = vst.msk [vmem:[%s2 + $0xc] sm:$0xf] %vm1071, %v946
  %1076 = vst.msk [vmem:[%s2 + $0x10] sm:$0xf] %vm1071, %v947
  %1077 = vst.msk [vmem:[%s2 + $0x14] sm:$0xf] %vm1071, %v948
  %1078 = vst.msk [vmem:[%s2 + $0x18] sm:$0xf] %vm1071, %v949
  %1079 = vst.msk [vmem:[%s2 + $0x1c] sm:$0xf] %vm1071, %v950
  %1080 = vst.msk [vmem:[%s2 + $0x20] sm:$0xf] %vm1071, %v951
  %1081 = vst.msk [vmem:[%s2 + $0x24] sm:$0xf] %vm1071, %v952
  %1082 = vst.msk [vmem:[%s2 + $0x28] sm:$0xf] %vm1071, %v953
  %1083 = vst.msk [vmem:[%s2 + $0x2c] sm:$0xf] %vm1071, %v954
  %1084 = vst.msk [vmem:[%s2 + $0x30] sm:$0xf] %vm1071, %v955
  %1085 = vst.msk [vmem:[%s2 + $0x34] sm:$0xf] %vm1071, %v956
  %1086 = vst.msk [vmem:[%s2 + $0x38] sm:$0xf] %vm1071, %v957
  %1087 = vst.msk [vmem:[%s2 + $0x3c] sm:$0xf] %vm1071, %v958
  %1088 = vst.msk [vmem:[%s2 + $0x40] sm:$0xf] %vm1071, %v959
  %1089 = vst.msk [vmem:[%s2 + $0x44] sm:$0xf] %vm1071, %v960
  %1090 = vst.msk [vmem:[%s2 + $0x48] sm:$0xf] %vm1071, %v961
  %1091 = vst.msk [vmem:[%s2 + $0x4c] sm:$0xf] %vm1071, %v962
  %1092 = vst.msk [vmem:[%s2 + $0x50] sm:$0xf] %vm1071, %v963
  %1093 = vst.msk [vmem:[%s2 + $0x54] sm:$0xf] %vm1071, %v964
  %1094 = vst.msk [vmem:[%s2 + $0x58] sm:$0xf] %vm1071, %v965
  %1095 = vst.msk [vmem:[%s2 + $0x5c] sm:$0xf] %vm1071, %v966
  %1096 = vst.msk [vmem:[%s2 + $0x60] sm:$0xf] %vm1071, %v967
  %1097 = vst.msk [vmem:[%s2 + $0x64] sm:$0xf] %vm1071, %v968
  %1098 = vst.msk [vmem:[%s2 + $0x68] sm:$0xf] %vm1071, %v969
  %1099 = vst.msk [vmem:[%s2 + $0x6c] sm:$0xf] %vm1071, %v970
  %1100 = vst.msk [vmem:[%s2 + $0x70] sm:$0xf] %vm1071, %v971
  %1101 = vst.msk [vmem:[%s2 + $0x74] sm:$0xf] %vm1071, %v972
  %1102 = vst.msk [vmem:[%s2 + $0x78] sm:$0xf] %vm1071, %v973
  %1103 = vst.msk [vmem:[%s2 + $0x7c] sm:$0xf] %vm1071, %v974
  %1104 = vst.msk [vmem:[%s2 + $0x80] sm:$0xf] %vm1071, %v975
  %1105 = vst.msk [vmem:[%s2 + $0x84] sm:$0xf] %vm1071, %v976
  %1106 = vst.msk [vmem:[%s2 + $0x88] sm:$0xf] %vm1071, %v977
  %1107 = vst.msk [vmem:[%s2 + $0x8c] sm:$0xf] %vm1071, %v978
  %1108 = vst.msk [vmem:[%s2 + $0x90] sm:$0xf] %vm1071, %v979
  %1109 = vst.msk [vmem:[%s2 + $0x94] sm:$0xf] %vm1071, %v980
  %1110 = vst.msk [vmem:[%s2 + $0x98] sm:$0xf] %vm1071, %v981
  %1111 = vst.msk [vmem:[%s2 + $0x9c] sm:$0xf] %vm1071, %v982
  %1112 = vst.msk [vmem:[%s2 + $0xa0] sm:$0xf] %vm1071, %v983
  %1113 = vst.msk [vmem:[%s2 + $0xa4] sm:$0xf] %vm1071, %v984
  %1114 = vst.msk [vmem:[%s2 + $0xa8] sm:$0xf] %vm1071, %v985
  %1115 = vst.msk [vmem:[%s2 + $0xac] sm:$0xf] %vm1071, %v986
  %1116 = vst.msk [vmem:[%s2 + $0xb0] sm:$0xf] %vm1071, %v987
  %1117 = vst.msk [vmem:[%s2 + $0xb4] sm:$0xf] %vm1071, %v988
  %1118 = vst.msk [vmem:[%s2 + $0xb8] sm:$0xf] %vm1071, %v989
  %1119 = vst.msk [vmem:[%s2 + $0xbc] sm:$0xf] %vm1071, %v990
  %1120 = vst.msk [vmem:[%s2 + $0xc0] sm:$0xf] %vm1071, %v991
  %1121 = vst.msk [vmem:[%s2 + $0xc4] sm:$0xf] %vm1071, %v992
  %1122 = vst.msk [vmem:[%s2 + $0xc8] sm:$0xf] %vm1071, %v993
  %1123 = vst.msk [vmem:[%s2 + $0xcc] sm:$0xf] %vm1071, %v994
  %1124 = vst.msk [vmem:[%s2 + $0xd0] sm:$0xf] %vm1071, %v995
  %1125 = vst.msk [vmem:[%s2 + $0xd4] sm:$0xf] %vm1071, %v996
  %1126 = vst.msk [vmem:[%s2 + $0xd8] sm:$0xf] %vm1071, %v997
  %1127 = vst.msk [vmem:[%s2 + $0xdc] sm:$0xf] %vm1071, %v998
  %1128 = vst.msk [vmem:[%s2 + $0xe0] sm:$0xf] %vm1071, %v999
  %1129 = vst.msk [vmem:[%s2 + $0xe4] sm:$0xf] %vm1071, %v1000
  %1130 = vst.msk [vmem:[%s2 + $0xe8] sm:$0xf] %vm1071, %v1001
  %1131 = vst.msk [vmem:[%s2 + $0xec] sm:$0xf] %vm1071, %v1002
  %1132 = vst.msk [vmem:[%s2 + $0xf0] sm:$0xf] %vm1071, %v1003
  %1133 = vst.msk [vmem:[%s2 + $0xf4] sm:$0xf] %vm1071, %v1004
  %1134 = vst.msk [vmem:[%s2 + $0xf8] sm:$0xf] %vm1071, %v1005
  %1135 = vst.msk [vmem:[%s2 + $0xfc] sm:$0xf] %vm1071, %v1006
  %vm1136 = vcmask 523264
  %v1137 = vsel %vm1136, %v561, 0.0
  %v1138 = vsel %vm1136, %v564, 0.0
  %v1139 = vadd.f32 %v1137, %v1138
  %v1140 = vsel %vm1136, %v569, 0.0
  %v1141 = vadd.f32 %v1139, %v1140
  %v1142 = vsel %vm1136, %v572, 0.0
  %v1143 = vadd.f32 %v1141, %v1142
  %v1144 = vsel %vm1136, %v577, 0.0
  %v1145 = vadd.f32 %v1143, %v1144
  %v1146 = vsel %vm1136, %v580, 0.0
  %v1147 = vadd.f32 %v1145, %v1146
  %v1148 = vsel %vm1136, %v585, 0.0
  %v1149 = vadd.f32 %v1147, %v1148
  %v1150 = vsel %vm1136, %v588, 0.0
  %v1151 = vadd.f32 %v1149, %v1150
  %v1152 = vsel %vm1136, %v593, 0.0
  %v1153 = vadd.f32 %v1151, %v1152
  %v1154 = vsel %vm1136, %v596, 0.0
  %v1155 = vadd.f32 %v1153, %v1154
  %v1156 = vsel %vm1136, %v601, 0.0
  %v1157 = vadd.f32 %v1155, %v1156
  %v1158 = vsel %vm1136, %v604, 0.0
  %v1159 = vadd.f32 %v1157, %v1158
  %v1160 = vsel %vm1136, %v609, 0.0
  %v1161 = vadd.f32 %v1159, %v1160
  %v1162 = vsel %vm1136, %v612, 0.0
  %v1163 = vadd.f32 %v1161, %v1162
  %v1164 = vsel %vm1136, %v617, 0.0
  %v1165 = vadd.f32 %v1163, %v1164
  %v1166 = vsel %vm1136, %v620, 0.0
  %v1167 = vadd.f32 %v1165, %v1166
  %v1168 = vsel %vm1136, %v625, 0.0
  %v1169 = vadd.f32 %v1167, %v1168
  %v1170 = vsel %vm1136, %v628, 0.0
  %v1171 = vadd.f32 %v1169, %v1170
  %v1172 = vsel %vm1136, %v633, 0.0
  %v1173 = vadd.f32 %v1171, %v1172
  %v1174 = vsel %vm1136, %v636, 0.0
  %v1175 = vadd.f32 %v1173, %v1174
  %v1176 = vsel %vm1136, %v641, 0.0
  %v1177 = vadd.f32 %v1175, %v1176
  %v1178 = vsel %vm1136, %v644, 0.0
  %v1179 = vadd.f32 %v1177, %v1178
  %v1180 = vsel %vm1136, %v649, 0.0
  %v1181 = vadd.f32 %v1179, %v1180
  %v1182 = vsel %vm1136, %v652, 0.0
  %v1183 = vadd.f32 %v1181, %v1182
  %v1184 = vsel %vm1136, %v657, 0.0
  %v1185 = vadd.f32 %v1183, %v1184
  %v1186 = vsel %vm1136, %v660, 0.0
  %v1187 = vadd.f32 %v1185, %v1186
  %v1188 = vsel %vm1136, %v665, 0.0
  %v1189 = vadd.f32 %v1187, %v1188
  %v1190 = vsel %vm1136, %v668, 0.0
  %v1191 = vadd.f32 %v1189, %v1190
  %v1192 = vsel %vm1136, %v673, 0.0
  %v1193 = vadd.f32 %v1191, %v1192
  %v1194 = vsel %vm1136, %v676, 0.0
  %v1195 = vadd.f32 %v1193, %v1194
  %v1196 = vsel %vm1136, %v681, 0.0
  %v1197 = vadd.f32 %v1195, %v1196
  %v1198 = vsel %vm1136, %v684, 0.0
  %v1199 = vadd.f32 %v1197, %v1198
  %v1200 = vsel %vm1136, %v689, 0.0
  %v1201 = vadd.f32 %v1199, %v1200
  %v1202 = vsel %vm1136, %v692, 0.0
  %v1203 = vadd.f32 %v1201, %v1202
  %v1204 = vsel %vm1136, %v697, 0.0
  %v1205 = vadd.f32 %v1203, %v1204
  %v1206 = vsel %vm1136, %v700, 0.0
  %v1207 = vadd.f32 %v1205, %v1206
  %v1208 = vsel %vm1136, %v705, 0.0
  %v1209 = vadd.f32 %v1207, %v1208
  %v1210 = vsel %vm1136, %v708, 0.0
  %v1211 = vadd.f32 %v1209, %v1210
  %v1212 = vsel %vm1136, %v713, 0.0
  %v1213 = vadd.f32 %v1211, %v1212
  %v1214 = vsel %vm1136, %v716, 0.0
  %v1215 = vadd.f32 %v1213, %v1214
  %v1216 = vsel %vm1136, %v721, 0.0
  %v1217 = vadd.f32 %v1215, %v1216
  %v1218 = vsel %vm1136, %v724, 0.0
  %v1219 = vadd.f32 %v1217, %v1218
  %v1220 = vsel %vm1136, %v729, 0.0
  %v1221 = vadd.f32 %v1219, %v1220
  %v1222 = vsel %vm1136, %v732, 0.0
  %v1223 = vadd.f32 %v1221, %v1222
  %v1224 = vsel %vm1136, %v737, 0.0
  %v1225 = vadd.f32 %v1223, %v1224
  %v1226 = vsel %vm1136, %v740, 0.0
  %v1227 = vadd.f32 %v1225, %v1226
  %v1228 = vsel %vm1136, %v745, 0.0
  %v1229 = vadd.f32 %v1227, %v1228
  %v1230 = vsel %vm1136, %v748, 0.0
  %v1231 = vadd.f32 %v1229, %v1230
  %v1232 = vsel %vm1136, %v753, 0.0
  %v1233 = vadd.f32 %v1231, %v1232
  %v1234 = vsel %vm1136, %v756, 0.0
  %v1235 = vadd.f32 %v1233, %v1234
  %v1236 = vsel %vm1136, %v761, 0.0
  %v1237 = vadd.f32 %v1235, %v1236
  %v1238 = vsel %vm1136, %v764, 0.0
  %v1239 = vadd.f32 %v1237, %v1238
  %v1240 = vsel %vm1136, %v769, 0.0
  %v1241 = vadd.f32 %v1239, %v1240
  %v1242 = vsel %vm1136, %v772, 0.0
  %v1243 = vadd.f32 %v1241, %v1242
  %v1244 = vsel %vm1136, %v777, 0.0
  %v1245 = vadd.f32 %v1243, %v1244
  %v1246 = vsel %vm1136, %v780, 0.0
  %v1247 = vadd.f32 %v1245, %v1246
  %v1248 = vsel %vm1136, %v785, 0.0
  %v1249 = vadd.f32 %v1247, %v1248
  %v1250 = vsel %vm1136, %v788, 0.0
  %v1251 = vadd.f32 %v1249, %v1250
  %v1252 = vsel %vm1136, %v793, 0.0
  %v1253 = vadd.f32 %v1251, %v1252
  %v1254 = vsel %vm1136, %v796, 0.0
  %v1255 = vadd.f32 %v1253, %v1254
  %v1256 = vsel %vm1136, %v801, 0.0
  %v1257 = vadd.f32 %v1255, %v1256
  %v1258 = vsel %vm1136, %v804, 0.0
  %v1259 = vadd.f32 %v1257, %v1258
  %v1260 = vsel %vm1136, %v809, 0.0
  %v1261 = vadd.f32 %v1259, %v1260
  %v1262 = vsel %vm1136, %v812, 0.0
  %v1263 = vadd.f32 %v1261, %v1262
  %v1264 = vrot.slane %v1263, 4
  %v1265 = vadd.f32 %v1263, %v1264
  %v1266 = vrot.slane %v1265, 2
  %v1267 = vadd.f32 %v1265, %v1266
  %v1268 = vrot.slane %v1267, 1
  %v1269 = vadd.f32 %v1267, %v1268
  %v1270 = vmul.f32 %v561, %v561
  %v1271 = vmul.f32 %v564, %v564
  %v1272 = vmul.f32 %v569, %v569
  %v1273 = vmul.f32 %v572, %v572
  %v1274 = vmul.f32 %v577, %v577
  %v1275 = vmul.f32 %v580, %v580
  %v1276 = vmul.f32 %v585, %v585
  %v1277 = vmul.f32 %v588, %v588
  %v1278 = vmul.f32 %v593, %v593
  %v1279 = vmul.f32 %v596, %v596
  %v1280 = vmul.f32 %v601, %v601
  %v1281 = vmul.f32 %v604, %v604
  %v1282 = vmul.f32 %v609, %v609
  %v1283 = vmul.f32 %v612, %v612
  %v1284 = vmul.f32 %v617, %v617
  %v1285 = vmul.f32 %v620, %v620
  %v1286 = vmul.f32 %v625, %v625
  %v1287 = vmul.f32 %v628, %v628
  %v1288 = vmul.f32 %v633, %v633
  %v1289 = vmul.f32 %v636, %v636
  %v1290 = vmul.f32 %v641, %v641
  %v1291 = vmul.f32 %v644, %v644
  %v1292 = vmul.f32 %v649, %v649
  %v1293 = vmul.f32 %v652, %v652
  %v1294 = vmul.f32 %v657, %v657
  %v1295 = vmul.f32 %v660, %v660
  %v1296 = vmul.f32 %v665, %v665
  %v1297 = vmul.f32 %v668, %v668
  %v1298 = vmul.f32 %v673, %v673
  %v1299 = vmul.f32 %v676, %v676
  %v1300 = vmul.f32 %v681, %v681
  %v1301 = vmul.f32 %v684, %v684
  %v1302 = vmul.f32 %v689, %v689
  %v1303 = vmul.f32 %v692, %v692
  %v1304 = vmul.f32 %v697, %v697
  %v1305 = vmul.f32 %v700, %v700
  %v1306 = vmul.f32 %v705, %v705
  %v1307 = vmul.f32 %v708, %v708
  %v1308 = vmul.f32 %v713, %v713
  %v1309 = vmul.f32 %v716, %v716
  %v1310 = vmul.f32 %v721, %v721
  %v1311 = vmul.f32 %v724, %v724
  %v1312 = vmul.f32 %v729, %v729
  %v1313 = vmul.f32 %v732, %v732
  %v1314 = vmul.f32 %v737, %v737
  %v1315 = vmul.f32 %v740, %v740
  %v1316 = vmul.f32 %v745, %v745
  %v1317 = vmul.f32 %v748, %v748
  %v1318 = vmul.f32 %v753, %v753
  %v1319 = vmul.f32 %v756, %v756
  %v1320 = vmul.f32 %v761, %v761
  %v1321 = vmul.f32 %v764, %v764
  %v1322 = vmul.f32 %v769, %v769
  %v1323 = vmul.f32 %v772, %v772
  %v1324 = vmul.f32 %v777, %v777
  %v1325 = vmul.f32 %v780, %v780
  %v1326 = vmul.f32 %v785, %v785
  %v1327 = vmul.f32 %v788, %v788
  %v1328 = vmul.f32 %v793, %v793
  %v1329 = vmul.f32 %v796, %v796
  %v1330 = vmul.f32 %v801, %v801
  %v1331 = vmul.f32 %v804, %v804
  %v1332 = vmul.f32 %v809, %v809
  %v1333 = vmul.f32 %v812, %v812
  %v1334 = vsel %vm1136, %v1270, 0.0
  %v1335 = vsel %vm1136, %v1271, 0.0
  %v1336 = vadd.f32 %v1334, %v1335
  %v1337 = vsel %vm1136, %v1272, 0.0
  %v1338 = vadd.f32 %v1336, %v1337
  %v1339 = vsel %vm1136, %v1273, 0.0
  %v1340 = vadd.f32 %v1338, %v1339
  %v1341 = vsel %vm1136, %v1274, 0.0
  %v1342 = vadd.f32 %v1340, %v1341
  %v1343 = vsel %vm1136, %v1275, 0.0
  %v1344 = vadd.f32 %v1342, %v1343
  %v1345 = vsel %vm1136, %v1276, 0.0
  %v1346 = vadd.f32 %v1344, %v1345
  %v1347 = vsel %vm1136, %v1277, 0.0
  %v1348 = vadd.f32 %v1346, %v1347
  %v1349 = vsel %vm1136, %v1278, 0.0
  %v1350 = vadd.f32 %v1348, %v1349
  %v1351 = vsel %vm1136, %v1279, 0.0
  %v1352 = vadd.f32 %v1350, %v1351
  %v1353 = vsel %vm1136, %v1280, 0.0
  %v1354 = vadd.f32 %v1352, %v1353
  %v1355 = vsel %vm1136, %v1281, 0.0
  %v1356 = vadd.f32 %v1354, %v1355
  %v1357 = vsel %vm1136, %v1282, 0.0
  %v1358 = vadd.f32 %v1356, %v1357
  %v1359 = vsel %vm1136, %v1283, 0.0
  %v1360 = vadd.f32 %v1358, %v1359
  %v1361 = vsel %vm1136, %v1284, 0.0
  %v1362 = vadd.f32 %v1360, %v1361
  %v1363 = vsel %vm1136, %v1285, 0.0
  %v1364 = vadd.f32 %v1362, %v1363
  %v1365 = vsel %vm1136, %v1286, 0.0
  %v1366 = vadd.f32 %v1364, %v1365
  %v1367 = vsel %vm1136, %v1287, 0.0
  %v1368 = vadd.f32 %v1366, %v1367
  %v1369 = vsel %vm1136, %v1288, 0.0
  %v1370 = vadd.f32 %v1368, %v1369
  %v1371 = vsel %vm1136, %v1289, 0.0
  %v1372 = vadd.f32 %v1370, %v1371
  %v1373 = vsel %vm1136, %v1290, 0.0
  %v1374 = vadd.f32 %v1372, %v1373
  %v1375 = vsel %vm1136, %v1291, 0.0
  %v1376 = vadd.f32 %v1374, %v1375
  %v1377 = vsel %vm1136, %v1292, 0.0
  %v1378 = vadd.f32 %v1376, %v1377
  %v1379 = vsel %vm1136, %v1293, 0.0
  %v1380 = vadd.f32 %v1378, %v1379
  %v1381 = vsel %vm1136, %v1294, 0.0
  %v1382 = vadd.f32 %v1380, %v1381
  %v1383 = vsel %vm1136, %v1295, 0.0
  %v1384 = vadd.f32 %v1382, %v1383
  %v1385 = vsel %vm1136, %v1296, 0.0
  %v1386 = vadd.f32 %v1384, %v1385
  %v1387 = vsel %vm1136, %v1297, 0.0
  %v1388 = vadd.f32 %v1386, %v1387
  %v1389 = vsel %vm1136, %v1298, 0.0
  %v1390 = vadd.f32 %v1388, %v1389
  %v1391 = vsel %vm1136, %v1299, 0.0
  %v1392 = vadd.f32 %v1390, %v1391
  %v1393 = vsel %vm1136, %v1300, 0.0
  %v1394 = vadd.f32 %v1392, %v1393
  %v1395 = vsel %vm1136, %v1301, 0.0
  %v1396 = vadd.f32 %v1394, %v1395
  %v1397 = vsel %vm1136, %v1302, 0.0
  %v1398 = vadd.f32 %v1396, %v1397
  %v1399 = vsel %vm1136, %v1303, 0.0
  %v1400 = vadd.f32 %v1398, %v1399
  %v1401 = vsel %vm1136, %v1304, 0.0
  %v1402 = vadd.f32 %v1400, %v1401
  %v1403 = vsel %vm1136, %v1305, 0.0
  %v1404 = vadd.f32 %v1402, %v1403
  %v1405 = vsel %vm1136, %v1306, 0.0
  %v1406 = vadd.f32 %v1404, %v1405
  %v1407 = vsel %vm1136, %v1307, 0.0
  %v1408 = vadd.f32 %v1406, %v1407
  %v1409 = vsel %vm1136, %v1308, 0.0
  %v1410 = vadd.f32 %v1408, %v1409
  %v1411 = vsel %vm1136, %v1309, 0.0
  %v1412 = vadd.f32 %v1410, %v1411
  %v1413 = vsel %vm1136, %v1310, 0.0
  %v1414 = vadd.f32 %v1412, %v1413
  %v1415 = vsel %vm1136, %v1311, 0.0
  %v1416 = vadd.f32 %v1414, %v1415
  %v1417 = vsel %vm1136, %v1312, 0.0
  %v1418 = vadd.f32 %v1416, %v1417
  %v1419 = vsel %vm1136, %v1313, 0.0
  %v1420 = vadd.f32 %v1418, %v1419
  %v1421 = vsel %vm1136, %v1314, 0.0
  %v1422 = vadd.f32 %v1420, %v1421
  %v1423 = vsel %vm1136, %v1315, 0.0
  %v1424 = vadd.f32 %v1422, %v1423
  %v1425 = vsel %vm1136, %v1316, 0.0
  %v1426 = vadd.f32 %v1424, %v1425
  %v1427 = vsel %vm1136, %v1317, 0.0
  %v1428 = vadd.f32 %v1426, %v1427
  %v1429 = vsel %vm1136, %v1318, 0.0
  %v1430 = vadd.f32 %v1428, %v1429
  %v1431 = vsel %vm1136, %v1319, 0.0
  %v1432 = vadd.f32 %v1430, %v1431
  %v1433 = vsel %vm1136, %v1320, 0.0
  %v1434 = vadd.f32 %v1432, %v1433
  %v1435 = vsel %vm1136, %v1321, 0.0
  %v1436 = vadd.f32 %v1434, %v1435
  %v1437 = vsel %vm1136, %v1322, 0.0
  %v1438 = vadd.f32 %v1436, %v1437
  %v1439 = vsel %vm1136, %v1323, 0.0
  %v1440 = vadd.f32 %v1438, %v1439
  %v1441 = vsel %vm1136, %v1324, 0.0
  %v1442 = vadd.f32 %v1440, %v1441
  %v1443 = vsel %vm1136, %v1325, 0.0
  %v1444 = vadd.f32 %v1442, %v1443
  %v1445 = vsel %vm1136, %v1326, 0.0
  %v1446 = vadd.f32 %v1444, %v1445
  %v1447 = vsel %vm1136, %v1327, 0.0
  %v1448 = vadd.f32 %v1446, %v1447
  %v1449 = vsel %vm1136, %v1328, 0.0
  %v1450 = vadd.f32 %v1448, %v1449
  %v1451 = vsel %vm1136, %v1329, 0.0
  %v1452 = vadd.f32 %v1450, %v1451
  %v1453 = vsel %vm1136, %v1330, 0.0
  %v1454 = vadd.f32 %v1452, %v1453
  %v1455 = vsel %vm1136, %v1331, 0.0
  %v1456 = vadd.f32 %v1454, %v1455
  %v1457 = vsel %vm1136, %v1332, 0.0
  %v1458 = vadd.f32 %v1456, %v1457
  %v1459 = vsel %vm1136, %v1333, 0.0
  %v1460 = vadd.f32 %v1458, %v1459
  %v1461 = vrot.slane %v1460, 4
  %v1462 = vadd.f32 %v1460, %v1461
  %v1463 = vrot.slane %v1462, 2
  %v1464 = vadd.f32 %v1462, %v1463
  %v1465 = vrot.slane %v1464, 1
  %v1466 = vadd.f32 %v1464, %v1465
  %vm1467 = vcmask 1040384
  %v1468 = vsel %vm1467, %v1269, %v1466
  %vm1469 = vcmask 517120
  %1470 = vst.msk [vmem:[%s3] sm:$0x3] %vm1469, %v1468
  // Predicated region
  $region10: #{encoder_forward.32} parent=0 // pred_check
    _
  $region11: #{encoder_forward.32} parent=0 // pred_check_branch
    %1472 = sbr.rel (0) target = $region13
  $region12: #{encoder_forward.32} parent=0 // pred_region
    _
  $region13: #{encoder_forward.32} parent=0 // pred_fallthru
    _
  // Predicated region
  $region14: #{encoder_forward.32} parent=0 // pred_check
    _
  $region15: #{encoder_forward.32} parent=0 // pred_check_branch
    %1474 = sbr.rel (0) target = $region17
  $region16: #{encoder_forward.32} parent=0 // pred_region
    _
  $region17: #{encoder_forward.32} parent=0 // pred_fallthru
    _
  // Predicated region
  $region18: #{encoder_forward.32} parent=0 // pred_check
    _
  $region19: #{encoder_forward.32} parent=0 // pred_check_branch
    %1476 = sbr.rel (0) target = $region21
  $region20: #{encoder_forward.32} parent=0 // pred_region
    _
  $region21: #{encoder_forward.32} parent=0 // pred_fallthru
    _
  // Predicated region
  $region22: #{encoder_forward.32} parent=0 // pred_check
    _
  $region23: #{encoder_forward.32} parent=0 // pred_check_branch
    %1478 = sbr.rel (0) target = $region25
  $region24: #{encoder_forward.32} parent=0 // pred_region
    _
  $region25: #{encoder_forward.32} parent=0 // pred_fallthru
    _

// kernel: encoder_forward.34
$region0: #{encoder_forward.34}
  #allocation0 [shape = 'u32[]', space=smem, size = 0x4, offset = 0x4, fixed_abs, tag = 'smem constant byte address 0x4 - core index']
  #allocation1 [shape = 'u32[144,128]{1,0:T(1,128)}', space=vmem, size = 0x12000, scoped, tag = 'internal scratch']
  %s0 = inlined_call_operand.vmem [shape: bf16[64,128], index: 0, kind: input, shape index: {}]
  %s1 = inlined_call_operand.vmem [shape: bf16[64,128], index: 1, kind: input, shape index: {}]
  %s2 = inlined_call_operand.vmem [shape: bf16[64,128], index: 2, kind: input, shape index: {}]
  %s3 = inlined_call_operand.vmem [shape: bf16[64,128], index: 3, kind: input, shape index: {}]
  %s4 = inlined_call_operand.vmem [shape: bf16[64,128], index: 4, kind: input, shape index: {}]
  %s5 = inlined_call_operand.vmem [shape: bf16[64,128], index: 5, kind: input, shape index: {}]
  %s6 = inlined_call_operand.vmem [shape: bf16[64,128], index: 6, kind: input, shape index: {}]
  %s7 = inlined_call_operand.vmem [shape: bf16[64,128], index: 7, kind: input, shape index: {}]
  %s8 = inlined_call_operand.vmem [shape: bf16[64,128], index: 8, kind: input, shape index: {}]
  %s9 = inlined_call_operand.vmem [shape: bf16[64,128], index: 9, kind: output, shape index: {}]
  %s10 = sld [smem:[#allocation0]]
  $region46: #{encoder_forward.34} parent=0
    _
  %s12 = ssub.s32 1, %s10
  %s13 = scalar_select 0, %s12, %s10
  // Predicated region
  $region2: #{encoder_forward.34} parent=0 // pred_check
    _
  $region3: #{encoder_forward.34} parent=0 // pred_check_branch
    %15 = sbr.rel (0) target = $region5
  $region4: #{encoder_forward.34} parent=0 // pred_region
    _
  $region5: #{encoder_forward.34} parent=0 // pred_fallthru
    _
  // Predicated region
  $region6: #{encoder_forward.34} parent=0 // pred_check
    _
  $region7: #{encoder_forward.34} parent=0 // pred_check_branch
    %17 = sbr.rel (0) target = $region9
  $region8: #{encoder_forward.34} parent=0 // pred_region
    _
  $region9: #{encoder_forward.34} parent=0 // pred_fallthru
    _
  // Predicated region
  $region10: #{encoder_forward.34} parent=0 // pred_check
    _
  $region11: #{encoder_forward.34} parent=0 // pred_check_branch
    %19 = sbr.rel (0) target = $region13
  $region12: #{encoder_forward.34} parent=0 // pred_region
    _
  $region13: #{encoder_forward.34} parent=0 // pred_fallthru
    _
  // Predicated region
  $region14: #{encoder_forward.34} parent=0 // pred_check
    _
  $region15: #{encoder_forward.34} parent=0 // pred_check_branch
    %21 = sbr.rel (0) target = $region17
  $region16: #{encoder_forward.34} parent=0 // pred_region
    _
  $region17: #{encoder_forward.34} parent=0 // pred_fallthru
    _
  // Predicated region
  $region18: #{encoder_forward.34} parent=0 // pred_check
    _
  $region19: #{encoder_forward.34} parent=0 // pred_check_branch
    %23 = sbr.rel (0) target = $region21
  $region20: #{encoder_forward.34} parent=0 // pred_region
    _
  $region21: #{encoder_forward.34} parent=0 // pred_fallthru
    _
  // Predicated region
  $region22: #{encoder_forward.34} parent=0 // pred_check
    _
  $region23: #{encoder_forward.34} parent=0 // pred_check_branch
    %25 = sbr.rel (0) target = $region25
  $region24: #{encoder_forward.34} parent=0 // pred_region
    _
  $region25: #{encoder_forward.34} parent=0 // pred_fallthru
    _
  // Predicated region
  $region26: #{encoder_forward.34} parent=0 // pred_check
    _
  $region27: #{encoder_forward.34} parent=0 // pred_check_branch
    %27 = sbr.rel (0) target = $region29
  $region28: #{encoder_forward.34} parent=0 // pred_region
    _
  $region29: #{encoder_forward.34} parent=0 // pred_fallthru
    _
  // Predicated region
  $region30: #{encoder_forward.34} parent=0 // pred_check
    _
  $region31: #{encoder_forward.34} parent=0 // pred_check_branch
    %29 = sbr.rel (0) target = $region33
  $region32: #{encoder_forward.34} parent=0 // pred_region
    _
  $region33: #{encoder_forward.34} parent=0 // pred_fallthru
    _
  // Predicated region
  $region34: #{encoder_forward.34} parent=0 // pred_check
    _
  $region35: #{encoder_forward.34} parent=0 // pred_check_branch
    %31 = sbr.rel (0) target = $region37
  $region36: #{encoder_forward.34} parent=0 // pred_region
    _
  $region37: #{encoder_forward.34} parent=0 // pred_fallthru
    _
  %v32 = vld [vmem:[%s0] sm:$0xf]
  %v33 = vld [vmem:[%s0 + $0x4] sm:$0xf]
  %v34 = vld [vmem:[%s0 + $0x8] sm:$0xf]
  %v35 = vld [vmem:[%s0 + $0xc] sm:$0xf]
  %v36 = vld [vmem:[%s0 + $0x10] sm:$0xf]
  %v37 = vld [vmem:[%s0 + $0x14] sm:$0xf]
  %v38 = vld [vmem:[%s0 + $0x18] sm:$0xf]
  %v39 = vld [vmem:[%s0 + $0x1c] sm:$0xf]
  %v40 = vunpack.c.l.bf16 %v32
  %v41 = vunpack.c.l.bf16 %v33
  %v42 = vunpack.c.l.bf16 %v34
  %v43 = vunpack.c.l.bf16 %v35
  %v44 = vunpack.c.l.bf16 %v36
  %v45 = vunpack.c.l.bf16 %v37
  %v46 = vunpack.c.l.bf16 %v38
  %v47 = vunpack.c.l.bf16 %v39
  %v48 = vld [vmem:[%s1] sm:$0xf]
  %v49 = vld [vmem:[%s1 + $0x4] sm:$0xf]
  %v50 = vld [vmem:[%s1 + $0x8] sm:$0xf]
  %v51 = vld [vmem:[%s1 + $0xc] sm:$0xf]
  %v52 = vld [vmem:[%s1 + $0x10] sm:$0xf]
  %v53 = vld [vmem:[%s1 + $0x14] sm:$0xf]
  %v54 = vld [vmem:[%s1 + $0x18] sm:$0xf]
  %v55 = vld [vmem:[%s1 + $0x1c] sm:$0xf]
  %v56 = vunpack.c.l.bf16 %v48
  %v57 = vunpack.c.l.bf16 %v49
  %v58 = vunpack.c.l.bf16 %v50
  %v59 = vunpack.c.l.bf16 %v51
  %v60 = vunpack.c.l.bf16 %v52
  %v61 = vunpack.c.l.bf16 %v53
  %v62 = vunpack.c.l.bf16 %v54
  %v63 = vunpack.c.l.bf16 %v55
  %v64 = vmax.f32 %v40, %v56
  %v65 = vmax.f32 %v41, %v57
  %v66 = vmax.f32 %v42, %v58
  %v67 = vmax.f32 %v43, %v59
  %v68 = vmax.f32 %v44, %v60
  %v69 = vmax.f32 %v45, %v61
  %v70 = vmax.f32 %v46, %v62
  %v71 = vmax.f32 %v47, %v63
  %v72 = vld [vmem:[%s2] sm:$0xf]
  %v73 = vld [vmem:[%s2 + $0x4] sm:$0xf]
  %v74 = vld [vmem:[%s2 + $0x8] sm:$0xf]
  %v75 = vld [vmem:[%s2 + $0xc] sm:$0xf]
  %v76 = vld [vmem:[%s2 + $0x10] sm:$0xf]
  %v77 = vld [vmem:[%s2 + $0x14] sm:$0xf]
  %v78 = vld [vmem:[%s2 + $0x18] sm:$0xf]
  %v79 = vld [vmem:[%s2 + $0x1c] sm:$0xf]
  %v80 = vunpack.c.l.bf16 %v72
  %v81 = vunpack.c.l.bf16 %v73
  %v82 = vunpack.c.l.bf16 %v74
  %v83 = vunpack.c.l.bf16 %v75
  %v84 = vunpack.c.l.bf16 %v76
  %v85 = vunpack.c.l.bf16 %v77
  %v86 = vunpack.c.l.bf16 %v78
  %v87 = vunpack.c.l.bf16 %v79
  %v88 = vmax.f32 %v64, %v80
  %v89 = vmax.f32 %v65, %v81
  %v90 = vmax.f32 %v66, %v82
  %v91 = vmax.f32 %v67, %v83
  %v92 = vmax.f32 %v68, %v84
  %v93 = vmax.f32 %v69, %v85
  %v94 = vmax.f32 %v70, %v86
  %v95 = vmax.f32 %v71, %v87
  %v96 = vld [vmem:[%s3] sm:$0xf]
  %v97 = vld [vmem:[%s3 + $0x4] sm:$0xf]
  %v98 = vld [vmem:[%s3 + $0x8] sm:$0xf]
  %v99 = vld [vmem:[%s3 + $0xc] sm:$0xf]
  %v100 = vld [vmem:[%s3 + $0x10] sm:$0xf]
  %v101 = vld [vmem:[%s3 + $0x14] sm:$0xf]
  %v102 = vld [vmem:[%s3 + $0x18] sm:$0xf]
  %v103 = vld [vmem:[%s3 + $0x1c] sm:$0xf]
  %v104 = vunpack.c.l.bf16 %v96
  %v105 = vunpack.c.l.bf16 %v97
  %v106 = vunpack.c.l.bf16 %v98
  %v107 = vunpack.c.l.bf16 %v99
  %v108 = vunpack.c.l.bf16 %v100
  %v109 = vunpack.c.l.bf16 %v101
  %v110 = vunpack.c.l.bf16 %v102
  %v111 = vunpack.c.l.bf16 %v103
  %v112 = vmax.f32 %v88, %v104
  %v113 = vmax.f32 %v89, %v105
  %v114 = vmax.f32 %v90, %v106
  %v115 = vmax.f32 %v91, %v107
  %v116 = vmax.f32 %v92, %v108
  %v117 = vmax.f32 %v93, %v109
  %v118 = vmax.f32 %v94, %v110
  %v119 = vmax.f32 %v95, %v111
  %v120 = vld [vmem:[%s4] sm:$0xf]
  %v121 = vld [vmem:[%s4 + $0x4] sm:$0xf]
  %v122 = vld [vmem:[%s4 + $0x8] sm:$0xf]
  %v123 = vld [vmem:[%s4 + $0xc] sm:$0xf]
  %v124 = vld [vmem:[%s4 + $0x10] sm:$0xf]
  %v125 = vld [vmem:[%s4 + $0x14] sm:$0xf]
  %v126 = vld [vmem:[%s4 + $0x18] sm:$0xf]
  %v127 = vld [vmem:[%s4 + $0x1c] sm:$0xf]
  %v128 = vunpack.c.l.bf16 %v120
  %v129 = vunpack.c.l.bf16 %v121
  %v130 = vunpack.c.l.bf16 %v122
  %v131 = vunpack.c.l.bf16 %v123
  %v132 = vunpack.c.l.bf16 %v124
  %v133 = vunpack.c.l.bf16 %v125
  %v134 = vunpack.c.l.bf16 %v126
  %v135 = vunpack.c.l.bf16 %v127
  %v136 = vmax.f32 %v112, %v128
  %v137 = vmax.f32 %v113, %v129
  %v138 = vmax.f32 %v114, %v130
  %v139 = vmax.f32 %v115, %v131
  %v140 = vmax.f32 %v116, %v132
  %v141 = vmax.f32 %v117, %v133
  %v142 = vmax.f32 %v118, %v134
  %v143 = vmax.f32 %v119, %v135
  %v144 = vld [vmem:[%s5] sm:$0xf]
  %v145 = vld [vmem:[%s5 + $0x4] sm:$0xf]
  %v146 = vld [vmem:[%s5 + $0x8] sm:$0xf]
  %v147 = vld [vmem:[%s5 + $0xc] sm:$0xf]
  %v148 = vld [vmem:[%s5 + $0x10] sm:$0xf]
  %v149 = vld [vmem:[%s5 + $0x14] sm:$0xf]
  %v150 = vld [vmem:[%s5 + $0x18] sm:$0xf]
  %v151 = vld [vmem:[%s5 + $0x1c] sm:$0xf]
  %v152 = vunpack.c.l.bf16 %v144
  %v153 = vunpack.c.l.bf16 %v145
  %v154 = vunpack.c.l.bf16 %v146
  %v155 = vunpack.c.l.bf16 %v147
  %v156 = vunpack.c.l.bf16 %v148
  %v157 = vunpack.c.l.bf16 %v149
  %v158 = vunpack.c.l.bf16 %v150
  %v159 = vunpack.c.l.bf16 %v151
  %v160 = vmax.f32 %v136, %v152
  %v161 = vmax.f32 %v137, %v153
  %v162 = vmax.f32 %v138, %v154
  %v163 = vmax.f32 %v139, %v155
  %v164 = vmax.f32 %v140, %v156
  %v165 = vmax.f32 %v141, %v157
  %v166 = vmax.f32 %v142, %v158
  %v167 = vmax.f32 %v143, %v159
  %v168 = vld [vmem:[%s6] sm:$0xf]
  %v169 = vld [vmem:[%s6 + $0x4] sm:$0xf]
  %v170 = vld [vmem:[%s6 + $0x8] sm:$0xf]
  %v171 = vld [vmem:[%s6 + $0xc] sm:$0xf]
  %v172 = vld [vmem:[%s6 + $0x10] sm:$0xf]
  %v173 = vld [vmem:[%s6 + $0x14] sm:$0xf]
  %v174 = vld [vmem:[%s6 + $0x18] sm:$0xf]
  %v175 = vld [vmem:[%s6 + $0x1c] sm:$0xf]
  %v176 = vunpack.c.l.bf16 %v168
  %v177 = vunpack.c.l.bf16 %v169
  %v178 = vunpack.c.l.bf16 %v170
  %v179 = vunpack.c.l.bf16 %v171
  %v180 = vunpack.c.l.bf16 %v172
  %v181 = vunpack.c.l.bf16 %v173
  %v182 = vunpack.c.l.bf16 %v174
  %v183 = vunpack.c.l.bf16 %v175
  %v184 = vmax.f32 %v160, %v176
  %v185 = vmax.f32 %v161, %v177
  %v186 = vmax.f32 %v162, %v178
  %v187 = vmax.f32 %v163, %v179
  %v188 = vmax.f32 %v164, %v180
  %v189 = vmax.f32 %v165, %v181
  %v190 = vmax.f32 %v166, %v182
  %v191 = vmax.f32 %v167, %v183
  %v192 = vld [vmem:[%s7] sm:$0xf]
  %v193 = vld [vmem:[%s7 + $0x4] sm:$0xf]
  %v194 = vld [vmem:[%s7 + $0x8] sm:$0xf]
  %v195 = vld [vmem:[%s7 + $0xc] sm:$0xf]
  %v196 = vld [vmem:[%s7 + $0x10] sm:$0xf]
  %v197 = vld [vmem:[%s7 + $0x14] sm:$0xf]
  %v198 = vld [vmem:[%s7 + $0x18] sm:$0xf]
  %v199 = vld [vmem:[%s7 + $0x1c] sm:$0xf]
  %v200 = vunpack.c.l.bf16 %v192
  %v201 = vunpack.c.l.bf16 %v193
  %v202 = vunpack.c.l.bf16 %v194
  %v203 = vunpack.c.l.bf16 %v195
  %v204 = vunpack.c.l.bf16 %v196
  %v205 = vunpack.c.l.bf16 %v197
  %v206 = vunpack.c.l.bf16 %v198
  %v207 = vunpack.c.l.bf16 %v199
  %v208 = vmax.f32 %v184, %v200
  %v209 = vmax.f32 %v185, %v201
  %v210 = vmax.f32 %v186, %v202
  %v211 = vmax.f32 %v187, %v203
  %v212 = vmax.f32 %v188, %v204
  %v213 = vmax.f32 %v189, %v205
  %v214 = vmax.f32 %v190, %v206
  %v215 = vmax.f32 %v191, %v207
  %v216 = vld [vmem:[%s8] sm:$0xf]
  %v217 = vld [vmem:[%s8 + $0x4] sm:$0xf]
  %v218 = vld [vmem:[%s8 + $0x8] sm:$0xf]
  %v219 = vld [vmem:[%s8 + $0xc] sm:$0xf]
  %v220 = vld [vmem:[%s8 + $0x10] sm:$0xf]
  %v221 = vld [vmem:[%s8 + $0x14] sm:$0xf]
  %v222 = vld [vmem:[%s8 + $0x18] sm:$0xf]
  %v223 = vld [vmem:[%s8 + $0x1c] sm:$0xf]
  %v224 = vunpack.c.l.bf16 %v216
  %v225 = vunpack.c.l.bf16 %v217
  %v226 = vunpack.c.l.bf16 %v218
  %v227 = vunpack.c.l.bf16 %v219
  %v228 = vunpack.c.l.bf16 %v220
  %v229 = vunpack.c.l.bf16 %v221
  %v230 = vunpack.c.l.bf16 %v222
  %v231 = vunpack.c.l.bf16 %v223
  %v232 = vmax.f32 %v208, %v224
  %v233 = vmax.f32 %v209, %v225
  %v234 = vmax.f32 %v210, %v226
  %v235 = vmax.f32 %v211, %v227
  %v236 = vmax.f32 %v212, %v228
  %v237 = vmax.f32 %v213, %v229
  %v238 = vmax.f32 %v214, %v230
  %v239 = vmax.f32 %v215, %v231
  %v240 = vpack.c.bf16 %v233, %v232
  %v241 = vpack.c.bf16 %v235, %v234
  %v242 = vpack.c.bf16 %v237, %v236
  %v243 = vpack.c.bf16 %v239, %v238
  %v248 = vunpack.c.l.b16 %v240
  %v249 = vunpack.c.h.b16 %v240
  %v250 = vunpack.c.l.b16 %v241
  %v251 = vunpack.c.h.b16 %v241
  %v252 = vunpack.c.l.b16 %v242
  %v253 = vunpack.c.h.b16 %v242
  %v254 = vunpack.c.l.b16 %v243
  %v255 = vunpack.c.h.b16 %v243
  %v256 = vpack.c.b16 %v248, %v248
  %v257 = vpack.c.b16 %v249, %v249
  %v258 = vpack.c.b16 %v250, %v250
  %v259 = vpack.c.b16 %v251, %v251
  %v260 = vpack.c.b16 %v252, %v252
  %v261 = vpack.c.b16 %v253, %v253
  %v262 = vpack.c.b16 %v254, %v254
  %v263 = vpack.c.b16 %v255, %v255
  %272 = vst [vmem:[%s9] sm:$0xf] %v256
  %273 = vst [vmem:[%s9 + $0x4] sm:$0xf] %v257
  %274 = vst [vmem:[%s9 + $0x8] sm:$0xf] %v258
  %275 = vst [vmem:[%s9 + $0xc] sm:$0xf] %v259
  %276 = vst [vmem:[%s9 + $0x10] sm:$0xf] %v260
  %277 = vst [vmem:[%s9 + $0x14] sm:$0xf] %v261
  %278 = vst [vmem:[%s9 + $0x18] sm:$0xf] %v262
  %279 = vst [vmem:[%s9 + $0x1c] sm:$0xf] %v263
  // Predicated region
  $region38: #{encoder_forward.34} parent=0 // pred_check
    _
  $region39: #{encoder_forward.34} parent=0 // pred_check_branch
    %281 = sbr.rel (0) target = $region41
  $region40: #{encoder_forward.34} parent=0 // pred_region
    _
  $region41: #{encoder_forward.34} parent=0 // pred_fallthru
    _
  // Predicated region
  $region42: #{encoder_forward.34} parent=0 // pred_check
    _
  $region43: #{encoder_forward.34} parent=0 // pred_check_branch
    %283 = sbr.rel (0) target = $region45
  $region44: #{encoder_forward.34} parent=0 // pred_region
    _
  $region45: #{encoder_forward.34} parent=0 // pred_fallthru
    _

// kernel: encoder_forward.38
$region0: #{encoder_forward.38}
  #allocation0 [shape = 'u32[]', space=smem, size = 0x4, offset = 0x4, fixed_abs, tag = 'smem constant byte address 0x4 - core index']
  #allocation1 [shape = 'u32[144,128]{1,0:T(1,128)}', space=vmem, size = 0x12000, scoped, tag = 'internal scratch']
  %s0 = inlined_call_operand.vmem [shape: bf16[64,128], index: 0, kind: input, shape index: {}]
  %s1 = inlined_call_operand.vmem [shape: bf16[64,128], index: 1, kind: input, shape index: {}]
  %s2 = inlined_call_operand.vmem [shape: f32[1,128], index: 2, kind: input, shape index: {}]
  %s3 = inlined_call_operand.vmem [shape: f32[1,128], index: 3, kind: input, shape index: {}]
  %s4 = inlined_call_operand.vmem [shape: bf16[64,128], index: 4, kind: output, shape index: {}]
  %s5 = sld [smem:[#allocation0]]
  $region26: #{encoder_forward.38} parent=0
    _
  %s7 = ssub.s32 1, %s5
  %s8 = scalar_select 0, %s7, %s5
  // Predicated region
  $region2: #{encoder_forward.38} parent=0 // pred_check
    _
  $region3: #{encoder_forward.38} parent=0 // pred_check_branch
    %10 = sbr.rel (0) target = $region5
  $region4: #{encoder_forward.38} parent=0 // pred_region
    _
  $region5: #{encoder_forward.38} parent=0 // pred_fallthru
    _
  // Predicated region
  $region6: #{encoder_forward.38} parent=0 // pred_check
    _
  $region7: #{encoder_forward.38} parent=0 // pred_check_branch
    %12 = sbr.rel (0) target = $region9
  $region8: #{encoder_forward.38} parent=0 // pred_region
    _
  $region9: #{encoder_forward.38} parent=0 // pred_fallthru
    _
  // Predicated region
  $region10: #{encoder_forward.38} parent=0 // pred_check
    _
  $region11: #{encoder_forward.38} parent=0 // pred_check_branch
    %14 = sbr.rel (0) target = $region13
  $region12: #{encoder_forward.38} parent=0 // pred_region
    _
  $region13: #{encoder_forward.38} parent=0 // pred_fallthru
    _
  // Predicated region
  $region14: #{encoder_forward.38} parent=0 // pred_check
    _
  $region15: #{encoder_forward.38} parent=0 // pred_check_branch
    %16 = sbr.rel (0) target = $region17
  $region16: #{encoder_forward.38} parent=0 // pred_region
    _
  $region17: #{encoder_forward.38} parent=0 // pred_fallthru
    _
  %v17 = vld [vmem:[%s0] sm:$0xf]
  %v18 = vld [vmem:[%s0 + $0x4] sm:$0xf]
  %v19 = vld [vmem:[%s0 + $0x8] sm:$0xf]
  %v20 = vld [vmem:[%s0 + $0xc] sm:$0xf]
  %v21 = vld [vmem:[%s0 + $0x10] sm:$0xf]
  %v22 = vld [vmem:[%s0 + $0x14] sm:$0xf]
  %v23 = vld [vmem:[%s0 + $0x18] sm:$0xf]
  %v24 = vld [vmem:[%s0 + $0x1c] sm:$0xf]
  %v25 = vunpack.c.l.bf16 %v17
  %v26 = vunpack.c.l.bf16 %v18
  %v27 = vunpack.c.l.bf16 %v19
  %v28 = vunpack.c.l.bf16 %v20
  %v29 = vunpack.c.l.bf16 %v21
  %v30 = vunpack.c.l.bf16 %v22
  %v31 = vunpack.c.l.bf16 %v23
  %v32 = vunpack.c.l.bf16 %v24
  %v33 = vld [vmem:[%s2] sm:$0x1]
  %v35 = vlaneseq
  %v36 = vshrl.u32 %v35, 7
  %v37 = vsub.s32 0, %v36
  %v38 = vrot.slane %v33, %v37
  %v40 = vmul.f32 %v25, %v38
  %v41 = vmul.f32 %v26, %v38
  %v42 = vmul.f32 %v27, %v38
  %v43 = vmul.f32 %v28, %v38
  %v44 = vmul.f32 %v29, %v38
  %v45 = vmul.f32 %v30, %v38
  %v46 = vmul.f32 %v31, %v38
  %v47 = vmul.f32 %v32, %v38
  %v48 = vld [vmem:[%s3] sm:$0x1]
  %v50 = vlaneseq
  %v51 = vshrl.u32 %v50, 7
  %v52 = vsub.s32 0, %v51
  %v53 = vrot.slane %v48, %v52
  %v55 = vadd.f32 %v40, %v53
  %v56 = vadd.f32 %v41, %v53
  %v57 = vadd.f32 %v42, %v53
  %v58 = vadd.f32 %v43, %v53
  %v59 = vadd.f32 %v44, %v53
  %v60 = vadd.f32 %v45, %v53
  %v61 = vadd.f32 %v46, %v53
  %v62 = vadd.f32 %v47, %v53
  %v63 = vld [vmem:[%s1] sm:$0xf]
  %v64 = vld [vmem:[%s1 + $0x4] sm:$0xf]
  %v65 = vld [vmem:[%s1 + $0x8] sm:$0xf]
  %v66 = vld [vmem:[%s1 + $0xc] sm:$0xf]
  %v67 = vld [vmem:[%s1 + $0x10] sm:$0xf]
  %v68 = vld [vmem:[%s1 + $0x14] sm:$0xf]
  %v69 = vld [vmem:[%s1 + $0x18] sm:$0xf]
  %v70 = vld [vmem:[%s1 + $0x1c] sm:$0xf]
  %v71 = vunpack.c.l.bf16 %v63
  %v72 = vunpack.c.l.bf16 %v64
  %v73 = vunpack.c.l.bf16 %v65
  %v74 = vunpack.c.l.bf16 %v66
  %v75 = vunpack.c.l.bf16 %v67
  %v76 = vunpack.c.l.bf16 %v68
  %v77 = vunpack.c.l.bf16 %v69
  %v78 = vunpack.c.l.bf16 %v70
  %v79 = vadd.f32 %v55, %v71
  %v80 = vadd.f32 %v56, %v72
  %v81 = vadd.f32 %v57, %v73
  %v82 = vadd.f32 %v58, %v74
  %v83 = vadd.f32 %v59, %v75
  %v84 = vadd.f32 %v60, %v76
  %v85 = vadd.f32 %v61, %v77
  %v86 = vadd.f32 %v62, %v78
  %v87 = vmax.f32 %v79, 0.0
  %v88 = vmax.f32 %v80, 0.0
  %v89 = vmax.f32 %v81, 0.0
  %v90 = vmax.f32 %v82, 0.0
  %v91 = vmax.f32 %v83, 0.0
  %v92 = vmax.f32 %v84, 0.0
  %v93 = vmax.f32 %v85, 0.0
  %v94 = vmax.f32 %v86, 0.0
  %v95 = vpack.c.bf16 %v88, %v87
  %v96 = vpack.c.bf16 %v90, %v89
  %v97 = vpack.c.bf16 %v92, %v91
  %v98 = vpack.c.bf16 %v94, %v93
  %v103 = vunpack.c.l.b16 %v95
  %v104 = vunpack.c.h.b16 %v95
  %v105 = vunpack.c.l.b16 %v96
  %v106 = vunpack.c.h.b16 %v96
  %v107 = vunpack.c.l.b16 %v97
  %v108 = vunpack.c.h.b16 %v97
  %v109 = vunpack.c.l.b16 %v98
  %v110 = vunpack.c.h.b16 %v98
  %v111 = vpack.c.b16 %v103, %v103
  %v112 = vpack.c.b16 %v104, %v104
  %v113 = vpack.c.b16 %v105, %v105
  %v114 = vpack.c.b16 %v106, %v106
  %v115 = vpack.c.b16 %v107, %v107
  %v116 = vpack.c.b16 %v108, %v108
  %v117 = vpack.c.b16 %v109, %v109
  %v118 = vpack.c.b16 %v110, %v110
  %127 = vst [vmem:[%s4] sm:$0xf] %v111
  %128 = vst [vmem:[%s4 + $0x4] sm:$0xf] %v112
  %129 = vst [vmem:[%s4 + $0x8] sm:$0xf] %v113
  %130 = vst [vmem:[%s4 + $0xc] sm:$0xf] %v114
  %131 = vst [vmem:[%s4 + $0x10] sm:$0xf] %v115
  %132 = vst [vmem:[%s4 + $0x14] sm:$0xf] %v116
  %133 = vst [vmem:[%s4 + $0x18] sm:$0xf] %v117
  %134 = vst [vmem:[%s4 + $0x1c] sm:$0xf] %v118
  // Predicated region
  $region18: #{encoder_forward.38} parent=0 // pred_check
    _
  $region19: #{encoder_forward.38} parent=0 // pred_check_branch
    %136 = sbr.rel (0) target = $region21
  $region20: #{encoder_forward.38} parent=0 // pred_region
    _
  $region21: #{encoder_forward.38} parent=0 // pred_fallthru
    _
  // Predicated region
  $region22: #{encoder_forward.38} parent=0 // pred_check
    _
  $region23: #{encoder_forward.38} parent=0 // pred_check_branch
    %138 = sbr.rel (0) target = $region25
  $region24: #{encoder_forward.38} parent=0 // pred_region
    _
  $region25: #{encoder_forward.38} parent=0 // pred_fallthru
    _

// kernel: encoder_forward.36
$region0: #{encoder_forward.36}
  #allocation0 [shape = 'u32[]', space=smem, size = 0x4, offset = 0x4, fixed_abs, tag = 'smem constant byte address 0x4 - core index']
  #allocation1 [shape = 'u32[144,128]{1,0:T(1,128)}', space=vmem, size = 0x12000, scoped, tag = 'internal scratch']
  %s0 = inlined_call_operand.vmem [shape: bf16[64,128], index: 0, kind: input, shape index: {}]
  %s1 = inlined_call_operand.vmem [shape: f32[1,128], index: 1, kind: input, shape index: {}]
  %s2 = inlined_call_operand.vmem [shape: f32[1,128], index: 2, kind: input, shape index: {}]
  %s3 = inlined_call_operand.vmem [shape: bf16[64,128], index: 3, kind: output, shape index: {}]
  %s4 = sld [smem:[#allocation0]]
  $region22: #{encoder_forward.36} parent=0
    _
  %s6 = ssub.s32 1, %s4
  %s7 = scalar_select 0, %s6, %s4
  // Predicated region
  $region2: #{encoder_forward.36} parent=0 // pred_check
    _
  $region3: #{encoder_forward.36} parent=0 // pred_check_branch
    %9 = sbr.rel (0) target = $region5
  $region4: #{encoder_forward.36} parent=0 // pred_region
    _
  $region5: #{encoder_forward.36} parent=0 // pred_fallthru
    _
  // Predicated region
  $region6: #{encoder_forward.36} parent=0 // pred_check
    _
  $region7: #{encoder_forward.36} parent=0 // pred_check_branch
    %11 = sbr.rel (0) target = $region9
  $region8: #{encoder_forward.36} parent=0 // pred_region
    _
  $region9: #{encoder_forward.36} parent=0 // pred_fallthru
    _
  // Predicated region
  $region10: #{encoder_forward.36} parent=0 // pred_check
    _
  $region11: #{encoder_forward.36} parent=0 // pred_check_branch
    %13 = sbr.rel (0) target = $region13
  $region12: #{encoder_forward.36} parent=0 // pred_region
    _
  $region13: #{encoder_forward.36} parent=0 // pred_fallthru
    _
  %v14 = vld [vmem:[%s0] sm:$0xf]
  %v15 = vld [vmem:[%s0 + $0x4] sm:$0xf]
  %v16 = vld [vmem:[%s0 + $0x8] sm:$0xf]
  %v17 = vld [vmem:[%s0 + $0xc] sm:$0xf]
  %v18 = vld [vmem:[%s0 + $0x10] sm:$0xf]
  %v19 = vld [vmem:[%s0 + $0x14] sm:$0xf]
  %v20 = vld [vmem:[%s0 + $0x18] sm:$0xf]
  %v21 = vld [vmem:[%s0 + $0x1c] sm:$0xf]
  %v22 = vunpack.c.l.bf16 %v14
  %v23 = vunpack.c.l.bf16 %v15
  %v24 = vunpack.c.l.bf16 %v16
  %v25 = vunpack.c.l.bf16 %v17
  %v26 = vunpack.c.l.bf16 %v18
  %v27 = vunpack.c.l.bf16 %v19
  %v28 = vunpack.c.l.bf16 %v20
  %v29 = vunpack.c.l.bf16 %v21
  %v30 = vld [vmem:[%s1] sm:$0x1]
  %v32 = vlaneseq
  %v33 = vshrl.u32 %v32, 7
  %v34 = vsub.s32 0, %v33
  %v35 = vrot.slane %v30, %v34
  %v37 = vmul.f32 %v22, %v35
  %v38 = vmul.f32 %v23, %v35
  %v39 = vmul.f32 %v24, %v35
  %v40 = vmul.f32 %v25, %v35
  %v41 = vmul.f32 %v26, %v35
  %v42 = vmul.f32 %v27, %v35
  %v43 = vmul.f32 %v28, %v35
  %v44 = vmul.f32 %v29, %v35
  %v45 = vld [vmem:[%s2] sm:$0x1]
  %v47 = vlaneseq
  %v48 = vshrl.u32 %v47, 7
  %v49 = vsub.s32 0, %v48
  %v50 = vrot.slane %v45, %v49
  %v52 = vadd.f32 %v37, %v50
  %v53 = vadd.f32 %v38, %v50
  %v54 = vadd.f32 %v39, %v50
  %v55 = vadd.f32 %v40, %v50
  %v56 = vadd.f32 %v41, %v50
  %v57 = vadd.f32 %v42, %v50
  %v58 = vadd.f32 %v43, %v50
  %v59 = vadd.f32 %v44, %v50
  %v60 = vmax.f32 %v52, 0.0
  %v61 = vmax.f32 %v53, 0.0
  %v62 = vmax.f32 %v54, 0.0
  %v63 = vmax.f32 %v55, 0.0
  %v64 = vmax.f32 %v56, 0.0
  %v65 = vmax.f32 %v57, 0.0
  %v66 = vmax.f32 %v58, 0.0
  %v67 = vmax.f32 %v59, 0.0
  %v68 = vpack.c.bf16 %v61, %v60
  %v69 = vpack.c.bf16 %v63, %v62
  %v70 = vpack.c.bf16 %v65, %v64
  %v71 = vpack.c.bf16 %v67, %v66
  %v76 = vunpack.c.l.b16 %v68
  %v77 = vunpack.c.h.b16 %v68
  %v78 = vunpack.c.l.b16 %v69
  %v79 = vunpack.c.h.b16 %v69
  %v80 = vunpack.c.l.b16 %v70
  %v81 = vunpack.c.h.b16 %v70
  %v82 = vunpack.c.l.b16 %v71
  %v83 = vunpack.c.h.b16 %v71
  %v84 = vpack.c.b16 %v76, %v76
  %v85 = vpack.c.b16 %v77, %v77
  %v86 = vpack.c.b16 %v78, %v78
  %v87 = vpack.c.b16 %v79, %v79
  %v88 = vpack.c.b16 %v80, %v80
  %v89 = vpack.c.b16 %v81, %v81
  %v90 = vpack.c.b16 %v82, %v82
  %v91 = vpack.c.b16 %v83, %v83
  %100 = vst [vmem:[%s3] sm:$0xf] %v84
  %101 = vst [vmem:[%s3 + $0x4] sm:$0xf] %v85
  %102 = vst [vmem:[%s3 + $0x8] sm:$0xf] %v86
  %103 = vst [vmem:[%s3 + $0xc] sm:$0xf] %v87
  %104 = vst [vmem:[%s3 + $0x10] sm:$0xf] %v88
  %105 = vst [vmem:[%s3 + $0x14] sm:$0xf] %v89
  %106 = vst [vmem:[%s3 + $0x18] sm:$0xf] %v90
  %107 = vst [vmem:[%s3 + $0x1c] sm:$0xf] %v91
  // Predicated region
  $region14: #{encoder_forward.36} parent=0 // pred_check
    _
  $region15: #{encoder_forward.36} parent=0 // pred_check_branch
    %109 = sbr.rel (0) target = $region17
  $region16: #{encoder_forward.36} parent=0 // pred_region
    _
  $region17: #{encoder_forward.36} parent=0 // pred_fallthru
    _
  // Predicated region
  $region18: #{encoder_forward.36} parent=0 // pred_check
    _
  $region19: #{encoder_forward.36} parent=0 // pred_check_branch
    %111 = sbr.rel (0) target = $region21
  $region20: #{encoder_forward.36} parent=0 // pred_region
    _
  $region21: #{encoder_forward.36} parent=0 // pred_fallthru
    _

// kernel: encoder_forward.35
$region0: #{encoder_forward.35}
  #allocation0 [shape = 'u32[]', space=smem, size = 0x4, offset = 0x4, fixed_abs, tag = 'smem constant byte address 0x4 - core index']
  #allocation1 [shape = 'u32[144,128]{1,0:T(1,128)}', space=vmem, size = 0x12000, scoped, tag = 'internal scratch']
  %s0 = inlined_call_operand.vmem [shape: bf16[128,576], index: 0, kind: input, shape index: {}]
  %s1 = inlined_call_operand.vmem [shape: bf16[576,64], index: 1, kind: input, shape index: {}]
  %s2 = inlined_call_operand.vmem [shape: bf16[128,64], index: 2, kind: output, shape index: {0}]
  %s3 = inlined_call_operand.vmem [shape: f32[1,2,64], index: 3, kind: output, shape index: {1}]
  %4 = xla_tuple %s2, %s3
  %s5 = sld [smem:[#allocation0]]
  $region26: #{encoder_forward.35} parent=0
    _
  %s7 = ssub.s32 1, %s5
  %s8 = scalar_select 0, %s7, %s5
  // Predicated region
  $region2: #{encoder_forward.35} parent=0 // pred_check
    _
  $region3: #{encoder_forward.35} parent=0 // pred_check_branch
    %10 = sbr.rel (0) target = $region5
  $region4: #{encoder_forward.35} parent=0 // pred_region
    _
  $region5: #{encoder_forward.35} parent=0 // pred_fallthru
    _
  // Predicated region
  $region6: #{encoder_forward.35} parent=0 // pred_check
    _
  $region7: #{encoder_forward.35} parent=0 // pred_check_branch
    %12 = sbr.rel (0) target = $region9
  $region8: #{encoder_forward.35} parent=0 // pred_region
    _
  $region9: #{encoder_forward.35} parent=0 // pred_fallthru
    _
  %v14 = vld [vmem:[%s0] sm:$0xff]
  %v15 = vld [vmem:[%s0 + $0x8] sm:$0xff]
  %v16 = vld [vmem:[%s0 + $0x10] sm:$0xf]
  %v17 = vld [vmem:[%s0 + $0x14] sm:$0xff]
  %v18 = vld [vmem:[%s0 + $0x1c] sm:$0xff]
  %v19 = vld [vmem:[%s0 + $0x24] sm:$0xf]
  %v20 = vld [vmem:[%s0 + $0x28] sm:$0xff]
  %v21 = vld [vmem:[%s0 + $0x30] sm:$0xff]
  %v22 = vld [vmem:[%s0 + $0x38] sm:$0xf]
  %v23 = vld [vmem:[%s0 + $0x3c] sm:$0xff]
  %v24 = vld [vmem:[%s0 + $0x44] sm:$0xff]
  %v25 = vld [vmem:[%s0 + $0x4c] sm:$0xf]
  %v26 = vld [vmem:[%s0 + $0x50] sm:$0xff]
  %v27 = vld [vmem:[%s0 + $0x58] sm:$0xff]
  %v28 = vld [vmem:[%s0 + $0x60] sm:$0xf]
  %v29 = vld [vmem:[%s0 + $0x64] sm:$0xff]
  %v30 = vld [vmem:[%s0 + $0x6c] sm:$0xff]
  %v31 = vld [vmem:[%s0 + $0x74] sm:$0xf]
  %v32 = vld [vmem:[%s0 + $0x78] sm:$0xff]
  %v33 = vld [vmem:[%s0 + $0x80] sm:$0xff]
  %v34 = vld [vmem:[%s0 + $0x88] sm:$0xf]
  %v35 = vld [vmem:[%s0 + $0x8c] sm:$0xff]
  %v36 = vld [vmem:[%s0 + $0x94] sm:$0xff]
  %v37 = vld [vmem:[%s0 + $0x9c] sm:$0xf]
  %v38 = vld [vmem:[%s0 + $0xa0] sm:$0xff]
  %v39 = vld [vmem:[%s0 + $0xa8] sm:$0xff]
  %v40 = vld [vmem:[%s0 + $0xb0] sm:$0xf]
  %v41 = vld [vmem:[%s0 + $0xb4] sm:$0xff]
  %v42 = vld [vmem:[%s0 + $0xbc] sm:$0xff]
  %v43 = vld [vmem:[%s0 + $0xc4] sm:$0xf]
  %v44 = vld [vmem:[%s0 + $0xc8] sm:$0xff]
  %v45 = vld [vmem:[%s0 + $0xd0] sm:$0xff]
  %v46 = vld [vmem:[%s0 + $0xd8] sm:$0xf]
  %v47 = vld [vmem:[%s0 + $0xdc] sm:$0xff]
  %v48 = vld [vmem:[%s0 + $0xe4] sm:$0xff]
  %v49 = vld [vmem:[%s0 + $0xec] sm:$0xf]
  %v50 = vld [vmem:[%s0 + $0xf0] sm:$0xff]
  %v51 = vld [vmem:[%s0 + $0xf8] sm:$0xff]
  %v52 = vld [vmem:[%s0 + $0x100] sm:$0xf]
  %v53 = vld [vmem:[%s0 + $0x104] sm:$0xff]
  %v54 = vld [vmem:[%s0 + $0x10c] sm:$0xff]
  %v55 = vld [vmem:[%s0 + $0x114] sm:$0xf]
  %v56 = vld [vmem:[%s0 + $0x118] sm:$0xff]
  %v57 = vld [vmem:[%s0 + $0x120] sm:$0xff]
  %v58 = vld [vmem:[%s0 + $0x128] sm:$0xf]
  %v59 = vld [vmem:[%s0 + $0x12c] sm:$0xff]
  %v60 = vld [vmem:[%s0 + $0x134] sm:$0xff]
  %v61 = vld [vmem:[%s0 + $0x13c] sm:$0xf]
  %v62 = vld [vmem:[%s1] sm:$0xf]
  %v63 = vld [vmem:[%s1 + $0x4] sm:$0xf]
  %v64 = vld [vmem:[%s1 + $0x8] sm:$0xf]
  %v65 = vld [vmem:[%s1 + $0xc] sm:$0xf]
  %v66 = vld [vmem:[%s1 + $0x10] sm:$0xf]
  %v67 = vld [vmem:[%s1 + $0x14] sm:$0xf]
  %v68 = vld [vmem:[%s1 + $0x18] sm:$0xf]
  %v69 = vld [vmem:[%s1 + $0x1c] sm:$0xf]
  %v70 = vld [vmem:[%s1 + $0x20] sm:$0xf]
  %v71 = vld [vmem:[%s1 + $0x24] sm:$0xf]
  %v72 = vld [vmem:[%s1 + $0x28] sm:$0xf]
  %v73 = vld [vmem:[%s1 + $0x2c] sm:$0xf]
  %v74 = vld [vmem:[%s1 + $0x30] sm:$0xf]
  %v75 = vld [vmem:[%s1 + $0x34] sm:$0xf]
  %v76 = vld [vmem:[%s1 + $0x38] sm:$0xf]
  %v77 = vld [vmem:[%s1 + $0x3c] sm:$0xf]
  %v78 = vld [vmem:[%s1 + $0x40] sm:$0xf]
  %v79 = vld [vmem:[%s1 + $0x44] sm:$0xf]
  %v80 = vld [vmem:[%s1 + $0x48] sm:$0xf]
  %v81 = vld [vmem:[%s1 + $0x4c] sm:$0xf]
  %v82 = vld [vmem:[%s1 + $0x50] sm:$0xf]
  %v83 = vld [vmem:[%s1 + $0x54] sm:$0xf]
  %v84 = vld [vmem:[%s1 + $0x58] sm:$0xf]
  %v85 = vld [vmem:[%s1 + $0x5c] sm:$0xf]
  %v86 = vld [vmem:[%s1 + $0x60] sm:$0xf]
  %v87 = vld [vmem:[%s1 + $0x64] sm:$0xf]
  %v88 = vld [vmem:[%s1 + $0x68] sm:$0xf]
  %v89 = vld [vmem:[%s1 + $0x6c] sm:$0xf]
  %v90 = vld [vmem:[%s1 + $0x70] sm:$0xf]
  %v91 = vld [vmem:[%s1 + $0x74] sm:$0xf]
  %v92 = vld [vmem:[%s1 + $0x78] sm:$0xf]
  %v93 = vld [vmem:[%s1 + $0x7c] sm:$0xf]
  %v94 = vld [vmem:[%s1 + $0x80] sm:$0xf]
  %v95 = vld [vmem:[%s1 + $0x84] sm:$0xf]
  %v96 = vld [vmem:[%s1 + $0x88] sm:$0xf]
  %v97 = vld [vmem:[%s1 + $0x8c] sm:$0xf]
  %v98 = vld [vmem:[%s1 + $0x90] sm:$0xf]
  %v99 = vld [vmem:[%s1 + $0x94] sm:$0xf]
  %v100 = vld [vmem:[%s1 + $0x98] sm:$0xf]
  %v101 = vld [vmem:[%s1 + $0x9c] sm:$0xf]
  %v102 = vld [vmem:[%s1 + $0xa0] sm:$0xf]
  %v103 = vld [vmem:[%s1 + $0xa4] sm:$0xf]
  %v104 = vld [vmem:[%s1 + $0xa8] sm:$0xf]
  %v105 = vld [vmem:[%s1 + $0xac] sm:$0xf]
  %v106 = vld [vmem:[%s1 + $0xb0] sm:$0xf]
  %v107 = vld [vmem:[%s1 + $0xb4] sm:$0xf]
  %v108 = vld [vmem:[%s1 + $0xb8] sm:$0xf]
  %v109 = vld [vmem:[%s1 + $0xbc] sm:$0xf]
  %v110 = vld [vmem:[%s1 + $0xc0] sm:$0xf]
  %v111 = vld [vmem:[%s1 + $0xc4] sm:$0xf]
  %v112 = vld [vmem:[%s1 + $0xc8] sm:$0xf]
  %v113 = vld [vmem:[%s1 + $0xcc] sm:$0xf]
  %v114 = vld [vmem:[%s1 + $0xd0] sm:$0xf]
  %v115 = vld [vmem:[%s1 + $0xd4] sm:$0xf]
  %v116 = vld [vmem:[%s1 + $0xd8] sm:$0xf]
  %v117 = vld [vmem:[%s1 + $0xdc] sm:$0xf]
  %v118 = vld [vmem:[%s1 + $0xe0] sm:$0xf]
  %v119 = vld [vmem:[%s1 + $0xe4] sm:$0xf]
  %v120 = vld [vmem:[%s1 + $0xe8] sm:$0xf]
  %v121 = vld [vmem:[%s1 + $0xec] sm:$0xf]
  %v122 = vld [vmem:[%s1 + $0xf0] sm:$0xf]
  %v123 = vld [vmem:[%s1 + $0xf4] sm:$0xf]
  %v124 = vld [vmem:[%s1 + $0xf8] sm:$0xf]
  %v125 = vld [vmem:[%s1 + $0xfc] sm:$0xf]
  %v126 = vld [vmem:[%s1 + $0x100] sm:$0xf]
  %v127 = vld [vmem:[%s1 + $0x104] sm:$0xf]
  %v128 = vld [vmem:[%s1 + $0x108] sm:$0xf]
  %v129 = vld [vmem:[%s1 + $0x10c] sm:$0xf]
  %v130 = vld [vmem:[%s1 + $0x110] sm:$0xf]
  %v131 = vld [vmem:[%s1 + $0x114] sm:$0xf]
  %v132 = vld [vmem:[%s1 + $0x118] sm:$0xf]
  %v133 = vld [vmem:[%s1 + $0x11c] sm:$0xf]
  %v182 = vunpack.c.l.b16 %v14
  %v183 = vunpack.c.h.b16 %v14
  %v184 = vunpack.c.l.b16 %v15
  %v185 = vunpack.c.h.b16 %v15
  %v186 = vunpack.c.l.b16 %v16
  %v187 = vunpack.c.l.b16 %v17
  %v188 = vunpack.c.h.b16 %v17
  %v189 = vunpack.c.l.b16 %v18
  %v190 = vunpack.c.h.b16 %v18
  %v191 = vunpack.c.l.b16 %v19
  %v192 = vunpack.c.l.b16 %v20
  %v193 = vunpack.c.h.b16 %v20
  %v194 = vunpack.c.l.b16 %v21
  %v195 = vunpack.c.h.b16 %v21
  %v196 = vunpack.c.l.b16 %v22
  %v197 = vunpack.c.l.b16 %v23
  %v198 = vunpack.c.h.b16 %v23
  %v199 = vunpack.c.l.b16 %v24
  %v200 = vunpack.c.h.b16 %v24
  %v201 = vunpack.c.l.b16 %v25
  %v202 = vunpack.c.l.b16 %v26
  %v203 = vunpack.c.h.b16 %v26
  %v204 = vunpack.c.l.b16 %v27
  %v205 = vunpack.c.h.b16 %v27
  %v206 = vunpack.c.l.b16 %v28
  %v207 = vunpack.c.l.b16 %v29
  %v208 = vunpack.c.h.b16 %v29
  %v209 = vunpack.c.l.b16 %v30
  %v210 = vunpack.c.h.b16 %v30
  %v211 = vunpack.c.l.b16 %v31
  %v212 = vunpack.c.l.b16 %v32
  %v213 = vunpack.c.h.b16 %v32
  %v214 = vunpack.c.l.b16 %v33
  %v215 = vunpack.c.h.b16 %v33
  %v216 = vunpack.c.l.b16 %v34
  %v217 = vunpack.c.l.b16 %v35
  %v218 = vunpack.c.h.b16 %v35
  %v219 = vunpack.c.l.b16 %v36
  %v220 = vunpack.c.h.b16 %v36
  %v221 = vunpack.c.l.b16 %v37
  %v222 = vunpack.c.l.b16 %v38
  %v223 = vunpack.c.h.b16 %v38
  %v224 = vunpack.c.l.b16 %v39
  %v225 = vunpack.c.h.b16 %v39
  %v226 = vunpack.c.l.b16 %v40
  %v227 = vunpack.c.l.b16 %v41
  %v228 = vunpack.c.h.b16 %v41
  %v229 = vunpack.c.l.b16 %v42
  %v230 = vunpack.c.h.b16 %v42
  %v231 = vunpack.c.l.b16 %v43
  %v232 = vunpack.c.l.b16 %v44
  %v233 = vunpack.c.h.b16 %v44
  %v234 = vunpack.c.l.b16 %v45
  %v235 = vunpack.c.h.b16 %v45
  %v236 = vunpack.c.l.b16 %v46
  %v237 = vunpack.c.l.b16 %v47
  %v238 = vunpack.c.h.b16 %v47
  %v239 = vunpack.c.l.b16 %v48
  %v240 = vunpack.c.h.b16 %v48
  %v241 = vunpack.c.l.b16 %v49
  %v242 = vunpack.c.l.b16 %v50
  %v243 = vunpack.c.h.b16 %v50
  %v244 = vunpack.c.l.b16 %v51
  %v245 = vunpack.c.h.b16 %v51
  %v246 = vunpack.c.l.b16 %v52
  %v247 = vunpack.c.l.b16 %v53
  %v248 = vunpack.c.h.b16 %v53
  %v249 = vunpack.c.l.b16 %v54
  %v250 = vunpack.c.h.b16 %v54
  %v251 = vunpack.c.l.b16 %v55
  %v252 = vunpack.c.l.b16 %v56
  %v253 = vunpack.c.h.b16 %v56
  %v254 = vunpack.c.l.b16 %v57
  %v255 = vunpack.c.h.b16 %v57
  %v256 = vunpack.c.l.b16 %v58
  %v257 = vunpack.c.l.b16 %v59
  %v258 = vunpack.c.h.b16 %v59
  %v259 = vunpack.c.l.b16 %v60
  %v260 = vunpack.c.h.b16 %v60
  %v261 = vunpack.c.l.b16 %v61
  %v262 = vpack.c.b16 %v187, %v182
  %v263 = vpack.c.b16 %v188, %v183
  %v264 = vpack.c.b16 %v189, %v184
  %v265 = vpack.c.b16 %v190, %v185
  %v266 = vpack.c.b16 %v191, %v186
  %v267 = vpack.c.b16 %v197, %v192
  %v268 = vpack.c.b16 %v198, %v193
  %v269 = vpack.c.b16 %v199, %v194
  %v270 = vpack.c.b16 %v200, %v195
  %v271 = vpack.c.b16 %v201, %v196
  %v272 = vpack.c.b16 %v207, %v202
  %v273 = vpack.c.b16 %v208, %v203
  %v274 = vpack.c.b16 %v209, %v204
  %v275 = vpack.c.b16 %v210, %v205
  %v276 = vpack.c.b16 %v211, %v206
  %v277 = vpack.c.b16 %v217, %v212
  %v278 = vpack.c.b16 %v218, %v213
  %v279 = vpack.c.b16 %v219, %v214
  %v280 = vpack.c.b16 %v220, %v215
  %v281 = vpack.c.b16 %v221, %v216
  %v282 = vpack.c.b16 %v227, %v222
  %v283 = vpack.c.b16 %v228, %v223
  %v284 = vpack.c.b16 %v229, %v224
  %v285 = vpack.c.b16 %v230, %v225
  %v286 = vpack.c.b16 %v231, %v226
  %v287 = vpack.c.b16 %v237, %v232
  %v288 = vpack.c.b16 %v238, %v233
  %v289 = vpack.c.b16 %v239, %v234
  %v290 = vpack.c.b16 %v240, %v235
  %v291 = vpack.c.b16 %v241, %v236
  %v292 = vpack.c.b16 %v247, %v242
  %v293 = vpack.c.b16 %v248, %v243
  %v294 = vpack.c.b16 %v249, %v244
  %v295 = vpack.c.b16 %v250, %v245
  %v296 = vpack.c.b16 %v251, %v246
  %v297 = vpack.c.b16 %v257, %v252
  %v298 = vpack.c.b16 %v258, %v253
  %v299 = vpack.c.b16 %v259, %v254
  %v300 = vpack.c.b16 %v260, %v255
  %v301 = vpack.c.b16 %v261, %v256
  %v406 = vunpack.c.l.b16 %v62
  %v407 = vunpack.c.l.b16 %v63
  %v408 = vunpack.c.l.b16 %v64
  %v409 = vunpack.c.l.b16 %v65
  %v410 = vunpack.c.l.b16 %v66
  %v411 = vunpack.c.l.b16 %v67
  %v412 = vunpack.c.l.b16 %v68
  %v413 = vunpack.c.l.b16 %v69
  %v414 = vunpack.c.l.b16 %v70
  %v415 = vunpack.c.l.b16 %v71
  %v416 = vunpack.c.l.b16 %v72
  %v417 = vunpack.c.l.b16 %v73
  %v418 = vunpack.c.l.b16 %v74
  %v419 = vunpack.c.l.b16 %v75
  %v420 = vunpack.c.l.b16 %v76
  %v421 = vunpack.c.l.b16 %v77
  %v422 = vunpack.c.l.b16 %v78
  %v423 = vunpack.c.l.b16 %v79
  %v424 = vunpack.c.l.b16 %v80
  %v425 = vunpack.c.l.b16 %v81
  %v426 = vunpack.c.l.b16 %v82
  %v427 = vunpack.c.l.b16 %v83
  %v428 = vunpack.c.l.b16 %v84
  %v429 = vunpack.c.l.b16 %v85
  %v430 = vunpack.c.l.b16 %v86
  %v431 = vunpack.c.l.b16 %v87
  %v432 = vunpack.c.l.b16 %v88
  %v433 = vunpack.c.l.b16 %v89
  %v434 = vunpack.c.l.b16 %v90
  %v435 = vunpack.c.l.b16 %v91
  %v436 = vunpack.c.l.b16 %v92
  %v437 = vunpack.c.l.b16 %v93
  %v438 = vunpack.c.l.b16 %v94
  %v439 = vunpack.c.l.b16 %v95
  %v440 = vunpack.c.l.b16 %v96
  %v441 = vunpack.c.l.b16 %v97
  %v442 = vunpack.c.l.b16 %v98
  %v443 = vunpack.c.l.b16 %v99
  %v444 = vunpack.c.l.b16 %v100
  %v445 = vunpack.c.l.b16 %v101
  %v446 = vunpack.c.l.b16 %v102
  %v447 = vunpack.c.l.b16 %v103
  %v448 = vunpack.c.l.b16 %v104
  %v449 = vunpack.c.l.b16 %v105
  %v450 = vunpack.c.l.b16 %v106
  %v451 = vunpack.c.l.b16 %v107
  %v452 = vunpack.c.l.b16 %v108
  %v453 = vunpack.c.l.b16 %v109
  %v454 = vunpack.c.l.b16 %v110
  %v455 = vunpack.c.l.b16 %v111
  %v456 = vunpack.c.l.b16 %v112
  %v457 = vunpack.c.l.b16 %v113
  %v458 = vunpack.c.l.b16 %v114
  %v459 = vunpack.c.l.b16 %v115
  %v460 = vunpack.c.l.b16 %v116
  %v461 = vunpack.c.l.b16 %v117
  %v462 = vunpack.c.l.b16 %v118
  %v463 = vunpack.c.l.b16 %v119
  %v464 = vunpack.c.l.b16 %v120
  %v465 = vunpack.c.l.b16 %v121
  %v466 = vunpack.c.l.b16 %v122
  %v467 = vunpack.c.l.b16 %v123
  %v468 = vunpack.c.l.b16 %v124
  %v469 = vunpack.c.l.b16 %v125
  %v470 = vunpack.c.l.b16 %v126
  %v471 = vunpack.c.l.b16 %v127
  %v472 = vunpack.c.l.b16 %v128
  %v473 = vunpack.c.l.b16 %v129
  %v474 = vunpack.c.l.b16 %v130
  %v475 = vunpack.c.l.b16 %v131
  %v476 = vunpack.c.l.b16 %v132
  %v477 = vunpack.c.l.b16 %v133
  %v478 = vpack.c.b16 %v407, %v406
  %v479 = vpack.c.b16 %v409, %v408
  %v480 = vpack.c.b16 %v411, %v410
  %v481 = vpack.c.b16 %v413, %v412
  %v482 = vpack.c.b16 %v415, %v414
  %v483 = vpack.c.b16 %v417, %v416
  %v484 = vpack.c.b16 %v419, %v418
  %v485 = vpack.c.b16 %v421, %v420
  %v486 = vpack.c.b16 %v423, %v422
  %v487 = vpack.c.b16 %v425, %v424
  %v488 = vpack.c.b16 %v427, %v426
  %v489 = vpack.c.b16 %v429, %v428
  %v490 = vpack.c.b16 %v431, %v430
  %v491 = vpack.c.b16 %v433, %v432
  %v492 = vpack.c.b16 %v435, %v434
  %v493 = vpack.c.b16 %v437, %v436
  %v494 = vpack.c.b16 %v439, %v438
  %v495 = vpack.c.b16 %v441, %v440
  %v496 = vpack.c.b16 %v443, %v442
  %v497 = vpack.c.b16 %v445, %v444
  %v498 = vpack.c.b16 %v447, %v446
  %v499 = vpack.c.b16 %v449, %v448
  %v500 = vpack.c.b16 %v451, %v450
  %v501 = vpack.c.b16 %v453, %v452
  %v502 = vpack.c.b16 %v455, %v454
  %v503 = vpack.c.b16 %v457, %v456
  %v504 = vpack.c.b16 %v459, %v458
  %v505 = vpack.c.b16 %v461, %v460
  %v506 = vpack.c.b16 %v463, %v462
  %v507 = vpack.c.b16 %v465, %v464
  %v508 = vpack.c.b16 %v467, %v466
  %v509 = vpack.c.b16 %v469, %v468
  %v510 = vpack.c.b16 %v471, %v470
  %v511 = vpack.c.b16 %v473, %v472
  %v512 = vpack.c.b16 %v475, %v474
  %v513 = vpack.c.b16 %v477, %v476
  %vm550 = vcmask 523264
  %v552 = vsel %vm550, %v266, 0
  %v555 = vsel %vm550, %v271, 0
  %v558 = vsel %vm550, %v276, 0
  %v561 = vsel %vm550, %v281, 0
  %v564 = vsel %vm550, %v286, 0
  %v567 = vsel %vm550, %v291, 0
  %v570 = vsel %vm550, %v296, 0
  %v573 = vsel %vm550, %v301, 0
  %575 = vmatprep.subr.bf16.mxu0 0
  %576 = vmatpush1.bf16.msra.mxu0 %v478
  %577 = vmatprep.subr.bf16.mxu0 0
  %578 = vmatpush1.bf16.msra.mxu0 %v479
  %579 = vmatprep.subr.bf16.mxu0 0
  %580 = vmatpush1.bf16.msra.mxu0 %v480
  %581 = vmatprep.subr.bf16.mxu0 0
  %582 = vmatpush1.bf16.msra.mxu0 %v481
  %583 = vmatprep.subr.bf16.mxu0 0
  %584 = vmatpush1.bf16.msra.mxu0 %v482
  %585 = vmatprep.subr.bf16.mxu0 0
  %586 = vmatpush1.bf16.msra.mxu0 %v483
  %587 = vmatprep.subr.bf16.mxu0 0
  %588 = vmatpush1.bf16.msra.mxu0 %v484
  %589 = vmatprep.subr.bf16.mxu0 0
  %590 = vmatpush1.bf16.msra.mxu0 %v485
  %591 = vmatprep.subr.bf16.mxu0 0
  %592 = vmatpush1.bf16.msra.mxu0 %v486
  %593 = vmatprep.subr.bf16.mxu0 0
  %594 = vmatpush1.bf16.msra.mxu0 %v487
  %595 = vmatprep.subr.bf16.mxu0 0
  %596 = vmatpush1.bf16.msra.mxu0 %v488
  %597 = vmatprep.subr.bf16.mxu0 0
  %598 = vmatpush1.bf16.msra.mxu0 %v489
  %599 = vmatprep.subr.bf16.mxu0 0
  %600 = vmatpush1.bf16.msra.mxu0 %v490
  %601 = vmatprep.subr.bf16.mxu0 0
  %602 = vmatpush1.bf16.msra.mxu0 %v491
  %603 = vmatprep.subr.bf16.mxu0 0
  %604 = vmatpush1.bf16.msra.mxu0 %v492
  %605 = vmatprep.subr.bf16.mxu0 0
  %606 = vmatpush1.bf16.msra.mxu0 %v493
  %607 = vmatprep.mubr.bf16.mxu0 %v263
  %608 = vmatmul.mubr.bf16.gmra.mrb[0].mxu0 %v262
  %v609 = vpop.f32.mrb[0].mxu0
  %v610 = vadd.f32 0.0, %v609
  %v611 = vpop.f32.mrb[0].mxu0
  %v612 = vpop.f32.mrb[0].mxu0
  %v613 = vadd.f32 0.0, %v612
  %v614 = vpop.f32.mrb[0].mxu0
  %615 = vmatprep.mubr.bf16.mxu0 %v268
  %616 = vmatmul.mubr.bf16.gmra.mrb[0].mxu0 %v267
  %v617 = vpop.f32.mrb[0].mxu0
  %v618 = vadd.f32 0.0, %v617
  %v619 = vpop.f32.mrb[0].mxu0
  %v620 = vpop.f32.mrb[0].mxu0
  %v621 = vadd.f32 0.0, %v620
  %v622 = vpop.f32.mrb[0].mxu0
  %623 = vmatprep.mubr.bf16.mxu0 %v273
  %624 = vmatmul.mubr.bf16.gmra.mrb[0].mxu0 %v272
  %v625 = vpop.f32.mrb[0].mxu0
  %v626 = vadd.f32 0.0, %v625
  %v627 = vpop.f32.mrb[0].mxu0
  %v628 = vpop.f32.mrb[0].mxu0
  %v629 = vadd.f32 0.0, %v628
  %v630 = vpop.f32.mrb[0].mxu0
  %631 = vmatprep.mubr.bf16.mxu0 %v278
  %632 = vmatmul.mubr.bf16.gmra.mrb[0].mxu0 %v277
  %v633 = vpop.f32.mrb[0].mxu0
  %v634 = vadd.f32 0.0, %v633
  %v635 = vpop.f32.mrb[0].mxu0
  %v636 = vpop.f32.mrb[0].mxu0
  %v637 = vadd.f32 0.0, %v636
  %v638 = vpop.f32.mrb[0].mxu0
  %639 = vmatprep.mubr.bf16.mxu0 %v283
  %640 = vmatmul.mubr.bf16.gmra.mrb[0].mxu0 %v282
  %v641 = vpop.f32.mrb[0].mxu0
  %v642 = vadd.f32 0.0, %v641
  %v643 = vpop.f32.mrb[0].mxu0
  %v644 = vpop.f32.mrb[0].mxu0
  %v645 = vadd.f32 0.0, %v644
  %v646 = vpop.f32.mrb[0].mxu0
  %647 = vmatprep.mubr.bf16.mxu0 %v288
  %648 = vmatmul.mubr.bf16.gmra.mrb[0].mxu0 %v287
  %v649 = vpop.f32.mrb[0].mxu0
  %v650 = vadd.f32 0.0, %v649
  %v651 = vpop.f32.mrb[0].mxu0
  %v652 = vpop.f32.mrb[0].mxu0
  %v653 = vadd.f32 0.0, %v652
  %v654 = vpop.f32.mrb[0].mxu0
  %655 = vmatprep.mubr.bf16.mxu0 %v293
  %656 = vmatmul.mubr.bf16.gmra.mrb[0].mxu0 %v292
  %v657 = vpop.f32.mrb[0].mxu0
  %v658 = vadd.f32 0.0, %v657
  %v659 = vpop.f32.mrb[0].mxu0
  %v660 = vpop.f32.mrb[0].mxu0
  %v661 = vadd.f32 0.0, %v660
  %v662 = vpop.f32.mrb[0].mxu0
  %663 = vmatprep.mubr.bf16.mxu0 %v298
  %664 = vmatmul.mubr.bf16.gmra.mrb[0].mxu0 %v297
  %v665 = vpop.f32.mrb[0].mxu0
  %v666 = vadd.f32 0.0, %v665
  %v667 = vpop.f32.mrb[0].mxu0
  %v668 = vpop.f32.mrb[0].mxu0
  %v669 = vadd.f32 0.0, %v668
  %v670 = vpop.f32.mrb[0].mxu0
  %671 = vdwg.mxu0
  %672 = vmatprep.subr.bf16.mxu0 0
  %673 = vmatpush1.bf16.msra.mxu0 %v494
  %674 = vmatprep.subr.bf16.mxu0 0
  %675 = vmatpush1.bf16.msra.mxu0 %v495
  %676 = vmatprep.subr.bf16.mxu0 0
  %677 = vmatpush1.bf16.msra.mxu0 %v496
  %678 = vmatprep.subr.bf16.mxu0 0
  %679 = vmatpush1.bf16.msra.mxu0 %v497
  %680 = vmatprep.subr.bf16.mxu0 0
  %681 = vmatpush1.bf16.msra.mxu0 %v498
  %682 = vmatprep.subr.bf16.mxu0 0
  %683 = vmatpush1.bf16.msra.mxu0 %v499
  %684 = vmatprep.subr.bf16.mxu0 0
  %685 = vmatpush1.bf16.msra.mxu0 %v500
  %686 = vmatprep.subr.bf16.mxu0 0
  %687 = vmatpush1.bf16.msra.mxu0 %v501
  %688 = vmatprep.subr.bf16.mxu0 0
  %689 = vmatpush1.bf16.msra.mxu0 %v502
  %690 = vmatprep.subr.bf16.mxu0 0
  %691 = vmatpush1.bf16.msra.mxu0 %v503
  %692 = vmatprep.subr.bf16.mxu0 0
  %693 = vmatpush1.bf16.msra.mxu0 %v504
  %694 = vmatprep.subr.bf16.mxu0 0
  %695 = vmatpush1.bf16.msra.mxu0 %v505
  %696 = vmatprep.subr.bf16.mxu0 0
  %697 = vmatpush1.bf16.msra.mxu0 %v506
  %698 = vmatprep.subr.bf16.mxu0 0
  %699 = vmatpush1.bf16.msra.mxu0 %v507
  %700 = vmatprep.subr.bf16.mxu0 0
  %701 = vmatpush1.bf16.msra.mxu0 %v508
  %702 = vmatprep.subr.bf16.mxu0 0
  %703 = vmatpush1.bf16.msra.mxu0 %v509
  %704 = vmatprep.mubr.bf16.mxu0 %v265
  %705 = vmatmul.mubr.bf16.gmra.mrb[0].mxu0 %v264
  %v706 = vpop.f32.mrb[0].mxu0
  %v707 = vadd.f32 %v610, %v706
  %v708 = vpop.f32.mrb[0].mxu0
  %v709 = vpop.f32.mrb[0].mxu0
  %v710 = vadd.f32 %v613, %v709
  %v711 = vpop.f32.mrb[0].mxu0
  %712 = vmatprep.mubr.bf16.mxu0 %v270
  %713 = vmatmul.mubr.bf16.gmra.mrb[0].mxu0 %v269
  %v714 = vpop.f32.mrb[0].mxu0
  %v715 = vadd.f32 %v618, %v714
  %v716 = vpop.f32.mrb[0].mxu0
  %v717 = vpop.f32.mrb[0].mxu0
  %v718 = vadd.f32 %v621, %v717
  %v719 = vpop.f32.mrb[0].mxu0
  %720 = vmatprep.mubr.bf16.mxu0 %v275
  %721 = vmatmul.mubr.bf16.gmra.mrb[0].mxu0 %v274
  %v722 = vpop.f32.mrb[0].mxu0
  %v723 = vadd.f32 %v626, %v722
  %v724 = vpop.f32.mrb[0].mxu0
  %v725 = vpop.f32.mrb[0].mxu0
  %v726 = vadd.f32 %v629, %v725
  %v727 = vpop.f32.mrb[0].mxu0
  %728 = vmatprep.mubr.bf16.mxu0 %v280
  %729 = vmatmul.mubr.bf16.gmra.mrb[0].mxu0 %v279
  %v730 = vpop.f32.mrb[0].mxu0
  %v731 = vadd.f32 %v634, %v730
  %v732 = vpop.f32.mrb[0].mxu0
  %v733 = vpop.f32.mrb[0].mxu0
  %v734 = vadd.f32 %v637, %v733
  %v735 = vpop.f32.mrb[0].mxu0
  %736 = vmatprep.mubr.bf16.mxu0 %v285
  %737 = vmatmul.mubr.bf16.gmra.mrb[0].mxu0 %v284
  %v738 = vpop.f32.mrb[0].mxu0
  %v739 = vadd.f32 %v642, %v738
  %v740 = vpop.f32.mrb[0].mxu0
  %v741 = vpop.f32.mrb[0].mxu0
  %v742 = vadd.f32 %v645, %v741
  %v743 = vpop.f32.mrb[0].mxu0
  %744 = vmatprep.mubr.bf16.mxu0 %v290
  %745 = vmatmul.mubr.bf16.gmra.mrb[0].mxu0 %v289
  %v746 = vpop.f32.mrb[0].mxu0
  %v747 = vadd.f32 %v650, %v746
  %v748 = vpop.f32.mrb[0].mxu0
  %v749 = vpop.f32.mrb[0].mxu0
  %v750 = vadd.f32 %v653, %v749
  %v751 = vpop.f32.mrb[0].mxu0
  %752 = vmatprep.mubr.bf16.mxu0 %v295
  %753 = vmatmul.mubr.bf16.gmra.mrb[0].mxu0 %v294
  %v754 = vpop.f32.mrb[0].mxu0
  %v755 = vadd.f32 %v658, %v754
  %v756 = vpop.f32.mrb[0].mxu0
  %v757 = vpop.f32.mrb[0].mxu0
  %v758 = vadd.f32 %v661, %v757
  %v759 = vpop.f32.mrb[0].mxu0
  %760 = vmatprep.mubr.bf16.mxu0 %v300
  %761 = vmatmul.mubr.bf16.gmra.mrb[0].mxu0 %v299
  %v762 = vpop.f32.mrb[0].mxu0
  %v763 = vadd.f32 %v666, %v762
  %v764 = vpop.f32.mrb[0].mxu0
  %v765 = vpop.f32.mrb[0].mxu0
  %v766 = vadd.f32 %v669, %v765
  %v767 = vpop.f32.mrb[0].mxu0
  %768 = vdwg.mxu0
  %769 = vmatprep.subr.bf16.mxu0 0
  %770 = vmatpush1.bf16.msra.mxu0 %v510
  %771 = vmatprep.subr.bf16.mxu0 0
  %772 = vmatpush1.bf16.msra.mxu0 %v511
  %773 = vmatprep.subr.bf16.mxu0 0
  %774 = vmatpush1.bf16.msra.mxu0 %v512
  %775 = vmatprep.subr.bf16.mxu0 0
  %776 = vmatpush1.bf16.msra.mxu0 %v513
  %777 = vmatprep.subr.bf16.mxu0 0
  %778 = vmatpush1.bf16.msra.mxu0 0
  %779 = vmatprep.subr.bf16.mxu0 0
  %780 = vmatpush1.bf16.msra.mxu0 0
  %781 = vmatprep.subr.bf16.mxu0 0
  %782 = vmatpush1.bf16.msra.mxu0 0
  %783 = vmatprep.subr.bf16.mxu0 0
  %784 = vmatpush1.bf16.msra.mxu0 0
  %785 = vmatprep.subr.bf16.mxu0 0
  %786 = vmatpush1.bf16.msra.mxu0 0
  %787 = vmatprep.subr.bf16.mxu0 0
  %788 = vmatpush1.bf16.msra.mxu0 0
  %789 = vmatprep.subr.bf16.mxu0 0
  %790 = vmatpush1.bf16.msra.mxu0 0
  %791 = vmatprep.subr.bf16.mxu0 0
  %792 = vmatpush1.bf16.msra.mxu0 0
  %793 = vmatprep.subr.bf16.mxu0 0
  %794 = vmatpush1.bf16.msra.mxu0 0
  %795 = vmatprep.subr.bf16.mxu0 0
  %796 = vmatpush1.bf16.msra.mxu0 0
  %797 = vmatprep.subr.bf16.mxu0 0
  %798 = vmatpush1.bf16.msra.mxu0 0
  %799 = vmatprep.subr.bf16.mxu0 0
  %800 = vmatpush1.bf16.msra.mxu0 0
  %801 = vmatprep.mubr.bf16.mxu0 0
  %802 = vmatmul.mubr.bf16.gmra.mrb[0].mxu0 %v552
  %v803 = vpop.f32.mrb[0].mxu0
  %v804 = vadd.f32 %v707, %v803
  %v805 = vpop.f32.mrb[0].mxu0
  %v806 = vpop.f32.mrb[0].mxu0
  %v807 = vadd.f32 %v710, %v806
  %v808 = vpop.f32.mrb[0].mxu0
  %809 = vmatprep.mubr.bf16.mxu0 0
  %810 = vmatmul.mubr.bf16.gmra.mrb[0].mxu0 %v555
  %v811 = vpop.f32.mrb[0].mxu0
  %v812 = vadd.f32 %v715, %v811
  %v813 = vpop.f32.mrb[0].mxu0
  %v814 = vpop.f32.mrb[0].mxu0
  %v815 = vadd.f32 %v718, %v814
  %v816 = vpop.f32.mrb[0].mxu0
  %817 = vmatprep.mubr.bf16.mxu0 0
  %818 = vmatmul.mubr.bf16.gmra.mrb[0].mxu0 %v558
  %v819 = vpop.f32.mrb[0].mxu0
  %v820 = vadd.f32 %v723, %v819
  %v821 = vpop.f32.mrb[0].mxu0
  %v822 = vpop.f32.mrb[0].mxu0
  %v823 = vadd.f32 %v726, %v822
  %v824 = vpop.f32.mrb[0].mxu0
  %825 = vmatprep.mubr.bf16.mxu0 0
  %826 = vmatmul.mubr.bf16.gmra.mrb[0].mxu0 %v561
  %v827 = vpop.f32.mrb[0].mxu0
  %v828 = vadd.f32 %v731, %v827
  %v829 = vpop.f32.mrb[0].mxu0
  %v830 = vpop.f32.mrb[0].mxu0
  %v831 = vadd.f32 %v734, %v830
  %v832 = vpop.f32.mrb[0].mxu0
  %833 = vmatprep.mubr.bf16.mxu0 0
  %834 = vmatmul.mubr.bf16.gmra.mrb[0].mxu0 %v564
  %v835 = vpop.f32.mrb[0].mxu0
  %v836 = vadd.f32 %v739, %v835
  %v837 = vpop.f32.mrb[0].mxu0
  %v838 = vpop.f32.mrb[0].mxu0
  %v839 = vadd.f32 %v742, %v838
  %v840 = vpop.f32.mrb[0].mxu0
  %841 = vmatprep.mubr.bf16.mxu0 0
  %842 = vmatmul.mubr.bf16.gmra.mrb[0].mxu0 %v567
  %v843 = vpop.f32.mrb[0].mxu0
  %v844 = vadd.f32 %v747, %v843
  %v845 = vpop.f32.mrb[0].mxu0
  %v846 = vpop.f32.mrb[0].mxu0
  %v847 = vadd.f32 %v750, %v846
  %v848 = vpop.f32.mrb[0].mxu0
  %849 = vmatprep.mubr.bf16.mxu0 0
  %850 = vmatmul.mubr.bf16.gmra.mrb[0].mxu0 %v570
  %v851 = vpop.f32.mrb[0].mxu0
  %v852 = vadd.f32 %v755, %v851
  %v853 = vpop.f32.mrb[0].mxu0
  %v854 = vpop.f32.mrb[0].mxu0
  %v855 = vadd.f32 %v758, %v854
  %v856 = vpop.f32.mrb[0].mxu0
  %857 = vmatprep.mubr.bf16.mxu0 0
  %858 = vmatmul.mubr.bf16.gmra.mrb[0].mxu0 %v573
  %v859 = vpop.f32.mrb[0].mxu0
  %v860 = vadd.f32 %v763, %v859
  %v861 = vpop.f32.mrb[0].mxu0
  %v862 = vpop.f32.mrb[0].mxu0
  %v863 = vadd.f32 %v766, %v862
  %v864 = vpop.f32.mrb[0].mxu0
  %865 = vdwg.mxu0
  %v866 = vpack.c.bf16 %v807, %v804
  %v867 = vpack.c.bf16 %v815, %v812
  %v868 = vpack.c.bf16 %v823, %v820
  %v869 = vpack.c.bf16 %v831, %v828
  %v870 = vpack.c.bf16 %v839, %v836
  %v871 = vpack.c.bf16 %v847, %v844
  %v872 = vpack.c.bf16 %v855, %v852
  %v873 = vpack.c.bf16 %v863, %v860
  %v882 = vunpack.c.l.b16 %v866
  %v883 = vunpack.c.h.b16 %v866
  %v884 = vunpack.c.l.b16 %v867
  %v885 = vunpack.c.h.b16 %v867
  %v886 = vunpack.c.l.b16 %v868
  %v887 = vunpack.c.h.b16 %v868
  %v888 = vunpack.c.l.b16 %v869
  %v889 = vunpack.c.h.b16 %v869
  %v890 = vunpack.c.l.b16 %v870
  %v891 = vunpack.c.h.b16 %v870
  %v892 = vunpack.c.l.b16 %v871
  %v893 = vunpack.c.h.b16 %v871
  %v894 = vunpack.c.l.b16 %v872
  %v895 = vunpack.c.h.b16 %v872
  %v896 = vunpack.c.l.b16 %v873
  %v897 = vunpack.c.h.b16 %v873
  %v898 = vpack.c.b16 %v882, %v882
  %v899 = vpack.c.b16 %v883, %v883
  %v900 = vpack.c.b16 %v884, %v884
  %v901 = vpack.c.b16 %v885, %v885
  %v902 = vpack.c.b16 %v886, %v886
  %v903 = vpack.c.b16 %v887, %v887
  %v904 = vpack.c.b16 %v888, %v888
  %v905 = vpack.c.b16 %v889, %v889
  %v906 = vpack.c.b16 %v890, %v890
  %v907 = vpack.c.b16 %v891, %v891
  %v908 = vpack.c.b16 %v892, %v892
  %v909 = vpack.c.b16 %v893, %v893
  %v910 = vpack.c.b16 %v894, %v894
  %v911 = vpack.c.b16 %v895, %v895
  %v912 = vpack.c.b16 %v896, %v896
  %v913 = vpack.c.b16 %v897, %v897
  %vm930 = vcmask 519168
  %931 = vst.msk [vmem:[%s2] sm:$0xf] %vm930, %v898
  %932 = vst.msk [vmem:[%s2 + $0x4] sm:$0xf] %vm930, %v899
  %933 = vst.msk [vmem:[%s2 + $0x8] sm:$0xf] %vm930, %v900
  %934 = vst.msk [vmem:[%s2 + $0xc] sm:$0xf] %vm930, %v901
  %935 = vst.msk [vmem:[%s2 + $0x10] sm:$0xf] %vm930, %v902
  %936 = vst.msk [vmem:[%s2 + $0x14] sm:$0xf] %vm930, %v903
  %937 = vst.msk [vmem:[%s2 + $0x18] sm:$0xf] %vm930, %v904
  %938 = vst.msk [vmem:[%s2 + $0x1c] sm:$0xf] %vm930, %v905
  %939 = vst.msk [vmem:[%s2 + $0x20] sm:$0xf] %vm930, %v906
  %940 = vst.msk [vmem:[%s2 + $0x24] sm:$0xf] %vm930, %v907
  %941 = vst.msk [vmem:[%s2 + $0x28] sm:$0xf] %vm930, %v908
  %942 = vst.msk [vmem:[%s2 + $0x2c] sm:$0xf] %vm930, %v909
  %943 = vst.msk [vmem:[%s2 + $0x30] sm:$0xf] %vm930, %v910
  %944 = vst.msk [vmem:[%s2 + $0x34] sm:$0xf] %vm930, %v911
  %945 = vst.msk [vmem:[%s2 + $0x38] sm:$0xf] %vm930, %v912
  %946 = vst.msk [vmem:[%s2 + $0x3c] sm:$0xf] %vm930, %v913
  %v947 = vsel %vm550, %v804, 0.0
  %v948 = vsel %vm550, %v807, 0.0
  %v949 = vadd.f32 %v947, %v948
  %v950 = vsel %vm550, %v812, 0.0
  %v951 = vadd.f32 %v949, %v950
  %v952 = vsel %vm550, %v815, 0.0
  %v953 = vadd.f32 %v951, %v952
  %v954 = vsel %vm550, %v820, 0.0
  %v955 = vadd.f32 %v953, %v954
  %v956 = vsel %vm550, %v823, 0.0
  %v957 = vadd.f32 %v955, %v956
  %v958 = vsel %vm550, %v828, 0.0
  %v959 = vadd.f32 %v957, %v958
  %v960 = vsel %vm550, %v831, 0.0
  %v961 = vadd.f32 %v959, %v960
  %v962 = vsel %vm550, %v836, 0.0
  %v963 = vadd.f32 %v961, %v962
  %v964 = vsel %vm550, %v839, 0.0
  %v965 = vadd.f32 %v963, %v964
  %v966 = vsel %vm550, %v844, 0.0
  %v967 = vadd.f32 %v965, %v966
  %v968 = vsel %vm550, %v847, 0.0
  %v969 = vadd.f32 %v967, %v968
  %v970 = vsel %vm550, %v852, 0.0
  %v971 = vadd.f32 %v969, %v970
  %v972 = vsel %vm550, %v855, 0.0
  %v973 = vadd.f32 %v971, %v972
  %v974 = vsel %vm550, %v860, 0.0
  %v975 = vadd.f32 %v973, %v974
  %v976 = vsel %vm550, %v863, 0.0
  %v977 = vadd.f32 %v975, %v976
  %v978 = vrot.slane %v977, 4
  %v979 = vadd.f32 %v977, %v978
  %v980 = vrot.slane %v979, 2
  %v981 = vadd.f32 %v979, %v980
  %v982 = vrot.slane %v981, 1
  %v983 = vadd.f32 %v981, %v982
  %v984 = vmul.f32 %v804, %v804
  %v985 = vmul.f32 %v807, %v807
  %v986 = vmul.f32 %v812, %v812
  %v987 = vmul.f32 %v815, %v815
  %v988 = vmul.f32 %v820, %v820
  %v989 = vmul.f32 %v823, %v823
  %v990 = vmul.f32 %v828, %v828
  %v991 = vmul.f32 %v831, %v831
  %v992 = vmul.f32 %v836, %v836
  %v993 = vmul.f32 %v839, %v839
  %v994 = vmul.f32 %v844, %v844
  %v995 = vmul.f32 %v847, %v847
  %v996 = vmul.f32 %v852, %v852
  %v997 = vmul.f32 %v855, %v855
  %v998 = vmul.f32 %v860, %v860
  %v999 = vmul.f32 %v863, %v863
  %v1000 = vsel %vm550, %v984, 0.0
  %v1001 = vsel %vm550, %v985, 0.0
  %v1002 = vadd.f32 %v1000, %v1001
  %v1003 = vsel %vm550, %v986, 0.0
  %v1004 = vadd.f32 %v1002, %v1003
  %v1005 = vsel %vm550, %v987, 0.0
  %v1006 = vadd.f32 %v1004, %v1005
  %v1007 = vsel %vm550, %v988, 0.0
  %v1008 = vadd.f32 %v1006, %v1007
  %v1009 = vsel %vm550, %v989, 0.0
  %v1010 = vadd.f32 %v1008, %v1009
  %v1011 = vsel %vm550, %v990, 0.0
  %v1012 = vadd.f32 %v1010, %v1011
  %v1013 = vsel %vm550, %v991, 0.0
  %v1014 = vadd.f32 %v1012, %v1013
  %v1015 = vsel %vm550, %v992, 0.0
  %v1016 = vadd.f32 %v1014, %v1015
  %v1017 = vsel %vm550, %v993, 0.0
  %v1018 = vadd.f32 %v1016, %v1017
  %v1019 = vsel %vm550, %v994, 0.0
  %v1020 = vadd.f32 %v1018, %v1019
  %v1021 = vsel %vm550, %v995, 0.0
  %v1022 = vadd.f32 %v1020, %v1021
  %v1023 = vsel %vm550, %v996, 0.0
  %v1024 = vadd.f32 %v1022, %v1023
  %v1025 = vsel %vm550, %v997, 0.0
  %v1026 = vadd.f32 %v1024, %v1025
  %v1027 = vsel %vm550, %v998, 0.0
  %v1028 = vadd.f32 %v1026, %v1027
  %v1029 = vsel %vm550, %v999, 0.0
  %v1030 = vadd.f32 %v1028, %v1029
  %v1031 = vrot.slane %v1030, 4
  %v1032 = vadd.f32 %v1030, %v1031
  %v1033 = vrot.slane %v1032, 2
  %v1034 = vadd.f32 %v1032, %v1033
  %v1035 = vrot.slane %v1034, 1
  %v1036 = vadd.f32 %v1034, %v1035
  %vm1037 = vcmask 1040384
  %v1038 = vsel %vm1037, %v983, %v1036
  %vm1039 = vcmask 517120
  %1040 = vst.msk [vmem:[%s3] sm:$0x3] %vm1039, %v1038
  // Predicated region
  $region10: #{encoder_forward.35} parent=0 // pred_check
    _
  $region11: #{encoder_forward.35} parent=0 // pred_check_branch
    %1042 = sbr.rel (0) target = $region13
  $region12: #{encoder_forward.35} parent=0 // pred_region
    _
  $region13: #{encoder_forward.35} parent=0 // pred_fallthru
    _
  // Predicated region
  $region14: #{encoder_forward.35} parent=0 // pred_check
    _
  $region15: #{encoder_forward.35} parent=0 // pred_check_branch
    %1044 = sbr.rel (0) target = $region17
  $region16: #{encoder_forward.35} parent=0 // pred_region
    _
  $region17: #{encoder_forward.35} parent=0 // pred_fallthru
    _
  // Predicated region
  $region18: #{encoder_forward.35} parent=0 // pred_check
    _
  $region19: #{encoder_forward.35} parent=0 // pred_check_branch
    %1046 = sbr.rel (0) target = $region21
  $region20: #{encoder_forward.35} parent=0 // pred_region
    _
  $region21: #{encoder_forward.35} parent=0 // pred_fallthru
    _
  // Predicated region
  $region22: #{encoder_forward.35} parent=0 // pred_check
    _
  $region23: #{encoder_forward.35} parent=0 // pred_check_branch
    %1048 = sbr.rel (0) target = $region25
  $region24: #{encoder_forward.35} parent=0 // pred_region
    _
  $region25: #{encoder_forward.35} parent=0 // pred_fallthru
    _

// kernel: encoder_forward.44
$region0: #{encoder_forward.44}
  #allocation0 [shape = 'u32[]', space=smem, size = 0x4, offset = 0x4, fixed_abs, tag = 'smem constant byte address 0x4 - core index']
  #allocation1 [shape = 'u32[144,128]{1,0:T(1,128)}', space=vmem, size = 0x12000, scoped, tag = 'internal scratch']
  %s0 = inlined_call_operand.vmem [shape: bf16[32,128], index: 0, kind: input, shape index: {}]
  %s1 = inlined_call_operand.vmem [shape: f32[1,128], index: 1, kind: input, shape index: {}]
  %s2 = inlined_call_operand.vmem [shape: f32[1,128], index: 2, kind: input, shape index: {}]
  %s3 = inlined_call_operand.vmem [shape: bf16[32,128], index: 3, kind: output, shape index: {}]
  %s4 = sld [smem:[#allocation0]]
  $region22: #{encoder_forward.44} parent=0
    _
  %s6 = ssub.s32 1, %s4
  %s7 = scalar_select 0, %s6, %s4
  // Predicated region
  $region2: #{encoder_forward.44} parent=0 // pred_check
    _
  $region3: #{encoder_forward.44} parent=0 // pred_check_branch
    %9 = sbr.rel (0) target = $region5
  $region4: #{encoder_forward.44} parent=0 // pred_region
    _
  $region5: #{encoder_forward.44} parent=0 // pred_fallthru
    _
  // Predicated region
  $region6: #{encoder_forward.44} parent=0 // pred_check
    _
  $region7: #{encoder_forward.44} parent=0 // pred_check_branch
    %11 = sbr.rel (0) target = $region9
  $region8: #{encoder_forward.44} parent=0 // pred_region
    _
  $region9: #{encoder_forward.44} parent=0 // pred_fallthru
    _
  // Predicated region
  $region10: #{encoder_forward.44} parent=0 // pred_check
    _
  $region11: #{encoder_forward.44} parent=0 // pred_check_branch
    %13 = sbr.rel (0) target = $region13
  $region12: #{encoder_forward.44} parent=0 // pred_region
    _
  $region13: #{encoder_forward.44} parent=0 // pred_fallthru
    _
  %v14 = vld [vmem:[%s0] sm:$0xf]
  %v15 = vld [vmem:[%s0 + $0x4] sm:$0xf]
  %v16 = vld [vmem:[%s0 + $0x8] sm:$0xf]
  %v17 = vld [vmem:[%s0 + $0xc] sm:$0xf]
  %v18 = vunpack.c.l.bf16 %v14
  %v19 = vunpack.c.l.bf16 %v15
  %v20 = vunpack.c.l.bf16 %v16
  %v21 = vunpack.c.l.bf16 %v17
  %v22 = vld [vmem:[%s1] sm:$0x1]
  %v24 = vlaneseq
  %v25 = vshrl.u32 %v24, 7
  %v26 = vsub.s32 0, %v25
  %v27 = vrot.slane %v22, %v26
  %v29 = vmul.f32 %v18, %v27
  %v30 = vmul.f32 %v19, %v27
  %v31 = vmul.f32 %v20, %v27
  %v32 = vmul.f32 %v21, %v27
  %v33 = vld [vmem:[%s2] sm:$0x1]
  %v35 = vlaneseq
  %v36 = vshrl.u32 %v35, 7
  %v37 = vsub.s32 0, %v36
  %v38 = vrot.slane %v33, %v37
  %v40 = vadd.f32 %v29, %v38
  %v41 = vadd.f32 %v30, %v38
  %v42 = vadd.f32 %v31, %v38
  %v43 = vadd.f32 %v32, %v38
  %v44 = vmax.f32 %v40, 0.0
  %v45 = vmax.f32 %v41, 0.0
  %v46 = vmax.f32 %v42, 0.0
  %v47 = vmax.f32 %v43, 0.0
  %v48 = vpack.c.bf16 %v45, %v44
  %v49 = vpack.c.bf16 %v47, %v46
  %v52 = vunpack.c.l.b16 %v48
  %v53 = vunpack.c.h.b16 %v48
  %v54 = vunpack.c.l.b16 %v49
  %v55 = vunpack.c.h.b16 %v49
  %v56 = vpack.c.b16 %v52, %v52
  %v57 = vpack.c.b16 %v53, %v53
  %v58 = vpack.c.b16 %v54, %v54
  %v59 = vpack.c.b16 %v55, %v55
  %64 = vst [vmem:[%s3] sm:$0xf] %v56
  %65 = vst [vmem:[%s3 + $0x4] sm:$0xf] %v57
  %66 = vst [vmem:[%s3 + $0x8] sm:$0xf] %v58
  %67 = vst [vmem:[%s3 + $0xc] sm:$0xf] %v59
  // Predicated region
  $region14: #{encoder_forward.44} parent=0 // pred_check
    _
  $region15: #{encoder_forward.44} parent=0 // pred_check_branch
    %69 = sbr.rel (0) target = $region17
  $region16: #{encoder_forward.44} parent=0 // pred_region
    _
  $region17: #{encoder_forward.44} parent=0 // pred_fallthru
    _
  // Predicated region
  $region18: #{encoder_forward.44} parent=0 // pred_check
    _
  $region19: #{encoder_forward.44} parent=0 // pred_check_branch
    %71 = sbr.rel (0) target = $region21
  $region20: #{encoder_forward.44} parent=0 // pred_region
    _
  $region21: #{encoder_forward.44} parent=0 // pred_fallthru
    _

// kernel: encoder_forward.43
$region0: #{encoder_forward.43}
  #allocation0 [shape = 'u32[]', space=smem, size = 0x4, offset = 0x4, fixed_abs, tag = 'smem constant byte address 0x4 - core index']
  #allocation1 [shape = 'u32[144,128]{1,0:T(1,128)}', space=vmem, size = 0x12000, scoped, tag = 'internal scratch']
  %s0 = inlined_call_operand.vmem [shape: bf16[32,576], index: 0, kind: input, shape index: {}]
  %s1 = inlined_call_operand.vmem [shape: bf16[576,128], index: 1, kind: input, shape index: {}]
  %s2 = inlined_call_operand.vmem [shape: bf16[32,128], index: 2, kind: output, shape index: {0}]
  %s3 = inlined_call_operand.vmem [shape: f32[1,2,128], index: 3, kind: output, shape index: {1}]
  %4 = xla_tuple %s2, %s3
  %s5 = sld [smem:[#allocation0]]
  $region26: #{encoder_forward.43} parent=0
    _
  %s7 = ssub.s32 1, %s5
  %s8 = scalar_select 0, %s7, %s5
  // Predicated region
  $region2: #{encoder_forward.43} parent=0 // pred_check
    _
  $region3: #{encoder_forward.43} parent=0 // pred_check_branch
    %10 = sbr.rel (0) target = $region5
  $region4: #{encoder_forward.43} parent=0 // pred_region
    _
  $region5: #{encoder_forward.43} parent=0 // pred_fallthru
    _
  // Predicated region
  $region6: #{encoder_forward.43} parent=0 // pred_check
    _
  $region7: #{encoder_forward.43} parent=0 // pred_check_branch
    %12 = sbr.rel (0) target = $region9
  $region8: #{encoder_forward.43} parent=0 // pred_region
    _
  $region9: #{encoder_forward.43} parent=0 // pred_fallthru
    _
  %v14 = vld [vmem:[%s0] sm:$0xff]
  %v15 = vld [vmem:[%s0 + $0x8] sm:$0xff]
  %v16 = vld [vmem:[%s0 + $0x10] sm:$0xf]
  %v17 = vld [vmem:[%s0 + $0x14] sm:$0xff]
  %v18 = vld [vmem:[%s0 + $0x1c] sm:$0xff]
  %v19 = vld [vmem:[%s0 + $0x24] sm:$0xf]
  %v20 = vld [vmem:[%s0 + $0x28] sm:$0xff]
  %v21 = vld [vmem:[%s0 + $0x30] sm:$0xff]
  %v22 = vld [vmem:[%s0 + $0x38] sm:$0xf]
  %v23 = vld [vmem:[%s0 + $0x3c] sm:$0xff]
  %v24 = vld [vmem:[%s0 + $0x44] sm:$0xff]
  %v25 = vld [vmem:[%s0 + $0x4c] sm:$0xf]
  %v26 = vld [vmem:[%s1] sm:$0xf]
  %v27 = vld [vmem:[%s1 + $0x4] sm:$0xf]
  %v28 = vld [vmem:[%s1 + $0x8] sm:$0xf]
  %v29 = vld [vmem:[%s1 + $0xc] sm:$0xf]
  %v30 = vld [vmem:[%s1 + $0x10] sm:$0xf]
  %v31 = vld [vmem:[%s1 + $0x14] sm:$0xf]
  %v32 = vld [vmem:[%s1 + $0x18] sm:$0xf]
  %v33 = vld [vmem:[%s1 + $0x1c] sm:$0xf]
  %v34 = vld [vmem:[%s1 + $0x20] sm:$0xf]
  %v35 = vld [vmem:[%s1 + $0x24] sm:$0xf]
  %v36 = vld [vmem:[%s1 + $0x28] sm:$0xf]
  %v37 = vld [vmem:[%s1 + $0x2c] sm:$0xf]
  %v38 = vld [vmem:[%s1 + $0x30] sm:$0xf]
  %v39 = vld [vmem:[%s1 + $0x34] sm:$0xf]
  %v40 = vld [vmem:[%s1 + $0x38] sm:$0xf]
  %v41 = vld [vmem:[%s1 + $0x3c] sm:$0xf]
  %v42 = vld [vmem:[%s1 + $0x40] sm:$0xf]
  %v43 = vld [vmem:[%s1 + $0x44] sm:$0xf]
  %v44 = vld [vmem:[%s1 + $0x48] sm:$0xf]
  %v45 = vld [vmem:[%s1 + $0x4c] sm:$0xf]
  %v46 = vld [vmem:[%s1 + $0x50] sm:$0xf]
  %v47 = vld [vmem:[%s1 + $0x54] sm:$0xf]
  %v48 = vld [vmem:[%s1 + $0x58] sm:$0xf]
  %v49 = vld [vmem:[%s1 + $0x5c] sm:$0xf]
  %v50 = vld [vmem:[%s1 + $0x60] sm:$0xf]
  %v51 = vld [vmem:[%s1 + $0x64] sm:$0xf]
  %v52 = vld [vmem:[%s1 + $0x68] sm:$0xf]
  %v53 = vld [vmem:[%s1 + $0x6c] sm:$0xf]
  %v54 = vld [vmem:[%s1 + $0x70] sm:$0xf]
  %v55 = vld [vmem:[%s1 + $0x74] sm:$0xf]
  %v56 = vld [vmem:[%s1 + $0x78] sm:$0xf]
  %v57 = vld [vmem:[%s1 + $0x7c] sm:$0xf]
  %v58 = vld [vmem:[%s1 + $0x80] sm:$0xf]
  %v59 = vld [vmem:[%s1 + $0x84] sm:$0xf]
  %v60 = vld [vmem:[%s1 + $0x88] sm:$0xf]
  %v61 = vld [vmem:[%s1 + $0x8c] sm:$0xf]
  %v62 = vld [vmem:[%s1 + $0x90] sm:$0xf]
  %v63 = vld [vmem:[%s1 + $0x94] sm:$0xf]
  %v64 = vld [vmem:[%s1 + $0x98] sm:$0xf]
  %v65 = vld [vmem:[%s1 + $0x9c] sm:$0xf]
  %v66 = vld [vmem:[%s1 + $0xa0] sm:$0xf]
  %v67 = vld [vmem:[%s1 + $0xa4] sm:$0xf]
  %v68 = vld [vmem:[%s1 + $0xa8] sm:$0xf]
  %v69 = vld [vmem:[%s1 + $0xac] sm:$0xf]
  %v70 = vld [vmem:[%s1 + $0xb0] sm:$0xf]
  %v71 = vld [vmem:[%s1 + $0xb4] sm:$0xf]
  %v72 = vld [vmem:[%s1 + $0xb8] sm:$0xf]
  %v73 = vld [vmem:[%s1 + $0xbc] sm:$0xf]
  %v74 = vld [vmem:[%s1 + $0xc0] sm:$0xf]
  %v75 = vld [vmem:[%s1 + $0xc4] sm:$0xf]
  %v76 = vld [vmem:[%s1 + $0xc8] sm:$0xf]
  %v77 = vld [vmem:[%s1 + $0xcc] sm:$0xf]
  %v78 = vld [vmem:[%s1 + $0xd0] sm:$0xf]
  %v79 = vld [vmem:[%s1 + $0xd4] sm:$0xf]
  %v80 = vld [vmem:[%s1 + $0xd8] sm:$0xf]
  %v81 = vld [vmem:[%s1 + $0xdc] sm:$0xf]
  %v82 = vld [vmem:[%s1 + $0xe0] sm:$0xf]
  %v83 = vld [vmem:[%s1 + $0xe4] sm:$0xf]
  %v84 = vld [vmem:[%s1 + $0xe8] sm:$0xf]
  %v85 = vld [vmem:[%s1 + $0xec] sm:$0xf]
  %v86 = vld [vmem:[%s1 + $0xf0] sm:$0xf]
  %v87 = vld [vmem:[%s1 + $0xf4] sm:$0xf]
  %v88 = vld [vmem:[%s1 + $0xf8] sm:$0xf]
  %v89 = vld [vmem:[%s1 + $0xfc] sm:$0xf]
  %v90 = vld [vmem:[%s1 + $0x100] sm:$0xf]
  %v91 = vld [vmem:[%s1 + $0x104] sm:$0xf]
  %v92 = vld [vmem:[%s1 + $0x108] sm:$0xf]
  %v93 = vld [vmem:[%s1 + $0x10c] sm:$0xf]
  %v94 = vld [vmem:[%s1 + $0x110] sm:$0xf]
  %v95 = vld [vmem:[%s1 + $0x114] sm:$0xf]
  %v96 = vld [vmem:[%s1 + $0x118] sm:$0xf]
  %v97 = vld [vmem:[%s1 + $0x11c] sm:$0xf]
  %v110 = vunpack.c.l.b16 %v14
  %v111 = vunpack.c.h.b16 %v14
  %v112 = vunpack.c.l.b16 %v15
  %v113 = vunpack.c.h.b16 %v15
  %v114 = vunpack.c.l.b16 %v16
  %v115 = vunpack.c.l.b16 %v17
  %v116 = vunpack.c.h.b16 %v17
  %v117 = vunpack.c.l.b16 %v18
  %v118 = vunpack.c.h.b16 %v18
  %v119 = vunpack.c.l.b16 %v19
  %v120 = vunpack.c.l.b16 %v20
  %v121 = vunpack.c.h.b16 %v20
  %v122 = vunpack.c.l.b16 %v21
  %v123 = vunpack.c.h.b16 %v21
  %v124 = vunpack.c.l.b16 %v22
  %v125 = vunpack.c.l.b16 %v23
  %v126 = vunpack.c.h.b16 %v23
  %v127 = vunpack.c.l.b16 %v24
  %v128 = vunpack.c.h.b16 %v24
  %v129 = vunpack.c.l.b16 %v25
  %v130 = vpack.c.b16 %v115, %v110
  %v131 = vpack.c.b16 %v116, %v111
  %v132 = vpack.c.b16 %v117, %v112
  %v133 = vpack.c.b16 %v118, %v113
  %v134 = vpack.c.b16 %v119, %v114
  %v135 = vpack.c.b16 %v125, %v120
  %v136 = vpack.c.b16 %v126, %v121
  %v137 = vpack.c.b16 %v127, %v122
  %v138 = vpack.c.b16 %v128, %v123
  %v139 = vpack.c.b16 %v129, %v124
  %v220 = vunpack.c.l.b16 %v26
  %v221 = vunpack.c.l.b16 %v27
  %v222 = vunpack.c.l.b16 %v28
  %v223 = vunpack.c.l.b16 %v29
  %v224 = vunpack.c.l.b16 %v30
  %v225 = vunpack.c.l.b16 %v31
  %v226 = vunpack.c.l.b16 %v32
  %v227 = vunpack.c.l.b16 %v33
  %v228 = vunpack.c.l.b16 %v34
  %v229 = vunpack.c.l.b16 %v35
  %v230 = vunpack.c.l.b16 %v36
  %v231 = vunpack.c.l.b16 %v37
  %v232 = vunpack.c.l.b16 %v38
  %v233 = vunpack.c.l.b16 %v39
  %v234 = vunpack.c.l.b16 %v40
  %v235 = vunpack.c.l.b16 %v41
  %v236 = vunpack.c.l.b16 %v42
  %v237 = vunpack.c.l.b16 %v43
  %v238 = vunpack.c.l.b16 %v44
  %v239 = vunpack.c.l.b16 %v45
  %v240 = vunpack.c.l.b16 %v46
  %v241 = vunpack.c.l.b16 %v47
  %v242 = vunpack.c.l.b16 %v48
  %v243 = vunpack.c.l.b16 %v49
  %v244 = vunpack.c.l.b16 %v50
  %v245 = vunpack.c.l.b16 %v51
  %v246 = vunpack.c.l.b16 %v52
  %v247 = vunpack.c.l.b16 %v53
  %v248 = vunpack.c.l.b16 %v54
  %v249 = vunpack.c.l.b16 %v55
  %v250 = vunpack.c.l.b16 %v56
  %v251 = vunpack.c.l.b16 %v57
  %v252 = vunpack.c.l.b16 %v58
  %v253 = vunpack.c.l.b16 %v59
  %v254 = vunpack.c.l.b16 %v60
  %v255 = vunpack.c.l.b16 %v61
  %v256 = vunpack.c.l.b16 %v62
  %v257 = vunpack.c.l.b16 %v63
  %v258 = vunpack.c.l.b16 %v64
  %v259 = vunpack.c.l.b16 %v65
  %v260 = vunpack.c.l.b16 %v66
  %v261 = vunpack.c.l.b16 %v67
  %v262 = vunpack.c.l.b16 %v68
  %v263 = vunpack.c.l.b16 %v69
  %v264 = vunpack.c.l.b16 %v70
  %v265 = vunpack.c.l.b16 %v71
  %v266 = vunpack.c.l.b16 %v72
  %v267 = vunpack.c.l.b16 %v73
  %v268 = vunpack.c.l.b16 %v74
  %v269 = vunpack.c.l.b16 %v75
  %v270 = vunpack.c.l.b16 %v76
  %v271 = vunpack.c.l.b16 %v77
  %v272 = vunpack.c.l.b16 %v78
  %v273 = vunpack.c.l.b16 %v79
  %v274 = vunpack.c.l.b16 %v80
  %v275 = vunpack.c.l.b16 %v81
  %v276 = vunpack.c.l.b16 %v82
  %v277 = vunpack.c.l.b16 %v83
  %v278 = vunpack.c.l.b16 %v84
  %v279 = vunpack.c.l.b16 %v85
  %v280 = vunpack.c.l.b16 %v86
  %v281 = vunpack.c.l.b16 %v87
  %v282 = vunpack.c.l.b16 %v88
  %v283 = vunpack.c.l.b16 %v89
  %v284 = vunpack.c.l.b16 %v90
  %v285 = vunpack.c.l.b16 %v91
  %v286 = vunpack.c.l.b16 %v92
  %v287 = vunpack.c.l.b16 %v93
  %v288 = vunpack.c.l.b16 %v94
  %v289 = vunpack.c.l.b16 %v95
  %v290 = vunpack.c.l.b16 %v96
  %v291 = vunpack.c.l.b16 %v97
  %v292 = vpack.c.b16 %v221, %v220
  %v293 = vpack.c.b16 %v223, %v222
  %v294 = vpack.c.b16 %v225, %v224
  %v295 = vpack.c.b16 %v227, %v226
  %v296 = vpack.c.b16 %v229, %v228
  %v297 = vpack.c.b16 %v231, %v230
  %v298 = vpack.c.b16 %v233, %v232
  %v299 = vpack.c.b16 %v235, %v234
  %v300 = vpack.c.b16 %v237, %v236
  %v301 = vpack.c.b16 %v239, %v238
  %v302 = vpack.c.b16 %v241, %v240
  %v303 = vpack.c.b16 %v243, %v242
  %v304 = vpack.c.b16 %v245, %v244
  %v305 = vpack.c.b16 %v247, %v246
  %v306 = vpack.c.b16 %v249, %v248
  %v307 = vpack.c.b16 %v251, %v250
  %v308 = vpack.c.b16 %v253, %v252
  %v309 = vpack.c.b16 %v255, %v254
  %v310 = vpack.c.b16 %v257, %v256
  %v311 = vpack.c.b16 %v259, %v258
  %v312 = vpack.c.b16 %v261, %v260
  %v313 = vpack.c.b16 %v263, %v262
  %v314 = vpack.c.b16 %v265, %v264
  %v315 = vpack.c.b16 %v267, %v266
  %v316 = vpack.c.b16 %v269, %v268
  %v317 = vpack.c.b16 %v271, %v270
  %v318 = vpack.c.b16 %v273, %v272
  %v319 = vpack.c.b16 %v275, %v274
  %v320 = vpack.c.b16 %v277, %v276
  %v321 = vpack.c.b16 %v279, %v278
  %v322 = vpack.c.b16 %v281, %v280
  %v323 = vpack.c.b16 %v283, %v282
  %v324 = vpack.c.b16 %v285, %v284
  %v325 = vpack.c.b16 %v287, %v286
  %v326 = vpack.c.b16 %v289, %v288
  %v327 = vpack.c.b16 %v291, %v290
  %vm364 = vcmask 523264
  %v366 = vsel %vm364, %v134, 0
  %v369 = vsel %vm364, %v139, 0
  %371 = vmatprep.subr.bf16.mxu0 0
  %372 = vmatpush1.bf16.msra.mxu0 %v292
  %373 = vmatprep.subr.bf16.mxu0 0
  %374 = vmatpush1.bf16.msra.mxu0 %v293
  %375 = vmatprep.subr.bf16.mxu0 0
  %376 = vmatpush1.bf16.msra.mxu0 %v294
  %377 = vmatprep.subr.bf16.mxu0 0
  %378 = vmatpush1.bf16.msra.mxu0 %v295
  %379 = vmatprep.subr.bf16.mxu0 0
  %380 = vmatpush1.bf16.msra.mxu0 %v296
  %381 = vmatprep.subr.bf16.mxu0 0
  %382 = vmatpush1.bf16.msra.mxu0 %v297
  %383 = vmatprep.subr.bf16.mxu0 0
  %384 = vmatpush1.bf16.msra.mxu0 %v298
  %385 = vmatprep.subr.bf16.mxu0 0
  %386 = vmatpush1.bf16.msra.mxu0 %v299
  %387 = vmatprep.subr.bf16.mxu0 0
  %388 = vmatpush1.bf16.msra.mxu0 %v300
  %389 = vmatprep.subr.bf16.mxu0 0
  %390 = vmatpush1.bf16.msra.mxu0 %v301
  %391 = vmatprep.subr.bf16.mxu0 0
  %392 = vmatpush1.bf16.msra.mxu0 %v302
  %393 = vmatprep.subr.bf16.mxu0 0
  %394 = vmatpush1.bf16.msra.mxu0 %v303
  %395 = vmatprep.subr.bf16.mxu0 0
  %396 = vmatpush1.bf16.msra.mxu0 %v304
  %397 = vmatprep.subr.bf16.mxu0 0
  %398 = vmatpush1.bf16.msra.mxu0 %v305
  %399 = vmatprep.subr.bf16.mxu0 0
  %400 = vmatpush1.bf16.msra.mxu0 %v306
  %401 = vmatprep.subr.bf16.mxu0 0
  %402 = vmatpush1.bf16.msra.mxu0 %v307
  %403 = vmatprep.mubr.bf16.mxu0 %v131
  %404 = vmatmul.mubr.bf16.gmra.mrb[0].mxu0 %v130
  %v405 = vpop.f32.mrb[0].mxu0
  %v406 = vadd.f32 0.0, %v405
  %v407 = vpop.f32.mrb[0].mxu0
  %v408 = vpop.f32.mrb[0].mxu0
  %v409 = vadd.f32 0.0, %v408
  %v410 = vpop.f32.mrb[0].mxu0
  %411 = vmatprep.mubr.bf16.mxu0 %v136
  %412 = vmatmul.mubr.bf16.gmra.mrb[0].mxu0 %v135
  %v413 = vpop.f32.mrb[0].mxu0
  %v414 = vadd.f32 0.0, %v413
  %v415 = vpop.f32.mrb[0].mxu0
  %v416 = vpop.f32.mrb[0].mxu0
  %v417 = vadd.f32 0.0, %v416
  %v418 = vpop.f32.mrb[0].mxu0
  %419 = vdwg.mxu0
  %420 = vmatprep.subr.bf16.mxu0 0
  %421 = vmatpush1.bf16.msra.mxu0 %v308
  %422 = vmatprep.subr.bf16.mxu0 0
  %423 = vmatpush1.bf16.msra.mxu0 %v309
  %424 = vmatprep.subr.bf16.mxu0 0
  %425 = vmatpush1.bf16.msra.mxu0 %v310
  %426 = vmatprep.subr.bf16.mxu0 0
  %427 = vmatpush1.bf16.msra.mxu0 %v311
  %428 = vmatprep.subr.bf16.mxu0 0
  %429 = vmatpush1.bf16.msra.mxu0 %v312
  %430 = vmatprep.subr.bf16.mxu0 0
  %431 = vmatpush1.bf16.msra.mxu0 %v313
  %432 = vmatprep.subr.bf16.mxu0 0
  %433 = vmatpush1.bf16.msra.mxu0 %v314
  %434 = vmatprep.subr.bf16.mxu0 0
  %435 = vmatpush1.bf16.msra.mxu0 %v315
  %436 = vmatprep.subr.bf16.mxu0 0
  %437 = vmatpush1.bf16.msra.mxu0 %v316
  %438 = vmatprep.subr.bf16.mxu0 0
  %439 = vmatpush1.bf16.msra.mxu0 %v317
  %440 = vmatprep.subr.bf16.mxu0 0
  %441 = vmatpush1.bf16.msra.mxu0 %v318
  %442 = vmatprep.subr.bf16.mxu0 0
  %443 = vmatpush1.bf16.msra.mxu0 %v319
  %444 = vmatprep.subr.bf16.mxu0 0
  %445 = vmatpush1.bf16.msra.mxu0 %v320
  %446 = vmatprep.subr.bf16.mxu0 0
  %447 = vmatpush1.bf16.msra.mxu0 %v321
  %448 = vmatprep.subr.bf16.mxu0 0
  %449 = vmatpush1.bf16.msra.mxu0 %v322
  %450 = vmatprep.subr.bf16.mxu0 0
  %451 = vmatpush1.bf16.msra.mxu0 %v323
  %452 = vmatprep.mubr.bf16.mxu0 %v133
  %453 = vmatmul.mubr.bf16.gmra.mrb[0].mxu0 %v132
  %v454 = vpop.f32.mrb[0].mxu0
  %v455 = vadd.f32 %v406, %v454
  %v456 = vpop.f32.mrb[0].mxu0
  %v457 = vpop.f32.mrb[0].mxu0
  %v458 = vadd.f32 %v409, %v457
  %v459 = vpop.f32.mrb[0].mxu0
  %460 = vmatprep.mubr.bf16.mxu0 %v138
  %461 = vmatmul.mubr.bf16.gmra.mrb[0].mxu0 %v137
  %v462 = vpop.f32.mrb[0].mxu0
  %v463 = vadd.f32 %v414, %v462
  %v464 = vpop.f32.mrb[0].mxu0
  %v465 = vpop.f32.mrb[0].mxu0
  %v466 = vadd.f32 %v417, %v465
  %v467 = vpop.f32.mrb[0].mxu0
  %468 = vdwg.mxu0
  %469 = vmatprep.subr.bf16.mxu0 0
  %470 = vmatpush1.bf16.msra.mxu0 %v324
  %471 = vmatprep.subr.bf16.mxu0 0
  %472 = vmatpush1.bf16.msra.mxu0 %v325
  %473 = vmatprep.subr.bf16.mxu0 0
  %474 = vmatpush1.bf16.msra.mxu0 %v326
  %475 = vmatprep.subr.bf16.mxu0 0
  %476 = vmatpush1.bf16.msra.mxu0 %v327
  %477 = vmatprep.subr.bf16.mxu0 0
  %478 = vmatpush1.bf16.msra.mxu0 0
  %479 = vmatprep.subr.bf16.mxu0 0
  %480 = vmatpush1.bf16.msra.mxu0 0
  %481 = vmatprep.subr.bf16.mxu0 0
  %482 = vmatpush1.bf16.msra.mxu0 0
  %483 = vmatprep.subr.bf16.mxu0 0
  %484 = vmatpush1.bf16.msra.mxu0 0
  %485 = vmatprep.subr.bf16.mxu0 0
  %486 = vmatpush1.bf16.msra.mxu0 0
  %487 = vmatprep.subr.bf16.mxu0 0
  %488 = vmatpush1.bf16.msra.mxu0 0
  %489 = vmatprep.subr.bf16.mxu0 0
  %490 = vmatpush1.bf16.msra.mxu0 0
  %491 = vmatprep.subr.bf16.mxu0 0
  %492 = vmatpush1.bf16.msra.mxu0 0
  %493 = vmatprep.subr.bf16.mxu0 0
  %494 = vmatpush1.bf16.msra.mxu0 0
  %495 = vmatprep.subr.bf16.mxu0 0
  %496 = vmatpush1.bf16.msra.mxu0 0
  %497 = vmatprep.subr.bf16.mxu0 0
  %498 = vmatpush1.bf16.msra.mxu0 0
  %499 = vmatprep.subr.bf16.mxu0 0
  %500 = vmatpush1.bf16.msra.mxu0 0
  %501 = vmatprep.mubr.bf16.mxu0 0
  %502 = vmatmul.mubr.bf16.gmra.mrb[0].mxu0 %v366
  %v503 = vpop.f32.mrb[0].mxu0
  %v504 = vadd.f32 %v455, %v503
  %v505 = vpop.f32.mrb[0].mxu0
  %v506 = vpop.f32.mrb[0].mxu0
  %v507 = vadd.f32 %v458, %v506
  %v508 = vpop.f32.mrb[0].mxu0
  %509 = vmatprep.mubr.bf16.mxu0 0
  %510 = vmatmul.mubr.bf16.gmra.mrb[0].mxu0 %v369
  %v511 = vpop.f32.mrb[0].mxu0
  %v512 = vadd.f32 %v463, %v511
  %v513 = vpop.f32.mrb[0].mxu0
  %v514 = vpop.f32.mrb[0].mxu0
  %v515 = vadd.f32 %v466, %v514
  %v516 = vpop.f32.mrb[0].mxu0
  %517 = vdwg.mxu0
  %v518 = vpack.c.bf16 %v507, %v504
  %v519 = vpack.c.bf16 %v515, %v512
  %v522 = vunpack.c.l.b16 %v518
  %v523 = vunpack.c.h.b16 %v518
  %v524 = vunpack.c.l.b16 %v519
  %v525 = vunpack.c.h.b16 %v519
  %v526 = vpack.c.b16 %v522, %v522
  %v527 = vpack.c.b16 %v523, %v523
  %v528 = vpack.c.b16 %v524, %v524
  %v529 = vpack.c.b16 %v525, %v525
  %534 = vst [vmem:[%s2] sm:$0xf] %v526
  %535 = vst [vmem:[%s2 + $0x4] sm:$0xf] %v527
  %536 = vst [vmem:[%s2 + $0x8] sm:$0xf] %v528
  %537 = vst [vmem:[%s2 + $0xc] sm:$0xf] %v529
  %v538 = vadd.f32 %v504, %v507
  %v539 = vadd.f32 %v538, %v512
  %v540 = vadd.f32 %v539, %v515
  %v541 = vrot.slane %v540, 4
  %v542 = vadd.f32 %v540, %v541
  %v543 = vrot.slane %v542, 2
  %v544 = vadd.f32 %v542, %v543
  %v545 = vrot.slane %v544, 1
  %v546 = vadd.f32 %v544, %v545
  %v547 = vmul.f32 %v504, %v504
  %v548 = vmul.f32 %v507, %v507
  %v549 = vmul.f32 %v512, %v512
  %v550 = vmul.f32 %v515, %v515
  %v551 = vadd.f32 %v547, %v548
  %v552 = vadd.f32 %v551, %v549
  %v553 = vadd.f32 %v552, %v550
  %v554 = vrot.slane %v553, 4
  %v555 = vadd.f32 %v553, %v554
  %v556 = vrot.slane %v555, 2
  %v557 = vadd.f32 %v555, %v556
  %v558 = vrot.slane %v557, 1
  %v559 = vadd.f32 %v557, %v558
  %vm560 = vcmask 1040384
  %v561 = vsel %vm560, %v546, %v559
  %562 = vst [vmem:[%s3] sm:$0x3] %v561
  // Predicated region
  $region10: #{encoder_forward.43} parent=0 // pred_check
    _
  $region11: #{encoder_forward.43} parent=0 // pred_check_branch
    %564 = sbr.rel (0) target = $region13
  $region12: #{encoder_forward.43} parent=0 // pred_region
    _
  $region13: #{encoder_forward.43} parent=0 // pred_fallthru
    _
  // Predicated region
  $region14: #{encoder_forward.43} parent=0 // pred_check
    _
  $region15: #{encoder_forward.43} parent=0 // pred_check_branch
    %566 = sbr.rel (0) target = $region17
  $region16: #{encoder_forward.43} parent=0 // pred_region
    _
  $region17: #{encoder_forward.43} parent=0 // pred_fallthru
    _
  // Predicated region
  $region18: #{encoder_forward.43} parent=0 // pred_check
    _
  $region19: #{encoder_forward.43} parent=0 // pred_check_branch
    %568 = sbr.rel (0) target = $region21
  $region20: #{encoder_forward.43} parent=0 // pred_region
    _
  $region21: #{encoder_forward.43} parent=0 // pred_fallthru
    _
  // Predicated region
  $region22: #{encoder_forward.43} parent=0 // pred_check
    _
  $region23: #{encoder_forward.43} parent=0 // pred_check_branch
    %570 = sbr.rel (0) target = $region25
  $region24: #{encoder_forward.43} parent=0 // pred_region
    _
  $region25: #{encoder_forward.43} parent=0 // pred_fallthru
    _

// kernel: encoder_forward.45
$region0: #{encoder_forward.45}
  #allocation0 [shape = 'u32[]', space=smem, size = 0x4, offset = 0x4, fixed_abs, tag = 'smem constant byte address 0x4 - core index']
  #allocation1 [shape = 'u32[144,128]{1,0:T(1,128)}', space=vmem, size = 0x12000, scoped, tag = 'internal scratch']
  %s0 = inlined_call_operand.vmem [shape: bf16[32,64], index: 0, kind: input, shape index: {}]
  %s1 = inlined_call_operand.vmem [shape: bf16[64,128], index: 1, kind: input, shape index: {}]
  %s2 = inlined_call_operand.vmem [shape: bf16[32,128], index: 2, kind: output, shape index: {0}]
  %s3 = inlined_call_operand.vmem [shape: f32[1,2,128], index: 3, kind: output, shape index: {1}]
  %4 = xla_tuple %s2, %s3
  %s5 = sld [smem:[#allocation0]]
  $region26: #{encoder_forward.45} parent=0
    _
  %s7 = ssub.s32 1, %s5
  %s8 = scalar_select 0, %s7, %s5
  // Predicated region
  $region2: #{encoder_forward.45} parent=0 // pred_check
    _
  $region3: #{encoder_forward.45} parent=0 // pred_check_branch
    %10 = sbr.rel (0) target = $region5
  $region4: #{encoder_forward.45} parent=0 // pred_region
    _
  $region5: #{encoder_forward.45} parent=0 // pred_fallthru
    _
  // Predicated region
  $region6: #{encoder_forward.45} parent=0 // pred_check
    _
  $region7: #{encoder_forward.45} parent=0 // pred_check_branch
    %12 = sbr.rel (0) target = $region9
  $region8: #{encoder_forward.45} parent=0 // pred_region
    _
  $region9: #{encoder_forward.45} parent=0 // pred_fallthru
    _
  %v14 = vld [vmem:[%s0] sm:$0xf]
  %v15 = vld [vmem:[%s0 + $0x4] sm:$0xf]
  %v16 = vld [vmem:[%s0 + $0x8] sm:$0xf]
  %v17 = vld [vmem:[%s0 + $0xc] sm:$0xf]
  %v18 = vld [vmem:[%s1] sm:$0xf]
  %v19 = vld [vmem:[%s1 + $0x4] sm:$0xf]
  %v20 = vld [vmem:[%s1 + $0x8] sm:$0xf]
  %v21 = vld [vmem:[%s1 + $0xc] sm:$0xf]
  %v22 = vld [vmem:[%s1 + $0x10] sm:$0xf]
  %v23 = vld [vmem:[%s1 + $0x14] sm:$0xf]
  %v24 = vld [vmem:[%s1 + $0x18] sm:$0xf]
  %v25 = vld [vmem:[%s1 + $0x1c] sm:$0xf]
  %v30 = vunpack.c.l.b16 %v14
  %v31 = vunpack.c.l.b16 %v15
  %v32 = vunpack.c.l.b16 %v16
  %v33 = vunpack.c.l.b16 %v17
  %v34 = vpack.c.b16 %v31, %v30
  %v35 = vpack.c.b16 %v33, %v32
  %v44 = vunpack.c.l.b16 %v18
  %v45 = vunpack.c.l.b16 %v19
  %v46 = vunpack.c.l.b16 %v20
  %v47 = vunpack.c.l.b16 %v21
  %v48 = vunpack.c.l.b16 %v22
  %v49 = vunpack.c.l.b16 %v23
  %v50 = vunpack.c.l.b16 %v24
  %v51 = vunpack.c.l.b16 %v25
  %v52 = vpack.c.b16 %v45, %v44
  %v53 = vpack.c.b16 %v47, %v46
  %v54 = vpack.c.b16 %v49, %v48
  %v55 = vpack.c.b16 %v51, %v50
  %vm60 = vcmask 523264
  %v62 = vsel %vm60, %v34, 0
  %v65 = vsel %vm60, %v35, 0
  %67 = vmatprep.subr.bf16.mxu0 0
  %68 = vmatpush1.bf16.msra.mxu0 %v52
  %69 = vmatprep.subr.bf16.mxu0 0
  %70 = vmatpush1.bf16.msra.mxu0 %v53
  %71 = vmatprep.subr.bf16.mxu0 0
  %72 = vmatpush1.bf16.msra.mxu0 %v54
  %73 = vmatprep.subr.bf16.mxu0 0
  %74 = vmatpush1.bf16.msra.mxu0 %v55
  %75 = vmatprep.subr.bf16.mxu0 0
  %76 = vmatpush1.bf16.msra.mxu0 0
  %77 = vmatprep.subr.bf16.mxu0 0
  %78 = vmatpush1.bf16.msra.mxu0 0
  %79 = vmatprep.subr.bf16.mxu0 0
  %80 = vmatpush1.bf16.msra.mxu0 0
  %81 = vmatprep.subr.bf16.mxu0 0
  %82 = vmatpush1.bf16.msra.mxu0 0
  %83 = vmatprep.subr.bf16.mxu0 0
  %84 = vmatpush1.bf16.msra.mxu0 0
  %85 = vmatprep.subr.bf16.mxu0 0
  %86 = vmatpush1.bf16.msra.mxu0 0
  %87 = vmatprep.subr.bf16.mxu0 0
  %88 = vmatpush1.bf16.msra.mxu0 0
  %89 = vmatprep.subr.bf16.mxu0 0
  %90 = vmatpush1.bf16.msra.mxu0 0
  %91 = vmatprep.subr.bf16.mxu0 0
  %92 = vmatpush1.bf16.msra.mxu0 0
  %93 = vmatprep.subr.bf16.mxu0 0
  %94 = vmatpush1.bf16.msra.mxu0 0
  %95 = vmatprep.subr.bf16.mxu0 0
  %96 = vmatpush1.bf16.msra.mxu0 0
  %97 = vmatprep.subr.bf16.mxu0 0
  %98 = vmatpush1.bf16.msra.mxu0 0
  %99 = vmatprep.mubr.bf16.mxu0 0
  %100 = vmatmul.mubr.bf16.gmra.mrb[0].mxu0 %v62
  %v101 = vpop.f32.mrb[0].mxu0
  %v102 = vadd.f32 0.0, %v101
  %v103 = vpop.f32.mrb[0].mxu0
  %v104 = vpop.f32.mrb[0].mxu0
  %v105 = vadd.f32 0.0, %v104
  %v106 = vpop.f32.mrb[0].mxu0
  %107 = vmatprep.mubr.bf16.mxu0 0
  %108 = vmatmul.mubr.bf16.gmra.mrb[0].mxu0 %v65
  %v109 = vpop.f32.mrb[0].mxu0
  %v110 = vadd.f32 0.0, %v109
  %v111 = vpop.f32.mrb[0].mxu0
  %v112 = vpop.f32.mrb[0].mxu0
  %v113 = vadd.f32 0.0, %v112
  %v114 = vpop.f32.mrb[0].mxu0
  %115 = vdwg.mxu0
  %v116 = vpack.c.bf16 %v105, %v102
  %v117 = vpack.c.bf16 %v113, %v110
  %v120 = vunpack.c.l.b16 %v116
  %v121 = vunpack.c.h.b16 %v116
  %v122 = vunpack.c.l.b16 %v117
  %v123 = vunpack.c.h.b16 %v117
  %v124 = vpack.c.b16 %v120, %v120
  %v125 = vpack.c.b16 %v121, %v121
  %v126 = vpack.c.b16 %v122, %v122
  %v127 = vpack.c.b16 %v123, %v123
  %132 = vst [vmem:[%s2] sm:$0xf] %v124
  %133 = vst [vmem:[%s2 + $0x4] sm:$0xf] %v125
  %134 = vst [vmem:[%s2 + $0x8] sm:$0xf] %v126
  %135 = vst [vmem:[%s2 + $0xc] sm:$0xf] %v127
  %v136 = vadd.f32 %v102, %v105
  %v137 = vadd.f32 %v136, %v110
  %v138 = vadd.f32 %v137, %v113
  %v139 = vrot.slane %v138, 4
  %v140 = vadd.f32 %v138, %v139
  %v141 = vrot.slane %v140, 2
  %v142 = vadd.f32 %v140, %v141
  %v143 = vrot.slane %v142, 1
  %v144 = vadd.f32 %v142, %v143
  %v145 = vmul.f32 %v102, %v102
  %v146 = vmul.f32 %v105, %v105
  %v147 = vmul.f32 %v110, %v110
  %v148 = vmul.f32 %v113, %v113
  %v149 = vadd.f32 %v145, %v146
  %v150 = vadd.f32 %v149, %v147
  %v151 = vadd.f32 %v150, %v148
  %v152 = vrot.slane %v151, 4
  %v153 = vadd.f32 %v151, %v152
  %v154 = vrot.slane %v153, 2
  %v155 = vadd.f32 %v153, %v154
  %v156 = vrot.slane %v155, 1
  %v157 = vadd.f32 %v155, %v156
  %vm158 = vcmask 1040384
  %v159 = vsel %vm158, %v144, %v157
  %160 = vst [vmem:[%s3] sm:$0x3] %v159
  // Predicated region
  $region10: #{encoder_forward.45} parent=0 // pred_check
    _
  $region11: #{encoder_forward.45} parent=0 // pred_check_branch
    %162 = sbr.rel (0) target = $region13
  $region12: #{encoder_forward.45} parent=0 // pred_region
    _
  $region13: #{encoder_forward.45} parent=0 // pred_fallthru
    _
  // Predicated region
  $region14: #{encoder_forward.45} parent=0 // pred_check
    _
  $region15: #{encoder_forward.45} parent=0 // pred_check_branch
    %164 = sbr.rel (0) target = $region17
  $region16: #{encoder_forward.45} parent=0 // pred_region
    _
  $region17: #{encoder_forward.45} parent=0 // pred_fallthru
    _
  // Predicated region
  $region18: #{encoder_forward.45} parent=0 // pred_check
    _
  $region19: #{encoder_forward.45} parent=0 // pred_check_branch
    %166 = sbr.rel (0) target = $region21
  $region20: #{encoder_forward.45} parent=0 // pred_region
    _
  $region21: #{encoder_forward.45} parent=0 // pred_fallthru
    _
  // Predicated region
  $region22: #{encoder_forward.45} parent=0 // pred_check
    _
  $region23: #{encoder_forward.45} parent=0 // pred_check_branch
    %168 = sbr.rel (0) target = $region25
  $region24: #{encoder_forward.45} parent=0 // pred_region
    _
  $region25: #{encoder_forward.45} parent=0 // pred_fallthru
    _

// kernel: encoder_forward.46
$region0: #{encoder_forward.46}
  #allocation0 [shape = 'u32[]', space=smem, size = 0x4, offset = 0x4, fixed_abs, tag = 'smem constant byte address 0x4 - core index']
  #allocation1 [shape = 'u32[144,128]{1,0:T(1,128)}', space=vmem, size = 0x12000, scoped, tag = 'internal scratch']
  %s0 = inlined_call_operand.vmem [shape: bf16[32,128], index: 0, kind: input, shape index: {}]
  %s1 = inlined_call_operand.vmem [shape: f32[1,128], index: 1, kind: input, shape index: {}]
  %s2 = inlined_call_operand.vmem [shape: f32[1,128], index: 2, kind: input, shape index: {}]
  %s3 = inlined_call_operand.vmem [shape: bf16[32,128], index: 3, kind: output, shape index: {}]
  %s4 = sld [smem:[#allocation0]]
  $region22: #{encoder_forward.46} parent=0
    _
  %s6 = ssub.s32 1, %s4
  %s7 = scalar_select 0, %s6, %s4
  // Predicated region
  $region2: #{encoder_forward.46} parent=0 // pred_check
    _
  $region3: #{encoder_forward.46} parent=0 // pred_check_branch
    %9 = sbr.rel (0) target = $region5
  $region4: #{encoder_forward.46} parent=0 // pred_region
    _
  $region5: #{encoder_forward.46} parent=0 // pred_fallthru
    _
  // Predicated region
  $region6: #{encoder_forward.46} parent=0 // pred_check
    _
  $region7: #{encoder_forward.46} parent=0 // pred_check_branch
    %11 = sbr.rel (0) target = $region9
  $region8: #{encoder_forward.46} parent=0 // pred_region
    _
  $region9: #{encoder_forward.46} parent=0 // pred_fallthru
    _
  // Predicated region
  $region10: #{encoder_forward.46} parent=0 // pred_check
    _
  $region11: #{encoder_forward.46} parent=0 // pred_check_branch
    %13 = sbr.rel (0) target = $region13
  $region12: #{encoder_forward.46} parent=0 // pred_region
    _
  $region13: #{encoder_forward.46} parent=0 // pred_fallthru
    _
  %v14 = vld [vmem:[%s0] sm:$0xf]
  %v15 = vld [vmem:[%s0 + $0x4] sm:$0xf]
  %v16 = vld [vmem:[%s0 + $0x8] sm:$0xf]
  %v17 = vld [vmem:[%s0 + $0xc] sm:$0xf]
  %v18 = vunpack.c.l.bf16 %v14
  %v19 = vunpack.c.l.bf16 %v15
  %v20 = vunpack.c.l.bf16 %v16
  %v21 = vunpack.c.l.bf16 %v17
  %v22 = vld [vmem:[%s1] sm:$0x1]
  %v24 = vlaneseq
  %v25 = vshrl.u32 %v24, 7
  %v26 = vsub.s32 0, %v25
  %v27 = vrot.slane %v22, %v26
  %v29 = vmul.f32 %v18, %v27
  %v30 = vmul.f32 %v19, %v27
  %v31 = vmul.f32 %v20, %v27
  %v32 = vmul.f32 %v21, %v27
  %v33 = vld [vmem:[%s2] sm:$0x1]
  %v35 = vlaneseq
  %v36 = vshrl.u32 %v35, 7
  %v37 = vsub.s32 0, %v36
  %v38 = vrot.slane %v33, %v37
  %v40 = vadd.f32 %v29, %v38
  %v41 = vadd.f32 %v30, %v38
  %v42 = vadd.f32 %v31, %v38
  %v43 = vadd.f32 %v32, %v38
  %v44 = vpack.c.bf16 %v41, %v40
  %v45 = vpack.c.bf16 %v43, %v42
  %v48 = vunpack.c.l.b16 %v44
  %v49 = vunpack.c.h.b16 %v44
  %v50 = vunpack.c.l.b16 %v45
  %v51 = vunpack.c.h.b16 %v45
  %v52 = vpack.c.b16 %v48, %v48
  %v53 = vpack.c.b16 %v49, %v49
  %v54 = vpack.c.b16 %v50, %v50
  %v55 = vpack.c.b16 %v51, %v51
  %60 = vst [vmem:[%s3] sm:$0xf] %v52
  %61 = vst [vmem:[%s3 + $0x4] sm:$0xf] %v53
  %62 = vst [vmem:[%s3 + $0x8] sm:$0xf] %v54
  %63 = vst [vmem:[%s3 + $0xc] sm:$0xf] %v55
  // Predicated region
  $region14: #{encoder_forward.46} parent=0 // pred_check
    _
  $region15: #{encoder_forward.46} parent=0 // pred_check_branch
    %65 = sbr.rel (0) target = $region17
  $region16: #{encoder_forward.46} parent=0 // pred_region
    _
  $region17: #{encoder_forward.46} parent=0 // pred_fallthru
    _
  // Predicated region
  $region18: #{encoder_forward.46} parent=0 // pred_check
    _
  $region19: #{encoder_forward.46} parent=0 // pred_check_branch
    %67 = sbr.rel (0) target = $region21
  $region20: #{encoder_forward.46} parent=0 // pred_region
    _
  $region21: #{encoder_forward.46} parent=0 // pred_fallthru
    _

// kernel: encoder_forward.47
$region0: #{encoder_forward.47}
  #allocation0 [shape = 'u32[]', space=smem, size = 0x4, offset = 0x4, fixed_abs, tag = 'smem constant byte address 0x4 - core index']
  #allocation1 [shape = 'u32[144,128]{1,0:T(1,128)}', space=vmem, size = 0x12000, scoped, tag = 'internal scratch']
  %s0 = inlined_call_operand.vmem [shape: bf16[32,1152], index: 0, kind: input, shape index: {}]
  %s1 = inlined_call_operand.vmem [shape: bf16[1152,128], index: 1, kind: input, shape index: {}]
  %s2 = inlined_call_operand.vmem [shape: bf16[32,128], index: 2, kind: output, shape index: {0}]
  %s3 = inlined_call_operand.vmem [shape: f32[1,2,128], index: 3, kind: output, shape index: {1}]
  %4 = xla_tuple %s2, %s3
  %s5 = sld [smem:[#allocation0]]
  $region26: #{encoder_forward.47} parent=0
    _
  %s7 = ssub.s32 1, %s5
  %s8 = scalar_select 0, %s7, %s5
  // Predicated region
  $region2: #{encoder_forward.47} parent=0 // pred_check
    _
  $region3: #{encoder_forward.47} parent=0 // pred_check_branch
    %10 = sbr.rel (0) target = $region5
  $region4: #{encoder_forward.47} parent=0 // pred_region
    _
  $region5: #{encoder_forward.47} parent=0 // pred_fallthru
    _
  // Predicated region
  $region6: #{encoder_forward.47} parent=0 // pred_check
    _
  $region7: #{encoder_forward.47} parent=0 // pred_check_branch
    %12 = sbr.rel (0) target = $region9
  $region8: #{encoder_forward.47} parent=0 // pred_region
    _
  $region9: #{encoder_forward.47} parent=0 // pred_fallthru
    _
  %v14 = vld [vmem:[%s0] sm:$0xff]
  %v15 = vld [vmem:[%s0 + $0x8] sm:$0xff]
  %v16 = vld [vmem:[%s0 + $0x10] sm:$0xff]
  %v17 = vld [vmem:[%s0 + $0x18] sm:$0xff]
  %v18 = vld [vmem:[%s0 + $0x20] sm:$0xf]
  %v19 = vld [vmem:[%s0 + $0x24] sm:$0xff]
  %v20 = vld [vmem:[%s0 + $0x2c] sm:$0xff]
  %v21 = vld [vmem:[%s0 + $0x34] sm:$0xff]
  %v22 = vld [vmem:[%s0 + $0x3c] sm:$0xff]
  %v23 = vld [vmem:[%s0 + $0x44] sm:$0xf]
  %v24 = vld [vmem:[%s0 + $0x48] sm:$0xff]
  %v25 = vld [vmem:[%s0 + $0x50] sm:$0xff]
  %v26 = vld [vmem:[%s0 + $0x58] sm:$0xff]
  %v27 = vld [vmem:[%s0 + $0x60] sm:$0xff]
  %v28 = vld [vmem:[%s0 + $0x68] sm:$0xf]
  %v29 = vld [vmem:[%s0 + $0x6c] sm:$0xff]
  %v30 = vld [vmem:[%s0 + $0x74] sm:$0xff]
  %v31 = vld [vmem:[%s0 + $0x7c] sm:$0xff]
  %v32 = vld [vmem:[%s0 + $0x84] sm:$0xff]
  %v33 = vld [vmem:[%s0 + $0x8c] sm:$0xf]
  %v34 = vld [vmem:[%s1] sm:$0xf]
  %v35 = vld [vmem:[%s1 + $0x4] sm:$0xf]
  %v36 = vld [vmem:[%s1 + $0x8] sm:$0xf]
  %v37 = vld [vmem:[%s1 + $0xc] sm:$0xf]
  %v38 = vld [vmem:[%s1 + $0x10] sm:$0xf]
  %v39 = vld [vmem:[%s1 + $0x14] sm:$0xf]
  %v40 = vld [vmem:[%s1 + $0x18] sm:$0xf]
  %v41 = vld [vmem:[%s1 + $0x1c] sm:$0xf]
  %v42 = vld [vmem:[%s1 + $0x20] sm:$0xf]
  %v43 = vld [vmem:[%s1 + $0x24] sm:$0xf]
  %v44 = vld [vmem:[%s1 + $0x28] sm:$0xf]
  %v45 = vld [vmem:[%s1 + $0x2c] sm:$0xf]
  %v46 = vld [vmem:[%s1 + $0x30] sm:$0xf]
  %v47 = vld [vmem:[%s1 + $0x34] sm:$0xf]
  %v48 = vld [vmem:[%s1 + $0x38] sm:$0xf]
  %v49 = vld [vmem:[%s1 + $0x3c] sm:$0xf]
  %v50 = vld [vmem:[%s1 + $0x40] sm:$0xf]
  %v51 = vld [vmem:[%s1 + $0x44] sm:$0xf]
  %v52 = vld [vmem:[%s1 + $0x48] sm:$0xf]
  %v53 = vld [vmem:[%s1 + $0x4c] sm:$0xf]
  %v54 = vld [vmem:[%s1 + $0x50] sm:$0xf]
  %v55 = vld [vmem:[%s1 + $0x54] sm:$0xf]
  %v56 = vld [vmem:[%s1 + $0x58] sm:$0xf]
  %v57 = vld [vmem:[%s1 + $0x5c] sm:$0xf]
  %v58 = vld [vmem:[%s1 + $0x60] sm:$0xf]
  %v59 = vld [vmem:[%s1 + $0x64] sm:$0xf]
  %v60 = vld [vmem:[%s1 + $0x68] sm:$0xf]
  %v61 = vld [vmem:[%s1 + $0x6c] sm:$0xf]
  %v62 = vld [vmem:[%s1 + $0x70] sm:$0xf]
  %v63 = vld [vmem:[%s1 + $0x74] sm:$0xf]
  %v64 = vld [vmem:[%s1 + $0x78] sm:$0xf]
  %v65 = vld [vmem:[%s1 + $0x7c] sm:$0xf]
  %v66 = vld [vmem:[%s1 + $0x80] sm:$0xf]
  %v67 = vld [vmem:[%s1 + $0x84] sm:$0xf]
  %v68 = vld [vmem:[%s1 + $0x88] sm:$0xf]
  %v69 = vld [vmem:[%s1 + $0x8c] sm:$0xf]
  %v70 = vld [vmem:[%s1 + $0x90] sm:$0xf]
  %v71 = vld [vmem:[%s1 + $0x94] sm:$0xf]
  %v72 = vld [vmem:[%s1 + $0x98] sm:$0xf]
  %v73 = vld [vmem:[%s1 + $0x9c] sm:$0xf]
  %v74 = vld [vmem:[%s1 + $0xa0] sm:$0xf]
  %v75 = vld [vmem:[%s1 + $0xa4] sm:$0xf]
  %v76 = vld [vmem:[%s1 + $0xa8] sm:$0xf]
  %v77 = vld [vmem:[%s1 + $0xac] sm:$0xf]
  %v78 = vld [vmem:[%s1 + $0xb0] sm:$0xf]
  %v79 = vld [vmem:[%s1 + $0xb4] sm:$0xf]
  %v80 = vld [vmem:[%s1 + $0xb8] sm:$0xf]
  %v81 = vld [vmem:[%s1 + $0xbc] sm:$0xf]
  %v82 = vld [vmem:[%s1 + $0xc0] sm:$0xf]
  %v83 = vld [vmem:[%s1 + $0xc4] sm:$0xf]
  %v84 = vld [vmem:[%s1 + $0xc8] sm:$0xf]
  %v85 = vld [vmem:[%s1 + $0xcc] sm:$0xf]
  %v86 = vld [vmem:[%s1 + $0xd0] sm:$0xf]
  %v87 = vld [vmem:[%s1 + $0xd4] sm:$0xf]
  %v88 = vld [vmem:[%s1 + $0xd8] sm:$0xf]
  %v89 = vld [vmem:[%s1 + $0xdc] sm:$0xf]
  %v90 = vld [vmem:[%s1 + $0xe0] sm:$0xf]
  %v91 = vld [vmem:[%s1 + $0xe4] sm:$0xf]
  %v92 = vld [vmem:[%s1 + $0xe8] sm:$0xf]
  %v93 = vld [vmem:[%s1 + $0xec] sm:$0xf]
  %v94 = vld [vmem:[%s1 + $0xf0] sm:$0xf]
  %v95 = vld [vmem:[%s1 + $0xf4] sm:$0xf]
  %v96 = vld [vmem:[%s1 + $0xf8] sm:$0xf]
  %v97 = vld [vmem:[%s1 + $0xfc] sm:$0xf]
  %v98 = vld [vmem:[%s1 + $0x100] sm:$0xf]
  %v99 = vld [vmem:[%s1 + $0x104] sm:$0xf]
  %v100 = vld [vmem:[%s1 + $0x108] sm:$0xf]
  %v101 = vld [vmem:[%s1 + $0x10c] sm:$0xf]
  %v102 = vld [vmem:[%s1 + $0x110] sm:$0xf]
  %v103 = vld [vmem:[%s1 + $0x114] sm:$0xf]
  %v104 = vld [vmem:[%s1 + $0x118] sm:$0xf]
  %v105 = vld [vmem:[%s1 + $0x11c] sm:$0xf]
  %v106 = vld [vmem:[%s1 + $0x120] sm:$0xf]
  %v107 = vld [vmem:[%s1 + $0x124] sm:$0xf]
  %v108 = vld [vmem:[%s1 + $0x128] sm:$0xf]
  %v109 = vld [vmem:[%s1 + $0x12c] sm:$0xf]
  %v110 = vld [vmem:[%s1 + $0x130] sm:$0xf]
  %v111 = vld [vmem:[%s1 + $0x134] sm:$0xf]
  %v112 = vld [vmem:[%s1 + $0x138] sm:$0xf]
  %v113 = vld [vmem:[%s1 + $0x13c] sm:$0xf]
  %v114 = vld [vmem:[%s1 + $0x140] sm:$0xf]
  %v115 = vld [vmem:[%s1 + $0x144] sm:$0xf]
  %v116 = vld [vmem:[%s1 + $0x148] sm:$0xf]
  %v117 = vld [vmem:[%s1 + $0x14c] sm:$0xf]
  %v118 = vld [vmem:[%s1 + $0x150] sm:$0xf]
  %v119 = vld [vmem:[%s1 + $0x154] sm:$0xf]
  %v120 = vld [vmem:[%s1 + $0x158] sm:$0xf]
  %v121 = vld [vmem:[%s1 + $0x15c] sm:$0xf]
  %v122 = vld [vmem:[%s1 + $0x160] sm:$0xf]
  %v123 = vld [vmem:[%s1 + $0x164] sm:$0xf]
  %v124 = vld [vmem:[%s1 + $0x168] sm:$0xf]
  %v125 = vld [vmem:[%s1 + $0x16c] sm:$0xf]
  %v126 = vld [vmem:[%s1 + $0x170] sm:$0xf]
  %v127 = vld [vmem:[%s1 + $0x174] sm:$0xf]
  %v128 = vld [vmem:[%s1 + $0x178] sm:$0xf]
  %v129 = vld [vmem:[%s1 + $0x17c] sm:$0xf]
  %v130 = vld [vmem:[%s1 + $0x180] sm:$0xf]
  %v131 = vld [vmem:[%s1 + $0x184] sm:$0xf]
  %v132 = vld [vmem:[%s1 + $0x188] sm:$0xf]
  %v133 = vld [vmem:[%s1 + $0x18c] sm:$0xf]
  %v134 = vld [vmem:[%s1 + $0x190] sm:$0xf]
  %v135 = vld [vmem:[%s1 + $0x194] sm:$0xf]
  %v136 = vld [vmem:[%s1 + $0x198] sm:$0xf]
  %v137 = vld [vmem:[%s1 + $0x19c] sm:$0xf]
  %v138 = vld [vmem:[%s1 + $0x1a0] sm:$0xf]
  %v139 = vld [vmem:[%s1 + $0x1a4] sm:$0xf]
  %v140 = vld [vmem:[%s1 + $0x1a8] sm:$0xf]
  %v141 = vld [vmem:[%s1 + $0x1ac] sm:$0xf]
  %v142 = vld [vmem:[%s1 + $0x1b0] sm:$0xf]
  %v143 = vld [vmem:[%s1 + $0x1b4] sm:$0xf]
  %v144 = vld [vmem:[%s1 + $0x1b8] sm:$0xf]
  %v145 = vld [vmem:[%s1 + $0x1bc] sm:$0xf]
  %v146 = vld [vmem:[%s1 + $0x1c0] sm:$0xf]
  %v147 = vld [vmem:[%s1 + $0x1c4] sm:$0xf]
  %v148 = vld [vmem:[%s1 + $0x1c8] sm:$0xf]
  %v149 = vld [vmem:[%s1 + $0x1cc] sm:$0xf]
  %v150 = vld [vmem:[%s1 + $0x1d0] sm:$0xf]
  %v151 = vld [vmem:[%s1 + $0x1d4] sm:$0xf]
  %v152 = vld [vmem:[%s1 + $0x1d8] sm:$0xf]
  %v153 = vld [vmem:[%s1 + $0x1dc] sm:$0xf]
  %v154 = vld [vmem:[%s1 + $0x1e0] sm:$0xf]
  %v155 = vld [vmem:[%s1 + $0x1e4] sm:$0xf]
  %v156 = vld [vmem:[%s1 + $0x1e8] sm:$0xf]
  %v157 = vld [vmem:[%s1 + $0x1ec] sm:$0xf]
  %v158 = vld [vmem:[%s1 + $0x1f0] sm:$0xf]
  %v159 = vld [vmem:[%s1 + $0x1f4] sm:$0xf]
  %v160 = vld [vmem:[%s1 + $0x1f8] sm:$0xf]
  %v161 = vld [vmem:[%s1 + $0x1fc] sm:$0xf]
  %v162 = vld [vmem:[%s1 + $0x200] sm:$0xf]
  %v163 = vld [vmem:[%s1 + $0x204] sm:$0xf]
  %v164 = vld [vmem:[%s1 + $0x208] sm:$0xf]
  %v165 = vld [vmem:[%s1 + $0x20c] sm:$0xf]
  %v166 = vld [vmem:[%s1 + $0x210] sm:$0xf]
  %v167 = vld [vmem:[%s1 + $0x214] sm:$0xf]
  %v168 = vld [vmem:[%s1 + $0x218] sm:$0xf]
  %v169 = vld [vmem:[%s1 + $0x21c] sm:$0xf]
  %v170 = vld [vmem:[%s1 + $0x220] sm:$0xf]
  %v171 = vld [vmem:[%s1 + $0x224] sm:$0xf]
  %v172 = vld [vmem:[%s1 + $0x228] sm:$0xf]
  %v173 = vld [vmem:[%s1 + $0x22c] sm:$0xf]
  %v174 = vld [vmem:[%s1 + $0x230] sm:$0xf]
  %v175 = vld [vmem:[%s1 + $0x234] sm:$0xf]
  %v176 = vld [vmem:[%s1 + $0x238] sm:$0xf]
  %v177 = vld [vmem:[%s1 + $0x23c] sm:$0xf]
  %v198 = vunpack.c.l.b16 %v14
  %v199 = vunpack.c.h.b16 %v14
  %v200 = vunpack.c.l.b16 %v15
  %v201 = vunpack.c.h.b16 %v15
  %v202 = vunpack.c.l.b16 %v16
  %v203 = vunpack.c.h.b16 %v16
  %v204 = vunpack.c.l.b16 %v17
  %v205 = vunpack.c.h.b16 %v17
  %v206 = vunpack.c.l.b16 %v18
  %v207 = vunpack.c.l.b16 %v19
  %v208 = vunpack.c.h.b16 %v19
  %v209 = vunpack.c.l.b16 %v20
  %v210 = vunpack.c.h.b16 %v20
  %v211 = vunpack.c.l.b16 %v21
  %v212 = vunpack.c.h.b16 %v21
  %v213 = vunpack.c.l.b16 %v22
  %v214 = vunpack.c.h.b16 %v22
  %v215 = vunpack.c.l.b16 %v23
  %v216 = vunpack.c.l.b16 %v24
  %v217 = vunpack.c.h.b16 %v24
  %v218 = vunpack.c.l.b16 %v25
  %v219 = vunpack.c.h.b16 %v25
  %v220 = vunpack.c.l.b16 %v26
  %v221 = vunpack.c.h.b16 %v26
  %v222 = vunpack.c.l.b16 %v27
  %v223 = vunpack.c.h.b16 %v27
  %v224 = vunpack.c.l.b16 %v28
  %v225 = vunpack.c.l.b16 %v29
  %v226 = vunpack.c.h.b16 %v29
  %v227 = vunpack.c.l.b16 %v30
  %v228 = vunpack.c.h.b16 %v30
  %v229 = vunpack.c.l.b16 %v31
  %v230 = vunpack.c.h.b16 %v31
  %v231 = vunpack.c.l.b16 %v32
  %v232 = vunpack.c.h.b16 %v32
  %v233 = vunpack.c.l.b16 %v33
  %v234 = vpack.c.b16 %v207, %v198
  %v235 = vpack.c.b16 %v208, %v199
  %v236 = vpack.c.b16 %v209, %v200
  %v237 = vpack.c.b16 %v210, %v201
  %v238 = vpack.c.b16 %v211, %v202
  %v239 = vpack.c.b16 %v212, %v203
  %v240 = vpack.c.b16 %v213, %v204
  %v241 = vpack.c.b16 %v214, %v205
  %v242 = vpack.c.b16 %v215, %v206
  %v243 = vpack.c.b16 %v225, %v216
  %v244 = vpack.c.b16 %v226, %v217
  %v245 = vpack.c.b16 %v227, %v218
  %v246 = vpack.c.b16 %v228, %v219
  %v247 = vpack.c.b16 %v229, %v220
  %v248 = vpack.c.b16 %v230, %v221
  %v249 = vpack.c.b16 %v231, %v222
  %v250 = vpack.c.b16 %v232, %v223
  %v251 = vpack.c.b16 %v233, %v224
  %v414 = vunpack.c.l.b16 %v34
  %v415 = vunpack.c.l.b16 %v35
  %v416 = vunpack.c.l.b16 %v36
  %v417 = vunpack.c.l.b16 %v37
  %v418 = vunpack.c.l.b16 %v38
  %v419 = vunpack.c.l.b16 %v39
  %v420 = vunpack.c.l.b16 %v40
  %v421 = vunpack.c.l.b16 %v41
  %v422 = vunpack.c.l.b16 %v42
  %v423 = vunpack.c.l.b16 %v43
  %v424 = vunpack.c.l.b16 %v44
  %v425 = vunpack.c.l.b16 %v45
  %v426 = vunpack.c.l.b16 %v46
  %v427 = vunpack.c.l.b16 %v47
  %v428 = vunpack.c.l.b16 %v48
  %v429 = vunpack.c.l.b16 %v49
  %v430 = vunpack.c.l.b16 %v50
  %v431 = vunpack.c.l.b16 %v51
  %v432 = vunpack.c.l.b16 %v52
  %v433 = vunpack.c.l.b16 %v53
  %v434 = vunpack.c.l.b16 %v54
  %v435 = vunpack.c.l.b16 %v55
  %v436 = vunpack.c.l.b16 %v56
  %v437 = vunpack.c.l.b16 %v57
  %v438 = vunpack.c.l.b16 %v58
  %v439 = vunpack.c.l.b16 %v59
  %v440 = vunpack.c.l.b16 %v60
  %v441 = vunpack.c.l.b16 %v61
  %v442 = vunpack.c.l.b16 %v62
  %v443 = vunpack.c.l.b16 %v63
  %v444 = vunpack.c.l.b16 %v64
  %v445 = vunpack.c.l.b16 %v65
  %v446 = vunpack.c.l.b16 %v66
  %v447 = vunpack.c.l.b16 %v67
  %v448 = vunpack.c.l.b16 %v68
  %v449 = vunpack.c.l.b16 %v69
  %v450 = vunpack.c.l.b16 %v70
  %v451 = vunpack.c.l.b16 %v71
  %v452 = vunpack.c.l.b16 %v72
  %v453 = vunpack.c.l.b16 %v73
  %v454 = vunpack.c.l.b16 %v74
  %v455 = vunpack.c.l.b16 %v75
  %v456 = vunpack.c.l.b16 %v76
  %v457 = vunpack.c.l.b16 %v77
  %v458 = vunpack.c.l.b16 %v78
  %v459 = vunpack.c.l.b16 %v79
  %v460 = vunpack.c.l.b16 %v80
  %v461 = vunpack.c.l.b16 %v81
  %v462 = vunpack.c.l.b16 %v82
  %v463 = vunpack.c.l.b16 %v83
  %v464 = vunpack.c.l.b16 %v84
  %v465 = vunpack.c.l.b16 %v85
  %v466 = vunpack.c.l.b16 %v86
  %v467 = vunpack.c.l.b16 %v87
  %v468 = vunpack.c.l.b16 %v88
  %v469 = vunpack.c.l.b16 %v89
  %v470 = vunpack.c.l.b16 %v90
  %v471 = vunpack.c.l.b16 %v91
  %v472 = vunpack.c.l.b16 %v92
  %v473 = vunpack.c.l.b16 %v93
  %v474 = vunpack.c.l.b16 %v94
  %v475 = vunpack.c.l.b16 %v95
  %v476 = vunpack.c.l.b16 %v96
  %v477 = vunpack.c.l.b16 %v97
  %v478 = vunpack.c.l.b16 %v98
  %v479 = vunpack.c.l.b16 %v99
  %v480 = vunpack.c.l.b16 %v100
  %v481 = vunpack.c.l.b16 %v101
  %v482 = vunpack.c.l.b16 %v102
  %v483 = vunpack.c.l.b16 %v103
  %v484 = vunpack.c.l.b16 %v104
  %v485 = vunpack.c.l.b16 %v105
  %v486 = vunpack.c.l.b16 %v106
  %v487 = vunpack.c.l.b16 %v107
  %v488 = vunpack.c.l.b16 %v108
  %v489 = vunpack.c.l.b16 %v109
  %v490 = vunpack.c.l.b16 %v110
  %v491 = vunpack.c.l.b16 %v111
  %v492 = vunpack.c.l.b16 %v112
  %v493 = vunpack.c.l.b16 %v113
  %v494 = vunpack.c.l.b16 %v114
  %v495 = vunpack.c.l.b16 %v115
  %v496 = vunpack.c.l.b16 %v116
  %v497 = vunpack.c.l.b16 %v117
  %v498 = vunpack.c.l.b16 %v118
  %v499 = vunpack.c.l.b16 %v119
  %v500 = vunpack.c.l.b16 %v120
  %v501 = vunpack.c.l.b16 %v121
  %v502 = vunpack.c.l.b16 %v122
  %v503 = vunpack.c.l.b16 %v123
  %v504 = vunpack.c.l.b16 %v124
  %v505 = vunpack.c.l.b16 %v125
  %v506 = vunpack.c.l.b16 %v126
  %v507 = vunpack.c.l.b16 %v127
  %v508 = vunpack.c.l.b16 %v128
  %v509 = vunpack.c.l.b16 %v129
  %v510 = vunpack.c.l.b16 %v130
  %v511 = vunpack.c.l.b16 %v131
  %v512 = vunpack.c.l.b16 %v132
  %v513 = vunpack.c.l.b16 %v133
  %v514 = vunpack.c.l.b16 %v134
  %v515 = vunpack.c.l.b16 %v135
  %v516 = vunpack.c.l.b16 %v136
  %v517 = vunpack.c.l.b16 %v137
  %v518 = vunpack.c.l.b16 %v138
  %v519 = vunpack.c.l.b16 %v139
  %v520 = vunpack.c.l.b16 %v140
  %v521 = vunpack.c.l.b16 %v141
  %v522 = vunpack.c.l.b16 %v142
  %v523 = vunpack.c.l.b16 %v143
  %v524 = vunpack.c.l.b16 %v144
  %v525 = vunpack.c.l.b16 %v145
  %v526 = vunpack.c.l.b16 %v146
  %v527 = vunpack.c.l.b16 %v147
  %v528 = vunpack.c.l.b16 %v148
  %v529 = vunpack.c.l.b16 %v149
  %v530 = vunpack.c.l.b16 %v150
  %v531 = vunpack.c.l.b16 %v151
  %v532 = vunpack.c.l.b16 %v152
  %v533 = vunpack.c.l.b16 %v153
  %v534 = vunpack.c.l.b16 %v154
  %v535 = vunpack.c.l.b16 %v155
  %v536 = vunpack.c.l.b16 %v156
  %v537 = vunpack.c.l.b16 %v157
  %v538 = vunpack.c.l.b16 %v158
  %v539 = vunpack.c.l.b16 %v159
  %v540 = vunpack.c.l.b16 %v160
  %v541 = vunpack.c.l.b16 %v161
  %v542 = vunpack.c.l.b16 %v162
  %v543 = vunpack.c.l.b16 %v163
  %v544 = vunpack.c.l.b16 %v164
  %v545 = vunpack.c.l.b16 %v165
  %v546 = vunpack.c.l.b16 %v166
  %v547 = vunpack.c.l.b16 %v167
  %v548 = vunpack.c.l.b16 %v168
  %v549 = vunpack.c.l.b16 %v169
  %v550 = vunpack.c.l.b16 %v170
  %v551 = vunpack.c.l.b16 %v171
  %v552 = vunpack.c.l.b16 %v172
  %v553 = vunpack.c.l.b16 %v173
  %v554 = vunpack.c.l.b16 %v174
  %v555 = vunpack.c.l.b16 %v175
  %v556 = vunpack.c.l.b16 %v176
  %v557 = vunpack.c.l.b16 %v177
  %v558 = vpack.c.b16 %v415, %v414
  %v559 = vpack.c.b16 %v417, %v416
  %v560 = vpack.c.b16 %v419, %v418
  %v561 = vpack.c.b16 %v421, %v420
  %v562 = vpack.c.b16 %v423, %v422
  %v563 = vpack.c.b16 %v425, %v424
  %v564 = vpack.c.b16 %v427, %v426
  %v565 = vpack.c.b16 %v429, %v428
  %v566 = vpack.c.b16 %v431, %v430
  %v567 = vpack.c.b16 %v433, %v432
  %v568 = vpack.c.b16 %v435, %v434
  %v569 = vpack.c.b16 %v437, %v436
  %v570 = vpack.c.b16 %v439, %v438
  %v571 = vpack.c.b16 %v441, %v440
  %v572 = vpack.c.b16 %v443, %v442
  %v573 = vpack.c.b16 %v445, %v444
  %v574 = vpack.c.b16 %v447, %v446
  %v575 = vpack.c.b16 %v449, %v448
  %v576 = vpack.c.b16 %v451, %v450
  %v577 = vpack.c.b16 %v453, %v452
  %v578 = vpack.c.b16 %v455, %v454
  %v579 = vpack.c.b16 %v457, %v456
  %v580 = vpack.c.b16 %v459, %v458
  %v581 = vpack.c.b16 %v461, %v460
  %v582 = vpack.c.b16 %v463, %v462
  %v583 = vpack.c.b16 %v465, %v464
  %v584 = vpack.c.b16 %v467, %v466
  %v585 = vpack.c.b16 %v469, %v468
  %v586 = vpack.c.b16 %v471, %v470
  %v587 = vpack.c.b16 %v473, %v472
  %v588 = vpack.c.b16 %v475, %v474
  %v589 = vpack.c.b16 %v477, %v476
  %v590 = vpack.c.b16 %v479, %v478
  %v591 = vpack.c.b16 %v481, %v480
  %v592 = vpack.c.b16 %v483, %v482
  %v593 = vpack.c.b16 %v485, %v484
  %v594 = vpack.c.b16 %v487, %v486
  %v595 = vpack.c.b16 %v489, %v488
  %v596 = vpack.c.b16 %v491, %v490
  %v597 = vpack.c.b16 %v493, %v492
  %v598 = vpack.c.b16 %v495, %v494
  %v599 = vpack.c.b16 %v497, %v496
  %v600 = vpack.c.b16 %v499, %v498
  %v601 = vpack.c.b16 %v501, %v500
  %v602 = vpack.c.b16 %v503, %v502
  %v603 = vpack.c.b16 %v505, %v504
  %v604 = vpack.c.b16 %v507, %v506
  %v605 = vpack.c.b16 %v509, %v508
  %v606 = vpack.c.b16 %v511, %v510
  %v607 = vpack.c.b16 %v513, %v512
  %v608 = vpack.c.b16 %v515, %v514
  %v609 = vpack.c.b16 %v517, %v516
  %v610 = vpack.c.b16 %v519, %v518
  %v611 = vpack.c.b16 %v521, %v520
  %v612 = vpack.c.b16 %v523, %v522
  %v613 = vpack.c.b16 %v525, %v524
  %v614 = vpack.c.b16 %v527, %v526
  %v615 = vpack.c.b16 %v529, %v528
  %v616 = vpack.c.b16 %v531, %v530
  %v617 = vpack.c.b16 %v533, %v532
  %v618 = vpack.c.b16 %v535, %v534
  %v619 = vpack.c.b16 %v537, %v536
  %v620 = vpack.c.b16 %v539, %v538
  %v621 = vpack.c.b16 %v541, %v540
  %v622 = vpack.c.b16 %v543, %v542
  %v623 = vpack.c.b16 %v545, %v544
  %v624 = vpack.c.b16 %v547, %v546
  %v625 = vpack.c.b16 %v549, %v548
  %v626 = vpack.c.b16 %v551, %v550
  %v627 = vpack.c.b16 %v553, %v552
  %v628 = vpack.c.b16 %v555, %v554
  %v629 = vpack.c.b16 %v557, %v556
  %702 = vmatprep.subr.bf16.mxu0 0
  %703 = vmatpush1.bf16.msra.mxu0 %v558
  %704 = vmatprep.subr.bf16.mxu0 0
  %705 = vmatpush1.bf16.msra.mxu0 %v559
  %706 = vmatprep.subr.bf16.mxu0 0
  %707 = vmatpush1.bf16.msra.mxu0 %v560
  %708 = vmatprep.subr.bf16.mxu0 0
  %709 = vmatpush1.bf16.msra.mxu0 %v561
  %710 = vmatprep.subr.bf16.mxu0 0
  %711 = vmatpush1.bf16.msra.mxu0 %v562
  %712 = vmatprep.subr.bf16.mxu0 0
  %713 = vmatpush1.bf16.msra.mxu0 %v563
  %714 = vmatprep.subr.bf16.mxu0 0
  %715 = vmatpush1.bf16.msra.mxu0 %v564
  %716 = vmatprep.subr.bf16.mxu0 0
  %717 = vmatpush1.bf16.msra.mxu0 %v565
  %718 = vmatprep.subr.bf16.mxu0 0
  %719 = vmatpush1.bf16.msra.mxu0 %v566
  %720 = vmatprep.subr.bf16.mxu0 0
  %721 = vmatpush1.bf16.msra.mxu0 %v567
  %722 = vmatprep.subr.bf16.mxu0 0
  %723 = vmatpush1.bf16.msra.mxu0 %v568
  %724 = vmatprep.subr.bf16.mxu0 0
  %725 = vmatpush1.bf16.msra.mxu0 %v569
  %726 = vmatprep.subr.bf16.mxu0 0
  %727 = vmatpush1.bf16.msra.mxu0 %v570
  %728 = vmatprep.subr.bf16.mxu0 0
  %729 = vmatpush1.bf16.msra.mxu0 %v571
  %730 = vmatprep.subr.bf16.mxu0 0
  %731 = vmatpush1.bf16.msra.mxu0 %v572
  %732 = vmatprep.subr.bf16.mxu0 0
  %733 = vmatpush1.bf16.msra.mxu0 %v573
  %734 = vmatprep.mubr.bf16.mxu0 %v235
  %735 = vmatmul.mubr.bf16.gmra.mrb[0].mxu0 %v234
  %v736 = vpop.f32.mrb[0].mxu0
  %v737 = vadd.f32 0.0, %v736
  %v738 = vpop.f32.mrb[0].mxu0
  %v739 = vpop.f32.mrb[0].mxu0
  %v740 = vadd.f32 0.0, %v739
  %v741 = vpop.f32.mrb[0].mxu0
  %742 = vmatprep.mubr.bf16.mxu0 %v244
  %743 = vmatmul.mubr.bf16.gmra.mrb[0].mxu0 %v243
  %v744 = vpop.f32.mrb[0].mxu0
  %v745 = vadd.f32 0.0, %v744
  %v746 = vpop.f32.mrb[0].mxu0
  %v747 = vpop.f32.mrb[0].mxu0
  %v748 = vadd.f32 0.0, %v747
  %v749 = vpop.f32.mrb[0].mxu0
  %750 = vdwg.mxu0
  %751 = vmatprep.subr.bf16.mxu0 0
  %752 = vmatpush1.bf16.msra.mxu0 %v574
  %753 = vmatprep.subr.bf16.mxu0 0
  %754 = vmatpush1.bf16.msra.mxu0 %v575
  %755 = vmatprep.subr.bf16.mxu0 0
  %756 = vmatpush1.bf16.msra.mxu0 %v576
  %757 = vmatprep.subr.bf16.mxu0 0
  %758 = vmatpush1.bf16.msra.mxu0 %v577
  %759 = vmatprep.subr.bf16.mxu0 0
  %760 = vmatpush1.bf16.msra.mxu0 %v578
  %761 = vmatprep.subr.bf16.mxu0 0
  %762 = vmatpush1.bf16.msra.mxu0 %v579
  %763 = vmatprep.subr.bf16.mxu0 0
  %764 = vmatpush1.bf16.msra.mxu0 %v580
  %765 = vmatprep.subr.bf16.mxu0 0
  %766 = vmatpush1.bf16.msra.mxu0 %v581
  %767 = vmatprep.subr.bf16.mxu0 0
  %768 = vmatpush1.bf16.msra.mxu0 %v582
  %769 = vmatprep.subr.bf16.mxu0 0
  %770 = vmatpush1.bf16.msra.mxu0 %v583
  %771 = vmatprep.subr.bf16.mxu0 0
  %772 = vmatpush1.bf16.msra.mxu0 %v584
  %773 = vmatprep.subr.bf16.mxu0 0
  %774 = vmatpush1.bf16.msra.mxu0 %v585
  %775 = vmatprep.subr.bf16.mxu0 0
  %776 = vmatpush1.bf16.msra.mxu0 %v586
  %777 = vmatprep.subr.bf16.mxu0 0
  %778 = vmatpush1.bf16.msra.mxu0 %v587
  %779 = vmatprep.subr.bf16.mxu0 0
  %780 = vmatpush1.bf16.msra.mxu0 %v588
  %781 = vmatprep.subr.bf16.mxu0 0
  %782 = vmatpush1.bf16.msra.mxu0 %v589
  %783 = vmatprep.mubr.bf16.mxu0 %v237
  %784 = vmatmul.mubr.bf16.gmra.mrb[0].mxu0 %v236
  %v785 = vpop.f32.mrb[0].mxu0
  %v786 = vadd.f32 %v737, %v785
  %v787 = vpop.f32.mrb[0].mxu0
  %v788 = vpop.f32.mrb[0].mxu0
  %v789 = vadd.f32 %v740, %v788
  %v790 = vpop.f32.mrb[0].mxu0
  %791 = vmatprep.mubr.bf16.mxu0 %v246
  %792 = vmatmul.mubr.bf16.gmra.mrb[0].mxu0 %v245
  %v793 = vpop.f32.mrb[0].mxu0
  %v794 = vadd.f32 %v745, %v793
  %v795 = vpop.f32.mrb[0].mxu0
  %v796 = vpop.f32.mrb[0].mxu0
  %v797 = vadd.f32 %v748, %v796
  %v798 = vpop.f32.mrb[0].mxu0
  %799 = vdwg.mxu0
  %800 = vmatprep.subr.bf16.mxu0 0
  %801 = vmatpush1.bf16.msra.mxu0 %v590
  %802 = vmatprep.subr.bf16.mxu0 0
  %803 = vmatpush1.bf16.msra.mxu0 %v591
  %804 = vmatprep.subr.bf16.mxu0 0
  %805 = vmatpush1.bf16.msra.mxu0 %v592
  %806 = vmatprep.subr.bf16.mxu0 0
  %807 = vmatpush1.bf16.msra.mxu0 %v593
  %808 = vmatprep.subr.bf16.mxu0 0
  %809 = vmatpush1.bf16.msra.mxu0 %v594
  %810 = vmatprep.subr.bf16.mxu0 0
  %811 = vmatpush1.bf16.msra.mxu0 %v595
  %812 = vmatprep.subr.bf16.mxu0 0
  %813 = vmatpush1.bf16.msra.mxu0 %v596
  %814 = vmatprep.subr.bf16.mxu0 0
  %815 = vmatpush1.bf16.msra.mxu0 %v597
  %816 = vmatprep.subr.bf16.mxu0 0
  %817 = vmatpush1.bf16.msra.mxu0 %v598
  %818 = vmatprep.subr.bf16.mxu0 0
  %819 = vmatpush1.bf16.msra.mxu0 %v599
  %820 = vmatprep.subr.bf16.mxu0 0
  %821 = vmatpush1.bf16.msra.mxu0 %v600
  %822 = vmatprep.subr.bf16.mxu0 0
  %823 = vmatpush1.bf16.msra.mxu0 %v601
  %824 = vmatprep.subr.bf16.mxu0 0
  %825 = vmatpush1.bf16.msra.mxu0 %v602
  %826 = vmatprep.subr.bf16.mxu0 0
  %827 = vmatpush1.bf16.msra.mxu0 %v603
  %828 = vmatprep.subr.bf16.mxu0 0
  %829 = vmatpush1.bf16.msra.mxu0 %v604
  %830 = vmatprep.subr.bf16.mxu0 0
  %831 = vmatpush1.bf16.msra.mxu0 %v605
  %832 = vmatprep.mubr.bf16.mxu0 %v239
  %833 = vmatmul.mubr.bf16.gmra.mrb[0].mxu0 %v238
  %v834 = vpop.f32.mrb[0].mxu0
  %v835 = vadd.f32 %v786, %v834
  %v836 = vpop.f32.mrb[0].mxu0
  %v837 = vpop.f32.mrb[0].mxu0
  %v838 = vadd.f32 %v789, %v837
  %v839 = vpop.f32.mrb[0].mxu0
  %840 = vmatprep.mubr.bf16.mxu0 %v248
  %841 = vmatmul.mubr.bf16.gmra.mrb[0].mxu0 %v247
  %v842 = vpop.f32.mrb[0].mxu0
  %v843 = vadd.f32 %v794, %v842
  %v844 = vpop.f32.mrb[0].mxu0
  %v845 = vpop.f32.mrb[0].mxu0
  %v846 = vadd.f32 %v797, %v845
  %v847 = vpop.f32.mrb[0].mxu0
  %848 = vdwg.mxu0
  %849 = vmatprep.subr.bf16.mxu0 0
  %850 = vmatpush1.bf16.msra.mxu0 %v606
  %851 = vmatprep.subr.bf16.mxu0 0
  %852 = vmatpush1.bf16.msra.mxu0 %v607
  %853 = vmatprep.subr.bf16.mxu0 0
  %854 = vmatpush1.bf16.msra.mxu0 %v608
  %855 = vmatprep.subr.bf16.mxu0 0
  %856 = vmatpush1.bf16.msra.mxu0 %v609
  %857 = vmatprep.subr.bf16.mxu0 0
  %858 = vmatpush1.bf16.msra.mxu0 %v610
  %859 = vmatprep.subr.bf16.mxu0 0
  %860 = vmatpush1.bf16.msra.mxu0 %v611
  %861 = vmatprep.subr.bf16.mxu0 0
  %862 = vmatpush1.bf16.msra.mxu0 %v612
  %863 = vmatprep.subr.bf16.mxu0 0
  %864 = vmatpush1.bf16.msra.mxu0 %v613
  %865 = vmatprep.subr.bf16.mxu0 0
  %866 = vmatpush1.bf16.msra.mxu0 %v614
  %867 = vmatprep.subr.bf16.mxu0 0
  %868 = vmatpush1.bf16.msra.mxu0 %v615
  %869 = vmatprep.subr.bf16.mxu0 0
  %870 = vmatpush1.bf16.msra.mxu0 %v616
  %871 = vmatprep.subr.bf16.mxu0 0
  %872 = vmatpush1.bf16.msra.mxu0 %v617
  %873 = vmatprep.subr.bf16.mxu0 0
  %874 = vmatpush1.bf16.msra.mxu0 %v618
  %875 = vmatprep.subr.bf16.mxu0 0
  %876 = vmatpush1.bf16.msra.mxu0 %v619
  %877 = vmatprep.subr.bf16.mxu0 0
  %878 = vmatpush1.bf16.msra.mxu0 %v620
  %879 = vmatprep.subr.bf16.mxu0 0
  %880 = vmatpush1.bf16.msra.mxu0 %v621
  %881 = vmatprep.mubr.bf16.mxu0 %v241
  %882 = vmatmul.mubr.bf16.gmra.mrb[0].mxu0 %v240
  %v883 = vpop.f32.mrb[0].mxu0
  %v884 = vadd.f32 %v835, %v883
  %v885 = vpop.f32.mrb[0].mxu0
  %v886 = vpop.f32.mrb[0].mxu0
  %v887 = vadd.f32 %v838, %v886
  %v888 = vpop.f32.mrb[0].mxu0
  %889 = vmatprep.mubr.bf16.mxu0 %v250
  %890 = vmatmul.mubr.bf16.gmra.mrb[0].mxu0 %v249
  %v891 = vpop.f32.mrb[0].mxu0
  %v892 = vadd.f32 %v843, %v891
  %v893 = vpop.f32.mrb[0].mxu0
  %v894 = vpop.f32.mrb[0].mxu0
  %v895 = vadd.f32 %v846, %v894
  %v896 = vpop.f32.mrb[0].mxu0
  %897 = vdwg.mxu0
  %898 = vmatprep.subr.bf16.mxu0 0
  %899 = vmatpush1.bf16.msra.mxu0 %v622
  %900 = vmatprep.subr.bf16.mxu0 0
  %901 = vmatpush1.bf16.msra.mxu0 %v623
  %902 = vmatprep.subr.bf16.mxu0 0
  %903 = vmatpush1.bf16.msra.mxu0 %v624
  %904 = vmatprep.subr.bf16.mxu0 0
  %905 = vmatpush1.bf16.msra.mxu0 %v625
  %906 = vmatprep.subr.bf16.mxu0 0
  %907 = vmatpush1.bf16.msra.mxu0 %v626
  %908 = vmatprep.subr.bf16.mxu0 0
  %909 = vmatpush1.bf16.msra.mxu0 %v627
  %910 = vmatprep.subr.bf16.mxu0 0
  %911 = vmatpush1.bf16.msra.mxu0 %v628
  %912 = vmatprep.subr.bf16.mxu0 0
  %913 = vmatpush1.bf16.msra.mxu0 %v629
  %914 = vmatprep.subr.bf16.mxu0 0
  %915 = vmatpush1.bf16.msra.mxu0 0
  %916 = vmatprep.subr.bf16.mxu0 0
  %917 = vmatpush1.bf16.msra.mxu0 0
  %918 = vmatprep.subr.bf16.mxu0 0
  %919 = vmatpush1.bf16.msra.mxu0 0
  %920 = vmatprep.subr.bf16.mxu0 0
  %921 = vmatpush1.bf16.msra.mxu0 0
  %922 = vmatprep.subr.bf16.mxu0 0
  %923 = vmatpush1.bf16.msra.mxu0 0
  %924 = vmatprep.subr.bf16.mxu0 0
  %925 = vmatpush1.bf16.msra.mxu0 0
  %926 = vmatprep.subr.bf16.mxu0 0
  %927 = vmatpush1.bf16.msra.mxu0 0
  %928 = vmatprep.subr.bf16.mxu0 0
  %929 = vmatpush1.bf16.msra.mxu0 0
  %930 = vmatprep.mubr.bf16.mxu0 0
  %931 = vmatmul.mubr.bf16.gmra.mrb[0].mxu0 %v242
  %v932 = vpop.f32.mrb[0].mxu0
  %v933 = vadd.f32 %v884, %v932
  %v934 = vpop.f32.mrb[0].mxu0
  %v935 = vpop.f32.mrb[0].mxu0
  %v936 = vadd.f32 %v887, %v935
  %v937 = vpop.f32.mrb[0].mxu0
  %938 = vmatprep.mubr.bf16.mxu0 0
  %939 = vmatmul.mubr.bf16.gmra.mrb[0].mxu0 %v251
  %v940 = vpop.f32.mrb[0].mxu0
  %v941 = vadd.f32 %v892, %v940
  %v942 = vpop.f32.mrb[0].mxu0
  %v943 = vpop.f32.mrb[0].mxu0
  %v944 = vadd.f32 %v895, %v943
  %v945 = vpop.f32.mrb[0].mxu0
  %946 = vdwg.mxu0
  %v947 = vpack.c.bf16 %v936, %v933
  %v948 = vpack.c.bf16 %v944, %v941
  %v951 = vunpack.c.l.b16 %v947
  %v952 = vunpack.c.h.b16 %v947
  %v953 = vunpack.c.l.b16 %v948
  %v954 = vunpack.c.h.b16 %v948
  %v955 = vpack.c.b16 %v951, %v951
  %v956 = vpack.c.b16 %v952, %v952
  %v957 = vpack.c.b16 %v953, %v953
  %v958 = vpack.c.b16 %v954, %v954
  %963 = vst [vmem:[%s2] sm:$0xf] %v955
  %964 = vst [vmem:[%s2 + $0x4] sm:$0xf] %v956
  %965 = vst [vmem:[%s2 + $0x8] sm:$0xf] %v957
  %966 = vst [vmem:[%s2 + $0xc] sm:$0xf] %v958
  %v967 = vadd.f32 %v933, %v936
  %v968 = vadd.f32 %v967, %v941
  %v969 = vadd.f32 %v968, %v944
  %v970 = vrot.slane %v969, 4
  %v971 = vadd.f32 %v969, %v970
  %v972 = vrot.slane %v971, 2
  %v973 = vadd.f32 %v971, %v972
  %v974 = vrot.slane %v973, 1
  %v975 = vadd.f32 %v973, %v974
  %v976 = vmul.f32 %v933, %v933
  %v977 = vmul.f32 %v936, %v936
  %v978 = vmul.f32 %v941, %v941
  %v979 = vmul.f32 %v944, %v944
  %v980 = vadd.f32 %v976, %v977
  %v981 = vadd.f32 %v980, %v978
  %v982 = vadd.f32 %v981, %v979
  %v983 = vrot.slane %v982, 4
  %v984 = vadd.f32 %v982, %v983
  %v985 = vrot.slane %v984, 2
  %v986 = vadd.f32 %v984, %v985
  %v987 = vrot.slane %v986, 1
  %v988 = vadd.f32 %v986, %v987
  %vm989 = vcmask 1040384
  %v990 = vsel %vm989, %v975, %v988
  %991 = vst [vmem:[%s3] sm:$0x3] %v990
  // Predicated region
  $region10: #{encoder_forward.47} parent=0 // pred_check
    _
  $region11: #{encoder_forward.47} parent=0 // pred_check_branch
    %993 = sbr.rel (0) target = $region13
  $region12: #{encoder_forward.47} parent=0 // pred_region
    _
  $region13: #{encoder_forward.47} parent=0 // pred_fallthru
    _
  // Predicated region
  $region14: #{encoder_forward.47} parent=0 // pred_check
    _
  $region15: #{encoder_forward.47} parent=0 // pred_check_branch
    %995 = sbr.rel (0) target = $region17
  $region16: #{encoder_forward.47} parent=0 // pred_region
    _
  $region17: #{encoder_forward.47} parent=0 // pred_fallthru
    _
  // Predicated region
  $region18: #{encoder_forward.47} parent=0 // pred_check
    _
  $region19: #{encoder_forward.47} parent=0 // pred_check_branch
    %997 = sbr.rel (0) target = $region21
  $region20: #{encoder_forward.47} parent=0 // pred_region
    _
  $region21: #{encoder_forward.47} parent=0 // pred_fallthru
    _
  // Predicated region
  $region22: #{encoder_forward.47} parent=0 // pred_check
    _
  $region23: #{encoder_forward.47} parent=0 // pred_check_branch
    %999 = sbr.rel (0) target = $region25
  $region24: #{encoder_forward.47} parent=0 // pred_region
    _
  $region25: #{encoder_forward.47} parent=0 // pred_fallthru
    _

// kernel: encoder_forward.48
$region0: #{encoder_forward.48}
  #allocation0 [shape = 'u32[]', space=smem, size = 0x4, offset = 0x4, fixed_abs, tag = 'smem constant byte address 0x4 - core index']
  #allocation1 [shape = 'u32[144,128]{1,0:T(1,128)}', space=vmem, size = 0x12000, scoped, tag = 'internal scratch']
  %s0 = inlined_call_operand.vmem [shape: bf16[32,128], index: 0, kind: input, shape index: {}]
  %s1 = inlined_call_operand.vmem [shape: bf16[32,128], index: 1, kind: input, shape index: {}]
  %s2 = inlined_call_operand.vmem [shape: f32[1,128], index: 2, kind: input, shape index: {}]
  %s3 = inlined_call_operand.vmem [shape: f32[1,128], index: 3, kind: input, shape index: {}]
  %s4 = inlined_call_operand.vmem [shape: bf16[32,128], index: 4, kind: output, shape index: {}]
  %s5 = sld [smem:[#allocation0]]
  $region26: #{encoder_forward.48} parent=0
    _
  %s7 = ssub.s32 1, %s5
  %s8 = scalar_select 0, %s7, %s5
  // Predicated region
  $region2: #{encoder_forward.48} parent=0 // pred_check
    _
  $region3: #{encoder_forward.48} parent=0 // pred_check_branch
    %10 = sbr.rel (0) target = $region5
  $region4: #{encoder_forward.48} parent=0 // pred_region
    _
  $region5: #{encoder_forward.48} parent=0 // pred_fallthru
    _
  // Predicated region
  $region6: #{encoder_forward.48} parent=0 // pred_check
    _
  $region7: #{encoder_forward.48} parent=0 // pred_check_branch
    %12 = sbr.rel (0) target = $region9
  $region8: #{encoder_forward.48} parent=0 // pred_region
    _
  $region9: #{encoder_forward.48} parent=0 // pred_fallthru
    _
  // Predicated region
  $region10: #{encoder_forward.48} parent=0 // pred_check
    _
  $region11: #{encoder_forward.48} parent=0 // pred_check_branch
    %14 = sbr.rel (0) target = $region13
  $region12: #{encoder_forward.48} parent=0 // pred_region
    _
  $region13: #{encoder_forward.48} parent=0 // pred_fallthru
    _
  // Predicated region
  $region14: #{encoder_forward.48} parent=0 // pred_check
    _
  $region15: #{encoder_forward.48} parent=0 // pred_check_branch
    %16 = sbr.rel (0) target = $region17
  $region16: #{encoder_forward.48} parent=0 // pred_region
    _
  $region17: #{encoder_forward.48} parent=0 // pred_fallthru
    _
  %v17 = vld [vmem:[%s0] sm:$0xf]
  %v18 = vld [vmem:[%s0 + $0x4] sm:$0xf]
  %v19 = vld [vmem:[%s0 + $0x8] sm:$0xf]
  %v20 = vld [vmem:[%s0 + $0xc] sm:$0xf]
  %v21 = vunpack.c.l.bf16 %v17
  %v22 = vunpack.c.l.bf16 %v18
  %v23 = vunpack.c.l.bf16 %v19
  %v24 = vunpack.c.l.bf16 %v20
  %v25 = vld [vmem:[%s2] sm:$0x1]
  %v27 = vlaneseq
  %v28 = vshrl.u32 %v27, 7
  %v29 = vsub.s32 0, %v28
  %v30 = vrot.slane %v25, %v29
  %v32 = vmul.f32 %v21, %v30
  %v33 = vmul.f32 %v22, %v30
  %v34 = vmul.f32 %v23, %v30
  %v35 = vmul.f32 %v24, %v30
  %v36 = vld [vmem:[%s3] sm:$0x1]
  %v38 = vlaneseq
  %v39 = vshrl.u32 %v38, 7
  %v40 = vsub.s32 0, %v39
  %v41 = vrot.slane %v36, %v40
  %v43 = vadd.f32 %v32, %v41
  %v44 = vadd.f32 %v33, %v41
  %v45 = vadd.f32 %v34, %v41
  %v46 = vadd.f32 %v35, %v41
  %v47 = vld [vmem:[%s1] sm:$0xf]
  %v48 = vld [vmem:[%s1 + $0x4] sm:$0xf]
  %v49 = vld [vmem:[%s1 + $0x8] sm:$0xf]
  %v50 = vld [vmem:[%s1 + $0xc] sm:$0xf]
  %v51 = vunpack.c.l.bf16 %v47
  %v52 = vunpack.c.l.bf16 %v48
  %v53 = vunpack.c.l.bf16 %v49
  %v54 = vunpack.c.l.bf16 %v50
  %v55 = vadd.f32 %v43, %v51
  %v56 = vadd.f32 %v44, %v52
  %v57 = vadd.f32 %v45, %v53
  %v58 = vadd.f32 %v46, %v54
  %v59 = vmax.f32 %v55, 0.0
  %v60 = vmax.f32 %v56, 0.0
  %v61 = vmax.f32 %v57, 0.0
  %v62 = vmax.f32 %v58, 0.0
  %v63 = vpack.c.bf16 %v60, %v59
  %v64 = vpack.c.bf16 %v62, %v61
  %v67 = vunpack.c.l.b16 %v63
  %v68 = vunpack.c.h.b16 %v63
  %v69 = vunpack.c.l.b16 %v64
  %v70 = vunpack.c.h.b16 %v64
  %v71 = vpack.c.b16 %v67, %v67
  %v72 = vpack.c.b16 %v68, %v68
  %v73 = vpack.c.b16 %v69, %v69
  %v74 = vpack.c.b16 %v70, %v70
  %79 = vst [vmem:[%s4] sm:$0xf] %v71
  %80 = vst [vmem:[%s4 + $0x4] sm:$0xf] %v72
  %81 = vst [vmem:[%s4 + $0x8] sm:$0xf] %v73
  %82 = vst [vmem:[%s4 + $0xc] sm:$0xf] %v74
  // Predicated region
  $region18: #{encoder_forward.48} parent=0 // pred_check
    _
  $region19: #{encoder_forward.48} parent=0 // pred_check_branch
    %84 = sbr.rel (0) target = $region21
  $region20: #{encoder_forward.48} parent=0 // pred_region
    _
  $region21: #{encoder_forward.48} parent=0 // pred_fallthru
    _
  // Predicated region
  $region22: #{encoder_forward.48} parent=0 // pred_check
    _
  $region23: #{encoder_forward.48} parent=0 // pred_check_branch
    %86 = sbr.rel (0) target = $region25
  $region24: #{encoder_forward.48} parent=0 // pred_region
    _
  $region25: #{encoder_forward.48} parent=0 // pred_fallthru
    _

// kernel: encoder_forward.54
$region0: #{encoder_forward.54}
  #allocation0 [shape = 'u32[]', space=smem, size = 0x4, offset = 0x4, fixed_abs, tag = 'smem constant byte address 0x4 - core index']
  #allocation1 [shape = 'u32[144,128]{1,0:T(1,128)}', space=vmem, size = 0x12000, scoped, tag = 'internal scratch']
  %s0 = inlined_call_operand.vmem [shape: bf16[8,256], index: 0, kind: input, shape index: {}]
  %s1 = inlined_call_operand.vmem [shape: f32[1,256], index: 1, kind: input, shape index: {}]
  %s2 = inlined_call_operand.vmem [shape: f32[1,256], index: 2, kind: input, shape index: {}]
  %s3 = inlined_call_operand.vmem [shape: bf16[8,256], index: 3, kind: output, shape index: {}]
  %s4 = sld [smem:[#allocation0]]
  $region22: #{encoder_forward.54} parent=0
    _
  %s6 = ssub.s32 1, %s4
  %s7 = scalar_select 0, %s6, %s4
  // Predicated region
  $region2: #{encoder_forward.54} parent=0 // pred_check
    _
  $region3: #{encoder_forward.54} parent=0 // pred_check_branch
    %9 = sbr.rel (0) target = $region5
  $region4: #{encoder_forward.54} parent=0 // pred_region
    _
  $region5: #{encoder_forward.54} parent=0 // pred_fallthru
    _
  // Predicated region
  $region6: #{encoder_forward.54} parent=0 // pred_check
    _
  $region7: #{encoder_forward.54} parent=0 // pred_check_branch
    %11 = sbr.rel (0) target = $region9
  $region8: #{encoder_forward.54} parent=0 // pred_region
    _
  $region9: #{encoder_forward.54} parent=0 // pred_fallthru
    _
  // Predicated region
  $region10: #{encoder_forward.54} parent=0 // pred_check
    _
  $region11: #{encoder_forward.54} parent=0 // pred_check_branch
    %13 = sbr.rel (0) target = $region13
  $region12: #{encoder_forward.54} parent=0 // pred_region
    _
  $region13: #{encoder_forward.54} parent=0 // pred_fallthru
    _
  %v14 = vld [vmem:[%s0] sm:$0xff]
  %v15 = vunpack.c.l.bf16 %v14
  %v16 = vunpack.c.h.bf16 %v14
  %v17 = vld [vmem:[%s1] sm:$0x3]
  %v19 = vlaneseq
  %v20 = vshrl.u32 %v19, 7
  %v21 = vsub.s32 0, %v20
  %v22 = vrot.slane %v17, %v21
  %v23 = vlaneseq
  %v24 = vshrl.u32 %v23, 7
  %v25 = vsub.s32 1, %v24
  %v26 = vrot.slane %v17, %v25
  %v29 = vmul.f32 %v15, %v22
  %v30 = vmul.f32 %v16, %v26
  %v31 = vld [vmem:[%s2] sm:$0x3]
  %v33 = vlaneseq
  %v34 = vshrl.u32 %v33, 7
  %v35 = vsub.s32 0, %v34
  %v36 = vrot.slane %v31, %v35
  %v37 = vlaneseq
  %v38 = vshrl.u32 %v37, 7
  %v39 = vsub.s32 1, %v38
  %v40 = vrot.slane %v31, %v39
  %v43 = vadd.f32 %v29, %v36
  %v44 = vadd.f32 %v30, %v40
  %v45 = vmax.f32 %v43, 0.0
  %v46 = vmax.f32 %v44, 0.0
  %v47 = vpack.c.bf16 %v45, %v45
  %v48 = vpack.c.bf16 %v46, %v46
  %v51 = vunpack.c.l.b16 %v47
  %v52 = vunpack.c.l.b16 %v48
  %v53 = vpack.c.b16 %v52, %v51
  %55 = vst [vmem:[%s3] sm:$0xff] %v53
  // Predicated region
  $region14: #{encoder_forward.54} parent=0 // pred_check
    _
  $region15: #{encoder_forward.54} parent=0 // pred_check_branch
    %57 = sbr.rel (0) target = $region17
  $region16: #{encoder_forward.54} parent=0 // pred_region
    _
  $region17: #{encoder_forward.54} parent=0 // pred_fallthru
    _
  // Predicated region
  $region18: #{encoder_forward.54} parent=0 // pred_check
    _
  $region19: #{encoder_forward.54} parent=0 // pred_check_branch
    %59 = sbr.rel (0) target = $region21
  $region20: #{encoder_forward.54} parent=0 // pred_region
    _
  $region21: #{encoder_forward.54} parent=0 // pred_fallthru
    _

// kernel: encoder_forward.55
$region0: #{encoder_forward.55}
  #allocation0 [shape = 'u32[]', space=smem, size = 0x4, offset = 0x4, fixed_abs, tag = 'smem constant byte address 0x4 - core index']
  #allocation1 [shape = 'u32[144,128]{1,0:T(1,128)}', space=vmem, size = 0x12000, scoped, tag = 'internal scratch']
  %s0 = inlined_call_operand.vmem [shape: bf16[8,128], index: 0, kind: input, shape index: {}]
  %s1 = inlined_call_operand.vmem [shape: bf16[128,256], index: 1, kind: input, shape index: {}]
  %s2 = inlined_call_operand.vmem [shape: bf16[8,256], index: 2, kind: output, shape index: {0}]
  %s3 = inlined_call_operand.vmem [shape: f32[1,2,256], index: 3, kind: output, shape index: {1}]
  %4 = xla_tuple %s2, %s3
  %s5 = sld [smem:[#allocation0]]
  $region26: #{encoder_forward.55} parent=0
    _
  %s7 = ssub.s32 1, %s5
  %s8 = scalar_select 0, %s7, %s5
  // Predicated region
  $region2: #{encoder_forward.55} parent=0 // pred_check
    _
  $region3: #{encoder_forward.55} parent=0 // pred_check_branch
    %10 = sbr.rel (0) target = $region5
  $region4: #{encoder_forward.55} parent=0 // pred_region
    _
  $region5: #{encoder_forward.55} parent=0 // pred_fallthru
    _
  // Predicated region
  $region6: #{encoder_forward.55} parent=0 // pred_check
    _
  $region7: #{encoder_forward.55} parent=0 // pred_check_branch
    %12 = sbr.rel (0) target = $region9
  $region8: #{encoder_forward.55} parent=0 // pred_region
    _
  $region9: #{encoder_forward.55} parent=0 // pred_fallthru
    _
  %v14 = vld [vmem:[%s0] sm:$0xf]
  %v15 = vld [vmem:[%s1] sm:$0xff]
  %v16 = vld [vmem:[%s1 + $0x8] sm:$0xff]
  %v17 = vld [vmem:[%s1 + $0x10] sm:$0xff]
  %v18 = vld [vmem:[%s1 + $0x18] sm:$0xff]
  %v19 = vld [vmem:[%s1 + $0x20] sm:$0xff]
  %v20 = vld [vmem:[%s1 + $0x28] sm:$0xff]
  %v21 = vld [vmem:[%s1 + $0x30] sm:$0xff]
  %v22 = vld [vmem:[%s1 + $0x38] sm:$0xff]
  %v23 = vld [vmem:[%s1 + $0x40] sm:$0xff]
  %v24 = vld [vmem:[%s1 + $0x48] sm:$0xff]
  %v25 = vld [vmem:[%s1 + $0x50] sm:$0xff]
  %v26 = vld [vmem:[%s1 + $0x58] sm:$0xff]
  %v27 = vld [vmem:[%s1 + $0x60] sm:$0xff]
  %v28 = vld [vmem:[%s1 + $0x68] sm:$0xff]
  %v29 = vld [vmem:[%s1 + $0x70] sm:$0xff]
  %v30 = vld [vmem:[%s1 + $0x78] sm:$0xff]
  %v47 = vunpack.c.l.b16 %v15
  %v48 = vunpack.c.h.b16 %v15
  %v49 = vunpack.c.l.b16 %v16
  %v50 = vunpack.c.h.b16 %v16
  %v51 = vunpack.c.l.b16 %v17
  %v52 = vunpack.c.h.b16 %v17
  %v53 = vunpack.c.l.b16 %v18
  %v54 = vunpack.c.h.b16 %v18
  %v55 = vunpack.c.l.b16 %v19
  %v56 = vunpack.c.h.b16 %v19
  %v57 = vunpack.c.l.b16 %v20
  %v58 = vunpack.c.h.b16 %v20
  %v59 = vunpack.c.l.b16 %v21
  %v60 = vunpack.c.h.b16 %v21
  %v61 = vunpack.c.l.b16 %v22
  %v62 = vunpack.c.h.b16 %v22
  %v63 = vunpack.c.l.b16 %v23
  %v64 = vunpack.c.h.b16 %v23
  %v65 = vunpack.c.l.b16 %v24
  %v66 = vunpack.c.h.b16 %v24
  %v67 = vunpack.c.l.b16 %v25
  %v68 = vunpack.c.h.b16 %v25
  %v69 = vunpack.c.l.b16 %v26
  %v70 = vunpack.c.h.b16 %v26
  %v71 = vunpack.c.l.b16 %v27
  %v72 = vunpack.c.h.b16 %v27
  %v73 = vunpack.c.l.b16 %v28
  %v74 = vunpack.c.h.b16 %v28
  %v75 = vunpack.c.l.b16 %v29
  %v76 = vunpack.c.h.b16 %v29
  %v77 = vunpack.c.l.b16 %v30
  %v78 = vunpack.c.h.b16 %v30
  %v79 = vpack.c.b16 %v49, %v47
  %v80 = vpack.c.b16 %v50, %v48
  %v81 = vpack.c.b16 %v53, %v51
  %v82 = vpack.c.b16 %v54, %v52
  %v83 = vpack.c.b16 %v57, %v55
  %v84 = vpack.c.b16 %v58, %v56
  %v85 = vpack.c.b16 %v61, %v59
  %v86 = vpack.c.b16 %v62, %v60
  %v87 = vpack.c.b16 %v65, %v63
  %v88 = vpack.c.b16 %v66, %v64
  %v89 = vpack.c.b16 %v69, %v67
  %v90 = vpack.c.b16 %v70, %v68
  %v91 = vpack.c.b16 %v73, %v71
  %v92 = vpack.c.b16 %v74, %v72
  %v93 = vpack.c.b16 %v77, %v75
  %v94 = vpack.c.b16 %v78, %v76
  %111 = vmatprep.subr.bf16.mxu0 %v80
  %112 = vmatpush1.bf16.msra.mxu0 %v79
  %113 = vmatprep.subr.bf16.mxu0 %v82
  %114 = vmatpush1.bf16.msra.mxu0 %v81
  %115 = vmatprep.subr.bf16.mxu0 %v84
  %116 = vmatpush1.bf16.msra.mxu0 %v83
  %117 = vmatprep.subr.bf16.mxu0 %v86
  %118 = vmatpush1.bf16.msra.mxu0 %v85
  %119 = vmatprep.subr.bf16.mxu0 %v88
  %120 = vmatpush1.bf16.msra.mxu0 %v87
  %121 = vmatprep.subr.bf16.mxu0 %v90
  %122 = vmatpush1.bf16.msra.mxu0 %v89
  %123 = vmatprep.subr.bf16.mxu0 %v92
  %124 = vmatpush1.bf16.msra.mxu0 %v91
  %125 = vmatprep.subr.bf16.mxu0 %v94
  %126 = vmatpush1.bf16.msra.mxu0 %v93
  %127 = vmatprep.subr.bf16.mxu0 0
  %128 = vmatpush1.bf16.msra.mxu0 0
  %129 = vmatprep.subr.bf16.mxu0 0
  %130 = vmatpush1.bf16.msra.mxu0 0
  %131 = vmatprep.subr.bf16.mxu0 0
  %132 = vmatpush1.bf16.msra.mxu0 0
  %133 = vmatprep.subr.bf16.mxu0 0
  %134 = vmatpush1.bf16.msra.mxu0 0
  %135 = vmatprep.subr.bf16.mxu0 0
  %136 = vmatpush1.bf16.msra.mxu0 0
  %137 = vmatprep.subr.bf16.mxu0 0
  %138 = vmatpush1.bf16.msra.mxu0 0
  %139 = vmatprep.subr.bf16.mxu0 0
  %140 = vmatpush1.bf16.msra.mxu0 0
  %141 = vmatprep.subr.bf16.mxu0 0
  %142 = vmatpush1.bf16.msra.mxu0 0
  %143 = vmatprep.mubr.bf16.mxu0 0
  %144 = vmatmul.mubr.bf16.gmra.mrb[0].mxu0 %v14
  %v145 = vpop.f32.mrb[0].mxu0
  %v146 = vadd.f32 0.0, %v145
  %v147 = vpop.f32.mrb[0].mxu0
  %v148 = vadd.f32 0.0, %v147
  %v149 = vpop.f32.mrb[0].mxu0
  %v150 = vpop.f32.mrb[0].mxu0
  %151 = vdwg.mxu0
  %v152 = vpack.c.bf16 %v146, %v146
  %v153 = vpack.c.bf16 %v148, %v148
  %v156 = vunpack.c.l.b16 %v152
  %v157 = vunpack.c.l.b16 %v153
  %v158 = vpack.c.b16 %v157, %v156
  %160 = vst [vmem:[%s2] sm:$0xff] %v158
  %v161 = vrot.slane %v146, 4
  %v162 = vadd.f32 %v146, %v161
  %v163 = vrot.slane %v162, 2
  %v164 = vadd.f32 %v162, %v163
  %v165 = vrot.slane %v164, 1
  %v166 = vadd.f32 %v164, %v165
  %v167 = vrot.slane %v148, 4
  %v168 = vadd.f32 %v148, %v167
  %v169 = vrot.slane %v168, 2
  %v170 = vadd.f32 %v168, %v169
  %v171 = vrot.slane %v170, 1
  %v172 = vadd.f32 %v170, %v171
  %v173 = vmul.f32 %v146, %v146
  %v174 = vmul.f32 %v148, %v148
  %v175 = vrot.slane %v173, 4
  %v176 = vadd.f32 %v173, %v175
  %v177 = vrot.slane %v176, 2
  %v178 = vadd.f32 %v176, %v177
  %v179 = vrot.slane %v178, 1
  %v180 = vadd.f32 %v178, %v179
  %v181 = vrot.slane %v174, 4
  %v182 = vadd.f32 %v174, %v181
  %v183 = vrot.slane %v182, 2
  %v184 = vadd.f32 %v182, %v183
  %v185 = vrot.slane %v184, 1
  %v186 = vadd.f32 %v184, %v185
  %vm187 = vcmask 1040384
  %v188 = vsel %vm187, %v166, %v180
  %v189 = vsel %vm187, %v172, %v186
  %v192 = vcombine.low %v188, %v189
  %v194 = vunpack.c.l.s4 1983009808
  %v195 = vunpack.c.0.s8 %v194
  %v196 = vlaneseq
  %v197 = vshrl.u32 %v196, 7
  %v198 = vsub.s32 %v195, %v197
  %v199 = vrot.slane %v192, %v198
  %201 = vst [vmem:[%s3] sm:$0xf] %v199
  // Predicated region
  $region10: #{encoder_forward.55} parent=0 // pred_check
    _
  $region11: #{encoder_forward.55} parent=0 // pred_check_branch
    %203 = sbr.rel (0) target = $region13
  $region12: #{encoder_forward.55} parent=0 // pred_region
    _
  $region13: #{encoder_forward.55} parent=0 // pred_fallthru
    _
  // Predicated region
  $region14: #{encoder_forward.55} parent=0 // pred_check
    _
  $region15: #{encoder_forward.55} parent=0 // pred_check_branch
    %205 = sbr.rel (0) target = $region17
  $region16: #{encoder_forward.55} parent=0 // pred_region
    _
  $region17: #{encoder_forward.55} parent=0 // pred_fallthru
    _
  // Predicated region
  $region18: #{encoder_forward.55} parent=0 // pred_check
    _
  $region19: #{encoder_forward.55} parent=0 // pred_check_branch
    %207 = sbr.rel (0) target = $region21
  $region20: #{encoder_forward.55} parent=0 // pred_region
    _
  $region21: #{encoder_forward.55} parent=0 // pred_fallthru
    _
  // Predicated region
  $region22: #{encoder_forward.55} parent=0 // pred_check
    _
  $region23: #{encoder_forward.55} parent=0 // pred_check_branch
    %209 = sbr.rel (0) target = $region25
  $region24: #{encoder_forward.55} parent=0 // pred_region
    _
  $region25: #{encoder_forward.55} parent=0 // pred_fallthru
    _

// kernel: encoder_forward.56
$region0: #{encoder_forward.56}
  #allocation0 [shape = 'u32[]', space=smem, size = 0x4, offset = 0x4, fixed_abs, tag = 'smem constant byte address 0x4 - core index']
  #allocation1 [shape = 'u32[144,128]{1,0:T(1,128)}', space=vmem, size = 0x12000, scoped, tag = 'internal scratch']
  %s0 = inlined_call_operand.vmem [shape: bf16[8,256], index: 0, kind: input, shape index: {}]
  %s1 = inlined_call_operand.vmem [shape: f32[1,256], index: 1, kind: input, shape index: {}]
  %s2 = inlined_call_operand.vmem [shape: f32[1,256], index: 2, kind: input, shape index: {}]
  %s3 = inlined_call_operand.vmem [shape: bf16[8,256], index: 3, kind: output, shape index: {}]
  %s4 = sld [smem:[#allocation0]]
  $region22: #{encoder_forward.56} parent=0
    _
  %s6 = ssub.s32 1, %s4
  %s7 = scalar_select 0, %s6, %s4
  // Predicated region
  $region2: #{encoder_forward.56} parent=0 // pred_check
    _
  $region3: #{encoder_forward.56} parent=0 // pred_check_branch
    %9 = sbr.rel (0) target = $region5
  $region4: #{encoder_forward.56} parent=0 // pred_region
    _
  $region5: #{encoder_forward.56} parent=0 // pred_fallthru
    _
  // Predicated region
  $region6: #{encoder_forward.56} parent=0 // pred_check
    _
  $region7: #{encoder_forward.56} parent=0 // pred_check_branch
    %11 = sbr.rel (0) target = $region9
  $region8: #{encoder_forward.56} parent=0 // pred_region
    _
  $region9: #{encoder_forward.56} parent=0 // pred_fallthru
    _
  // Predicated region
  $region10: #{encoder_forward.56} parent=0 // pred_check
    _
  $region11: #{encoder_forward.56} parent=0 // pred_check_branch
    %13 = sbr.rel (0) target = $region13
  $region12: #{encoder_forward.56} parent=0 // pred_region
    _
  $region13: #{encoder_forward.56} parent=0 // pred_fallthru
    _
  %v14 = vld [vmem:[%s0] sm:$0xff]
  %v15 = vunpack.c.l.bf16 %v14
  %v16 = vunpack.c.h.bf16 %v14
  %v17 = vld [vmem:[%s1] sm:$0x3]
  %v19 = vlaneseq
  %v20 = vshrl.u32 %v19, 7
  %v21 = vsub.s32 0, %v20
  %v22 = vrot.slane %v17, %v21
  %v23 = vlaneseq
  %v24 = vshrl.u32 %v23, 7
  %v25 = vsub.s32 1, %v24
  %v26 = vrot.slane %v17, %v25
  %v29 = vmul.f32 %v15, %v22
  %v30 = vmul.f32 %v16, %v26
  %v31 = vld [vmem:[%s2] sm:$0x3]
  %v33 = vlaneseq
  %v34 = vshrl.u32 %v33, 7
  %v35 = vsub.s32 0, %v34
  %v36 = vrot.slane %v31, %v35
  %v37 = vlaneseq
  %v38 = vshrl.u32 %v37, 7
  %v39 = vsub.s32 1, %v38
  %v40 = vrot.slane %v31, %v39
  %v43 = vadd.f32 %v29, %v36
  %v44 = vadd.f32 %v30, %v40
  %v45 = vpack.c.bf16 %v43, %v43
  %v46 = vpack.c.bf16 %v44, %v44
  %v49 = vunpack.c.l.b16 %v45
  %v50 = vunpack.c.l.b16 %v46
  %v51 = vpack.c.b16 %v50, %v49
  %53 = vst [vmem:[%s3] sm:$0xff] %v51
  // Predicated region
  $region14: #{encoder_forward.56} parent=0 // pred_check
    _
  $region15: #{encoder_forward.56} parent=0 // pred_check_branch
    %55 = sbr.rel (0) target = $region17
  $region16: #{encoder_forward.56} parent=0 // pred_region
    _
  $region17: #{encoder_forward.56} parent=0 // pred_fallthru
    _
  // Predicated region
  $region18: #{encoder_forward.56} parent=0 // pred_check
    _
  $region19: #{encoder_forward.56} parent=0 // pred_check_branch
    %57 = sbr.rel (0) target = $region21
  $region20: #{encoder_forward.56} parent=0 // pred_region
    _
  $region21: #{encoder_forward.56} parent=0 // pred_fallthru
    _

// kernel: encoder_forward.53
$region0: #{encoder_forward.53}
  #allocation0 [shape = 'u32[]', space=smem, size = 0x4, offset = 0x4, fixed_abs, tag = 'smem constant byte address 0x4 - core index']
  #allocation1 [shape = 'u32[144,128]{1,0:T(1,128)}', space=vmem, size = 0x12000, scoped, tag = 'internal scratch']
  %s0 = inlined_call_operand.vmem [shape: bf16[8,1152], index: 0, kind: input, shape index: {}]
  %s1 = inlined_call_operand.vmem [shape: bf16[1152,256], index: 1, kind: input, shape index: {}]
  %s2 = inlined_call_operand.vmem [shape: bf16[8,256], index: 2, kind: output, shape index: {0}]
  %s3 = inlined_call_operand.vmem [shape: f32[1,2,256], index: 3, kind: output, shape index: {1}]
  %4 = xla_tuple %s2, %s3
  %s5 = sld [smem:[#allocation0]]
  $region26: #{encoder_forward.53} parent=0
    _
  %s7 = ssub.s32 1, %s5
  %s8 = scalar_select 0, %s7, %s5
  // Predicated region
  $region2: #{encoder_forward.53} parent=0 // pred_check
    _
  $region3: #{encoder_forward.53} parent=0 // pred_check_branch
    %10 = sbr.rel (0) target = $region5
  $region4: #{encoder_forward.53} parent=0 // pred_region
    _
  $region5: #{encoder_forward.53} parent=0 // pred_fallthru
    _
  // Predicated region
  $region6: #{encoder_forward.53} parent=0 // pred_check
    _
  $region7: #{encoder_forward.53} parent=0 // pred_check_branch
    %12 = sbr.rel (0) target = $region9
  $region8: #{encoder_forward.53} parent=0 // pred_region
    _
  $region9: #{encoder_forward.53} parent=0 // pred_fallthru
    _
  %v14 = vld [vmem:[%s0] sm:$0xff]
  %v15 = vld [vmem:[%s0 + $0x8] sm:$0xff]
  %v16 = vld [vmem:[%s0 + $0x10] sm:$0xff]
  %v17 = vld [vmem:[%s0 + $0x18] sm:$0xff]
  %v18 = vld [vmem:[%s0 + $0x20] sm:$0xf]
  %v19 = vld [vmem:[%s1] sm:$0xff]
  %v20 = vld [vmem:[%s1 + $0x8] sm:$0xff]
  %v21 = vld [vmem:[%s1 + $0x10] sm:$0xff]
  %v22 = vld [vmem:[%s1 + $0x18] sm:$0xff]
  %v23 = vld [vmem:[%s1 + $0x20] sm:$0xff]
  %v24 = vld [vmem:[%s1 + $0x28] sm:$0xff]
  %v25 = vld [vmem:[%s1 + $0x30] sm:$0xff]
  %v26 = vld [vmem:[%s1 + $0x38] sm:$0xff]
  %v27 = vld [vmem:[%s1 + $0x40] sm:$0xff]
  %v28 = vld [vmem:[%s1 + $0x48] sm:$0xff]
  %v29 = vld [vmem:[%s1 + $0x50] sm:$0xff]
  %v30 = vld [vmem:[%s1 + $0x58] sm:$0xff]
  %v31 = vld [vmem:[%s1 + $0x60] sm:$0xff]
  %v32 = vld [vmem:[%s1 + $0x68] sm:$0xff]
  %v33 = vld [vmem:[%s1 + $0x70] sm:$0xff]
  %v34 = vld [vmem:[%s1 + $0x78] sm:$0xff]
  %v35 = vld [vmem:[%s1 + $0x80] sm:$0xff]
  %v36 = vld [vmem:[%s1 + $0x88] sm:$0xff]
  %v37 = vld [vmem:[%s1 + $0x90] sm:$0xff]
  %v38 = vld [vmem:[%s1 + $0x98] sm:$0xff]
  %v39 = vld [vmem:[%s1 + $0xa0] sm:$0xff]
  %v40 = vld [vmem:[%s1 + $0xa8] sm:$0xff]
  %v41 = vld [vmem:[%s1 + $0xb0] sm:$0xff]
  %v42 = vld [vmem:[%s1 + $0xb8] sm:$0xff]
  %v43 = vld [vmem:[%s1 + $0xc0] sm:$0xff]
  %v44 = vld [vmem:[%s1 + $0xc8] sm:$0xff]
  %v45 = vld [vmem:[%s1 + $0xd0] sm:$0xff]
  %v46 = vld [vmem:[%s1 + $0xd8] sm:$0xff]
  %v47 = vld [vmem:[%s1 + $0xe0] sm:$0xff]
  %v48 = vld [vmem:[%s1 + $0xe8] sm:$0xff]
  %v49 = vld [vmem:[%s1 + $0xf0] sm:$0xff]
  %v50 = vld [vmem:[%s1 + $0xf8] sm:$0xff]
  %v51 = vld [vmem:[%s1 + $0x100] sm:$0xff]
  %v52 = vld [vmem:[%s1 + $0x108] sm:$0xff]
  %v53 = vld [vmem:[%s1 + $0x110] sm:$0xff]
  %v54 = vld [vmem:[%s1 + $0x118] sm:$0xff]
  %v55 = vld [vmem:[%s1 + $0x120] sm:$0xff]
  %v56 = vld [vmem:[%s1 + $0x128] sm:$0xff]
  %v57 = vld [vmem:[%s1 + $0x130] sm:$0xff]
  %v58 = vld [vmem:[%s1 + $0x138] sm:$0xff]
  %v59 = vld [vmem:[%s1 + $0x140] sm:$0xff]
  %v60 = vld [vmem:[%s1 + $0x148] sm:$0xff]
  %v61 = vld [vmem:[%s1 + $0x150] sm:$0xff]
  %v62 = vld [vmem:[%s1 + $0x158] sm:$0xff]
  %v63 = vld [vmem:[%s1 + $0x160] sm:$0xff]
  %v64 = vld [vmem:[%s1 + $0x168] sm:$0xff]
  %v65 = vld [vmem:[%s1 + $0x170] sm:$0xff]
  %v66 = vld [vmem:[%s1 + $0x178] sm:$0xff]
  %v67 = vld [vmem:[%s1 + $0x180] sm:$0xff]
  %v68 = vld [vmem:[%s1 + $0x188] sm:$0xff]
  %v69 = vld [vmem:[%s1 + $0x190] sm:$0xff]
  %v70 = vld [vmem:[%s1 + $0x198] sm:$0xff]
  %v71 = vld [vmem:[%s1 + $0x1a0] sm:$0xff]
  %v72 = vld [vmem:[%s1 + $0x1a8] sm:$0xff]
  %v73 = vld [vmem:[%s1 + $0x1b0] sm:$0xff]
  %v74 = vld [vmem:[%s1 + $0x1b8] sm:$0xff]
  %v75 = vld [vmem:[%s1 + $0x1c0] sm:$0xff]
  %v76 = vld [vmem:[%s1 + $0x1c8] sm:$0xff]
  %v77 = vld [vmem:[%s1 + $0x1d0] sm:$0xff]
  %v78 = vld [vmem:[%s1 + $0x1d8] sm:$0xff]
  %v79 = vld [vmem:[%s1 + $0x1e0] sm:$0xff]
  %v80 = vld [vmem:[%s1 + $0x1e8] sm:$0xff]
  %v81 = vld [vmem:[%s1 + $0x1f0] sm:$0xff]
  %v82 = vld [vmem:[%s1 + $0x1f8] sm:$0xff]
  %v83 = vld [vmem:[%s1 + $0x200] sm:$0xff]
  %v84 = vld [vmem:[%s1 + $0x208] sm:$0xff]
  %v85 = vld [vmem:[%s1 + $0x210] sm:$0xff]
  %v86 = vld [vmem:[%s1 + $0x218] sm:$0xff]
  %v87 = vld [vmem:[%s1 + $0x220] sm:$0xff]
  %v88 = vld [vmem:[%s1 + $0x228] sm:$0xff]
  %v89 = vld [vmem:[%s1 + $0x230] sm:$0xff]
  %v90 = vld [vmem:[%s1 + $0x238] sm:$0xff]
  %v91 = vld [vmem:[%s1 + $0x240] sm:$0xff]
  %v92 = vld [vmem:[%s1 + $0x248] sm:$0xff]
  %v93 = vld [vmem:[%s1 + $0x250] sm:$0xff]
  %v94 = vld [vmem:[%s1 + $0x258] sm:$0xff]
  %v95 = vld [vmem:[%s1 + $0x260] sm:$0xff]
  %v96 = vld [vmem:[%s1 + $0x268] sm:$0xff]
  %v97 = vld [vmem:[%s1 + $0x270] sm:$0xff]
  %v98 = vld [vmem:[%s1 + $0x278] sm:$0xff]
  %v99 = vld [vmem:[%s1 + $0x280] sm:$0xff]
  %v100 = vld [vmem:[%s1 + $0x288] sm:$0xff]
  %v101 = vld [vmem:[%s1 + $0x290] sm:$0xff]
  %v102 = vld [vmem:[%s1 + $0x298] sm:$0xff]
  %v103 = vld [vmem:[%s1 + $0x2a0] sm:$0xff]
  %v104 = vld [vmem:[%s1 + $0x2a8] sm:$0xff]
  %v105 = vld [vmem:[%s1 + $0x2b0] sm:$0xff]
  %v106 = vld [vmem:[%s1 + $0x2b8] sm:$0xff]
  %v107 = vld [vmem:[%s1 + $0x2c0] sm:$0xff]
  %v108 = vld [vmem:[%s1 + $0x2c8] sm:$0xff]
  %v109 = vld [vmem:[%s1 + $0x2d0] sm:$0xff]
  %v110 = vld [vmem:[%s1 + $0x2d8] sm:$0xff]
  %v111 = vld [vmem:[%s1 + $0x2e0] sm:$0xff]
  %v112 = vld [vmem:[%s1 + $0x2e8] sm:$0xff]
  %v113 = vld [vmem:[%s1 + $0x2f0] sm:$0xff]
  %v114 = vld [vmem:[%s1 + $0x2f8] sm:$0xff]
  %v115 = vld [vmem:[%s1 + $0x300] sm:$0xff]
  %v116 = vld [vmem:[%s1 + $0x308] sm:$0xff]
  %v117 = vld [vmem:[%s1 + $0x310] sm:$0xff]
  %v118 = vld [vmem:[%s1 + $0x318] sm:$0xff]
  %v119 = vld [vmem:[%s1 + $0x320] sm:$0xff]
  %v120 = vld [vmem:[%s1 + $0x328] sm:$0xff]
  %v121 = vld [vmem:[%s1 + $0x330] sm:$0xff]
  %v122 = vld [vmem:[%s1 + $0x338] sm:$0xff]
  %v123 = vld [vmem:[%s1 + $0x340] sm:$0xff]
  %v124 = vld [vmem:[%s1 + $0x348] sm:$0xff]
  %v125 = vld [vmem:[%s1 + $0x350] sm:$0xff]
  %v126 = vld [vmem:[%s1 + $0x358] sm:$0xff]
  %v127 = vld [vmem:[%s1 + $0x360] sm:$0xff]
  %v128 = vld [vmem:[%s1 + $0x368] sm:$0xff]
  %v129 = vld [vmem:[%s1 + $0x370] sm:$0xff]
  %v130 = vld [vmem:[%s1 + $0x378] sm:$0xff]
  %v131 = vld [vmem:[%s1 + $0x380] sm:$0xff]
  %v132 = vld [vmem:[%s1 + $0x388] sm:$0xff]
  %v133 = vld [vmem:[%s1 + $0x390] sm:$0xff]
  %v134 = vld [vmem:[%s1 + $0x398] sm:$0xff]
  %v135 = vld [vmem:[%s1 + $0x3a0] sm:$0xff]
  %v136 = vld [vmem:[%s1 + $0x3a8] sm:$0xff]
  %v137 = vld [vmem:[%s1 + $0x3b0] sm:$0xff]
  %v138 = vld [vmem:[%s1 + $0x3b8] sm:$0xff]
  %v139 = vld [vmem:[%s1 + $0x3c0] sm:$0xff]
  %v140 = vld [vmem:[%s1 + $0x3c8] sm:$0xff]
  %v141 = vld [vmem:[%s1 + $0x3d0] sm:$0xff]
  %v142 = vld [vmem:[%s1 + $0x3d8] sm:$0xff]
  %v143 = vld [vmem:[%s1 + $0x3e0] sm:$0xff]
  %v144 = vld [vmem:[%s1 + $0x3e8] sm:$0xff]
  %v145 = vld [vmem:[%s1 + $0x3f0] sm:$0xff]
  %v146 = vld [vmem:[%s1 + $0x3f8] sm:$0xff]
  %v147 = vld [vmem:[%s1 + $0x400] sm:$0xff]
  %v148 = vld [vmem:[%s1 + $0x408] sm:$0xff]
  %v149 = vld [vmem:[%s1 + $0x410] sm:$0xff]
  %v150 = vld [vmem:[%s1 + $0x418] sm:$0xff]
  %v151 = vld [vmem:[%s1 + $0x420] sm:$0xff]
  %v152 = vld [vmem:[%s1 + $0x428] sm:$0xff]
  %v153 = vld [vmem:[%s1 + $0x430] sm:$0xff]
  %v154 = vld [vmem:[%s1 + $0x438] sm:$0xff]
  %v155 = vld [vmem:[%s1 + $0x440] sm:$0xff]
  %v156 = vld [vmem:[%s1 + $0x448] sm:$0xff]
  %v157 = vld [vmem:[%s1 + $0x450] sm:$0xff]
  %v158 = vld [vmem:[%s1 + $0x458] sm:$0xff]
  %v159 = vld [vmem:[%s1 + $0x460] sm:$0xff]
  %v160 = vld [vmem:[%s1 + $0x468] sm:$0xff]
  %v161 = vld [vmem:[%s1 + $0x470] sm:$0xff]
  %v162 = vld [vmem:[%s1 + $0x478] sm:$0xff]
  %v168 = vunpack.c.l.b16 %v14
  %v169 = vunpack.c.h.b16 %v14
  %v170 = vunpack.c.l.b16 %v15
  %v171 = vunpack.c.h.b16 %v15
  %v172 = vunpack.c.l.b16 %v16
  %v173 = vunpack.c.h.b16 %v16
  %v174 = vunpack.c.l.b16 %v17
  %v175 = vunpack.c.h.b16 %v17
  %v176 = vunpack.c.l.b16 %v18
  %v177 = vpack.c.b16 %v168, %v168
  %v178 = vpack.c.b16 %v169, %v169
  %v179 = vpack.c.b16 %v170, %v170
  %v180 = vpack.c.b16 %v171, %v171
  %v181 = vpack.c.b16 %v172, %v172
  %v182 = vpack.c.b16 %v173, %v173
  %v183 = vpack.c.b16 %v174, %v174
  %v184 = vpack.c.b16 %v175, %v175
  %v185 = vpack.c.b16 %v176, %v176
  %v339 = vunpack.c.l.b16 %v19
  %v340 = vunpack.c.h.b16 %v19
  %v341 = vunpack.c.l.b16 %v20
  %v342 = vunpack.c.h.b16 %v20
  %v343 = vunpack.c.l.b16 %v21
  %v344 = vunpack.c.h.b16 %v21
  %v345 = vunpack.c.l.b16 %v22
  %v346 = vunpack.c.h.b16 %v22
  %v347 = vunpack.c.l.b16 %v23
  %v348 = vunpack.c.h.b16 %v23
  %v349 = vunpack.c.l.b16 %v24
  %v350 = vunpack.c.h.b16 %v24
  %v351 = vunpack.c.l.b16 %v25
  %v352 = vunpack.c.h.b16 %v25
  %v353 = vunpack.c.l.b16 %v26
  %v354 = vunpack.c.h.b16 %v26
  %v355 = vunpack.c.l.b16 %v27
  %v356 = vunpack.c.h.b16 %v27
  %v357 = vunpack.c.l.b16 %v28
  %v358 = vunpack.c.h.b16 %v28
  %v359 = vunpack.c.l.b16 %v29
  %v360 = vunpack.c.h.b16 %v29
  %v361 = vunpack.c.l.b16 %v30
  %v362 = vunpack.c.h.b16 %v30
  %v363 = vunpack.c.l.b16 %v31
  %v364 = vunpack.c.h.b16 %v31
  %v365 = vunpack.c.l.b16 %v32
  %v366 = vunpack.c.h.b16 %v32
  %v367 = vunpack.c.l.b16 %v33
  %v368 = vunpack.c.h.b16 %v33
  %v369 = vunpack.c.l.b16 %v34
  %v370 = vunpack.c.h.b16 %v34
  %v371 = vunpack.c.l.b16 %v35
  %v372 = vunpack.c.h.b16 %v35
  %v373 = vunpack.c.l.b16 %v36
  %v374 = vunpack.c.h.b16 %v36
  %v375 = vunpack.c.l.b16 %v37
  %v376 = vunpack.c.h.b16 %v37
  %v377 = vunpack.c.l.b16 %v38
  %v378 = vunpack.c.h.b16 %v38
  %v379 = vunpack.c.l.b16 %v39
  %v380 = vunpack.c.h.b16 %v39
  %v381 = vunpack.c.l.b16 %v40
  %v382 = vunpack.c.h.b16 %v40
  %v383 = vunpack.c.l.b16 %v41
  %v384 = vunpack.c.h.b16 %v41
  %v385 = vunpack.c.l.b16 %v42
  %v386 = vunpack.c.h.b16 %v42
  %v387 = vunpack.c.l.b16 %v43
  %v388 = vunpack.c.h.b16 %v43
  %v389 = vunpack.c.l.b16 %v44
  %v390 = vunpack.c.h.b16 %v44
  %v391 = vunpack.c.l.b16 %v45
  %v392 = vunpack.c.h.b16 %v45
  %v393 = vunpack.c.l.b16 %v46
  %v394 = vunpack.c.h.b16 %v46
  %v395 = vunpack.c.l.b16 %v47
  %v396 = vunpack.c.h.b16 %v47
  %v397 = vunpack.c.l.b16 %v48
  %v398 = vunpack.c.h.b16 %v48
  %v399 = vunpack.c.l.b16 %v49
  %v400 = vunpack.c.h.b16 %v49
  %v401 = vunpack.c.l.b16 %v50
  %v402 = vunpack.c.h.b16 %v50
  %v403 = vunpack.c.l.b16 %v51
  %v404 = vunpack.c.h.b16 %v51
  %v405 = vunpack.c.l.b16 %v52
  %v406 = vunpack.c.h.b16 %v52
  %v407 = vunpack.c.l.b16 %v53
  %v408 = vunpack.c.h.b16 %v53
  %v409 = vunpack.c.l.b16 %v54
  %v410 = vunpack.c.h.b16 %v54
  %v411 = vunpack.c.l.b16 %v55
  %v412 = vunpack.c.h.b16 %v55
  %v413 = vunpack.c.l.b16 %v56
  %v414 = vunpack.c.h.b16 %v56
  %v415 = vunpack.c.l.b16 %v57
  %v416 = vunpack.c.h.b16 %v57
  %v417 = vunpack.c.l.b16 %v58
  %v418 = vunpack.c.h.b16 %v58
  %v419 = vunpack.c.l.b16 %v59
  %v420 = vunpack.c.h.b16 %v59
  %v421 = vunpack.c.l.b16 %v60
  %v422 = vunpack.c.h.b16 %v60
  %v423 = vunpack.c.l.b16 %v61
  %v424 = vunpack.c.h.b16 %v61
  %v425 = vunpack.c.l.b16 %v62
  %v426 = vunpack.c.h.b16 %v62
  %v427 = vunpack.c.l.b16 %v63
  %v428 = vunpack.c.h.b16 %v63
  %v429 = vunpack.c.l.b16 %v64
  %v430 = vunpack.c.h.b16 %v64
  %v431 = vunpack.c.l.b16 %v65
  %v432 = vunpack.c.h.b16 %v65
  %v433 = vunpack.c.l.b16 %v66
  %v434 = vunpack.c.h.b16 %v66
  %v435 = vunpack.c.l.b16 %v67
  %v436 = vunpack.c.h.b16 %v67
  %v437 = vunpack.c.l.b16 %v68
  %v438 = vunpack.c.h.b16 %v68
  %v439 = vunpack.c.l.b16 %v69
  %v440 = vunpack.c.h.b16 %v69
  %v441 = vunpack.c.l.b16 %v70
  %v442 = vunpack.c.h.b16 %v70
  %v443 = vunpack.c.l.b16 %v71
  %v444 = vunpack.c.h.b16 %v71
  %v445 = vunpack.c.l.b16 %v72
  %v446 = vunpack.c.h.b16 %v72
  %v447 = vunpack.c.l.b16 %v73
  %v448 = vunpack.c.h.b16 %v73
  %v449 = vunpack.c.l.b16 %v74
  %v450 = vunpack.c.h.b16 %v74
  %v451 = vunpack.c.l.b16 %v75
  %v452 = vunpack.c.h.b16 %v75
  %v453 = vunpack.c.l.b16 %v76
  %v454 = vunpack.c.h.b16 %v76
  %v455 = vunpack.c.l.b16 %v77
  %v456 = vunpack.c.h.b16 %v77
  %v457 = vunpack.c.l.b16 %v78
  %v458 = vunpack.c.h.b16 %v78
  %v459 = vunpack.c.l.b16 %v79
  %v460 = vunpack.c.h.b16 %v79
  %v461 = vunpack.c.l.b16 %v80
  %v462 = vunpack.c.h.b16 %v80
  %v463 = vunpack.c.l.b16 %v81
  %v464 = vunpack.c.h.b16 %v81
  %v465 = vunpack.c.l.b16 %v82
  %v466 = vunpack.c.h.b16 %v82
  %v467 = vunpack.c.l.b16 %v83
  %v468 = vunpack.c.h.b16 %v83
  %v469 = vunpack.c.l.b16 %v84
  %v470 = vunpack.c.h.b16 %v84
  %v471 = vunpack.c.l.b16 %v85
  %v472 = vunpack.c.h.b16 %v85
  %v473 = vunpack.c.l.b16 %v86
  %v474 = vunpack.c.h.b16 %v86
  %v475 = vunpack.c.l.b16 %v87
  %v476 = vunpack.c.h.b16 %v87
  %v477 = vunpack.c.l.b16 %v88
  %v478 = vunpack.c.h.b16 %v88
  %v479 = vunpack.c.l.b16 %v89
  %v480 = vunpack.c.h.b16 %v89
  %v481 = vunpack.c.l.b16 %v90
  %v482 = vunpack.c.h.b16 %v90
  %v483 = vunpack.c.l.b16 %v91
  %v484 = vunpack.c.h.b16 %v91
  %v485 = vunpack.c.l.b16 %v92
  %v486 = vunpack.c.h.b16 %v92
  %v487 = vunpack.c.l.b16 %v93
  %v488 = vunpack.c.h.b16 %v93
  %v489 = vunpack.c.l.b16 %v94
  %v490 = vunpack.c.h.b16 %v94
  %v491 = vunpack.c.l.b16 %v95
  %v492 = vunpack.c.h.b16 %v95
  %v493 = vunpack.c.l.b16 %v96
  %v494 = vunpack.c.h.b16 %v96
  %v495 = vunpack.c.l.b16 %v97
  %v496 = vunpack.c.h.b16 %v97
  %v497 = vunpack.c.l.b16 %v98
  %v498 = vunpack.c.h.b16 %v98
  %v499 = vunpack.c.l.b16 %v99
  %v500 = vunpack.c.h.b16 %v99
  %v501 = vunpack.c.l.b16 %v100
  %v502 = vunpack.c.h.b16 %v100
  %v503 = vunpack.c.l.b16 %v101
  %v504 = vunpack.c.h.b16 %v101
  %v505 = vunpack.c.l.b16 %v102
  %v506 = vunpack.c.h.b16 %v102
  %v507 = vunpack.c.l.b16 %v103
  %v508 = vunpack.c.h.b16 %v103
  %v509 = vunpack.c.l.b16 %v104
  %v510 = vunpack.c.h.b16 %v104
  %v511 = vunpack.c.l.b16 %v105
  %v512 = vunpack.c.h.b16 %v105
  %v513 = vunpack.c.l.b16 %v106
  %v514 = vunpack.c.h.b16 %v106
  %v515 = vunpack.c.l.b16 %v107
  %v516 = vunpack.c.h.b16 %v107
  %v517 = vunpack.c.l.b16 %v108
  %v518 = vunpack.c.h.b16 %v108
  %v519 = vunpack.c.l.b16 %v109
  %v520 = vunpack.c.h.b16 %v109
  %v521 = vunpack.c.l.b16 %v110
  %v522 = vunpack.c.h.b16 %v110
  %v523 = vunpack.c.l.b16 %v111
  %v524 = vunpack.c.h.b16 %v111
  %v525 = vunpack.c.l.b16 %v112
  %v526 = vunpack.c.h.b16 %v112
  %v527 = vunpack.c.l.b16 %v113
  %v528 = vunpack.c.h.b16 %v113
  %v529 = vunpack.c.l.b16 %v114
  %v530 = vunpack.c.h.b16 %v114
  %v531 = vunpack.c.l.b16 %v115
  %v532 = vunpack.c.h.b16 %v115
  %v533 = vunpack.c.l.b16 %v116
  %v534 = vunpack.c.h.b16 %v116
  %v535 = vunpack.c.l.b16 %v117
  %v536 = vunpack.c.h.b16 %v117
  %v537 = vunpack.c.l.b16 %v118
  %v538 = vunpack.c.h.b16 %v118
  %v539 = vunpack.c.l.b16 %v119
  %v540 = vunpack.c.h.b16 %v119
  %v541 = vunpack.c.l.b16 %v120
  %v542 = vunpack.c.h.b16 %v120
  %v543 = vunpack.c.l.b16 %v121
  %v544 = vunpack.c.h.b16 %v121
  %v545 = vunpack.c.l.b16 %v122
  %v546 = vunpack.c.h.b16 %v122
  %v547 = vunpack.c.l.b16 %v123
  %v548 = vunpack.c.h.b16 %v123
  %v549 = vunpack.c.l.b16 %v124
  %v550 = vunpack.c.h.b16 %v124
  %v551 = vunpack.c.l.b16 %v125
  %v552 = vunpack.c.h.b16 %v125
  %v553 = vunpack.c.l.b16 %v126
  %v554 = vunpack.c.h.b16 %v126
  %v555 = vunpack.c.l.b16 %v127
  %v556 = vunpack.c.h.b16 %v127
  %v557 = vunpack.c.l.b16 %v128
  %v558 = vunpack.c.h.b16 %v128
  %v559 = vunpack.c.l.b16 %v129
  %v560 = vunpack.c.h.b16 %v129
  %v561 = vunpack.c.l.b16 %v130
  %v562 = vunpack.c.h.b16 %v130
  %v563 = vunpack.c.l.b16 %v131
  %v564 = vunpack.c.h.b16 %v131
  %v565 = vunpack.c.l.b16 %v132
  %v566 = vunpack.c.h.b16 %v132
  %v567 = vunpack.c.l.b16 %v133
  %v568 = vunpack.c.h.b16 %v133
  %v569 = vunpack.c.l.b16 %v134
  %v570 = vunpack.c.h.b16 %v134
  %v571 = vunpack.c.l.b16 %v135
  %v572 = vunpack.c.h.b16 %v135
  %v573 = vunpack.c.l.b16 %v136
  %v574 = vunpack.c.h.b16 %v136
  %v575 = vunpack.c.l.b16 %v137
  %v576 = vunpack.c.h.b16 %v137
  %v577 = vunpack.c.l.b16 %v138
  %v578 = vunpack.c.h.b16 %v138
  %v579 = vunpack.c.l.b16 %v139
  %v580 = vunpack.c.h.b16 %v139
  %v581 = vunpack.c.l.b16 %v140
  %v582 = vunpack.c.h.b16 %v140
  %v583 = vunpack.c.l.b16 %v141
  %v584 = vunpack.c.h.b16 %v141
  %v585 = vunpack.c.l.b16 %v142
  %v586 = vunpack.c.h.b16 %v142
  %v587 = vunpack.c.l.b16 %v143
  %v588 = vunpack.c.h.b16 %v143
  %v589 = vunpack.c.l.b16 %v144
  %v590 = vunpack.c.h.b16 %v144
  %v591 = vunpack.c.l.b16 %v145
  %v592 = vunpack.c.h.b16 %v145
  %v593 = vunpack.c.l.b16 %v146
  %v594 = vunpack.c.h.b16 %v146
  %v595 = vunpack.c.l.b16 %v147
  %v596 = vunpack.c.h.b16 %v147
  %v597 = vunpack.c.l.b16 %v148
  %v598 = vunpack.c.h.b16 %v148
  %v599 = vunpack.c.l.b16 %v149
  %v600 = vunpack.c.h.b16 %v149
  %v601 = vunpack.c.l.b16 %v150
  %v602 = vunpack.c.h.b16 %v150
  %v603 = vunpack.c.l.b16 %v151
  %v604 = vunpack.c.h.b16 %v151
  %v605 = vunpack.c.l.b16 %v152
  %v606 = vunpack.c.h.b16 %v152
  %v607 = vunpack.c.l.b16 %v153
  %v608 = vunpack.c.h.b16 %v153
  %v609 = vunpack.c.l.b16 %v154
  %v610 = vunpack.c.h.b16 %v154
  %v611 = vunpack.c.l.b16 %v155
  %v612 = vunpack.c.h.b16 %v155
  %v613 = vunpack.c.l.b16 %v156
  %v614 = vunpack.c.h.b16 %v156
  %v615 = vunpack.c.l.b16 %v157
  %v616 = vunpack.c.h.b16 %v157
  %v617 = vunpack.c.l.b16 %v158
  %v618 = vunpack.c.h.b16 %v158
  %v619 = vunpack.c.l.b16 %v159
  %v620 = vunpack.c.h.b16 %v159
  %v621 = vunpack.c.l.b16 %v160
  %v622 = vunpack.c.h.b16 %v160
  %v623 = vunpack.c.l.b16 %v161
  %v624 = vunpack.c.h.b16 %v161
  %v625 = vunpack.c.l.b16 %v162
  %v626 = vunpack.c.h.b16 %v162
  %v627 = vpack.c.b16 %v341, %v339
  %v628 = vpack.c.b16 %v342, %v340
  %v629 = vpack.c.b16 %v345, %v343
  %v630 = vpack.c.b16 %v346, %v344
  %v631 = vpack.c.b16 %v349, %v347
  %v632 = vpack.c.b16 %v350, %v348
  %v633 = vpack.c.b16 %v353, %v351
  %v634 = vpack.c.b16 %v354, %v352
  %v635 = vpack.c.b16 %v357, %v355
  %v636 = vpack.c.b16 %v358, %v356
  %v637 = vpack.c.b16 %v361, %v359
  %v638 = vpack.c.b16 %v362, %v360
  %v639 = vpack.c.b16 %v365, %v363
  %v640 = vpack.c.b16 %v366, %v364
  %v641 = vpack.c.b16 %v369, %v367
  %v642 = vpack.c.b16 %v370, %v368
  %v643 = vpack.c.b16 %v373, %v371
  %v644 = vpack.c.b16 %v374, %v372
  %v645 = vpack.c.b16 %v377, %v375
  %v646 = vpack.c.b16 %v378, %v376
  %v647 = vpack.c.b16 %v381, %v379
  %v648 = vpack.c.b16 %v382, %v380
  %v649 = vpack.c.b16 %v385, %v383
  %v650 = vpack.c.b16 %v386, %v384
  %v651 = vpack.c.b16 %v389, %v387
  %v652 = vpack.c.b16 %v390, %v388
  %v653 = vpack.c.b16 %v393, %v391
  %v654 = vpack.c.b16 %v394, %v392
  %v655 = vpack.c.b16 %v397, %v395
  %v656 = vpack.c.b16 %v398, %v396
  %v657 = vpack.c.b16 %v401, %v399
  %v658 = vpack.c.b16 %v402, %v400
  %v659 = vpack.c.b16 %v405, %v403
  %v660 = vpack.c.b16 %v406, %v404
  %v661 = vpack.c.b16 %v409, %v407
  %v662 = vpack.c.b16 %v410, %v408
  %v663 = vpack.c.b16 %v413, %v411
  %v664 = vpack.c.b16 %v414, %v412
  %v665 = vpack.c.b16 %v417, %v415
  %v666 = vpack.c.b16 %v418, %v416
  %v667 = vpack.c.b16 %v421, %v419
  %v668 = vpack.c.b16 %v422, %v420
  %v669 = vpack.c.b16 %v425, %v423
  %v670 = vpack.c.b16 %v426, %v424
  %v671 = vpack.c.b16 %v429, %v427
  %v672 = vpack.c.b16 %v430, %v428
  %v673 = vpack.c.b16 %v433, %v431
  %v674 = vpack.c.b16 %v434, %v432
  %v675 = vpack.c.b16 %v437, %v435
  %v676 = vpack.c.b16 %v438, %v436
  %v677 = vpack.c.b16 %v441, %v439
  %v678 = vpack.c.b16 %v442, %v440
  %v679 = vpack.c.b16 %v445, %v443
  %v680 = vpack.c.b16 %v446, %v444
  %v681 = vpack.c.b16 %v449, %v447
  %v682 = vpack.c.b16 %v450, %v448
  %v683 = vpack.c.b16 %v453, %v451
  %v684 = vpack.c.b16 %v454, %v452
  %v685 = vpack.c.b16 %v457, %v455
  %v686 = vpack.c.b16 %v458, %v456
  %v687 = vpack.c.b16 %v461, %v459
  %v688 = vpack.c.b16 %v462, %v460
  %v689 = vpack.c.b16 %v465, %v463
  %v690 = vpack.c.b16 %v466, %v464
  %v691 = vpack.c.b16 %v469, %v467
  %v692 = vpack.c.b16 %v470, %v468
  %v693 = vpack.c.b16 %v473, %v471
  %v694 = vpack.c.b16 %v474, %v472
  %v695 = vpack.c.b16 %v477, %v475
  %v696 = vpack.c.b16 %v478, %v476
  %v697 = vpack.c.b16 %v481, %v479
  %v698 = vpack.c.b16 %v482, %v480
  %v699 = vpack.c.b16 %v485, %v483
  %v700 = vpack.c.b16 %v486, %v484
  %v701 = vpack.c.b16 %v489, %v487
  %v702 = vpack.c.b16 %v490, %v488
  %v703 = vpack.c.b16 %v493, %v491
  %v704 = vpack.c.b16 %v494, %v492
  %v705 = vpack.c.b16 %v497, %v495
  %v706 = vpack.c.b16 %v498, %v496
  %v707 = vpack.c.b16 %v501, %v499
  %v708 = vpack.c.b16 %v502, %v500
  %v709 = vpack.c.b16 %v505, %v503
  %v710 = vpack.c.b16 %v506, %v504
  %v711 = vpack.c.b16 %v509, %v507
  %v712 = vpack.c.b16 %v510, %v508
  %v713 = vpack.c.b16 %v513, %v511
  %v714 = vpack.c.b16 %v514, %v512
  %v715 = vpack.c.b16 %v517, %v515
  %v716 = vpack.c.b16 %v518, %v516
  %v717 = vpack.c.b16 %v521, %v519
  %v718 = vpack.c.b16 %v522, %v520
  %v719 = vpack.c.b16 %v525, %v523
  %v720 = vpack.c.b16 %v526, %v524
  %v721 = vpack.c.b16 %v529, %v527
  %v722 = vpack.c.b16 %v530, %v528
  %v723 = vpack.c.b16 %v533, %v531
  %v724 = vpack.c.b16 %v534, %v532
  %v725 = vpack.c.b16 %v537, %v535
  %v726 = vpack.c.b16 %v538, %v536
  %v727 = vpack.c.b16 %v541, %v539
  %v728 = vpack.c.b16 %v542, %v540
  %v729 = vpack.c.b16 %v545, %v543
  %v730 = vpack.c.b16 %v546, %v544
  %v731 = vpack.c.b16 %v549, %v547
  %v732 = vpack.c.b16 %v550, %v548
  %v733 = vpack.c.b16 %v553, %v551
  %v734 = vpack.c.b16 %v554, %v552
  %v735 = vpack.c.b16 %v557, %v555
  %v736 = vpack.c.b16 %v558, %v556
  %v737 = vpack.c.b16 %v561, %v559
  %v738 = vpack.c.b16 %v562, %v560
  %v739 = vpack.c.b16 %v565, %v563
  %v740 = vpack.c.b16 %v566, %v564
  %v741 = vpack.c.b16 %v569, %v567
  %v742 = vpack.c.b16 %v570, %v568
  %v743 = vpack.c.b16 %v573, %v571
  %v744 = vpack.c.b16 %v574, %v572
  %v745 = vpack.c.b16 %v577, %v575
  %v746 = vpack.c.b16 %v578, %v576
  %v747 = vpack.c.b16 %v581, %v579
  %v748 = vpack.c.b16 %v582, %v580
  %v749 = vpack.c.b16 %v585, %v583
  %v750 = vpack.c.b16 %v586, %v584
  %v751 = vpack.c.b16 %v589, %v587
  %v752 = vpack.c.b16 %v590, %v588
  %v753 = vpack.c.b16 %v593, %v591
  %v754 = vpack.c.b16 %v594, %v592
  %v755 = vpack.c.b16 %v597, %v595
  %v756 = vpack.c.b16 %v598, %v596
  %v757 = vpack.c.b16 %v601, %v599
  %v758 = vpack.c.b16 %v602, %v600
  %v759 = vpack.c.b16 %v605, %v603
  %v760 = vpack.c.b16 %v606, %v604
  %v761 = vpack.c.b16 %v609, %v607
  %v762 = vpack.c.b16 %v610, %v608
  %v763 = vpack.c.b16 %v613, %v611
  %v764 = vpack.c.b16 %v614, %v612
  %v765 = vpack.c.b16 %v617, %v615
  %v766 = vpack.c.b16 %v618, %v616
  %v767 = vpack.c.b16 %v621, %v619
  %v768 = vpack.c.b16 %v622, %v620
  %v769 = vpack.c.b16 %v625, %v623
  %v770 = vpack.c.b16 %v626, %v624
  %915 = vmatprep.subr.bf16.mxu0 %v628
  %916 = vmatpush1.bf16.msra.mxu0 %v627
  %917 = vmatprep.subr.bf16.mxu0 %v630
  %918 = vmatpush1.bf16.msra.mxu0 %v629
  %919 = vmatprep.subr.bf16.mxu0 %v632
  %920 = vmatpush1.bf16.msra.mxu0 %v631
  %921 = vmatprep.subr.bf16.mxu0 %v634
  %922 = vmatpush1.bf16.msra.mxu0 %v633
  %923 = vmatprep.subr.bf16.mxu0 %v636
  %924 = vmatpush1.bf16.msra.mxu0 %v635
  %925 = vmatprep.subr.bf16.mxu0 %v638
  %926 = vmatpush1.bf16.msra.mxu0 %v637
  %927 = vmatprep.subr.bf16.mxu0 %v640
  %928 = vmatpush1.bf16.msra.mxu0 %v639
  %929 = vmatprep.subr.bf16.mxu0 %v642
  %930 = vmatpush1.bf16.msra.mxu0 %v641
  %931 = vmatprep.subr.bf16.mxu0 %v644
  %932 = vmatpush1.bf16.msra.mxu0 %v643
  %933 = vmatprep.subr.bf16.mxu0 %v646
  %934 = vmatpush1.bf16.msra.mxu0 %v645
  %935 = vmatprep.subr.bf16.mxu0 %v648
  %936 = vmatpush1.bf16.msra.mxu0 %v647
  %937 = vmatprep.subr.bf16.mxu0 %v650
  %938 = vmatpush1.bf16.msra.mxu0 %v649
  %939 = vmatprep.subr.bf16.mxu0 %v652
  %940 = vmatpush1.bf16.msra.mxu0 %v651
  %941 = vmatprep.subr.bf16.mxu0 %v654
  %942 = vmatpush1.bf16.msra.mxu0 %v653
  %943 = vmatprep.subr.bf16.mxu0 %v656
  %944 = vmatpush1.bf16.msra.mxu0 %v655
  %945 = vmatprep.subr.bf16.mxu0 %v658
  %946 = vmatpush1.bf16.msra.mxu0 %v657
  %947 = vmatprep.mubr.bf16.mxu0 %v178
  %948 = vmatmul.mubr.bf16.gmra.mrb[0].mxu0 %v177
  %v949 = vpop.f32.mrb[0].mxu0
  %v950 = vadd.f32 0.0, %v949
  %v951 = vpop.f32.mrb[0].mxu0
  %v952 = vadd.f32 0.0, %v951
  %v953 = vpop.f32.mrb[0].mxu0
  %v954 = vpop.f32.mrb[0].mxu0
  %955 = vdwg.mxu0
  %956 = vmatprep.subr.bf16.mxu0 %v660
  %957 = vmatpush1.bf16.msra.mxu0 %v659
  %958 = vmatprep.subr.bf16.mxu0 %v662
  %959 = vmatpush1.bf16.msra.mxu0 %v661
  %960 = vmatprep.subr.bf16.mxu0 %v664
  %961 = vmatpush1.bf16.msra.mxu0 %v663
  %962 = vmatprep.subr.bf16.mxu0 %v666
  %963 = vmatpush1.bf16.msra.mxu0 %v665
  %964 = vmatprep.subr.bf16.mxu0 %v668
  %965 = vmatpush1.bf16.msra.mxu0 %v667
  %966 = vmatprep.subr.bf16.mxu0 %v670
  %967 = vmatpush1.bf16.msra.mxu0 %v669
  %968 = vmatprep.subr.bf16.mxu0 %v672
  %969 = vmatpush1.bf16.msra.mxu0 %v671
  %970 = vmatprep.subr.bf16.mxu0 %v674
  %971 = vmatpush1.bf16.msra.mxu0 %v673
  %972 = vmatprep.subr.bf16.mxu0 %v676
  %973 = vmatpush1.bf16.msra.mxu0 %v675
  %974 = vmatprep.subr.bf16.mxu0 %v678
  %975 = vmatpush1.bf16.msra.mxu0 %v677
  %976 = vmatprep.subr.bf16.mxu0 %v680
  %977 = vmatpush1.bf16.msra.mxu0 %v679
  %978 = vmatprep.subr.bf16.mxu0 %v682
  %979 = vmatpush1.bf16.msra.mxu0 %v681
  %980 = vmatprep.subr.bf16.mxu0 %v684
  %981 = vmatpush1.bf16.msra.mxu0 %v683
  %982 = vmatprep.subr.bf16.mxu0 %v686
  %983 = vmatpush1.bf16.msra.mxu0 %v685
  %984 = vmatprep.subr.bf16.mxu0 %v688
  %985 = vmatpush1.bf16.msra.mxu0 %v687
  %986 = vmatprep.subr.bf16.mxu0 %v690
  %987 = vmatpush1.bf16.msra.mxu0 %v689
  %988 = vmatprep.mubr.bf16.mxu0 %v180
  %989 = vmatmul.mubr.bf16.gmra.mrb[0].mxu0 %v179
  %v990 = vpop.f32.mrb[0].mxu0
  %v991 = vadd.f32 %v950, %v990
  %v992 = vpop.f32.mrb[0].mxu0
  %v993 = vadd.f32 %v952, %v992
  %v994 = vpop.f32.mrb[0].mxu0
  %v995 = vpop.f32.mrb[0].mxu0
  %996 = vdwg.mxu0
  %997 = vmatprep.subr.bf16.mxu0 %v692
  %998 = vmatpush1.bf16.msra.mxu0 %v691
  %999 = vmatprep.subr.bf16.mxu0 %v694
  %1000 = vmatpush1.bf16.msra.mxu0 %v693
  %1001 = vmatprep.subr.bf16.mxu0 %v696
  %1002 = vmatpush1.bf16.msra.mxu0 %v695
  %1003 = vmatprep.subr.bf16.mxu0 %v698
  %1004 = vmatpush1.bf16.msra.mxu0 %v697
  %1005 = vmatprep.subr.bf16.mxu0 %v700
  %1006 = vmatpush1.bf16.msra.mxu0 %v699
  %1007 = vmatprep.subr.bf16.mxu0 %v702
  %1008 = vmatpush1.bf16.msra.mxu0 %v701
  %1009 = vmatprep.subr.bf16.mxu0 %v704
  %1010 = vmatpush1.bf16.msra.mxu0 %v703
  %1011 = vmatprep.subr.bf16.mxu0 %v706
  %1012 = vmatpush1.bf16.msra.mxu0 %v705
  %1013 = vmatprep.subr.bf16.mxu0 %v708
  %1014 = vmatpush1.bf16.msra.mxu0 %v707
  %1015 = vmatprep.subr.bf16.mxu0 %v710
  %1016 = vmatpush1.bf16.msra.mxu0 %v709
  %1017 = vmatprep.subr.bf16.mxu0 %v712
  %1018 = vmatpush1.bf16.msra.mxu0 %v711
  %1019 = vmatprep.subr.bf16.mxu0 %v714
  %1020 = vmatpush1.bf16.msra.mxu0 %v713
  %1021 = vmatprep.subr.bf16.mxu0 %v716
  %1022 = vmatpush1.bf16.msra.mxu0 %v715
  %1023 = vmatprep.subr.bf16.mxu0 %v718
  %1024 = vmatpush1.bf16.msra.mxu0 %v717
  %1025 = vmatprep.subr.bf16.mxu0 %v720
  %1026 = vmatpush1.bf16.msra.mxu0 %v719
  %1027 = vmatprep.subr.bf16.mxu0 %v722
  %1028 = vmatpush1.bf16.msra.mxu0 %v721
  %1029 = vmatprep.mubr.bf16.mxu0 %v182
  %1030 = vmatmul.mubr.bf16.gmra.mrb[0].mxu0 %v181
  %v1031 = vpop.f32.mrb[0].mxu0
  %v1032 = vadd.f32 %v991, %v1031
  %v1033 = vpop.f32.mrb[0].mxu0
  %v1034 = vadd.f32 %v993, %v1033
  %v1035 = vpop.f32.mrb[0].mxu0
  %v1036 = vpop.f32.mrb[0].mxu0
  %1037 = vdwg.mxu0
  %1038 = vmatprep.subr.bf16.mxu0 %v724
  %1039 = vmatpush1.bf16.msra.mxu0 %v723
  %1040 = vmatprep.subr.bf16.mxu0 %v726
  %1041 = vmatpush1.bf16.msra.mxu0 %v725
  %1042 = vmatprep.subr.bf16.mxu0 %v728
  %1043 = vmatpush1.bf16.msra.mxu0 %v727
  %1044 = vmatprep.subr.bf16.mxu0 %v730
  %1045 = vmatpush1.bf16.msra.mxu0 %v729
  %1046 = vmatprep.subr.bf16.mxu0 %v732
  %1047 = vmatpush1.bf16.msra.mxu0 %v731
  %1048 = vmatprep.subr.bf16.mxu0 %v734
  %1049 = vmatpush1.bf16.msra.mxu0 %v733
  %1050 = vmatprep.subr.bf16.mxu0 %v736
  %1051 = vmatpush1.bf16.msra.mxu0 %v735
  %1052 = vmatprep.subr.bf16.mxu0 %v738
  %1053 = vmatpush1.bf16.msra.mxu0 %v737
  %1054 = vmatprep.subr.bf16.mxu0 %v740
  %1055 = vmatpush1.bf16.msra.mxu0 %v739
  %1056 = vmatprep.subr.bf16.mxu0 %v742
  %1057 = vmatpush1.bf16.msra.mxu0 %v741
  %1058 = vmatprep.subr.bf16.mxu0 %v744
  %1059 = vmatpush1.bf16.msra.mxu0 %v743
  %1060 = vmatprep.subr.bf16.mxu0 %v746
  %1061 = vmatpush1.bf16.msra.mxu0 %v745
  %1062 = vmatprep.subr.bf16.mxu0 %v748
  %1063 = vmatpush1.bf16.msra.mxu0 %v747
  %1064 = vmatprep.subr.bf16.mxu0 %v750
  %1065 = vmatpush1.bf16.msra.mxu0 %v749
  %1066 = vmatprep.subr.bf16.mxu0 %v752
  %1067 = vmatpush1.bf16.msra.mxu0 %v751
  %1068 = vmatprep.subr.bf16.mxu0 %v754
  %1069 = vmatpush1.bf16.msra.mxu0 %v753
  %1070 = vmatprep.mubr.bf16.mxu0 %v184
  %1071 = vmatmul.mubr.bf16.gmra.mrb[0].mxu0 %v183
  %v1072 = vpop.f32.mrb[0].mxu0
  %v1073 = vadd.f32 %v1032, %v1072
  %v1074 = vpop.f32.mrb[0].mxu0
  %v1075 = vadd.f32 %v1034, %v1074
  %v1076 = vpop.f32.mrb[0].mxu0
  %v1077 = vpop.f32.mrb[0].mxu0
  %1078 = vdwg.mxu0
  %1079 = vmatprep.subr.bf16.mxu0 %v756
  %1080 = vmatpush1.bf16.msra.mxu0 %v755
  %1081 = vmatprep.subr.bf16.mxu0 %v758
  %1082 = vmatpush1.bf16.msra.mxu0 %v757
  %1083 = vmatprep.subr.bf16.mxu0 %v760
  %1084 = vmatpush1.bf16.msra.mxu0 %v759
  %1085 = vmatprep.subr.bf16.mxu0 %v762
  %1086 = vmatpush1.bf16.msra.mxu0 %v761
  %1087 = vmatprep.subr.bf16.mxu0 %v764
  %1088 = vmatpush1.bf16.msra.mxu0 %v763
  %1089 = vmatprep.subr.bf16.mxu0 %v766
  %1090 = vmatpush1.bf16.msra.mxu0 %v765
  %1091 = vmatprep.subr.bf16.mxu0 %v768
  %1092 = vmatpush1.bf16.msra.mxu0 %v767
  %1093 = vmatprep.subr.bf16.mxu0 %v770
  %1094 = vmatpush1.bf16.msra.mxu0 %v769
  %1095 = vmatprep.subr.bf16.mxu0 0
  %1096 = vmatpush1.bf16.msra.mxu0 0
  %1097 = vmatprep.subr.bf16.mxu0 0
  %1098 = vmatpush1.bf16.msra.mxu0 0
  %1099 = vmatprep.subr.bf16.mxu0 0
  %1100 = vmatpush1.bf16.msra.mxu0 0
  %1101 = vmatprep.subr.bf16.mxu0 0
  %1102 = vmatpush1.bf16.msra.mxu0 0
  %1103 = vmatprep.subr.bf16.mxu0 0
  %1104 = vmatpush1.bf16.msra.mxu0 0
  %1105 = vmatprep.subr.bf16.mxu0 0
  %1106 = vmatpush1.bf16.msra.mxu0 0
  %1107 = vmatprep.subr.bf16.mxu0 0
  %1108 = vmatpush1.bf16.msra.mxu0 0
  %1109 = vmatprep.subr.bf16.mxu0 0
  %1110 = vmatpush1.bf16.msra.mxu0 0
  %1111 = vmatprep.mubr.bf16.mxu0 0
  %1112 = vmatmul.mubr.bf16.gmra.mrb[0].mxu0 %v185
  %v1113 = vpop.f32.mrb[0].mxu0
  %v1114 = vadd.f32 %v1073, %v1113
  %v1115 = vpop.f32.mrb[0].mxu0
  %v1116 = vadd.f32 %v1075, %v1115
  %v1117 = vpop.f32.mrb[0].mxu0
  %v1118 = vpop.f32.mrb[0].mxu0
  %1119 = vdwg.mxu0
  %v1120 = vpack.c.bf16 %v1114, %v1114
  %v1121 = vpack.c.bf16 %v1116, %v1116
  %v1124 = vunpack.c.l.b16 %v1120
  %v1125 = vunpack.c.l.b16 %v1121
  %v1126 = vpack.c.b16 %v1125, %v1124
  %1128 = vst [vmem:[%s2] sm:$0xff] %v1126
  %v1129 = vrot.slane %v1114, 4
  %v1130 = vadd.f32 %v1114, %v1129
  %v1131 = vrot.slane %v1130, 2
  %v1132 = vadd.f32 %v1130, %v1131
  %v1133 = vrot.slane %v1132, 1
  %v1134 = vadd.f32 %v1132, %v1133
  %v1135 = vrot.slane %v1116, 4
  %v1136 = vadd.f32 %v1116, %v1135
  %v1137 = vrot.slane %v1136, 2
  %v1138 = vadd.f32 %v1136, %v1137
  %v1139 = vrot.slane %v1138, 1
  %v1140 = vadd.f32 %v1138, %v1139
  %v1141 = vmul.f32 %v1114, %v1114
  %v1142 = vmul.f32 %v1116, %v1116
  %v1143 = vrot.slane %v1141, 4
  %v1144 = vadd.f32 %v1141, %v1143
  %v1145 = vrot.slane %v1144, 2
  %v1146 = vadd.f32 %v1144, %v1145
  %v1147 = vrot.slane %v1146, 1
  %v1148 = vadd.f32 %v1146, %v1147
  %v1149 = vrot.slane %v1142, 4
  %v1150 = vadd.f32 %v1142, %v1149
  %v1151 = vrot.slane %v1150, 2
  %v1152 = vadd.f32 %v1150, %v1151
  %v1153 = vrot.slane %v1152, 1
  %v1154 = vadd.f32 %v1152, %v1153
  %vm1155 = vcmask 1040384
  %v1156 = vsel %vm1155, %v1134, %v1148
  %v1157 = vsel %vm1155, %v1140, %v1154
  %v1160 = vcombine.low %v1156, %v1157
  %v1162 = vunpack.c.l.s4 1983009808
  %v1163 = vunpack.c.0.s8 %v1162
  %v1164 = vlaneseq
  %v1165 = vshrl.u32 %v1164, 7
  %v1166 = vsub.s32 %v1163, %v1165
  %v1167 = vrot.slane %v1160, %v1166
  %1169 = vst [vmem:[%s3] sm:$0xf] %v1167
  // Predicated region
  $region10: #{encoder_forward.53} parent=0 // pred_check
    _
  $region11: #{encoder_forward.53} parent=0 // pred_check_branch
    %1171 = sbr.rel (0) target = $region13
  $region12: #{encoder_forward.53} parent=0 // pred_region
    _
  $region13: #{encoder_forward.53} parent=0 // pred_fallthru
    _
  // Predicated region
  $region14: #{encoder_forward.53} parent=0 // pred_check
    _
  $region15: #{encoder_forward.53} parent=0 // pred_check_branch
    %1173 = sbr.rel (0) target = $region17
  $region16: #{encoder_forward.53} parent=0 // pred_region
    _
  $region17: #{encoder_forward.53} parent=0 // pred_fallthru
    _
  // Predicated region
  $region18: #{encoder_forward.53} parent=0 // pred_check
    _
  $region19: #{encoder_forward.53} parent=0 // pred_check_branch
    %1175 = sbr.rel (0) target = $region21
  $region20: #{encoder_forward.53} parent=0 // pred_region
    _
  $region21: #{encoder_forward.53} parent=0 // pred_fallthru
    _
  // Predicated region
  $region22: #{encoder_forward.53} parent=0 // pred_check
    _
  $region23: #{encoder_forward.53} parent=0 // pred_check_branch
    %1177 = sbr.rel (0) target = $region25
  $region24: #{encoder_forward.53} parent=0 // pred_region
    _
  $region25: #{encoder_forward.53} parent=0 // pred_fallthru
    _

// kernel: encoder_forward.58
$region0: #{encoder_forward.58}
  #allocation0 [shape = 'u32[]', space=smem, size = 0x4, offset = 0x4, fixed_abs, tag = 'smem constant byte address 0x4 - core index']
  #allocation1 [shape = 'u32[144,128]{1,0:T(1,128)}', space=vmem, size = 0x12000, scoped, tag = 'internal scratch']
  %s0 = inlined_call_operand.vmem [shape: bf16[8,256], index: 0, kind: input, shape index: {}]
  %s1 = inlined_call_operand.vmem [shape: bf16[8,256], index: 1, kind: input, shape index: {}]
  %s2 = inlined_call_operand.vmem [shape: f32[1,256], index: 2, kind: input, shape index: {}]
  %s3 = inlined_call_operand.vmem [shape: f32[1,256], index: 3, kind: input, shape index: {}]
  %s4 = inlined_call_operand.vmem [shape: bf16[8,256], index: 4, kind: output, shape index: {}]
  %s5 = sld [smem:[#allocation0]]
  $region26: #{encoder_forward.58} parent=0
    _
  %s7 = ssub.s32 1, %s5
  %s8 = scalar_select 0, %s7, %s5
  // Predicated region
  $region2: #{encoder_forward.58} parent=0 // pred_check
    _
  $region3: #{encoder_forward.58} parent=0 // pred_check_branch
    %10 = sbr.rel (0) target = $region5
  $region4: #{encoder_forward.58} parent=0 // pred_region
    _
  $region5: #{encoder_forward.58} parent=0 // pred_fallthru
    _
  // Predicated region
  $region6: #{encoder_forward.58} parent=0 // pred_check
    _
  $region7: #{encoder_forward.58} parent=0 // pred_check_branch
    %12 = sbr.rel (0) target = $region9
  $region8: #{encoder_forward.58} parent=0 // pred_region
    _
  $region9: #{encoder_forward.58} parent=0 // pred_fallthru
    _
  // Predicated region
  $region10: #{encoder_forward.58} parent=0 // pred_check
    _
  $region11: #{encoder_forward.58} parent=0 // pred_check_branch
    %14 = sbr.rel (0) target = $region13
  $region12: #{encoder_forward.58} parent=0 // pred_region
    _
  $region13: #{encoder_forward.58} parent=0 // pred_fallthru
    _
  // Predicated region
  $region14: #{encoder_forward.58} parent=0 // pred_check
    _
  $region15: #{encoder_forward.58} parent=0 // pred_check_branch
    %16 = sbr.rel (0) target = $region17
  $region16: #{encoder_forward.58} parent=0 // pred_region
    _
  $region17: #{encoder_forward.58} parent=0 // pred_fallthru
    _
  %v17 = vld [vmem:[%s0] sm:$0xff]
  %v18 = vunpack.c.l.bf16 %v17
  %v19 = vunpack.c.h.bf16 %v17
  %v20 = vld [vmem:[%s2] sm:$0x3]
  %v22 = vlaneseq
  %v23 = vshrl.u32 %v22, 7
  %v24 = vsub.s32 0, %v23
  %v25 = vrot.slane %v20, %v24
  %v26 = vlaneseq
  %v27 = vshrl.u32 %v26, 7
  %v28 = vsub.s32 1, %v27
  %v29 = vrot.slane %v20, %v28
  %v32 = vmul.f32 %v18, %v25
  %v33 = vmul.f32 %v19, %v29
  %v34 = vld [vmem:[%s3] sm:$0x3]
  %v36 = vlaneseq
  %v37 = vshrl.u32 %v36, 7
  %v38 = vsub.s32 0, %v37
  %v39 = vrot.slane %v34, %v38
  %v40 = vlaneseq
  %v41 = vshrl.u32 %v40, 7
  %v42 = vsub.s32 1, %v41
  %v43 = vrot.slane %v34, %v42
  %v46 = vadd.f32 %v32, %v39
  %v47 = vadd.f32 %v33, %v43
  %v48 = vld [vmem:[%s1] sm:$0xff]
  %v49 = vunpack.c.l.bf16 %v48
  %v50 = vunpack.c.h.bf16 %v48
  %v51 = vadd.f32 %v46, %v49
  %v52 = vadd.f32 %v47, %v50
  %v53 = vmax.f32 %v51, 0.0
  %v54 = vmax.f32 %v52, 0.0
  %v55 = vpack.c.bf16 %v53, %v53
  %v56 = vpack.c.bf16 %v54, %v54
  %v59 = vunpack.c.l.b16 %v55
  %v60 = vunpack.c.l.b16 %v56
  %v61 = vpack.c.b16 %v60, %v59
  %63 = vst [vmem:[%s4] sm:$0xff] %v61
  // Predicated region
  $region18: #{encoder_forward.58} parent=0 // pred_check
    _
  $region19: #{encoder_forward.58} parent=0 // pred_check_branch
    %65 = sbr.rel (0) target = $region21
  $region20: #{encoder_forward.58} parent=0 // pred_region
    _
  $region21: #{encoder_forward.58} parent=0 // pred_fallthru
    _
  // Predicated region
  $region22: #{encoder_forward.58} parent=0 // pred_check
    _
  $region23: #{encoder_forward.58} parent=0 // pred_check_branch
    %67 = sbr.rel (0) target = $region25
  $region24: #{encoder_forward.58} parent=0 // pred_region
    _
  $region25: #{encoder_forward.58} parent=0 // pred_fallthru
    _

// kernel: encoder_forward.63
$region0: #{encoder_forward.63}
  #allocation0 [shape = 'u32[]', space=smem, size = 0x4, offset = 0x4, fixed_abs, tag = 'smem constant byte address 0x4 - core index']
  #allocation1 [shape = 'u32[144,128]{1,0:T(1,128)}', space=vmem, size = 0x12000, scoped, tag = 'internal scratch']
  %s0 = inlined_call_operand.vmem [shape: bf16[2,4,256], index: 0, kind: input, shape index: {}]
  %s1 = inlined_call_operand.vmem [shape: f32[256,16], index: 1, kind: input, shape index: {}]
  %s2 = inlined_call_operand.vmem [shape: f32[1,16], index: 2, kind: input, shape index: {}]
  %s3 = inlined_call_operand.vmem [shape: f32[2,1,16], index: 3, kind: output, shape index: {}]
  %s4 = sld [smem:[#allocation0]]
  $region45: #{encoder_forward.63} parent=0
    _
  %s6 = ssub.s32 1, %s4
  %s7 = scalar_select 0, %s6, %s4
  loop: start=0, step=1, limit=4
  $region2: #{encoder_forward.63} parent=0 // loop_pre_header
    _
  $region3: #{encoder_forward.63} parent=0 // loop_header
    %s9 = sphi 0, %s13
    %p10 = scmp.ge.s32.totalorder %s9, 4
    %s19 = sphi 0, %s21
    %s22 = sphi 0, %s19
    %s23 = sphi 0, %s22
    %s39 = sphi 0, %s23
    %s43 = sphi 0, %s43
    %s45 = sphi 0, %s43
    %s46 = sphi 0, %s45
    %s60 = sphi 0, %s46
    %s64 = sphi 0, %s64
    %s66 = sphi 0, %s64
    %s67 = sphi 0, %s66
    %s81 = sphi 0, %s67
    %s87 = sphi 0, %s89
    %s90 = sphi 0, %s87
    %s91 = sphi 0, %s90
    %s107 = sphi 0, %s91
  $region4: #{encoder_forward.63} parent=0 // loop_header_branch
    %12 = sbr.rel (%p10) target = $region8
  $region5: #{encoder_forward.63} parent=0 // loop_body
    %s14 = ssub.s32 %s9, 1
    %s15 = ssub.s32 %s9, 2
    %s16 = sadd.s32 %s9, 1
    %s17 = ssub.s32 %s9, %s16
    %p18 = scmp.eq.s32.totalorder %s17, 0
    %s20 = sadd.s32 %s19, 1
    %s21 = scalar_select %p18, %s19, %s20
    %p24 = pneg %p18
    %p25 = scmp.eq.s32.totalorder %s9, 1
    %p26 = por %p24, %p25
    %p27 = scmp.ne.s32.totalorder %s19, %s22
    %p28 = scmp.eq.s32.totalorder %s9, 0
    %p29 = por %p27, %p28
    %p30 = scmp.ne.s32.totalorder %s19, %s22
    %p31 = scmp.eq.s32.totalorder %s14, 1
    %p32 = por %p30, %p31
    %p33 = scmp.ne.s32.totalorder %s22, %s23
    %p34 = scmp.eq.s32.totalorder %s14, 0
    %p35 = por %p33, %p34
    %p36 = scmp.ne.s32.totalorder %s22, %s23
    %p37 = scmp.eq.s32.totalorder %s15, 1
    %p38 = por %p36, %p37
    %p40 = scmp.ne.s32.totalorder %s23, %s39
    %p41 = scmp.eq.s32.totalorder %s15, 0
    %p42 = por %p40, %p41
    %s44 = sadd.s32 %s43, 1
    %p47 = scmp.eq.s32.totalorder %s9, 1
    %p48 = scmp.ne.s32.totalorder %s43, %s45
    %p49 = scmp.eq.s32.totalorder %s9, 0
    %p50 = por %p48, %p49
    %p51 = scmp.ne.s32.totalorder %s43, %s45
    %p52 = scmp.eq.s32.totalorder %s14, 1
    %p53 = por %p51, %p52
    %p54 = scmp.ne.s32.totalorder %s45, %s46
    %p55 = scmp.eq.s32.totalorder %s14, 0
    %p56 = por %p54, %p55
    %p57 = scmp.ne.s32.totalorder %s45, %s46
    %p58 = scmp.eq.s32.totalorder %s15, 1
    %p59 = por %p57, %p58
    %p61 = scmp.ne.s32.totalorder %s46, %s60
    %p62 = scmp.eq.s32.totalorder %s15, 0
    %p63 = por %p61, %p62
    %s65 = sadd.s32 %s64, 1
    %p68 = scmp.eq.s32.totalorder %s9, 1
    %p69 = scmp.ne.s32.totalorder %s64, %s66
    %p70 = scmp.eq.s32.totalorder %s9, 0
    %p71 = por %p69, %p70
    %p72 = scmp.ne.s32.totalorder %s64, %s66
    %p73 = scmp.eq.s32.totalorder %s14, 1
    %p74 = por %p72, %p73
    %p75 = scmp.ne.s32.totalorder %s66, %s67
    %p76 = scmp.eq.s32.totalorder %s14, 0
    %p77 = por %p75, %p76
    %p78 = scmp.ne.s32.totalorder %s66, %s67
    %p79 = scmp.eq.s32.totalorder %s15, 1
    %p80 = por %p78, %p79
    %p82 = scmp.ne.s32.totalorder %s67, %s81
    %p83 = scmp.eq.s32.totalorder %s15, 0
    %p84 = por %p82, %p83
    %s85 = ssub.s32 %s9, %s16
    %p86 = scmp.eq.s32.totalorder %s85, 0
    %s88 = sadd.s32 %s87, 1
    %s89 = scalar_select %p86, %s87, %s88
    %p92 = pneg %p86
    %p93 = scmp.eq.s32.totalorder %s9, 1
    %p94 = por %p92, %p93
    %p95 = scmp.ne.s32.totalorder %s87, %s90
    %p96 = scmp.eq.s32.totalorder %s9, 0
    %p97 = por %p95, %p96
    %p98 = scmp.ne.s32.totalorder %s87, %s90
    %p99 = scmp.eq.s32.totalorder %s14, 1
    %p100 = por %p98, %p99
    %p101 = scmp.ne.s32.totalorder %s90, %s91
    %p102 = scmp.eq.s32.totalorder %s14, 0
    %p103 = por %p101, %p102
    %p104 = scmp.ne.s32.totalorder %s90, %s91
    %p105 = scmp.eq.s32.totalorder %s15, 1
    %p106 = por %p104, %p105
    %p108 = scmp.ne.s32.totalorder %s91, %s107
    %p109 = scmp.eq.s32.totalorder %s15, 0
    %p110 = por %p108, %p109
    %p111 = scmp.le.s32.totalorder 1, %s9
    %p112 = scmp.lt.s32.totalorder %s9, 3
    %p113 = pnand %p111, %p112
    %p114 = pneg %p113
    // Predicated region
    $region9: #{encoder_forward.63} parent=5 // pred_check
      _
    $region10: #{encoder_forward.63} parent=5 // pred_check_branch
      %116 = sbr.rel (%p113) target = $region12
    $region11: #{encoder_forward.63} parent=5 // pred_region
      %s117 = ssub.s32 %s9, 1
      // Predicated region
      $region13: #{encoder_forward.63} parent=11 // pred_check
        %p118 = pneg %p56
      $region14: #{encoder_forward.63} parent=11 // pred_check_branch
        %120 = sbr.rel (%p118) target = $region16
      $region15: #{encoder_forward.63} parent=11 // pred_region
        _
      $region16: #{encoder_forward.63} parent=11 // pred_fallthru
        _
      // Predicated region
      $region17: #{encoder_forward.63} parent=11 // pred_check
        %p121 = pneg %p77
      $region18: #{encoder_forward.63} parent=11 // pred_check_branch
        %123 = sbr.rel (%p121) target = $region20
      $region19: #{encoder_forward.63} parent=11 // pred_region
        _
      $region20: #{encoder_forward.63} parent=11 // pred_fallthru
        _
    $region12: #{encoder_forward.63} parent=5 // pred_fallthru
      _
    %p124 = scmp.lt.s32.totalorder %s9, 2
    // Predicated region
    $region21: #{encoder_forward.63} parent=5 // pred_check
      %p125 = pneg %p124
    $region22: #{encoder_forward.63} parent=5 // pred_check_branch
      %127 = sbr.rel (%p125) target = $region24
    $region23: #{encoder_forward.63} parent=5 // pred_region
      // Predicated region
      $region25: #{encoder_forward.63} parent=23 // pred_check
        %p128 = pneg %p29
      $region26: #{encoder_forward.63} parent=23 // pred_check_branch
        %130 = sbr.rel (%p128) target = $region28
      $region27: #{encoder_forward.63} parent=23 // pred_region
        %p131 = scmp.lt.s32.totalorder %s9, 1
        %s132 = scalar_select %p131, %s9, 1
        %s133 = smul.addr %s132, 2
        %s134 = smul.addr %s133, 2
        %s135 = scalar_lea.vmem %s0, %s134
      $region28: #{encoder_forward.63} parent=23 // pred_fallthru
        _
    $region24: #{encoder_forward.63} parent=5 // pred_fallthru
      _
    %p136 = scmp.le.s32.totalorder 1, %s9
    %p137 = scmp.lt.s32.totalorder %s9, 3
    %p138 = pnand %p136, %p137
    %p139 = pneg %p138
    // Predicated region
    $region29: #{encoder_forward.63} parent=5 // pred_check
      _
    $region30: #{encoder_forward.63} parent=5 // pred_check_branch
      %141 = sbr.rel (%p138) target = $region32
    $region31: #{encoder_forward.63} parent=5 // pred_region
      %s142 = ssub.s32 %s9, 1
      %p143 = scmp.lt.s32.totalorder %s14, 1
      %s144 = scalar_select %p143, %s14, 1
      %s145 = smul.addr %s144, 2
      %s146 = smul.addr %s145, 2
      %s147 = scalar_lea.vmem %s0, %s146
      %p148 = pneg %p35
      %p149 = pneg %p32
      %p150 = pneg %p56
      %p151 = pneg %p53
      %p152 = pneg %p77
      %p153 = pneg %p74
      %p154 = pneg %p103
      %p155 = pneg %p100
      %p156 = scmp.lt.s32.totalorder %s14, 1
      %s157 = scalar_select %p156, %s14, 1
      %s158 = scalar_lea.vmem %s3, %s157
      %p159 = scmp.lt.s32.totalorder %s14, 1
      %s160 = scalar_select %p159, %s14, 1
      %s161 = smul.addr %s160, 2
      %s162 = smul.addr %s161, 2
      %s163 = scalar_lea.vmem %s0, %s162
      %p164 = scmp.lt.s32.totalorder %s14, 1
      %s165 = scalar_select %p164, %s14, 1
      %s166 = scalar_lea.vmem %s3, %s165
      %v167 = vld [vmem:[%s163] sm:$0xf]
      %v168 = vunpack.c.l.bf16 %v167
      %v170 = vcombine.high %v168, %v168
      %vm172 = vcmask 1043456
      %v173 = vsel %vm172, %v168, 0.0
      %v174 = vrot.slane %v173, 4
      %v175 = vadd.f32 %v173, %v174
      %v176 = vrot.slane %v175, 2
      %v177 = vadd.f32 %v175, %v176
      %v178 = vrot.slane %v177, 1
      %v179 = vadd.f32 %v177, %v178
      %v180 = vsel %vm172, %v170, 0.0
      %v181 = vrot.slane %v180, 4
      %v182 = vadd.f32 %v180, %v181
      %v183 = vrot.slane %v182, 2
      %v184 = vadd.f32 %v182, %v183
      %v185 = vrot.slane %v184, 1
      %v186 = vadd.f32 %v184, %v185
      %v187 = vrcp.pop 4.0
      %v188 = vmul.f32 %v179, %v187
      %v189 = vmul.f32 %v186, %v187
      %v190 = vld [vmem:[%s1] sm:$0xff]
      %v191 = vld [vmem:[%s1 + $0x8] sm:$0xff]
      %v192 = vld [vmem:[%s1 + $0x10] sm:$0xff]
      %v193 = vld [vmem:[%s1 + $0x18] sm:$0xff]
      %v194 = vld [vmem:[%s1 + $0x20] sm:$0xff]
      %v195 = vld [vmem:[%s1 + $0x28] sm:$0xff]
      %v196 = vld [vmem:[%s1 + $0x30] sm:$0xff]
      %v197 = vld [vmem:[%s1 + $0x38] sm:$0xff]
      %v198 = vld [vmem:[%s1 + $0x40] sm:$0xff]
      %v199 = vld [vmem:[%s1 + $0x48] sm:$0xff]
      %v200 = vld [vmem:[%s1 + $0x50] sm:$0xff]
      %v201 = vld [vmem:[%s1 + $0x58] sm:$0xff]
      %v202 = vld [vmem:[%s1 + $0x60] sm:$0xff]
      %v203 = vld [vmem:[%s1 + $0x68] sm:$0xff]
      %v204 = vld [vmem:[%s1 + $0x70] sm:$0xff]
      %v205 = vld [vmem:[%s1 + $0x78] sm:$0xff]
      %v206 = vld [vmem:[%s1 + $0x80] sm:$0xff]
      %v207 = vld [vmem:[%s1 + $0x88] sm:$0xff]
      %v208 = vld [vmem:[%s1 + $0x90] sm:$0xff]
      %v209 = vld [vmem:[%s1 + $0x98] sm:$0xff]
      %v210 = vld [vmem:[%s1 + $0xa0] sm:$0xff]
      %v211 = vld [vmem:[%s1 + $0xa8] sm:$0xff]
      %v212 = vld [vmem:[%s1 + $0xb0] sm:$0xff]
      %v213 = vld [vmem:[%s1 + $0xb8] sm:$0xff]
      %v214 = vld [vmem:[%s1 + $0xc0] sm:$0xff]
      %v215 = vld [vmem:[%s1 + $0xc8] sm:$0xff]
      %v216 = vld [vmem:[%s1 + $0xd0] sm:$0xff]
      %v217 = vld [vmem:[%s1 + $0xd8] sm:$0xff]
      %v218 = vld [vmem:[%s1 + $0xe0] sm:$0xff]
      %v219 = vld [vmem:[%s1 + $0xe8] sm:$0xff]
      %v220 = vld [vmem:[%s1 + $0xf0] sm:$0xff]
      %v221 = vld [vmem:[%s1 + $0xf8] sm:$0xff]
      %v222 = vld [vmem:[%s2] sm:$0x1]
      %223 = vmatprep.subr.mxu0 0.0
      %224 = vmatpush1.msra.mxu0 %v190
      %225 = vmatprep.subr.mxu0 0.0
      %226 = vmatpush1.msra.mxu0 %v191
      %227 = vmatprep.subr.mxu0 0.0
      %228 = vmatpush1.msra.mxu0 %v192
      %229 = vmatprep.subr.mxu0 0.0
      %230 = vmatpush1.msra.mxu0 %v193
      %231 = vmatprep.subr.mxu0 0.0
      %232 = vmatpush1.msra.mxu0 %v194
      %233 = vmatprep.subr.mxu0 0.0
      %234 = vmatpush1.msra.mxu0 %v195
      %235 = vmatprep.subr.mxu0 0.0
      %236 = vmatpush1.msra.mxu0 %v196
      %237 = vmatprep.subr.mxu0 0.0
      %238 = vmatpush1.msra.mxu0 %v197
      %239 = vmatprep.subr.mxu0 0.0
      %240 = vmatpush1.msra.mxu0 %v198
      %241 = vmatprep.subr.mxu0 0.0
      %242 = vmatpush1.msra.mxu0 %v199
      %243 = vmatprep.subr.mxu0 0.0
      %244 = vmatpush1.msra.mxu0 %v200
      %245 = vmatprep.subr.mxu0 0.0
      %246 = vmatpush1.msra.mxu0 %v201
      %247 = vmatprep.subr.mxu0 0.0
      %248 = vmatpush1.msra.mxu0 %v202
      %249 = vmatprep.subr.mxu0 0.0
      %250 = vmatpush1.msra.mxu0 %v203
      %251 = vmatprep.subr.mxu0 0.0
      %252 = vmatpush1.msra.mxu0 %v204
      %253 = vmatprep.subr.mxu0 0.0
      %254 = vmatpush1.msra.mxu0 %v205
      %255 = vmatprep.subr.mxu0 0.0
      %256 = vmatpush1.msra.mxu0 %v206
      %257 = vmatprep.subr.mxu0 0.0
      %258 = vmatpush1.msra.mxu0 %v207
      %259 = vmatprep.subr.mxu0 0.0
      %260 = vmatpush1.msra.mxu0 %v208
      %261 = vmatprep.subr.mxu0 0.0
      %262 = vmatpush1.msra.mxu0 %v209
      %263 = vmatprep.subr.mxu0 0.0
      %264 = vmatpush1.msra.mxu0 %v210
      %265 = vmatprep.subr.mxu0 0.0
      %266 = vmatpush1.msra.mxu0 %v211
      %267 = vmatprep.subr.mxu0 0.0
      %268 = vmatpush1.msra.mxu0 %v212
      %269 = vmatprep.subr.mxu0 0.0
      %270 = vmatpush1.msra.mxu0 %v213
      %271 = vmatprep.subr.mxu0 0.0
      %272 = vmatpush1.msra.mxu0 %v214
      %273 = vmatprep.subr.mxu0 0.0
      %274 = vmatpush1.msra.mxu0 %v215
      %275 = vmatprep.subr.mxu0 0.0
      %276 = vmatpush1.msra.mxu0 %v216
      %277 = vmatprep.subr.mxu0 0.0
      %278 = vmatpush1.msra.mxu0 %v217
      %279 = vmatprep.subr.mxu0 0.0
      %280 = vmatpush1.msra.mxu0 %v218
      %281 = vmatprep.subr.mxu0 0.0
      %282 = vmatpush1.msra.mxu0 %v219
      %283 = vmatprep.subr.mxu0 0.0
      %284 = vmatpush1.msra.mxu0 %v220
      %285 = vmatprep.subr.mxu0 0.0
      %286 = vmatpush1.msra.mxu0 %v221
      %287 = vmatprep.mubr.f32.mxu0 %v189
      %288 = vmatmul.mubr.f32.gmra.mrb[0].mxu0 %v188
      %v289 = vpop.f32.mrb[0].mxu0
      %v290 = vadd.f32 %v222, %v289
      %v291 = vpop.f32.mrb[0].mxu0
      %292 = vdwg.mxu0
      %vm293 = vcmask 122880
      %294 = vst.msk [vmem:[%s166] sm:$0x1] %vm293, %v290
      %p295 = scmp.lt.s32.totalorder %s14, 1
      %s296 = scalar_select %p295, %s14, 1
      %s297 = scalar_lea.vmem %s3, %s296
      // Predicated region
      $region33: #{encoder_forward.63} parent=31 // pred_check
        %p298 = pneg %p100
      $region34: #{encoder_forward.63} parent=31 // pred_check_branch
        %300 = sbr.rel (%p298) target = $region36
      $region35: #{encoder_forward.63} parent=31 // pred_region
        _
      $region36: #{encoder_forward.63} parent=31 // pred_fallthru
        _
    $region32: #{encoder_forward.63} parent=5 // pred_fallthru
      _
    %p301 = scmp.le.s32.totalorder 2, %s9
    // Predicated region
    $region37: #{encoder_forward.63} parent=5 // pred_check
      %p302 = pneg %p301
    $region38: #{encoder_forward.63} parent=5 // pred_check_branch
      %304 = sbr.rel (%p302) target = $region40
    $region39: #{encoder_forward.63} parent=5 // pred_region
      %s305 = ssub.s32 %s9, 2
      // Predicated region
      $region41: #{encoder_forward.63} parent=39 // pred_check
        %p306 = pneg %p106
      $region42: #{encoder_forward.63} parent=39 // pred_check_branch
        %308 = sbr.rel (%p306) target = $region44
      $region43: #{encoder_forward.63} parent=39 // pred_region
        %p309 = scmp.lt.s32.totalorder %s15, 1
        %s310 = scalar_select %p309, %s15, 1
        %s311 = scalar_lea.vmem %s3, %s310
      $region44: #{encoder_forward.63} parent=39 // pred_fallthru
        _
    $region40: #{encoder_forward.63} parent=5 // pred_fallthru
      _
  $region6: #{encoder_forward.63} parent=0 // loop_footer
    %s13 = sadd.s32 1, %s9
  $region7: #{encoder_forward.63} parent=0 // loop_footer_branch
    %8 = sbr.rel target = $region3
  $region8: #{encoder_forward.63} parent=0 // loop_exit
    _

// kernel: encoder_forward.57
$region0: #{encoder_forward.57}
  #allocation0 [shape = 'u32[]', space=smem, size = 0x4, offset = 0x4, fixed_abs, tag = 'smem constant byte address 0x4 - core index']
  #allocation1 [shape = 'u32[144,128]{1,0:T(1,128)}', space=vmem, size = 0x12000, scoped, tag = 'internal scratch']
  %s0 = inlined_call_operand.vmem [shape: bf16[8,2304], index: 0, kind: input, shape index: {}]
  %s1 = inlined_call_operand.vmem [shape: bf16[2304,256], index: 1, kind: input, shape index: {}]
  %s2 = inlined_call_operand.vmem [shape: bf16[8,256], index: 2, kind: output, shape index: {0}]
  %s3 = inlined_call_operand.vmem [shape: f32[1,2,256], index: 3, kind: output, shape index: {1}]
  %4 = xla_tuple %s2, %s3
  %s5 = sld [smem:[#allocation0]]
  $region26: #{encoder_forward.57} parent=0
    _
  %s7 = ssub.s32 1, %s5
  %s8 = scalar_select 0, %s7, %s5
  // Predicated region
  $region2: #{encoder_forward.57} parent=0 // pred_check
    _
  $region3: #{encoder_forward.57} parent=0 // pred_check_branch
    %10 = sbr.rel (0) target = $region5
  $region4: #{encoder_forward.57} parent=0 // pred_region
    _
  $region5: #{encoder_forward.57} parent=0 // pred_fallthru
    _
  // Predicated region
  $region6: #{encoder_forward.57} parent=0 // pred_check
    _
  $region7: #{encoder_forward.57} parent=0 // pred_check_branch
    %12 = sbr.rel (0) target = $region9
  $region8: #{encoder_forward.57} parent=0 // pred_region
    _
  $region9: #{encoder_forward.57} parent=0 // pred_fallthru
    _
  %v13 = vld [vmem:[%s0] sm:$0xff]
  %v14 = vld [vmem:[%s0 + $0x8] sm:$0xff]
  %v15 = vld [vmem:[%s0 + $0x10] sm:$0xff]
  %v16 = vld [vmem:[%s0 + $0x18] sm:$0xff]
  %v17 = vld [vmem:[%s0 + $0x20] sm:$0xff]
  %v18 = vld [vmem:[%s0 + $0x28] sm:$0xff]
  %v19 = vld [vmem:[%s0 + $0x30] sm:$0xff]
  %v20 = vld [vmem:[%s0 + $0x38] sm:$0xff]
  %v21 = vld [vmem:[%s0 + $0x40] sm:$0xff]
  %v22 = vld [vmem:[%s1] sm:$0xff]
  %v23 = vld [vmem:[%s1 + $0x8] sm:$0xff]
  %v24 = vld [vmem:[%s1 + $0x10] sm:$0xff]
  %v25 = vld [vmem:[%s1 + $0x18] sm:$0xff]
  %v26 = vld [vmem:[%s1 + $0x20] sm:$0xff]
  %v27 = vld [vmem:[%s1 + $0x28] sm:$0xff]
  %v28 = vld [vmem:[%s1 + $0x30] sm:$0xff]
  %v29 = vld [vmem:[%s1 + $0x38] sm:$0xff]
  %v30 = vld [vmem:[%s1 + $0x40] sm:$0xff]
  %v31 = vld [vmem:[%s1 + $0x48] sm:$0xff]
  %v32 = vld [vmem:[%s1 + $0x50] sm:$0xff]
  %v33 = vld [vmem:[%s1 + $0x58] sm:$0xff]
  %v34 = vld [vmem:[%s1 + $0x60] sm:$0xff]
  %v35 = vld [vmem:[%s1 + $0x68] sm:$0xff]
  %v36 = vld [vmem:[%s1 + $0x70] sm:$0xff]
  %v37 = vld [vmem:[%s1 + $0x78] sm:$0xff]
  %v38 = vld [vmem:[%s1 + $0x80] sm:$0xff]
  %v39 = vld [vmem:[%s1 + $0x88] sm:$0xff]
  %v40 = vld [vmem:[%s1 + $0x90] sm:$0xff]
  %v41 = vld [vmem:[%s1 + $0x98] sm:$0xff]
  %v42 = vld [vmem:[%s1 + $0xa0] sm:$0xff]
  %v43 = vld [vmem:[%s1 + $0xa8] sm:$0xff]
  %v44 = vld [vmem:[%s1 + $0xb0] sm:$0xff]
  %v45 = vld [vmem:[%s1 + $0xb8] sm:$0xff]
  %v46 = vld [vmem:[%s1 + $0xc0] sm:$0xff]
  %v47 = vld [vmem:[%s1 + $0xc8] sm:$0xff]
  %v48 = vld [vmem:[%s1 + $0xd0] sm:$0xff]
  %v49 = vld [vmem:[%s1 + $0xd8] sm:$0xff]
  %v50 = vld [vmem:[%s1 + $0xe0] sm:$0xff]
  %v51 = vld [vmem:[%s1 + $0xe8] sm:$0xff]
  %v52 = vld [vmem:[%s1 + $0xf0] sm:$0xff]
  %v53 = vld [vmem:[%s1 + $0xf8] sm:$0xff]
  %v54 = vld [vmem:[%s1 + $0x100] sm:$0xff]
  %v55 = vld [vmem:[%s1 + $0x108] sm:$0xff]
  %v56 = vld [vmem:[%s1 + $0x110] sm:$0xff]
  %v57 = vld [vmem:[%s1 + $0x118] sm:$0xff]
  %v58 = vld [vmem:[%s1 + $0x120] sm:$0xff]
  %v59 = vld [vmem:[%s1 + $0x128] sm:$0xff]
  %v60 = vld [vmem:[%s1 + $0x130] sm:$0xff]
  %v61 = vld [vmem:[%s1 + $0x138] sm:$0xff]
  %v62 = vld [vmem:[%s1 + $0x140] sm:$0xff]
  %v63 = vld [vmem:[%s1 + $0x148] sm:$0xff]
  %v64 = vld [vmem:[%s1 + $0x150] sm:$0xff]
  %v65 = vld [vmem:[%s1 + $0x158] sm:$0xff]
  %v66 = vld [vmem:[%s1 + $0x160] sm:$0xff]
  %v67 = vld [vmem:[%s1 + $0x168] sm:$0xff]
  %v68 = vld [vmem:[%s1 + $0x170] sm:$0xff]
  %v69 = vld [vmem:[%s1 + $0x178] sm:$0xff]
  %v70 = vld [vmem:[%s1 + $0x180] sm:$0xff]
  %v71 = vld [vmem:[%s1 + $0x188] sm:$0xff]
  %v72 = vld [vmem:[%s1 + $0x190] sm:$0xff]
  %v73 = vld [vmem:[%s1 + $0x198] sm:$0xff]
  %v74 = vld [vmem:[%s1 + $0x1a0] sm:$0xff]
  %v75 = vld [vmem:[%s1 + $0x1a8] sm:$0xff]
  %v76 = vld [vmem:[%s1 + $0x1b0] sm:$0xff]
  %v77 = vld [vmem:[%s1 + $0x1b8] sm:$0xff]
  %v78 = vld [vmem:[%s1 + $0x1c0] sm:$0xff]
  %v79 = vld [vmem:[%s1 + $0x1c8] sm:$0xff]
  %v80 = vld [vmem:[%s1 + $0x1d0] sm:$0xff]
  %v81 = vld [vmem:[%s1 + $0x1d8] sm:$0xff]
  %v82 = vld [vmem:[%s1 + $0x1e0] sm:$0xff]
  %v83 = vld [vmem:[%s1 + $0x1e8] sm:$0xff]
  %v84 = vld [vmem:[%s1 + $0x1f0] sm:$0xff]
  %v85 = vld [vmem:[%s1 + $0x1f8] sm:$0xff]
  %v86 = vld [vmem:[%s1 + $0x200] sm:$0xff]
  %v87 = vld [vmem:[%s1 + $0x208] sm:$0xff]
  %v88 = vld [vmem:[%s1 + $0x210] sm:$0xff]
  %v89 = vld [vmem:[%s1 + $0x218] sm:$0xff]
  %v90 = vld [vmem:[%s1 + $0x220] sm:$0xff]
  %v91 = vld [vmem:[%s1 + $0x228] sm:$0xff]
  %v92 = vld [vmem:[%s1 + $0x230] sm:$0xff]
  %v93 = vld [vmem:[%s1 + $0x238] sm:$0xff]
  %v94 = vld [vmem:[%s1 + $0x240] sm:$0xff]
  %v95 = vld [vmem:[%s1 + $0x248] sm:$0xff]
  %v96 = vld [vmem:[%s1 + $0x250] sm:$0xff]
  %v97 = vld [vmem:[%s1 + $0x258] sm:$0xff]
  %v98 = vld [vmem:[%s1 + $0x260] sm:$0xff]
  %v99 = vld [vmem:[%s1 + $0x268] sm:$0xff]
  %v100 = vld [vmem:[%s1 + $0x270] sm:$0xff]
  %v101 = vld [vmem:[%s1 + $0x278] sm:$0xff]
  %v102 = vld [vmem:[%s1 + $0x280] sm:$0xff]
  %v103 = vld [vmem:[%s1 + $0x288] sm:$0xff]
  %v104 = vld [vmem:[%s1 + $0x290] sm:$0xff]
  %v105 = vld [vmem:[%s1 + $0x298] sm:$0xff]
  %v106 = vld [vmem:[%s1 + $0x2a0] sm:$0xff]
  %v107 = vld [vmem:[%s1 + $0x2a8] sm:$0xff]
  %v108 = vld [vmem:[%s1 + $0x2b0] sm:$0xff]
  %v109 = vld [vmem:[%s1 + $0x2b8] sm:$0xff]
  %v110 = vld [vmem:[%s1 + $0x2c0] sm:$0xff]
  %v111 = vld [vmem:[%s1 + $0x2c8] sm:$0xff]
  %v112 = vld [vmem:[%s1 + $0x2d0] sm:$0xff]
  %v113 = vld [vmem:[%s1 + $0x2d8] sm:$0xff]
  %v114 = vld [vmem:[%s1 + $0x2e0] sm:$0xff]
  %v115 = vld [vmem:[%s1 + $0x2e8] sm:$0xff]
  %v116 = vld [vmem:[%s1 + $0x2f0] sm:$0xff]
  %v117 = vld [vmem:[%s1 + $0x2f8] sm:$0xff]
  %v118 = vld [vmem:[%s1 + $0x300] sm:$0xff]
  %v119 = vld [vmem:[%s1 + $0x308] sm:$0xff]
  %v120 = vld [vmem:[%s1 + $0x310] sm:$0xff]
  %v121 = vld [vmem:[%s1 + $0x318] sm:$0xff]
  %v122 = vld [vmem:[%s1 + $0x320] sm:$0xff]
  %v123 = vld [vmem:[%s1 + $0x328] sm:$0xff]
  %v124 = vld [vmem:[%s1 + $0x330] sm:$0xff]
  %v125 = vld [vmem:[%s1 + $0x338] sm:$0xff]
  %v126 = vld [vmem:[%s1 + $0x340] sm:$0xff]
  %v127 = vld [vmem:[%s1 + $0x348] sm:$0xff]
  %v128 = vld [vmem:[%s1 + $0x350] sm:$0xff]
  %v129 = vld [vmem:[%s1 + $0x358] sm:$0xff]
  %v130 = vld [vmem:[%s1 + $0x360] sm:$0xff]
  %v131 = vld [vmem:[%s1 + $0x368] sm:$0xff]
  %v132 = vld [vmem:[%s1 + $0x370] sm:$0xff]
  %v133 = vld [vmem:[%s1 + $0x378] sm:$0xff]
  %v134 = vld [vmem:[%s1 + $0x380] sm:$0xff]
  %v135 = vld [vmem:[%s1 + $0x388] sm:$0xff]
  %v136 = vld [vmem:[%s1 + $0x390] sm:$0xff]
  %v137 = vld [vmem:[%s1 + $0x398] sm:$0xff]
  %v138 = vld [vmem:[%s1 + $0x3a0] sm:$0xff]
  %v139 = vld [vmem:[%s1 + $0x3a8] sm:$0xff]
  %v140 = vld [vmem:[%s1 + $0x3b0] sm:$0xff]
  %v141 = vld [vmem:[%s1 + $0x3b8] sm:$0xff]
  %v142 = vld [vmem:[%s1 + $0x3c0] sm:$0xff]
  %v143 = vld [vmem:[%s1 + $0x3c8] sm:$0xff]
  %v144 = vld [vmem:[%s1 + $0x3d0] sm:$0xff]
  %v145 = vld [vmem:[%s1 + $0x3d8] sm:$0xff]
  %v146 = vld [vmem:[%s1 + $0x3e0] sm:$0xff]
  %v147 = vld [vmem:[%s1 + $0x3e8] sm:$0xff]
  %v148 = vld [vmem:[%s1 + $0x3f0] sm:$0xff]
  %v149 = vld [vmem:[%s1 + $0x3f8] sm:$0xff]
  %v150 = vld [vmem:[%s1 + $0x400] sm:$0xff]
  %v151 = vld [vmem:[%s1 + $0x408] sm:$0xff]
  %v152 = vld [vmem:[%s1 + $0x410] sm:$0xff]
  %v153 = vld [vmem:[%s1 + $0x418] sm:$0xff]
  %v154 = vld [vmem:[%s1 + $0x420] sm:$0xff]
  %v155 = vld [vmem:[%s1 + $0x428] sm:$0xff]
  %v156 = vld [vmem:[%s1 + $0x430] sm:$0xff]
  %v157 = vld [vmem:[%s1 + $0x438] sm:$0xff]
  %v158 = vld [vmem:[%s1 + $0x440] sm:$0xff]
  %v159 = vld [vmem:[%s1 + $0x448] sm:$0xff]
  %v160 = vld [vmem:[%s1 + $0x450] sm:$0xff]
  %v161 = vld [vmem:[%s1 + $0x458] sm:$0xff]
  %v162 = vld [vmem:[%s1 + $0x460] sm:$0xff]
  %v163 = vld [vmem:[%s1 + $0x468] sm:$0xff]
  %v164 = vld [vmem:[%s1 + $0x470] sm:$0xff]
  %v165 = vld [vmem:[%s1 + $0x478] sm:$0xff]
  %v166 = vld [vmem:[%s1 + $0x480] sm:$0xff]
  %v167 = vld [vmem:[%s1 + $0x488] sm:$0xff]
  %v168 = vld [vmem:[%s1 + $0x490] sm:$0xff]
  %v169 = vld [vmem:[%s1 + $0x498] sm:$0xff]
  %v170 = vld [vmem:[%s1 + $0x4a0] sm:$0xff]
  %v171 = vld [vmem:[%s1 + $0x4a8] sm:$0xff]
  %v172 = vld [vmem:[%s1 + $0x4b0] sm:$0xff]
  %v173 = vld [vmem:[%s1 + $0x4b8] sm:$0xff]
  %v174 = vld [vmem:[%s1 + $0x4c0] sm:$0xff]
  %v175 = vld [vmem:[%s1 + $0x4c8] sm:$0xff]
  %v176 = vld [vmem:[%s1 + $0x4d0] sm:$0xff]
  %v177 = vld [vmem:[%s1 + $0x4d8] sm:$0xff]
  %v178 = vld [vmem:[%s1 + $0x4e0] sm:$0xff]
  %v179 = vld [vmem:[%s1 + $0x4e8] sm:$0xff]
  %v180 = vld [vmem:[%s1 + $0x4f0] sm:$0xff]
  %v181 = vld [vmem:[%s1 + $0x4f8] sm:$0xff]
  %v182 = vld [vmem:[%s1 + $0x500] sm:$0xff]
  %v183 = vld [vmem:[%s1 + $0x508] sm:$0xff]
  %v184 = vld [vmem:[%s1 + $0x510] sm:$0xff]
  %v185 = vld [vmem:[%s1 + $0x518] sm:$0xff]
  %v186 = vld [vmem:[%s1 + $0x520] sm:$0xff]
  %v187 = vld [vmem:[%s1 + $0x528] sm:$0xff]
  %v188 = vld [vmem:[%s1 + $0x530] sm:$0xff]
  %v189 = vld [vmem:[%s1 + $0x538] sm:$0xff]
  %v190 = vld [vmem:[%s1 + $0x540] sm:$0xff]
  %v191 = vld [vmem:[%s1 + $0x548] sm:$0xff]
  %v192 = vld [vmem:[%s1 + $0x550] sm:$0xff]
  %v193 = vld [vmem:[%s1 + $0x558] sm:$0xff]
  %v194 = vld [vmem:[%s1 + $0x560] sm:$0xff]
  %v195 = vld [vmem:[%s1 + $0x568] sm:$0xff]
  %v196 = vld [vmem:[%s1 + $0x570] sm:$0xff]
  %v197 = vld [vmem:[%s1 + $0x578] sm:$0xff]
  %v198 = vld [vmem:[%s1 + $0x580] sm:$0xff]
  %v199 = vld [vmem:[%s1 + $0x588] sm:$0xff]
  %v200 = vld [vmem:[%s1 + $0x590] sm:$0xff]
  %v201 = vld [vmem:[%s1 + $0x598] sm:$0xff]
  %v202 = vld [vmem:[%s1 + $0x5a0] sm:$0xff]
  %v203 = vld [vmem:[%s1 + $0x5a8] sm:$0xff]
  %v204 = vld [vmem:[%s1 + $0x5b0] sm:$0xff]
  %v205 = vld [vmem:[%s1 + $0x5b8] sm:$0xff]
  %v206 = vld [vmem:[%s1 + $0x5c0] sm:$0xff]
  %v207 = vld [vmem:[%s1 + $0x5c8] sm:$0xff]
  %v208 = vld [vmem:[%s1 + $0x5d0] sm:$0xff]
  %v209 = vld [vmem:[%s1 + $0x5d8] sm:$0xff]
  %v210 = vld [vmem:[%s1 + $0x5e0] sm:$0xff]
  %v211 = vld [vmem:[%s1 + $0x5e8] sm:$0xff]
  %v212 = vld [vmem:[%s1 + $0x5f0] sm:$0xff]
  %v213 = vld [vmem:[%s1 + $0x5f8] sm:$0xff]
  %v214 = vld [vmem:[%s1 + $0x600] sm:$0xff]
  %v215 = vld [vmem:[%s1 + $0x608] sm:$0xff]
  %v216 = vld [vmem:[%s1 + $0x610] sm:$0xff]
  %v217 = vld [vmem:[%s1 + $0x618] sm:$0xff]
  %v218 = vld [vmem:[%s1 + $0x620] sm:$0xff]
  %v219 = vld [vmem:[%s1 + $0x628] sm:$0xff]
  %v220 = vld [vmem:[%s1 + $0x630] sm:$0xff]
  %v221 = vld [vmem:[%s1 + $0x638] sm:$0xff]
  %v222 = vld [vmem:[%s1 + $0x640] sm:$0xff]
  %v223 = vld [vmem:[%s1 + $0x648] sm:$0xff]
  %v224 = vld [vmem:[%s1 + $0x650] sm:$0xff]
  %v225 = vld [vmem:[%s1 + $0x658] sm:$0xff]
  %v226 = vld [vmem:[%s1 + $0x660] sm:$0xff]
  %v227 = vld [vmem:[%s1 + $0x668] sm:$0xff]
  %v228 = vld [vmem:[%s1 + $0x670] sm:$0xff]
  %v229 = vld [vmem:[%s1 + $0x678] sm:$0xff]
  %v230 = vld [vmem:[%s1 + $0x680] sm:$0xff]
  %v231 = vld [vmem:[%s1 + $0x688] sm:$0xff]
  %v232 = vld [vmem:[%s1 + $0x690] sm:$0xff]
  %v233 = vld [vmem:[%s1 + $0x698] sm:$0xff]
  %v234 = vld [vmem:[%s1 + $0x6a0] sm:$0xff]
  %v235 = vld [vmem:[%s1 + $0x6a8] sm:$0xff]
  %v236 = vld [vmem:[%s1 + $0x6b0] sm:$0xff]
  %v237 = vld [vmem:[%s1 + $0x6b8] sm:$0xff]
  %v238 = vld [vmem:[%s1 + $0x6c0] sm:$0xff]
  %v239 = vld [vmem:[%s1 + $0x6c8] sm:$0xff]
  %v240 = vld [vmem:[%s1 + $0x6d0] sm:$0xff]
  %v241 = vld [vmem:[%s1 + $0x6d8] sm:$0xff]
  %v242 = vld [vmem:[%s1 + $0x6e0] sm:$0xff]
  %v243 = vld [vmem:[%s1 + $0x6e8] sm:$0xff]
  %v244 = vld [vmem:[%s1 + $0x6f0] sm:$0xff]
  %v245 = vld [vmem:[%s1 + $0x6f8] sm:$0xff]
  %v246 = vld [vmem:[%s1 + $0x700] sm:$0xff]
  %v247 = vld [vmem:[%s1 + $0x708] sm:$0xff]
  %v248 = vld [vmem:[%s1 + $0x710] sm:$0xff]
  %v249 = vld [vmem:[%s1 + $0x718] sm:$0xff]
  %v250 = vld [vmem:[%s1 + $0x720] sm:$0xff]
  %v251 = vld [vmem:[%s1 + $0x728] sm:$0xff]
  %v252 = vld [vmem:[%s1 + $0x730] sm:$0xff]
  %v253 = vld [vmem:[%s1 + $0x738] sm:$0xff]
  %v254 = vld [vmem:[%s1 + $0x740] sm:$0xff]
  %v255 = vld [vmem:[%s1 + $0x748] sm:$0xff]
  %v256 = vld [vmem:[%s1 + $0x750] sm:$0xff]
  %v257 = vld [vmem:[%s1 + $0x758] sm:$0xff]
  %v258 = vld [vmem:[%s1 + $0x760] sm:$0xff]
  %v259 = vld [vmem:[%s1 + $0x768] sm:$0xff]
  %v260 = vld [vmem:[%s1 + $0x770] sm:$0xff]
  %v261 = vld [vmem:[%s1 + $0x778] sm:$0xff]
  %v262 = vld [vmem:[%s1 + $0x780] sm:$0xff]
  %v263 = vld [vmem:[%s1 + $0x788] sm:$0xff]
  %v264 = vld [vmem:[%s1 + $0x790] sm:$0xff]
  %v265 = vld [vmem:[%s1 + $0x798] sm:$0xff]
  %v266 = vld [vmem:[%s1 + $0x7a0] sm:$0xff]
  %v267 = vld [vmem:[%s1 + $0x7a8] sm:$0xff]
  %v268 = vld [vmem:[%s1 + $0x7b0] sm:$0xff]
  %v269 = vld [vmem:[%s1 + $0x7b8] sm:$0xff]
  %v270 = vld [vmem:[%s1 + $0x7c0] sm:$0xff]
  %v271 = vld [vmem:[%s1 + $0x7c8] sm:$0xff]
  %v272 = vld [vmem:[%s1 + $0x7d0] sm:$0xff]
  %v273 = vld [vmem:[%s1 + $0x7d8] sm:$0xff]
  %v274 = vld [vmem:[%s1 + $0x7e0] sm:$0xff]
  %v275 = vld [vmem:[%s1 + $0x7e8] sm:$0xff]
  %v276 = vld [vmem:[%s1 + $0x7f0] sm:$0xff]
  %v277 = vld [vmem:[%s1 + $0x7f8] sm:$0xff]
  %v278 = vld [vmem:[%s1 + $0x800] sm:$0xff]
  %v279 = vld [vmem:[%s1 + $0x808] sm:$0xff]
  %v280 = vld [vmem:[%s1 + $0x810] sm:$0xff]
  %v281 = vld [vmem:[%s1 + $0x818] sm:$0xff]
  %v282 = vld [vmem:[%s1 + $0x820] sm:$0xff]
  %v283 = vld [vmem:[%s1 + $0x828] sm:$0xff]
  %v284 = vld [vmem:[%s1 + $0x830] sm:$0xff]
  %v285 = vld [vmem:[%s1 + $0x838] sm:$0xff]
  %v286 = vld [vmem:[%s1 + $0x840] sm:$0xff]
  %v287 = vld [vmem:[%s1 + $0x848] sm:$0xff]
  %v288 = vld [vmem:[%s1 + $0x850] sm:$0xff]
  %v289 = vld [vmem:[%s1 + $0x858] sm:$0xff]
  %v290 = vld [vmem:[%s1 + $0x860] sm:$0xff]
  %v291 = vld [vmem:[%s1 + $0x868] sm:$0xff]
  %v292 = vld [vmem:[%s1 + $0x870] sm:$0xff]
  %v293 = vld [vmem:[%s1 + $0x878] sm:$0xff]
  %v294 = vld [vmem:[%s1 + $0x880] sm:$0xff]
  %v295 = vld [vmem:[%s1 + $0x888] sm:$0xff]
  %v296 = vld [vmem:[%s1 + $0x890] sm:$0xff]
  %v297 = vld [vmem:[%s1 + $0x898] sm:$0xff]
  %v298 = vld [vmem:[%s1 + $0x8a0] sm:$0xff]
  %v299 = vld [vmem:[%s1 + $0x8a8] sm:$0xff]
  %v300 = vld [vmem:[%s1 + $0x8b0] sm:$0xff]
  %v301 = vld [vmem:[%s1 + $0x8b8] sm:$0xff]
  %v302 = vld [vmem:[%s1 + $0x8c0] sm:$0xff]
  %v303 = vld [vmem:[%s1 + $0x8c8] sm:$0xff]
  %v304 = vld [vmem:[%s1 + $0x8d0] sm:$0xff]
  %v305 = vld [vmem:[%s1 + $0x8d8] sm:$0xff]
  %v306 = vld [vmem:[%s1 + $0x8e0] sm:$0xff]
  %v307 = vld [vmem:[%s1 + $0x8e8] sm:$0xff]
  %v308 = vld [vmem:[%s1 + $0x8f0] sm:$0xff]
  %v309 = vld [vmem:[%s1 + $0x8f8] sm:$0xff]
  %v319 = vunpack.c.l.b16 %v13
  %v320 = vunpack.c.h.b16 %v13
  %v321 = vunpack.c.l.b16 %v14
  %v322 = vunpack.c.h.b16 %v14
  %v323 = vunpack.c.l.b16 %v15
  %v324 = vunpack.c.h.b16 %v15
  %v325 = vunpack.c.l.b16 %v16
  %v326 = vunpack.c.h.b16 %v16
  %v327 = vunpack.c.l.b16 %v17
  %v328 = vunpack.c.h.b16 %v17
  %v329 = vunpack.c.l.b16 %v18
  %v330 = vunpack.c.h.b16 %v18
  %v331 = vunpack.c.l.b16 %v19
  %v332 = vunpack.c.h.b16 %v19
  %v333 = vunpack.c.l.b16 %v20
  %v334 = vunpack.c.h.b16 %v20
  %v335 = vunpack.c.l.b16 %v21
  %v336 = vunpack.c.h.b16 %v21
  %v337 = vpack.c.b16 %v319, %v319
  %v338 = vpack.c.b16 %v320, %v320
  %v339 = vpack.c.b16 %v321, %v321
  %v340 = vpack.c.b16 %v322, %v322
  %v341 = vpack.c.b16 %v323, %v323
  %v342 = vpack.c.b16 %v324, %v324
  %v343 = vpack.c.b16 %v325, %v325
  %v344 = vpack.c.b16 %v326, %v326
  %v345 = vpack.c.b16 %v327, %v327
  %v346 = vpack.c.b16 %v328, %v328
  %v347 = vpack.c.b16 %v329, %v329
  %v348 = vpack.c.b16 %v330, %v330
  %v349 = vpack.c.b16 %v331, %v331
  %v350 = vpack.c.b16 %v332, %v332
  %v351 = vpack.c.b16 %v333, %v333
  %v352 = vpack.c.b16 %v334, %v334
  %v353 = vpack.c.b16 %v335, %v335
  %v354 = vpack.c.b16 %v336, %v336
  %v661 = vunpack.c.l.b16 %v22
  %v662 = vunpack.c.h.b16 %v22
  %v663 = vunpack.c.l.b16 %v23
  %v664 = vunpack.c.h.b16 %v23
  %v665 = vunpack.c.l.b16 %v24
  %v666 = vunpack.c.h.b16 %v24
  %v667 = vunpack.c.l.b16 %v25
  %v668 = vunpack.c.h.b16 %v25
  %v669 = vunpack.c.l.b16 %v26
  %v670 = vunpack.c.h.b16 %v26
  %v671 = vunpack.c.l.b16 %v27
  %v672 = vunpack.c.h.b16 %v27
  %v673 = vunpack.c.l.b16 %v28
  %v674 = vunpack.c.h.b16 %v28
  %v675 = vunpack.c.l.b16 %v29
  %v676 = vunpack.c.h.b16 %v29
  %v677 = vunpack.c.l.b16 %v30
  %v678 = vunpack.c.h.b16 %v30
  %v679 = vunpack.c.l.b16 %v31
  %v680 = vunpack.c.h.b16 %v31
  %v681 = vunpack.c.l.b16 %v32
  %v682 = vunpack.c.h.b16 %v32
  %v683 = vunpack.c.l.b16 %v33
  %v684 = vunpack.c.h.b16 %v33
  %v685 = vunpack.c.l.b16 %v34
  %v686 = vunpack.c.h.b16 %v34
  %v687 = vunpack.c.l.b16 %v35
  %v688 = vunpack.c.h.b16 %v35
  %v689 = vunpack.c.l.b16 %v36
  %v690 = vunpack.c.h.b16 %v36
  %v691 = vunpack.c.l.b16 %v37
  %v692 = vunpack.c.h.b16 %v37
  %v693 = vunpack.c.l.b16 %v38
  %v694 = vunpack.c.h.b16 %v38
  %v695 = vunpack.c.l.b16 %v39
  %v696 = vunpack.c.h.b16 %v39
  %v697 = vunpack.c.l.b16 %v40
  %v698 = vunpack.c.h.b16 %v40
  %v699 = vunpack.c.l.b16 %v41
  %v700 = vunpack.c.h.b16 %v41
  %v701 = vunpack.c.l.b16 %v42
  %v702 = vunpack.c.h.b16 %v42
  %v703 = vunpack.c.l.b16 %v43
  %v704 = vunpack.c.h.b16 %v43
  %v705 = vunpack.c.l.b16 %v44
  %v706 = vunpack.c.h.b16 %v44
  %v707 = vunpack.c.l.b16 %v45
  %v708 = vunpack.c.h.b16 %v45
  %v709 = vunpack.c.l.b16 %v46
  %v710 = vunpack.c.h.b16 %v46
  %v711 = vunpack.c.l.b16 %v47
  %v712 = vunpack.c.h.b16 %v47
  %v713 = vunpack.c.l.b16 %v48
  %v714 = vunpack.c.h.b16 %v48
  %v715 = vunpack.c.l.b16 %v49
  %v716 = vunpack.c.h.b16 %v49
  %v717 = vunpack.c.l.b16 %v50
  %v718 = vunpack.c.h.b16 %v50
  %v719 = vunpack.c.l.b16 %v51
  %v720 = vunpack.c.h.b16 %v51
  %v721 = vunpack.c.l.b16 %v52
  %v722 = vunpack.c.h.b16 %v52
  %v723 = vunpack.c.l.b16 %v53
  %v724 = vunpack.c.h.b16 %v53
  %v725 = vunpack.c.l.b16 %v54
  %v726 = vunpack.c.h.b16 %v54
  %v727 = vunpack.c.l.b16 %v55
  %v728 = vunpack.c.h.b16 %v55
  %v729 = vunpack.c.l.b16 %v56
  %v730 = vunpack.c.h.b16 %v56
  %v731 = vunpack.c.l.b16 %v57
  %v732 = vunpack.c.h.b16 %v57
  %v733 = vunpack.c.l.b16 %v58
  %v734 = vunpack.c.h.b16 %v58
  %v735 = vunpack.c.l.b16 %v59
  %v736 = vunpack.c.h.b16 %v59
  %v737 = vunpack.c.l.b16 %v60
  %v738 = vunpack.c.h.b16 %v60
  %v739 = vunpack.c.l.b16 %v61
  %v740 = vunpack.c.h.b16 %v61
  %v741 = vunpack.c.l.b16 %v62
  %v742 = vunpack.c.h.b16 %v62
  %v743 = vunpack.c.l.b16 %v63
  %v744 = vunpack.c.h.b16 %v63
  %v745 = vunpack.c.l.b16 %v64
  %v746 = vunpack.c.h.b16 %v64
  %v747 = vunpack.c.l.b16 %v65
  %v748 = vunpack.c.h.b16 %v65
  %v749 = vunpack.c.l.b16 %v66
  %v750 = vunpack.c.h.b16 %v66
  %v751 = vunpack.c.l.b16 %v67
  %v752 = vunpack.c.h.b16 %v67
  %v753 = vunpack.c.l.b16 %v68
  %v754 = vunpack.c.h.b16 %v68
  %v755 = vunpack.c.l.b16 %v69
  %v756 = vunpack.c.h.b16 %v69
  %v757 = vunpack.c.l.b16 %v70
  %v758 = vunpack.c.h.b16 %v70
  %v759 = vunpack.c.l.b16 %v71
  %v760 = vunpack.c.h.b16 %v71
  %v761 = vunpack.c.l.b16 %v72
  %v762 = vunpack.c.h.b16 %v72
  %v763 = vunpack.c.l.b16 %v73
  %v764 = vunpack.c.h.b16 %v73
  %v765 = vunpack.c.l.b16 %v74
  %v766 = vunpack.c.h.b16 %v74
  %v767 = vunpack.c.l.b16 %v75
  %v768 = vunpack.c.h.b16 %v75
  %v769 = vunpack.c.l.b16 %v76
  %v770 = vunpack.c.h.b16 %v76
  %v771 = vunpack.c.l.b16 %v77
  %v772 = vunpack.c.h.b16 %v77
  %v773 = vunpack.c.l.b16 %v78
  %v774 = vunpack.c.h.b16 %v78
  %v775 = vunpack.c.l.b16 %v79
  %v776 = vunpack.c.h.b16 %v79
  %v777 = vunpack.c.l.b16 %v80
  %v778 = vunpack.c.h.b16 %v80
  %v779 = vunpack.c.l.b16 %v81
  %v780 = vunpack.c.h.b16 %v81
  %v781 = vunpack.c.l.b16 %v82
  %v782 = vunpack.c.h.b16 %v82
  %v783 = vunpack.c.l.b16 %v83
  %v784 = vunpack.c.h.b16 %v83
  %v785 = vunpack.c.l.b16 %v84
  %v786 = vunpack.c.h.b16 %v84
  %v787 = vunpack.c.l.b16 %v85
  %v788 = vunpack.c.h.b16 %v85
  %v789 = vunpack.c.l.b16 %v86
  %v790 = vunpack.c.h.b16 %v86
  %v791 = vunpack.c.l.b16 %v87
  %v792 = vunpack.c.h.b16 %v87
  %v793 = vunpack.c.l.b16 %v88
  %v794 = vunpack.c.h.b16 %v88
  %v795 = vunpack.c.l.b16 %v89
  %v796 = vunpack.c.h.b16 %v89
  %v797 = vunpack.c.l.b16 %v90
  %v798 = vunpack.c.h.b16 %v90
  %v799 = vunpack.c.l.b16 %v91
  %v800 = vunpack.c.h.b16 %v91
  %v801 = vunpack.c.l.b16 %v92
  %v802 = vunpack.c.h.b16 %v92
  %v803 = vunpack.c.l.b16 %v93
  %v804 = vunpack.c.h.b16 %v93
  %v805 = vunpack.c.l.b16 %v94
  %v806 = vunpack.c.h.b16 %v94
  %v807 = vunpack.c.l.b16 %v95
  %v808 = vunpack.c.h.b16 %v95
  %v809 = vunpack.c.l.b16 %v96
  %v810 = vunpack.c.h.b16 %v96
  %v811 = vunpack.c.l.b16 %v97
  %v812 = vunpack.c.h.b16 %v97
  %v813 = vunpack.c.l.b16 %v98
  %v814 = vunpack.c.h.b16 %v98
  %v815 = vunpack.c.l.b16 %v99
  %v816 = vunpack.c.h.b16 %v99
  %v817 = vunpack.c.l.b16 %v100
  %v818 = vunpack.c.h.b16 %v100
  %v819 = vunpack.c.l.b16 %v101
  %v820 = vunpack.c.h.b16 %v101
  %v821 = vunpack.c.l.b16 %v102
  %v822 = vunpack.c.h.b16 %v102
  %v823 = vunpack.c.l.b16 %v103
  %v824 = vunpack.c.h.b16 %v103
  %v825 = vunpack.c.l.b16 %v104
  %v826 = vunpack.c.h.b16 %v104
  %v827 = vunpack.c.l.b16 %v105
  %v828 = vunpack.c.h.b16 %v105
  %v829 = vunpack.c.l.b16 %v106
  %v830 = vunpack.c.h.b16 %v106
  %v831 = vunpack.c.l.b16 %v107
  %v832 = vunpack.c.h.b16 %v107
  %v833 = vunpack.c.l.b16 %v108
  %v834 = vunpack.c.h.b16 %v108
  %v835 = vunpack.c.l.b16 %v109
  %v836 = vunpack.c.h.b16 %v109
  %v837 = vunpack.c.l.b16 %v110
  %v838 = vunpack.c.h.b16 %v110
  %v839 = vunpack.c.l.b16 %v111
  %v840 = vunpack.c.h.b16 %v111
  %v841 = vunpack.c.l.b16 %v112
  %v842 = vunpack.c.h.b16 %v112
  %v843 = vunpack.c.l.b16 %v113
  %v844 = vunpack.c.h.b16 %v113
  %v845 = vunpack.c.l.b16 %v114
  %v846 = vunpack.c.h.b16 %v114
  %v847 = vunpack.c.l.b16 %v115
  %v848 = vunpack.c.h.b16 %v115
  %v849 = vunpack.c.l.b16 %v116
  %v850 = vunpack.c.h.b16 %v116
  %v851 = vunpack.c.l.b16 %v117
  %v852 = vunpack.c.h.b16 %v117
  %v853 = vunpack.c.l.b16 %v118
  %v854 = vunpack.c.h.b16 %v118
  %v855 = vunpack.c.l.b16 %v119
  %v856 = vunpack.c.h.b16 %v119
  %v857 = vunpack.c.l.b16 %v120
  %v858 = vunpack.c.h.b16 %v120
  %v859 = vunpack.c.l.b16 %v121
  %v860 = vunpack.c.h.b16 %v121
  %v861 = vunpack.c.l.b16 %v122
  %v862 = vunpack.c.h.b16 %v122
  %v863 = vunpack.c.l.b16 %v123
  %v864 = vunpack.c.h.b16 %v123
  %v865 = vunpack.c.l.b16 %v124
  %v866 = vunpack.c.h.b16 %v124
  %v867 = vunpack.c.l.b16 %v125
  %v868 = vunpack.c.h.b16 %v125
  %v869 = vunpack.c.l.b16 %v126
  %v870 = vunpack.c.h.b16 %v126
  %v871 = vunpack.c.l.b16 %v127
  %v872 = vunpack.c.h.b16 %v127
  %v873 = vunpack.c.l.b16 %v128
  %v874 = vunpack.c.h.b16 %v128
  %v875 = vunpack.c.l.b16 %v129
  %v876 = vunpack.c.h.b16 %v129
  %v877 = vunpack.c.l.b16 %v130
  %v878 = vunpack.c.h.b16 %v130
  %v879 = vunpack.c.l.b16 %v131
  %v880 = vunpack.c.h.b16 %v131
  %v881 = vunpack.c.l.b16 %v132
  %v882 = vunpack.c.h.b16 %v132
  %v883 = vunpack.c.l.b16 %v133
  %v884 = vunpack.c.h.b16 %v133
  %v885 = vunpack.c.l.b16 %v134
  %v886 = vunpack.c.h.b16 %v134
  %v887 = vunpack.c.l.b16 %v135
  %v888 = vunpack.c.h.b16 %v135
  %v889 = vunpack.c.l.b16 %v136
  %v890 = vunpack.c.h.b16 %v136
  %v891 = vunpack.c.l.b16 %v137
  %v892 = vunpack.c.h.b16 %v137
  %v893 = vunpack.c.l.b16 %v138
  %v894 = vunpack.c.h.b16 %v138
  %v895 = vunpack.c.l.b16 %v139
  %v896 = vunpack.c.h.b16 %v139
  %v897 = vunpack.c.l.b16 %v140
  %v898 = vunpack.c.h.b16 %v140
  %v899 = vunpack.c.l.b16 %v141
  %v900 = vunpack.c.h.b16 %v141
  %v901 = vunpack.c.l.b16 %v142
  %v902 = vunpack.c.h.b16 %v142
  %v903 = vunpack.c.l.b16 %v143
  %v904 = vunpack.c.h.b16 %v143
  %v905 = vunpack.c.l.b16 %v144
  %v906 = vunpack.c.h.b16 %v144
  %v907 = vunpack.c.l.b16 %v145
  %v908 = vunpack.c.h.b16 %v145
  %v909 = vunpack.c.l.b16 %v146
  %v910 = vunpack.c.h.b16 %v146
  %v911 = vunpack.c.l.b16 %v147
  %v912 = vunpack.c.h.b16 %v147
  %v913 = vunpack.c.l.b16 %v148
  %v914 = vunpack.c.h.b16 %v148
  %v915 = vunpack.c.l.b16 %v149
  %v916 = vunpack.c.h.b16 %v149
  %v917 = vunpack.c.l.b16 %v150
  %v918 = vunpack.c.h.b16 %v150
  %v919 = vunpack.c.l.b16 %v151
  %v920 = vunpack.c.h.b16 %v151
  %v921 = vunpack.c.l.b16 %v152
  %v922 = vunpack.c.h.b16 %v152
  %v923 = vunpack.c.l.b16 %v153
  %v924 = vunpack.c.h.b16 %v153
  %v925 = vunpack.c.l.b16 %v154
  %v926 = vunpack.c.h.b16 %v154
  %v927 = vunpack.c.l.b16 %v155
  %v928 = vunpack.c.h.b16 %v155
  %v929 = vunpack.c.l.b16 %v156
  %v930 = vunpack.c.h.b16 %v156
  %v931 = vunpack.c.l.b16 %v157
  %v932 = vunpack.c.h.b16 %v157
  %v933 = vunpack.c.l.b16 %v158
  %v934 = vunpack.c.h.b16 %v158
  %v935 = vunpack.c.l.b16 %v159
  %v936 = vunpack.c.h.b16 %v159
  %v937 = vunpack.c.l.b16 %v160
  %v938 = vunpack.c.h.b16 %v160
  %v939 = vunpack.c.l.b16 %v161
  %v940 = vunpack.c.h.b16 %v161
  %v941 = vunpack.c.l.b16 %v162
  %v942 = vunpack.c.h.b16 %v162
  %v943 = vunpack.c.l.b16 %v163
  %v944 = vunpack.c.h.b16 %v163
  %v945 = vunpack.c.l.b16 %v164
  %v946 = vunpack.c.h.b16 %v164
  %v947 = vunpack.c.l.b16 %v165
  %v948 = vunpack.c.h.b16 %v165
  %v949 = vunpack.c.l.b16 %v166
  %v950 = vunpack.c.h.b16 %v166
  %v951 = vunpack.c.l.b16 %v167
  %v952 = vunpack.c.h.b16 %v167
  %v953 = vunpack.c.l.b16 %v168
  %v954 = vunpack.c.h.b16 %v168
  %v955 = vunpack.c.l.b16 %v169
  %v956 = vunpack.c.h.b16 %v169
  %v957 = vunpack.c.l.b16 %v170
  %v958 = vunpack.c.h.b16 %v170
  %v959 = vunpack.c.l.b16 %v171
  %v960 = vunpack.c.h.b16 %v171
  %v961 = vunpack.c.l.b16 %v172
  %v962 = vunpack.c.h.b16 %v172
  %v963 = vunpack.c.l.b16 %v173
  %v964 = vunpack.c.h.b16 %v173
  %v965 = vunpack.c.l.b16 %v174
  %v966 = vunpack.c.h.b16 %v174
  %v967 = vunpack.c.l.b16 %v175
  %v968 = vunpack.c.h.b16 %v175
  %v969 = vunpack.c.l.b16 %v176
  %v970 = vunpack.c.h.b16 %v176
  %v971 = vunpack.c.l.b16 %v177
  %v972 = vunpack.c.h.b16 %v177
  %v973 = vunpack.c.l.b16 %v178
  %v974 = vunpack.c.h.b16 %v178
  %v975 = vunpack.c.l.b16 %v179
  %v976 = vunpack.c.h.b16 %v179
  %v977 = vunpack.c.l.b16 %v180
  %v978 = vunpack.c.h.b16 %v180
  %v979 = vunpack.c.l.b16 %v181
  %v980 = vunpack.c.h.b16 %v181
  %v981 = vunpack.c.l.b16 %v182
  %v982 = vunpack.c.h.b16 %v182
  %v983 = vunpack.c.l.b16 %v183
  %v984 = vunpack.c.h.b16 %v183
  %v985 = vunpack.c.l.b16 %v184
  %v986 = vunpack.c.h.b16 %v184
  %v987 = vunpack.c.l.b16 %v185
  %v988 = vunpack.c.h.b16 %v185
  %v989 = vunpack.c.l.b16 %v186
  %v990 = vunpack.c.h.b16 %v186
  %v991 = vunpack.c.l.b16 %v187
  %v992 = vunpack.c.h.b16 %v187
  %v993 = vunpack.c.l.b16 %v188
  %v994 = vunpack.c.h.b16 %v188
  %v995 = vunpack.c.l.b16 %v189
  %v996 = vunpack.c.h.b16 %v189
  %v997 = vunpack.c.l.b16 %v190
  %v998 = vunpack.c.h.b16 %v190
  %v999 = vunpack.c.l.b16 %v191
  %v1000 = vunpack.c.h.b16 %v191
  %v1001 = vunpack.c.l.b16 %v192
  %v1002 = vunpack.c.h.b16 %v192
  %v1003 = vunpack.c.l.b16 %v193
  %v1004 = vunpack.c.h.b16 %v193
  %v1005 = vunpack.c.l.b16 %v194
  %v1006 = vunpack.c.h.b16 %v194
  %v1007 = vunpack.c.l.b16 %v195
  %v1008 = vunpack.c.h.b16 %v195
  %v1009 = vunpack.c.l.b16 %v196
  %v1010 = vunpack.c.h.b16 %v196
  %v1011 = vunpack.c.l.b16 %v197
  %v1012 = vunpack.c.h.b16 %v197
  %v1013 = vunpack.c.l.b16 %v198
  %v1014 = vunpack.c.h.b16 %v198
  %v1015 = vunpack.c.l.b16 %v199
  %v1016 = vunpack.c.h.b16 %v199
  %v1017 = vunpack.c.l.b16 %v200
  %v1018 = vunpack.c.h.b16 %v200
  %v1019 = vunpack.c.l.b16 %v201
  %v1020 = vunpack.c.h.b16 %v201
  %v1021 = vunpack.c.l.b16 %v202
  %v1022 = vunpack.c.h.b16 %v202
  %v1023 = vunpack.c.l.b16 %v203
  %v1024 = vunpack.c.h.b16 %v203
  %v1025 = vunpack.c.l.b16 %v204
  %v1026 = vunpack.c.h.b16 %v204
  %v1027 = vunpack.c.l.b16 %v205
  %v1028 = vunpack.c.h.b16 %v205
  %v1029 = vunpack.c.l.b16 %v206
  %v1030 = vunpack.c.h.b16 %v206
  %v1031 = vunpack.c.l.b16 %v207
  %v1032 = vunpack.c.h.b16 %v207
  %v1033 = vunpack.c.l.b16 %v208
  %v1034 = vunpack.c.h.b16 %v208
  %v1035 = vunpack.c.l.b16 %v209
  %v1036 = vunpack.c.h.b16 %v209
  %v1037 = vunpack.c.l.b16 %v210
  %v1038 = vunpack.c.h.b16 %v210
  %v1039 = vunpack.c.l.b16 %v211
  %v1040 = vunpack.c.h.b16 %v211
  %v1041 = vunpack.c.l.b16 %v212
  %v1042 = vunpack.c.h.b16 %v212
  %v1043 = vunpack.c.l.b16 %v213
  %v1044 = vunpack.c.h.b16 %v213
  %v1045 = vunpack.c.l.b16 %v214
  %v1046 = vunpack.c.h.b16 %v214
  %v1047 = vunpack.c.l.b16 %v215
  %v1048 = vunpack.c.h.b16 %v215
  %v1049 = vunpack.c.l.b16 %v216
  %v1050 = vunpack.c.h.b16 %v216
  %v1051 = vunpack.c.l.b16 %v217
  %v1052 = vunpack.c.h.b16 %v217
  %v1053 = vunpack.c.l.b16 %v218
  %v1054 = vunpack.c.h.b16 %v218
  %v1055 = vunpack.c.l.b16 %v219
  %v1056 = vunpack.c.h.b16 %v219
  %v1057 = vunpack.c.l.b16 %v220
  %v1058 = vunpack.c.h.b16 %v220
  %v1059 = vunpack.c.l.b16 %v221
  %v1060 = vunpack.c.h.b16 %v221
  %v1061 = vunpack.c.l.b16 %v222
  %v1062 = vunpack.c.h.b16 %v222
  %v1063 = vunpack.c.l.b16 %v223
  %v1064 = vunpack.c.h.b16 %v223
  %v1065 = vunpack.c.l.b16 %v224
  %v1066 = vunpack.c.h.b16 %v224
  %v1067 = vunpack.c.l.b16 %v225
  %v1068 = vunpack.c.h.b16 %v225
  %v1069 = vunpack.c.l.b16 %v226
  %v1070 = vunpack.c.h.b16 %v226
  %v1071 = vunpack.c.l.b16 %v227
  %v1072 = vunpack.c.h.b16 %v227
  %v1073 = vunpack.c.l.b16 %v228
  %v1074 = vunpack.c.h.b16 %v228
  %v1075 = vunpack.c.l.b16 %v229
  %v1076 = vunpack.c.h.b16 %v229
  %v1077 = vunpack.c.l.b16 %v230
  %v1078 = vunpack.c.h.b16 %v230
  %v1079 = vunpack.c.l.b16 %v231
  %v1080 = vunpack.c.h.b16 %v231
  %v1081 = vunpack.c.l.b16 %v232
  %v1082 = vunpack.c.h.b16 %v232
  %v1083 = vunpack.c.l.b16 %v233
  %v1084 = vunpack.c.h.b16 %v233
  %v1085 = vunpack.c.l.b16 %v234
  %v1086 = vunpack.c.h.b16 %v234
  %v1087 = vunpack.c.l.b16 %v235
  %v1088 = vunpack.c.h.b16 %v235
  %v1089 = vunpack.c.l.b16 %v236
  %v1090 = vunpack.c.h.b16 %v236
  %v1091 = vunpack.c.l.b16 %v237
  %v1092 = vunpack.c.h.b16 %v237
  %v1093 = vunpack.c.l.b16 %v238
  %v1094 = vunpack.c.h.b16 %v238
  %v1095 = vunpack.c.l.b16 %v239
  %v1096 = vunpack.c.h.b16 %v239
  %v1097 = vunpack.c.l.b16 %v240
  %v1098 = vunpack.c.h.b16 %v240
  %v1099 = vunpack.c.l.b16 %v241
  %v1100 = vunpack.c.h.b16 %v241
  %v1101 = vunpack.c.l.b16 %v242
  %v1102 = vunpack.c.h.b16 %v242
  %v1103 = vunpack.c.l.b16 %v243
  %v1104 = vunpack.c.h.b16 %v243
  %v1105 = vunpack.c.l.b16 %v244
  %v1106 = vunpack.c.h.b16 %v244
  %v1107 = vunpack.c.l.b16 %v245
  %v1108 = vunpack.c.h.b16 %v245
  %v1109 = vunpack.c.l.b16 %v246
  %v1110 = vunpack.c.h.b16 %v246
  %v1111 = vunpack.c.l.b16 %v247
  %v1112 = vunpack.c.h.b16 %v247
  %v1113 = vunpack.c.l.b16 %v248
  %v1114 = vunpack.c.h.b16 %v248
  %v1115 = vunpack.c.l.b16 %v249
  %v1116 = vunpack.c.h.b16 %v249
  %v1117 = vunpack.c.l.b16 %v250
  %v1118 = vunpack.c.h.b16 %v250
  %v1119 = vunpack.c.l.b16 %v251
  %v1120 = vunpack.c.h.b16 %v251
  %v1121 = vunpack.c.l.b16 %v252
  %v1122 = vunpack.c.h.b16 %v252
  %v1123 = vunpack.c.l.b16 %v253
  %v1124 = vunpack.c.h.b16 %v253
  %v1125 = vunpack.c.l.b16 %v254
  %v1126 = vunpack.c.h.b16 %v254
  %v1127 = vunpack.c.l.b16 %v255
  %v1128 = vunpack.c.h.b16 %v255
  %v1129 = vunpack.c.l.b16 %v256
  %v1130 = vunpack.c.h.b16 %v256
  %v1131 = vunpack.c.l.b16 %v257
  %v1132 = vunpack.c.h.b16 %v257
  %v1133 = vunpack.c.l.b16 %v258
  %v1134 = vunpack.c.h.b16 %v258
  %v1135 = vunpack.c.l.b16 %v259
  %v1136 = vunpack.c.h.b16 %v259
  %v1137 = vunpack.c.l.b16 %v260
  %v1138 = vunpack.c.h.b16 %v260
  %v1139 = vunpack.c.l.b16 %v261
  %v1140 = vunpack.c.h.b16 %v261
  %v1141 = vunpack.c.l.b16 %v262
  %v1142 = vunpack.c.h.b16 %v262
  %v1143 = vunpack.c.l.b16 %v263
  %v1144 = vunpack.c.h.b16 %v263
  %v1145 = vunpack.c.l.b16 %v264
  %v1146 = vunpack.c.h.b16 %v264
  %v1147 = vunpack.c.l.b16 %v265
  %v1148 = vunpack.c.h.b16 %v265
  %v1149 = vunpack.c.l.b16 %v266
  %v1150 = vunpack.c.h.b16 %v266
  %v1151 = vunpack.c.l.b16 %v267
  %v1152 = vunpack.c.h.b16 %v267
  %v1153 = vunpack.c.l.b16 %v268
  %v1154 = vunpack.c.h.b16 %v268
  %v1155 = vunpack.c.l.b16 %v269
  %v1156 = vunpack.c.h.b16 %v269
  %v1157 = vunpack.c.l.b16 %v270
  %v1158 = vunpack.c.h.b16 %v270
  %v1159 = vunpack.c.l.b16 %v271
  %v1160 = vunpack.c.h.b16 %v271
  %v1161 = vunpack.c.l.b16 %v272
  %v1162 = vunpack.c.h.b16 %v272
  %v1163 = vunpack.c.l.b16 %v273
  %v1164 = vunpack.c.h.b16 %v273
  %v1165 = vunpack.c.l.b16 %v274
  %v1166 = vunpack.c.h.b16 %v274
  %v1167 = vunpack.c.l.b16 %v275
  %v1168 = vunpack.c.h.b16 %v275
  %v1169 = vunpack.c.l.b16 %v276
  %v1170 = vunpack.c.h.b16 %v276
  %v1171 = vunpack.c.l.b16 %v277
  %v1172 = vunpack.c.h.b16 %v277
  %v1173 = vunpack.c.l.b16 %v278
  %v1174 = vunpack.c.h.b16 %v278
  %v1175 = vunpack.c.l.b16 %v279
  %v1176 = vunpack.c.h.b16 %v279
  %v1177 = vunpack.c.l.b16 %v280
  %v1178 = vunpack.c.h.b16 %v280
  %v1179 = vunpack.c.l.b16 %v281
  %v1180 = vunpack.c.h.b16 %v281
  %v1181 = vunpack.c.l.b16 %v282
  %v1182 = vunpack.c.h.b16 %v282
  %v1183 = vunpack.c.l.b16 %v283
  %v1184 = vunpack.c.h.b16 %v283
  %v1185 = vunpack.c.l.b16 %v284
  %v1186 = vunpack.c.h.b16 %v284
  %v1187 = vunpack.c.l.b16 %v285
  %v1188 = vunpack.c.h.b16 %v285
  %v1189 = vunpack.c.l.b16 %v286
  %v1190 = vunpack.c.h.b16 %v286
  %v1191 = vunpack.c.l.b16 %v287
  %v1192 = vunpack.c.h.b16 %v287
  %v1193 = vunpack.c.l.b16 %v288
  %v1194 = vunpack.c.h.b16 %v288
  %v1195 = vunpack.c.l.b16 %v289
  %v1196 = vunpack.c.h.b16 %v289
  %v1197 = vunpack.c.l.b16 %v290
  %v1198 = vunpack.c.h.b16 %v290
  %v1199 = vunpack.c.l.b16 %v291
  %v1200 = vunpack.c.h.b16 %v291
  %v1201 = vunpack.c.l.b16 %v292
  %v1202 = vunpack.c.h.b16 %v292
  %v1203 = vunpack.c.l.b16 %v293
  %v1204 = vunpack.c.h.b16 %v293
  %v1205 = vunpack.c.l.b16 %v294
  %v1206 = vunpack.c.h.b16 %v294
  %v1207 = vunpack.c.l.b16 %v295
  %v1208 = vunpack.c.h.b16 %v295
  %v1209 = vunpack.c.l.b16 %v296
  %v1210 = vunpack.c.h.b16 %v296
  %v1211 = vunpack.c.l.b16 %v297
  %v1212 = vunpack.c.h.b16 %v297
  %v1213 = vunpack.c.l.b16 %v298
  %v1214 = vunpack.c.h.b16 %v298
  %v1215 = vunpack.c.l.b16 %v299
  %v1216 = vunpack.c.h.b16 %v299
  %v1217 = vunpack.c.l.b16 %v300
  %v1218 = vunpack.c.h.b16 %v300
  %v1219 = vunpack.c.l.b16 %v301
  %v1220 = vunpack.c.h.b16 %v301
  %v1221 = vunpack.c.l.b16 %v302
  %v1222 = vunpack.c.h.b16 %v302
  %v1223 = vunpack.c.l.b16 %v303
  %v1224 = vunpack.c.h.b16 %v303
  %v1225 = vunpack.c.l.b16 %v304
  %v1226 = vunpack.c.h.b16 %v304
  %v1227 = vunpack.c.l.b16 %v305
  %v1228 = vunpack.c.h.b16 %v305
  %v1229 = vunpack.c.l.b16 %v306
  %v1230 = vunpack.c.h.b16 %v306
  %v1231 = vunpack.c.l.b16 %v307
  %v1232 = vunpack.c.h.b16 %v307
  %v1233 = vunpack.c.l.b16 %v308
  %v1234 = vunpack.c.h.b16 %v308
  %v1235 = vunpack.c.l.b16 %v309
  %v1236 = vunpack.c.h.b16 %v309
  %v1237 = vpack.c.b16 %v663, %v661
  %v1238 = vpack.c.b16 %v664, %v662
  %v1239 = vpack.c.b16 %v667, %v665
  %v1240 = vpack.c.b16 %v668, %v666
  %v1241 = vpack.c.b16 %v671, %v669
  %v1242 = vpack.c.b16 %v672, %v670
  %v1243 = vpack.c.b16 %v675, %v673
  %v1244 = vpack.c.b16 %v676, %v674
  %v1245 = vpack.c.b16 %v679, %v677
  %v1246 = vpack.c.b16 %v680, %v678
  %v1247 = vpack.c.b16 %v683, %v681
  %v1248 = vpack.c.b16 %v684, %v682
  %v1249 = vpack.c.b16 %v687, %v685
  %v1250 = vpack.c.b16 %v688, %v686
  %v1251 = vpack.c.b16 %v691, %v689
  %v1252 = vpack.c.b16 %v692, %v690
  %v1253 = vpack.c.b16 %v695, %v693
  %v1254 = vpack.c.b16 %v696, %v694
  %v1255 = vpack.c.b16 %v699, %v697
  %v1256 = vpack.c.b16 %v700, %v698
  %v1257 = vpack.c.b16 %v703, %v701
  %v1258 = vpack.c.b16 %v704, %v702
  %v1259 = vpack.c.b16 %v707, %v705
  %v1260 = vpack.c.b16 %v708, %v706
  %v1261 = vpack.c.b16 %v711, %v709
  %v1262 = vpack.c.b16 %v712, %v710
  %v1263 = vpack.c.b16 %v715, %v713
  %v1264 = vpack.c.b16 %v716, %v714
  %v1265 = vpack.c.b16 %v719, %v717
  %v1266 = vpack.c.b16 %v720, %v718
  %v1267 = vpack.c.b16 %v723, %v721
  %v1268 = vpack.c.b16 %v724, %v722
  %v1269 = vpack.c.b16 %v727, %v725
  %v1270 = vpack.c.b16 %v728, %v726
  %v1271 = vpack.c.b16 %v731, %v729
  %v1272 = vpack.c.b16 %v732, %v730
  %v1273 = vpack.c.b16 %v735, %v733
  %v1274 = vpack.c.b16 %v736, %v734
  %v1275 = vpack.c.b16 %v739, %v737
  %v1276 = vpack.c.b16 %v740, %v738
  %v1277 = vpack.c.b16 %v743, %v741
  %v1278 = vpack.c.b16 %v744, %v742
  %v1279 = vpack.c.b16 %v747, %v745
  %v1280 = vpack.c.b16 %v748, %v746
  %v1281 = vpack.c.b16 %v751, %v749
  %v1282 = vpack.c.b16 %v752, %v750
  %v1283 = vpack.c.b16 %v755, %v753
  %v1284 = vpack.c.b16 %v756, %v754
  %v1285 = vpack.c.b16 %v759, %v757
  %v1286 = vpack.c.b16 %v760, %v758
  %v1287 = vpack.c.b16 %v763, %v761
  %v1288 = vpack.c.b16 %v764, %v762
  %v1289 = vpack.c.b16 %v767, %v765
  %v1290 = vpack.c.b16 %v768, %v766
  %v1291 = vpack.c.b16 %v771, %v769
  %v1292 = vpack.c.b16 %v772, %v770
  %v1293 = vpack.c.b16 %v775, %v773
  %v1294 = vpack.c.b16 %v776, %v774
  %v1295 = vpack.c.b16 %v779, %v777
  %v1296 = vpack.c.b16 %v780, %v778
  %v1297 = vpack.c.b16 %v783, %v781
  %v1298 = vpack.c.b16 %v784, %v782
  %v1299 = vpack.c.b16 %v787, %v785
  %v1300 = vpack.c.b16 %v788, %v786
  %v1301 = vpack.c.b16 %v791, %v789
  %v1302 = vpack.c.b16 %v792, %v790
  %v1303 = vpack.c.b16 %v795, %v793
  %v1304 = vpack.c.b16 %v796, %v794
  %v1305 = vpack.c.b16 %v799, %v797
  %v1306 = vpack.c.b16 %v800, %v798
  %v1307 = vpack.c.b16 %v803, %v801
  %v1308 = vpack.c.b16 %v804, %v802
  %v1309 = vpack.c.b16 %v807, %v805
  %v1310 = vpack.c.b16 %v808, %v806
  %v1311 = vpack.c.b16 %v811, %v809
  %v1312 = vpack.c.b16 %v812, %v810
  %v1313 = vpack.c.b16 %v815, %v813
  %v1314 = vpack.c.b16 %v816, %v814
  %v1315 = vpack.c.b16 %v819, %v817
  %v1316 = vpack.c.b16 %v820, %v818
  %v1317 = vpack.c.b16 %v823, %v821
  %v1318 = vpack.c.b16 %v824, %v822
  %v1319 = vpack.c.b16 %v827, %v825
  %v1320 = vpack.c.b16 %v828, %v826
  %v1321 = vpack.c.b16 %v831, %v829
  %v1322 = vpack.c.b16 %v832, %v830
  %v1323 = vpack.c.b16 %v835, %v833
  %v1324 = vpack.c.b16 %v836, %v834
  %v1325 = vpack.c.b16 %v839, %v837
  %v1326 = vpack.c.b16 %v840, %v838
  %v1327 = vpack.c.b16 %v843, %v841
  %v1328 = vpack.c.b16 %v844, %v842
  %v1329 = vpack.c.b16 %v847, %v845
  %v1330 = vpack.c.b16 %v848, %v846
  %v1331 = vpack.c.b16 %v851, %v849
  %v1332 = vpack.c.b16 %v852, %v850
  %v1333 = vpack.c.b16 %v855, %v853
  %v1334 = vpack.c.b16 %v856, %v854
  %v1335 = vpack.c.b16 %v859, %v857
  %v1336 = vpack.c.b16 %v860, %v858
  %v1337 = vpack.c.b16 %v863, %v861
  %v1338 = vpack.c.b16 %v864, %v862
  %v1339 = vpack.c.b16 %v867, %v865
  %v1340 = vpack.c.b16 %v868, %v866
  %v1341 = vpack.c.b16 %v871, %v869
  %v1342 = vpack.c.b16 %v872, %v870
  %v1343 = vpack.c.b16 %v875, %v873
  %v1344 = vpack.c.b16 %v876, %v874
  %v1345 = vpack.c.b16 %v879, %v877
  %v1346 = vpack.c.b16 %v880, %v878
  %v1347 = vpack.c.b16 %v883, %v881
  %v1348 = vpack.c.b16 %v884, %v882
  %v1349 = vpack.c.b16 %v887, %v885
  %v1350 = vpack.c.b16 %v888, %v886
  %v1351 = vpack.c.b16 %v891, %v889
  %v1352 = vpack.c.b16 %v892, %v890
  %v1353 = vpack.c.b16 %v895, %v893
  %v1354 = vpack.c.b16 %v896, %v894
  %v1355 = vpack.c.b16 %v899, %v897
  %v1356 = vpack.c.b16 %v900, %v898
  %v1357 = vpack.c.b16 %v903, %v901
  %v1358 = vpack.c.b16 %v904, %v902
  %v1359 = vpack.c.b16 %v907, %v905
  %v1360 = vpack.c.b16 %v908, %v906
  %v1361 = vpack.c.b16 %v911, %v909
  %v1362 = vpack.c.b16 %v912, %v910
  %v1363 = vpack.c.b16 %v915, %v913
  %v1364 = vpack.c.b16 %v916, %v914
  %v1365 = vpack.c.b16 %v919, %v917
  %v1366 = vpack.c.b16 %v920, %v918
  %v1367 = vpack.c.b16 %v923, %v921
  %v1368 = vpack.c.b16 %v924, %v922
  %v1369 = vpack.c.b16 %v927, %v925
  %v1370 = vpack.c.b16 %v928, %v926
  %v1371 = vpack.c.b16 %v931, %v929
  %v1372 = vpack.c.b16 %v932, %v930
  %v1373 = vpack.c.b16 %v935, %v933
  %v1374 = vpack.c.b16 %v936, %v934
  %v1375 = vpack.c.b16 %v939, %v937
  %v1376 = vpack.c.b16 %v940, %v938
  %v1377 = vpack.c.b16 %v943, %v941
  %v1378 = vpack.c.b16 %v944, %v942
  %v1379 = vpack.c.b16 %v947, %v945
  %v1380 = vpack.c.b16 %v948, %v946
  %v1381 = vpack.c.b16 %v951, %v949
  %v1382 = vpack.c.b16 %v952, %v950
  %v1383 = vpack.c.b16 %v955, %v953
  %v1384 = vpack.c.b16 %v956, %v954
  %v1385 = vpack.c.b16 %v959, %v957
  %v1386 = vpack.c.b16 %v960, %v958
  %v1387 = vpack.c.b16 %v963, %v961
  %v1388 = vpack.c.b16 %v964, %v962
  %v1389 = vpack.c.b16 %v967, %v965
  %v1390 = vpack.c.b16 %v968, %v966
  %v1391 = vpack.c.b16 %v971, %v969
  %v1392 = vpack.c.b16 %v972, %v970
  %v1393 = vpack.c.b16 %v975, %v973
  %v1394 = vpack.c.b16 %v976, %v974
  %v1395 = vpack.c.b16 %v979, %v977
  %v1396 = vpack.c.b16 %v980, %v978
  %v1397 = vpack.c.b16 %v983, %v981
  %v1398 = vpack.c.b16 %v984, %v982
  %v1399 = vpack.c.b16 %v987, %v985
  %v1400 = vpack.c.b16 %v988, %v986
  %v1401 = vpack.c.b16 %v991, %v989
  %v1402 = vpack.c.b16 %v992, %v990
  %v1403 = vpack.c.b16 %v995, %v993
  %v1404 = vpack.c.b16 %v996, %v994
  %v1405 = vpack.c.b16 %v999, %v997
  %v1406 = vpack.c.b16 %v1000, %v998
  %v1407 = vpack.c.b16 %v1003, %v1001
  %v1408 = vpack.c.b16 %v1004, %v1002
  %v1409 = vpack.c.b16 %v1007, %v1005
  %v1410 = vpack.c.b16 %v1008, %v1006
  %v1411 = vpack.c.b16 %v1011, %v1009
  %v1412 = vpack.c.b16 %v1012, %v1010
  %v1413 = vpack.c.b16 %v1015, %v1013
  %v1414 = vpack.c.b16 %v1016, %v1014
  %v1415 = vpack.c.b16 %v1019, %v1017
  %v1416 = vpack.c.b16 %v1020, %v1018
  %v1417 = vpack.c.b16 %v1023, %v1021
  %v1418 = vpack.c.b16 %v1024, %v1022
  %v1419 = vpack.c.b16 %v1027, %v1025
  %v1420 = vpack.c.b16 %v1028, %v1026
  %v1421 = vpack.c.b16 %v1031, %v1029
  %v1422 = vpack.c.b16 %v1032, %v1030
  %v1423 = vpack.c.b16 %v1035, %v1033
  %v1424 = vpack.c.b16 %v1036, %v1034
  %v1425 = vpack.c.b16 %v1039, %v1037
  %v1426 = vpack.c.b16 %v1040, %v1038
  %v1427 = vpack.c.b16 %v1043, %v1041
  %v1428 = vpack.c.b16 %v1044, %v1042
  %v1429 = vpack.c.b16 %v1047, %v1045
  %v1430 = vpack.c.b16 %v1048, %v1046
  %v1431 = vpack.c.b16 %v1051, %v1049
  %v1432 = vpack.c.b16 %v1052, %v1050
  %v1433 = vpack.c.b16 %v1055, %v1053
  %v1434 = vpack.c.b16 %v1056, %v1054
  %v1435 = vpack.c.b16 %v1059, %v1057
  %v1436 = vpack.c.b16 %v1060, %v1058
  %v1437 = vpack.c.b16 %v1063, %v1061
  %v1438 = vpack.c.b16 %v1064, %v1062
  %v1439 = vpack.c.b16 %v1067, %v1065
  %v1440 = vpack.c.b16 %v1068, %v1066
  %v1441 = vpack.c.b16 %v1071, %v1069
  %v1442 = vpack.c.b16 %v1072, %v1070
  %v1443 = vpack.c.b16 %v1075, %v1073
  %v1444 = vpack.c.b16 %v1076, %v1074
  %v1445 = vpack.c.b16 %v1079, %v1077
  %v1446 = vpack.c.b16 %v1080, %v1078
  %v1447 = vpack.c.b16 %v1083, %v1081
  %v1448 = vpack.c.b16 %v1084, %v1082
  %v1449 = vpack.c.b16 %v1087, %v1085
  %v1450 = vpack.c.b16 %v1088, %v1086
  %v1451 = vpack.c.b16 %v1091, %v1089
  %v1452 = vpack.c.b16 %v1092, %v1090
  %v1453 = vpack.c.b16 %v1095, %v1093
  %v1454 = vpack.c.b16 %v1096, %v1094
  %v1455 = vpack.c.b16 %v1099, %v1097
  %v1456 = vpack.c.b16 %v1100, %v1098
  %v1457 = vpack.c.b16 %v1103, %v1101
  %v1458 = vpack.c.b16 %v1104, %v1102
  %v1459 = vpack.c.b16 %v1107, %v1105
  %v1460 = vpack.c.b16 %v1108, %v1106
  %v1461 = vpack.c.b16 %v1111, %v1109
  %v1462 = vpack.c.b16 %v1112, %v1110
  %v1463 = vpack.c.b16 %v1115, %v1113
  %v1464 = vpack.c.b16 %v1116, %v1114
  %v1465 = vpack.c.b16 %v1119, %v1117
  %v1466 = vpack.c.b16 %v1120, %v1118
  %v1467 = vpack.c.b16 %v1123, %v1121
  %v1468 = vpack.c.b16 %v1124, %v1122
  %v1469 = vpack.c.b16 %v1127, %v1125
  %v1470 = vpack.c.b16 %v1128, %v1126
  %v1471 = vpack.c.b16 %v1131, %v1129
  %v1472 = vpack.c.b16 %v1132, %v1130
  %v1473 = vpack.c.b16 %v1135, %v1133
  %v1474 = vpack.c.b16 %v1136, %v1134
  %v1475 = vpack.c.b16 %v1139, %v1137
  %v1476 = vpack.c.b16 %v1140, %v1138
  %v1477 = vpack.c.b16 %v1143, %v1141
  %v1478 = vpack.c.b16 %v1144, %v1142
  %v1479 = vpack.c.b16 %v1147, %v1145
  %v1480 = vpack.c.b16 %v1148, %v1146
  %v1481 = vpack.c.b16 %v1151, %v1149
  %v1482 = vpack.c.b16 %v1152, %v1150
  %v1483 = vpack.c.b16 %v1155, %v1153
  %v1484 = vpack.c.b16 %v1156, %v1154
  %v1485 = vpack.c.b16 %v1159, %v1157
  %v1486 = vpack.c.b16 %v1160, %v1158
  %v1487 = vpack.c.b16 %v1163, %v1161
  %v1488 = vpack.c.b16 %v1164, %v1162
  %v1489 = vpack.c.b16 %v1167, %v1165
  %v1490 = vpack.c.b16 %v1168, %v1166
  %v1491 = vpack.c.b16 %v1171, %v1169
  %v1492 = vpack.c.b16 %v1172, %v1170
  %v1493 = vpack.c.b16 %v1175, %v1173
  %v1494 = vpack.c.b16 %v1176, %v1174
  %v1495 = vpack.c.b16 %v1179, %v1177
  %v1496 = vpack.c.b16 %v1180, %v1178
  %v1497 = vpack.c.b16 %v1183, %v1181
  %v1498 = vpack.c.b16 %v1184, %v1182
  %v1499 = vpack.c.b16 %v1187, %v1185
  %v1500 = vpack.c.b16 %v1188, %v1186
  %v1501 = vpack.c.b16 %v1191, %v1189
  %v1502 = vpack.c.b16 %v1192, %v1190
  %v1503 = vpack.c.b16 %v1195, %v1193
  %v1504 = vpack.c.b16 %v1196, %v1194
  %v1505 = vpack.c.b16 %v1199, %v1197
  %v1506 = vpack.c.b16 %v1200, %v1198
  %v1507 = vpack.c.b16 %v1203, %v1201
  %v1508 = vpack.c.b16 %v1204, %v1202
  %v1509 = vpack.c.b16 %v1207, %v1205
  %v1510 = vpack.c.b16 %v1208, %v1206
  %v1511 = vpack.c.b16 %v1211, %v1209
  %v1512 = vpack.c.b16 %v1212, %v1210
  %v1513 = vpack.c.b16 %v1215, %v1213
  %v1514 = vpack.c.b16 %v1216, %v1214
  %v1515 = vpack.c.b16 %v1219, %v1217
  %v1516 = vpack.c.b16 %v1220, %v1218
  %v1517 = vpack.c.b16 %v1223, %v1221
  %v1518 = vpack.c.b16 %v1224, %v1222
  %v1519 = vpack.c.b16 %v1227, %v1225
  %v1520 = vpack.c.b16 %v1228, %v1226
  %v1521 = vpack.c.b16 %v1231, %v1229
  %v1522 = vpack.c.b16 %v1232, %v1230
  %v1523 = vpack.c.b16 %v1235, %v1233
  %v1524 = vpack.c.b16 %v1236, %v1234
  %1813 = vmatprep.subr.bf16.mxu0 %v1238
  %1814 = vmatpush1.bf16.msra.mxu0 %v1237
  %1815 = vmatprep.subr.bf16.mxu0 %v1240
  %1816 = vmatpush1.bf16.msra.mxu0 %v1239
  %1817 = vmatprep.subr.bf16.mxu0 %v1242
  %1818 = vmatpush1.bf16.msra.mxu0 %v1241
  %1819 = vmatprep.subr.bf16.mxu0 %v1244
  %1820 = vmatpush1.bf16.msra.mxu0 %v1243
  %1821 = vmatprep.subr.bf16.mxu0 %v1246
  %1822 = vmatpush1.bf16.msra.mxu0 %v1245
  %1823 = vmatprep.subr.bf16.mxu0 %v1248
  %1824 = vmatpush1.bf16.msra.mxu0 %v1247
  %1825 = vmatprep.subr.bf16.mxu0 %v1250
  %1826 = vmatpush1.bf16.msra.mxu0 %v1249
  %1827 = vmatprep.subr.bf16.mxu0 %v1252
  %1828 = vmatpush1.bf16.msra.mxu0 %v1251
  %1829 = vmatprep.subr.bf16.mxu0 %v1254
  %1830 = vmatpush1.bf16.msra.mxu0 %v1253
  %1831 = vmatprep.subr.bf16.mxu0 %v1256
  %1832 = vmatpush1.bf16.msra.mxu0 %v1255
  %1833 = vmatprep.subr.bf16.mxu0 %v1258
  %1834 = vmatpush1.bf16.msra.mxu0 %v1257
  %1835 = vmatprep.subr.bf16.mxu0 %v1260
  %1836 = vmatpush1.bf16.msra.mxu0 %v1259
  %1837 = vmatprep.subr.bf16.mxu0 %v1262
  %1838 = vmatpush1.bf16.msra.mxu0 %v1261
  %1839 = vmatprep.subr.bf16.mxu0 %v1264
  %1840 = vmatpush1.bf16.msra.mxu0 %v1263
  %1841 = vmatprep.subr.bf16.mxu0 %v1266
  %1842 = vmatpush1.bf16.msra.mxu0 %v1265
  %1843 = vmatprep.subr.bf16.mxu0 %v1268
  %1844 = vmatpush1.bf16.msra.mxu0 %v1267
  %1845 = vmatprep.mubr.bf16.mxu0 %v338
  %1846 = vmatmul.mubr.bf16.gmra.mrb[0].mxu0 %v337
  %v1847 = vpop.f32.mrb[0].mxu0
  %v1848 = vadd.f32 0.0, %v1847
  %v1849 = vpop.f32.mrb[0].mxu0
  %v1850 = vadd.f32 0.0, %v1849
  %v1851 = vpop.f32.mrb[0].mxu0
  %v1852 = vpop.f32.mrb[0].mxu0
  %1853 = vdwg.mxu0
  %1854 = vmatprep.subr.bf16.mxu0 %v1270
  %1855 = vmatpush1.bf16.msra.mxu0 %v1269
  %1856 = vmatprep.subr.bf16.mxu0 %v1272
  %1857 = vmatpush1.bf16.msra.mxu0 %v1271
  %1858 = vmatprep.subr.bf16.mxu0 %v1274
  %1859 = vmatpush1.bf16.msra.mxu0 %v1273
  %1860 = vmatprep.subr.bf16.mxu0 %v1276
  %1861 = vmatpush1.bf16.msra.mxu0 %v1275
  %1862 = vmatprep.subr.bf16.mxu0 %v1278
  %1863 = vmatpush1.bf16.msra.mxu0 %v1277
  %1864 = vmatprep.subr.bf16.mxu0 %v1280
  %1865 = vmatpush1.bf16.msra.mxu0 %v1279
  %1866 = vmatprep.subr.bf16.mxu0 %v1282
  %1867 = vmatpush1.bf16.msra.mxu0 %v1281
  %1868 = vmatprep.subr.bf16.mxu0 %v1284
  %1869 = vmatpush1.bf16.msra.mxu0 %v1283
  %1870 = vmatprep.subr.bf16.mxu0 %v1286
  %1871 = vmatpush1.bf16.msra.mxu0 %v1285
  %1872 = vmatprep.subr.bf16.mxu0 %v1288
  %1873 = vmatpush1.bf16.msra.mxu0 %v1287
  %1874 = vmatprep.subr.bf16.mxu0 %v1290
  %1875 = vmatpush1.bf16.msra.mxu0 %v1289
  %1876 = vmatprep.subr.bf16.mxu0 %v1292
  %1877 = vmatpush1.bf16.msra.mxu0 %v1291
  %1878 = vmatprep.subr.bf16.mxu0 %v1294
  %1879 = vmatpush1.bf16.msra.mxu0 %v1293
  %1880 = vmatprep.subr.bf16.mxu0 %v1296
  %1881 = vmatpush1.bf16.msra.mxu0 %v1295
  %1882 = vmatprep.subr.bf16.mxu0 %v1298
  %1883 = vmatpush1.bf16.msra.mxu0 %v1297
  %1884 = vmatprep.subr.bf16.mxu0 %v1300
  %1885 = vmatpush1.bf16.msra.mxu0 %v1299
  %1886 = vmatprep.mubr.bf16.mxu0 %v340
  %1887 = vmatmul.mubr.bf16.gmra.mrb[0].mxu0 %v339
  %v1888 = vpop.f32.mrb[0].mxu0
  %v1889 = vadd.f32 %v1848, %v1888
  %v1890 = vpop.f32.mrb[0].mxu0
  %v1891 = vadd.f32 %v1850, %v1890
  %v1892 = vpop.f32.mrb[0].mxu0
  %v1893 = vpop.f32.mrb[0].mxu0
  %1894 = vdwg.mxu0
  %1895 = vmatprep.subr.bf16.mxu0 %v1302
  %1896 = vmatpush1.bf16.msra.mxu0 %v1301
  %1897 = vmatprep.subr.bf16.mxu0 %v1304
  %1898 = vmatpush1.bf16.msra.mxu0 %v1303
  %1899 = vmatprep.subr.bf16.mxu0 %v1306
  %1900 = vmatpush1.bf16.msra.mxu0 %v1305
  %1901 = vmatprep.subr.bf16.mxu0 %v1308
  %1902 = vmatpush1.bf16.msra.mxu0 %v1307
  %1903 = vmatprep.subr.bf16.mxu0 %v1310
  %1904 = vmatpush1.bf16.msra.mxu0 %v1309
  %1905 = vmatprep.subr.bf16.mxu0 %v1312
  %1906 = vmatpush1.bf16.msra.mxu0 %v1311
  %1907 = vmatprep.subr.bf16.mxu0 %v1314
  %1908 = vmatpush1.bf16.msra.mxu0 %v1313
  %1909 = vmatprep.subr.bf16.mxu0 %v1316
  %1910 = vmatpush1.bf16.msra.mxu0 %v1315
  %1911 = vmatprep.subr.bf16.mxu0 %v1318
  %1912 = vmatpush1.bf16.msra.mxu0 %v1317
  %1913 = vmatprep.subr.bf16.mxu0 %v1320
  %1914 = vmatpush1.bf16.msra.mxu0 %v1319
  %1915 = vmatprep.subr.bf16.mxu0 %v1322
  %1916 = vmatpush1.bf16.msra.mxu0 %v1321
  %1917 = vmatprep.subr.bf16.mxu0 %v1324
  %1918 = vmatpush1.bf16.msra.mxu0 %v1323
  %1919 = vmatprep.subr.bf16.mxu0 %v1326
  %1920 = vmatpush1.bf16.msra.mxu0 %v1325
  %1921 = vmatprep.subr.bf16.mxu0 %v1328
  %1922 = vmatpush1.bf16.msra.mxu0 %v1327
  %1923 = vmatprep.subr.bf16.mxu0 %v1330
  %1924 = vmatpush1.bf16.msra.mxu0 %v1329
  %1925 = vmatprep.subr.bf16.mxu0 %v1332
  %1926 = vmatpush1.bf16.msra.mxu0 %v1331
  %1927 = vmatprep.mubr.bf16.mxu0 %v342
  %1928 = vmatmul.mubr.bf16.gmra.mrb[0].mxu0 %v341
  %v1929 = vpop.f32.mrb[0].mxu0
  %v1930 = vadd.f32 %v1889, %v1929
  %v1931 = vpop.f32.mrb[0].mxu0
  %v1932 = vadd.f32 %v1891, %v1931
  %v1933 = vpop.f32.mrb[0].mxu0
  %v1934 = vpop.f32.mrb[0].mxu0
  %1935 = vdwg.mxu0
  %1936 = vmatprep.subr.bf16.mxu0 %v1334
  %1937 = vmatpush1.bf16.msra.mxu0 %v1333
  %1938 = vmatprep.subr.bf16.mxu0 %v1336
  %1939 = vmatpush1.bf16.msra.mxu0 %v1335
  %1940 = vmatprep.subr.bf16.mxu0 %v1338
  %1941 = vmatpush1.bf16.msra.mxu0 %v1337
  %1942 = vmatprep.subr.bf16.mxu0 %v1340
  %1943 = vmatpush1.bf16.msra.mxu0 %v1339
  %1944 = vmatprep.subr.bf16.mxu0 %v1342
  %1945 = vmatpush1.bf16.msra.mxu0 %v1341
  %1946 = vmatprep.subr.bf16.mxu0 %v1344
  %1947 = vmatpush1.bf16.msra.mxu0 %v1343
  %1948 = vmatprep.subr.bf16.mxu0 %v1346
  %1949 = vmatpush1.bf16.msra.mxu0 %v1345
  %1950 = vmatprep.subr.bf16.mxu0 %v1348
  %1951 = vmatpush1.bf16.msra.mxu0 %v1347
  %1952 = vmatprep.subr.bf16.mxu0 %v1350
  %1953 = vmatpush1.bf16.msra.mxu0 %v1349
  %1954 = vmatprep.subr.bf16.mxu0 %v1352
  %1955 = vmatpush1.bf16.msra.mxu0 %v1351
  %1956 = vmatprep.subr.bf16.mxu0 %v1354
  %1957 = vmatpush1.bf16.msra.mxu0 %v1353
  %1958 = vmatprep.subr.bf16.mxu0 %v1356
  %1959 = vmatpush1.bf16.msra.mxu0 %v1355
  %1960 = vmatprep.subr.bf16.mxu0 %v1358
  %1961 = vmatpush1.bf16.msra.mxu0 %v1357
  %1962 = vmatprep.subr.bf16.mxu0 %v1360
  %1963 = vmatpush1.bf16.msra.mxu0 %v1359
  %1964 = vmatprep.subr.bf16.mxu0 %v1362
  %1965 = vmatpush1.bf16.msra.mxu0 %v1361
  %1966 = vmatprep.subr.bf16.mxu0 %v1364
  %1967 = vmatpush1.bf16.msra.mxu0 %v1363
  %1968 = vmatprep.mubr.bf16.mxu0 %v344
  %1969 = vmatmul.mubr.bf16.gmra.mrb[0].mxu0 %v343
  %v1970 = vpop.f32.mrb[0].mxu0
  %v1971 = vadd.f32 %v1930, %v1970
  %v1972 = vpop.f32.mrb[0].mxu0
  %v1973 = vadd.f32 %v1932, %v1972
  %v1974 = vpop.f32.mrb[0].mxu0
  %v1975 = vpop.f32.mrb[0].mxu0
  %1976 = vdwg.mxu0
  %1977 = vmatprep.subr.bf16.mxu0 %v1366
  %1978 = vmatpush1.bf16.msra.mxu0 %v1365
  %1979 = vmatprep.subr.bf16.mxu0 %v1368
  %1980 = vmatpush1.bf16.msra.mxu0 %v1367
  %1981 = vmatprep.subr.bf16.mxu0 %v1370
  %1982 = vmatpush1.bf16.msra.mxu0 %v1369
  %1983 = vmatprep.subr.bf16.mxu0 %v1372
  %1984 = vmatpush1.bf16.msra.mxu0 %v1371
  %1985 = vmatprep.subr.bf16.mxu0 %v1374
  %1986 = vmatpush1.bf16.msra.mxu0 %v1373
  %1987 = vmatprep.subr.bf16.mxu0 %v1376
  %1988 = vmatpush1.bf16.msra.mxu0 %v1375
  %1989 = vmatprep.subr.bf16.mxu0 %v1378
  %1990 = vmatpush1.bf16.msra.mxu0 %v1377
  %1991 = vmatprep.subr.bf16.mxu0 %v1380
  %1992 = vmatpush1.bf16.msra.mxu0 %v1379
  %1993 = vmatprep.subr.bf16.mxu0 %v1382
  %1994 = vmatpush1.bf16.msra.mxu0 %v1381
  %1995 = vmatprep.subr.bf16.mxu0 %v1384
  %1996 = vmatpush1.bf16.msra.mxu0 %v1383
  %1997 = vmatprep.subr.bf16.mxu0 %v1386
  %1998 = vmatpush1.bf16.msra.mxu0 %v1385
  %1999 = vmatprep.subr.bf16.mxu0 %v1388
  %2000 = vmatpush1.bf16.msra.mxu0 %v1387
  %2001 = vmatprep.subr.bf16.mxu0 %v1390
  %2002 = vmatpush1.bf16.msra.mxu0 %v1389
  %2003 = vmatprep.subr.bf16.mxu0 %v1392
  %2004 = vmatpush1.bf16.msra.mxu0 %v1391
  %2005 = vmatprep.subr.bf16.mxu0 %v1394
  %2006 = vmatpush1.bf16.msra.mxu0 %v1393
  %2007 = vmatprep.subr.bf16.mxu0 %v1396
  %2008 = vmatpush1.bf16.msra.mxu0 %v1395
  %2009 = vmatprep.mubr.bf16.mxu0 %v346
  %2010 = vmatmul.mubr.bf16.gmra.mrb[0].mxu0 %v345
  %v2011 = vpop.f32.mrb[0].mxu0
  %v2012 = vadd.f32 %v1971, %v2011
  %v2013 = vpop.f32.mrb[0].mxu0
  %v2014 = vadd.f32 %v1973, %v2013
  %v2015 = vpop.f32.mrb[0].mxu0
  %v2016 = vpop.f32.mrb[0].mxu0
  %2017 = vdwg.mxu0
  %2018 = vmatprep.subr.bf16.mxu0 %v1398
  %2019 = vmatpush1.bf16.msra.mxu0 %v1397
  %2020 = vmatprep.subr.bf16.mxu0 %v1400
  %2021 = vmatpush1.bf16.msra.mxu0 %v1399
  %2022 = vmatprep.subr.bf16.mxu0 %v1402
  %2023 = vmatpush1.bf16.msra.mxu0 %v1401
  %2024 = vmatprep.subr.bf16.mxu0 %v1404
  %2025 = vmatpush1.bf16.msra.mxu0 %v1403
  %2026 = vmatprep.subr.bf16.mxu0 %v1406
  %2027 = vmatpush1.bf16.msra.mxu0 %v1405
  %2028 = vmatprep.subr.bf16.mxu0 %v1408
  %2029 = vmatpush1.bf16.msra.mxu0 %v1407
  %2030 = vmatprep.subr.bf16.mxu0 %v1410
  %2031 = vmatpush1.bf16.msra.mxu0 %v1409
  %2032 = vmatprep.subr.bf16.mxu0 %v1412
  %2033 = vmatpush1.bf16.msra.mxu0 %v1411
  %2034 = vmatprep.subr.bf16.mxu0 %v1414
  %2035 = vmatpush1.bf16.msra.mxu0 %v1413
  %2036 = vmatprep.subr.bf16.mxu0 %v1416
  %2037 = vmatpush1.bf16.msra.mxu0 %v1415
  %2038 = vmatprep.subr.bf16.mxu0 %v1418
  %2039 = vmatpush1.bf16.msra.mxu0 %v1417
  %2040 = vmatprep.subr.bf16.mxu0 %v1420
  %2041 = vmatpush1.bf16.msra.mxu0 %v1419
  %2042 = vmatprep.subr.bf16.mxu0 %v1422
  %2043 = vmatpush1.bf16.msra.mxu0 %v1421
  %2044 = vmatprep.subr.bf16.mxu0 %v1424
  %2045 = vmatpush1.bf16.msra.mxu0 %v1423
  %2046 = vmatprep.subr.bf16.mxu0 %v1426
  %2047 = vmatpush1.bf16.msra.mxu0 %v1425
  %2048 = vmatprep.subr.bf16.mxu0 %v1428
  %2049 = vmatpush1.bf16.msra.mxu0 %v1427
  %2050 = vmatprep.mubr.bf16.mxu0 %v348
  %2051 = vmatmul.mubr.bf16.gmra.mrb[0].mxu0 %v347
  %v2052 = vpop.f32.mrb[0].mxu0
  %v2053 = vadd.f32 %v2012, %v2052
  %v2054 = vpop.f32.mrb[0].mxu0
  %v2055 = vadd.f32 %v2014, %v2054
  %v2056 = vpop.f32.mrb[0].mxu0
  %v2057 = vpop.f32.mrb[0].mxu0
  %2058 = vdwg.mxu0
  %2059 = vmatprep.subr.bf16.mxu0 %v1430
  %2060 = vmatpush1.bf16.msra.mxu0 %v1429
  %2061 = vmatprep.subr.bf16.mxu0 %v1432
  %2062 = vmatpush1.bf16.msra.mxu0 %v1431
  %2063 = vmatprep.subr.bf16.mxu0 %v1434
  %2064 = vmatpush1.bf16.msra.mxu0 %v1433
  %2065 = vmatprep.subr.bf16.mxu0 %v1436
  %2066 = vmatpush1.bf16.msra.mxu0 %v1435
  %2067 = vmatprep.subr.bf16.mxu0 %v1438
  %2068 = vmatpush1.bf16.msra.mxu0 %v1437
  %2069 = vmatprep.subr.bf16.mxu0 %v1440
  %2070 = vmatpush1.bf16.msra.mxu0 %v1439
  %2071 = vmatprep.subr.bf16.mxu0 %v1442
  %2072 = vmatpush1.bf16.msra.mxu0 %v1441
  %2073 = vmatprep.subr.bf16.mxu0 %v1444
  %2074 = vmatpush1.bf16.msra.mxu0 %v1443
  %2075 = vmatprep.subr.bf16.mxu0 %v1446
  %2076 = vmatpush1.bf16.msra.mxu0 %v1445
  %2077 = vmatprep.subr.bf16.mxu0 %v1448
  %2078 = vmatpush1.bf16.msra.mxu0 %v1447
  %2079 = vmatprep.subr.bf16.mxu0 %v1450
  %2080 = vmatpush1.bf16.msra.mxu0 %v1449
  %2081 = vmatprep.subr.bf16.mxu0 %v1452
  %2082 = vmatpush1.bf16.msra.mxu0 %v1451
  %2083 = vmatprep.subr.bf16.mxu0 %v1454
  %2084 = vmatpush1.bf16.msra.mxu0 %v1453
  %2085 = vmatprep.subr.bf16.mxu0 %v1456
  %2086 = vmatpush1.bf16.msra.mxu0 %v1455
  %2087 = vmatprep.subr.bf16.mxu0 %v1458
  %2088 = vmatpush1.bf16.msra.mxu0 %v1457
  %2089 = vmatprep.subr.bf16.mxu0 %v1460
  %2090 = vmatpush1.bf16.msra.mxu0 %v1459
  %2091 = vmatprep.mubr.bf16.mxu0 %v350
  %2092 = vmatmul.mubr.bf16.gmra.mrb[0].mxu0 %v349
  %v2093 = vpop.f32.mrb[0].mxu0
  %v2094 = vadd.f32 %v2053, %v2093
  %v2095 = vpop.f32.mrb[0].mxu0
  %v2096 = vadd.f32 %v2055, %v2095
  %v2097 = vpop.f32.mrb[0].mxu0
  %v2098 = vpop.f32.mrb[0].mxu0
  %2099 = vdwg.mxu0
  %2100 = vmatprep.subr.bf16.mxu0 %v1462
  %2101 = vmatpush1.bf16.msra.mxu0 %v1461
  %2102 = vmatprep.subr.bf16.mxu0 %v1464
  %2103 = vmatpush1.bf16.msra.mxu0 %v1463
  %2104 = vmatprep.subr.bf16.mxu0 %v1466
  %2105 = vmatpush1.bf16.msra.mxu0 %v1465
  %2106 = vmatprep.subr.bf16.mxu0 %v1468
  %2107 = vmatpush1.bf16.msra.mxu0 %v1467
  %2108 = vmatprep.subr.bf16.mxu0 %v1470
  %2109 = vmatpush1.bf16.msra.mxu0 %v1469
  %2110 = vmatprep.subr.bf16.mxu0 %v1472
  %2111 = vmatpush1.bf16.msra.mxu0 %v1471
  %2112 = vmatprep.subr.bf16.mxu0 %v1474
  %2113 = vmatpush1.bf16.msra.mxu0 %v1473
  %2114 = vmatprep.subr.bf16.mxu0 %v1476
  %2115 = vmatpush1.bf16.msra.mxu0 %v1475
  %2116 = vmatprep.subr.bf16.mxu0 %v1478
  %2117 = vmatpush1.bf16.msra.mxu0 %v1477
  %2118 = vmatprep.subr.bf16.mxu0 %v1480
  %2119 = vmatpush1.bf16.msra.mxu0 %v1479
  %2120 = vmatprep.subr.bf16.mxu0 %v1482
  %2121 = vmatpush1.bf16.msra.mxu0 %v1481
  %2122 = vmatprep.subr.bf16.mxu0 %v1484
  %2123 = vmatpush1.bf16.msra.mxu0 %v1483
  %2124 = vmatprep.subr.bf16.mxu0 %v1486
  %2125 = vmatpush1.bf16.msra.mxu0 %v1485
  %2126 = vmatprep.subr.bf16.mxu0 %v1488
  %2127 = vmatpush1.bf16.msra.mxu0 %v1487
  %2128 = vmatprep.subr.bf16.mxu0 %v1490
  %2129 = vmatpush1.bf16.msra.mxu0 %v1489
  %2130 = vmatprep.subr.bf16.mxu0 %v1492
  %2131 = vmatpush1.bf16.msra.mxu0 %v1491
  %2132 = vmatprep.mubr.bf16.mxu0 %v352
  %2133 = vmatmul.mubr.bf16.gmra.mrb[0].mxu0 %v351
  %v2134 = vpop.f32.mrb[0].mxu0
  %v2135 = vadd.f32 %v2094, %v2134
  %v2136 = vpop.f32.mrb[0].mxu0
  %v2137 = vadd.f32 %v2096, %v2136
  %v2138 = vpop.f32.mrb[0].mxu0
  %v2139 = vpop.f32.mrb[0].mxu0
  %2140 = vdwg.mxu0
  %2141 = vmatprep.subr.bf16.mxu0 %v1494
  %2142 = vmatpush1.bf16.msra.mxu0 %v1493
  %2143 = vmatprep.subr.bf16.mxu0 %v1496
  %2144 = vmatpush1.bf16.msra.mxu0 %v1495
  %2145 = vmatprep.subr.bf16.mxu0 %v1498
  %2146 = vmatpush1.bf16.msra.mxu0 %v1497
  %2147 = vmatprep.subr.bf16.mxu0 %v1500
  %2148 = vmatpush1.bf16.msra.mxu0 %v1499
  %2149 = vmatprep.subr.bf16.mxu0 %v1502
  %2150 = vmatpush1.bf16.msra.mxu0 %v1501
  %2151 = vmatprep.subr.bf16.mxu0 %v1504
  %2152 = vmatpush1.bf16.msra.mxu0 %v1503
  %2153 = vmatprep.subr.bf16.mxu0 %v1506
  %2154 = vmatpush1.bf16.msra.mxu0 %v1505
  %2155 = vmatprep.subr.bf16.mxu0 %v1508
  %2156 = vmatpush1.bf16.msra.mxu0 %v1507
  %2157 = vmatprep.subr.bf16.mxu0 %v1510
  %2158 = vmatpush1.bf16.msra.mxu0 %v1509
  %2159 = vmatprep.subr.bf16.mxu0 %v1512
  %2160 = vmatpush1.bf16.msra.mxu0 %v1511
  %2161 = vmatprep.subr.bf16.mxu0 %v1514
  %2162 = vmatpush1.bf16.msra.mxu0 %v1513
  %2163 = vmatprep.subr.bf16.mxu0 %v1516
  %2164 = vmatpush1.bf16.msra.mxu0 %v1515
  %2165 = vmatprep.subr.bf16.mxu0 %v1518
  %2166 = vmatpush1.bf16.msra.mxu0 %v1517
  %2167 = vmatprep.subr.bf16.mxu0 %v1520
  %2168 = vmatpush1.bf16.msra.mxu0 %v1519
  %2169 = vmatprep.subr.bf16.mxu0 %v1522
  %2170 = vmatpush1.bf16.msra.mxu0 %v1521
  %2171 = vmatprep.subr.bf16.mxu0 %v1524
  %2172 = vmatpush1.bf16.msra.mxu0 %v1523
  %2173 = vmatprep.mubr.bf16.mxu0 %v354
  %2174 = vmatmul.mubr.bf16.gmra.mrb[0].mxu0 %v353
  %v2175 = vpop.f32.mrb[0].mxu0
  %v2176 = vadd.f32 %v2135, %v2175
  %v2177 = vpop.f32.mrb[0].mxu0
  %v2178 = vadd.f32 %v2137, %v2177
  %v2179 = vpop.f32.mrb[0].mxu0
  %v2180 = vpop.f32.mrb[0].mxu0
  %2181 = vdwg.mxu0
  %v2182 = vpack.c.bf16 %v2176, %v2176
  %v2183 = vpack.c.bf16 %v2178, %v2178
  %v2186 = vunpack.c.l.b16 %v2182
  %v2187 = vunpack.c.l.b16 %v2183
  %v2188 = vpack.c.b16 %v2187, %v2186
  %2190 = vst [vmem:[%s2] sm:$0xff] %v2188
  %v2191 = vrot.slane %v2176, 4
  %v2192 = vadd.f32 %v2176, %v2191
  %v2193 = vrot.slane %v2192, 2
  %v2194 = vadd.f32 %v2192, %v2193
  %v2195 = vrot.slane %v2194, 1
  %v2196 = vadd.f32 %v2194, %v2195
  %v2197 = vrot.slane %v2178, 4
  %v2198 = vadd.f32 %v2178, %v2197
  %v2199 = vrot.slane %v2198, 2
  %v2200 = vadd.f32 %v2198, %v2199
  %v2201 = vrot.slane %v2200, 1
  %v2202 = vadd.f32 %v2200, %v2201
  %v2203 = vmul.f32 %v2176, %v2176
  %v2204 = vmul.f32 %v2178, %v2178
  %v2205 = vrot.slane %v2203, 4
  %v2206 = vadd.f32 %v2203, %v2205
  %v2207 = vrot.slane %v2206, 2
  %v2208 = vadd.f32 %v2206, %v2207
  %v2209 = vrot.slane %v2208, 1
  %v2210 = vadd.f32 %v2208, %v2209
  %v2211 = vrot.slane %v2204, 4
  %v2212 = vadd.f32 %v2204, %v2211
  %v2213 = vrot.slane %v2212, 2
  %v2214 = vadd.f32 %v2212, %v2213
  %v2215 = vrot.slane %v2214, 1
  %v2216 = vadd.f32 %v2214, %v2215
  %vm2217 = vcmask 1040384
  %v2218 = vsel %vm2217, %v2196, %v2210
  %v2219 = vsel %vm2217, %v2202, %v2216
  %v2222 = vcombine.low %v2218, %v2219
  %v2224 = vunpack.c.l.s4 1983009808
  %v2225 = vunpack.c.0.s8 %v2224
  %v2226 = vlaneseq
  %v2227 = vshrl.u32 %v2226, 7
  %v2228 = vsub.s32 %v2225, %v2227
  %v2229 = vrot.slane %v2222, %v2228
  %2231 = vst [vmem:[%s3] sm:$0xf] %v2229
  // Predicated region
  $region10: #{encoder_forward.57} parent=0 // pred_check
    _
  $region11: #{encoder_forward.57} parent=0 // pred_check_branch
    %2233 = sbr.rel (0) target = $region13
  $region12: #{encoder_forward.57} parent=0 // pred_region
    _
  $region13: #{encoder_forward.57} parent=0 // pred_fallthru
    _
  // Predicated region
  $region14: #{encoder_forward.57} parent=0 // pred_check
    _
  $region15: #{encoder_forward.57} parent=0 // pred_check_branch
    %2235 = sbr.rel (0) target = $region17
  $region16: #{encoder_forward.57} parent=0 // pred_region
    _
  $region17: #{encoder_forward.57} parent=0 // pred_fallthru
    _
  // Predicated region
  $region18: #{encoder_forward.57} parent=0 // pred_check
    _
  $region19: #{encoder_forward.57} parent=0 // pred_check_branch
    %2237 = sbr.rel (0) target = $region21
  $region20: #{encoder_forward.57} parent=0 // pred_region
    _
  $region21: #{encoder_forward.57} parent=0 // pred_fallthru
    _
  // Predicated region
  $region22: #{encoder_forward.57} parent=0 // pred_check
    _
  $region23: #{encoder_forward.57} parent=0 // pred_check_branch
    %2239 = sbr.rel (0) target = $region25
  $region24: #{encoder_forward.57} parent=0 // pred_region
    _
  $region25: #{encoder_forward.57} parent=0 // pred_fallthru
    _

</llo_original>
